<compile_context>
chip_gen: v5e
topology: v5e:2x2
jax: 0.10.0
libtpu: 0.0.40
codegen_flags: <defaults>
</compile_context>

<pallas_src>
import jax
import jax.numpy as jnp
from jax.experimental import pallas as pl
from jax.experimental.pallas import tpu as pltpu

EPS = 1e-5          # PyG GraphNorm eps
NEG_SLOPE = 0.2     # PyG GATConv leaky_relu negative slope
NEG_INF = -1e30


# -----------------------------------------------------------------------------
# Fused kernel: 3x (GATConv -> GraphNorm -> [residual] ReLU) -> mean pool -> Linear
# -----------------------------------------------------------------------------
def _make_kernel(num_heads, n_nodes, bb, feat_hidden, feat_out):
    H = num_heads

    def kernel(x_ref, amask_ref, hm_ref,
               w1_ref, sd1_ref, ss1_ref, b1_ref, g1w_ref, g1b_ref, g1m_ref,
               w2_ref, sd2_ref, ss2_ref, b2_ref, g2w_ref, g2b_ref, g2m_ref,
               w3_ref, sd3_ref, ss3_ref, b3_ref, g3w_ref, g3b_ref, g3m_ref,
               wc_ref, bc_ref, out_ref):
        f32, bf16 = jnp.float32, jnp.bfloat16
        inv_n = 1.0 / n_nodes
        # Additive attention mask (0 on edges incl. self-loops, -1e30 elsewhere); broadcast once.
        amask = amask_ref[...][None, None, :, :]          # [1, 1, Nt, Ns]
        # Head-block mask: hm[h, f] = 1 iff feature f belongs to head h.
        hm4 = hm_ref[...][None, :, None, :]               # [1, H, 1, F]

        def gat_layer(h_in, w_ref, sd_ref, ss_ref, b_ref, feat):
            cin = h_in.shape[-1]
            # Fused projection for ALL heads: one MXU pass with M = bb*N rows, bf16 operands.
            hp = jnp.dot(h_in.reshape(bb * n_nodes, cin).astype(bf16),
                         w_ref[...].astype(bf16),
                         preferred_element_type=f32)                      # [bb*N, F]
            hp3_b = hp.reshape(bb, n_nodes, feat).astype(bf16)            # [bb, N, F]

            # Attention target/source terms for all heads with two batched matmuls against
            # block-diagonal selectors -> results land directly in [bb, H, N] (no transposes).
            sd = jnp.broadcast_to(sd_ref[...].astype(bf16)[None], (bb, H, feat))
            ss = jnp.broadcast_to(ss_ref[...].astype(bf16)[None], (bb, H, feat))
            a_dst = jnp.einsum('bhf,bnf->bhn', sd, hp3_b, preferred_element_type=f32)
            a_src = jnp.einsum('bhf,bnf->bhn', ss, hp3_b, preferred_element_type=f32)

            # Scores with heads folded into the batch dims: [bb, H, Nt, Ns].
            e = a_dst[:, :, :, None] + a_src[:, :, None, :]
            e = jnp.where(e > 0, e, NEG_SLOPE * e) + amask                # leaky_relu + mask
            e = e - jnp.max(e, axis=-1, keepdims=True)
            p = jnp.exp(e)                                                # masked entries -> 0
            alpha = p * pl.reciprocal(jnp.sum(p, axis=-1, keepdims=True), approx=True)

            # Aggregation for ALL heads in ONE batched matmul: fold (H, Nt) into rows, keep the
            # full lane-dense feature width, then keep each head's own d-block via hm4.
            # (Costs H x the minimal MXU flops but avoids every sublane relayout / transpose;
            #  the MXU has plenty of slack at these shapes.)
            alpha_r = alpha.reshape(bb, H * n_nodes, n_nodes).astype(bf16)
            agg = jnp.einsum('bij,bjf->bif', alpha_r, hp3_b,
                             preferred_element_type=f32)                  # [bb, H*N, F]
            agg = agg.reshape(bb, H, n_nodes, feat)
            out = jnp.sum(agg * hm4, axis=1)                              # [bb, N, F]
            return out + b_ref[...][None]                                 # + GATConv bias

        def graph_norm(h, w_ref, b_ref, m_ref):
            # PyG GraphNorm over the node axis (biased variance); sublane reductions, no MXU.
            mean = jnp.sum(h, axis=1, keepdims=True) * inv_n              # [bb, 1, F]
            c = h - m_ref[...][None] * mean
            var = jnp.sum(c * c, axis=1, keepdims=True) * inv_n
            return w_ref[...][None] * c * jax.lax.rsqrt(var + EPS) + b_ref[...][None]

        x = x_ref[...]                                                    # [bb, N, C_in]

        # ---- GAT layer 1 (no residual) ----
        h1 = gat_layer(x, w1_ref, sd1_ref, ss1_ref, b1_ref, feat_hidden)
        h1 = jnp.maximum(graph_norm(h1, g1w_ref, g1b_ref, g1m_ref), 0.0)
        # TODO(synk): nn.Dropout / GATConv attention dropout are train-mode only; inference omits them.

        # ---- GAT layer 2 + residual ----
        h2 = gat_layer(h1, w2_ref, sd2_ref, ss2_ref, b2_ref, feat_hidden)
        h2 = jnp.maximum(graph_norm(h2, g2w_ref, g2b_ref, g2m_ref) + h1, 0.0)

        # ---- GAT layer 3 + residual ----
        h3 = gat_layer(h2, w3_ref, sd3_ref, ss3_ref, b3_ref, feat_out)
        h3 = jnp.maximum(graph_norm(h3, g3w_ref, g3b_ref, g3m_ref) + h2, 0.0)

        # ---- global mean pool + classifier Linear(gat_out, 1) ----
        pooled = jnp.sum(h3, axis=1, keepdims=True) * inv_n               # [bb, 1, F]
        logit = jnp.sum(pooled * wc_ref[...][None], axis=-1, keepdims=True)  # [bb, 1, 1]
        out_ref[...] = logit + bc_ref[...][None]

    return kernel


# -----------------------------------------------------------------------------
# Wrapper
# -----------------------------------------------------------------------------
def _block_diag_att(att):
    """[H, d] per-head attention vector -> [H, H*d] block-diagonal selector (host/trace time)."""
    H, d = att.shape
    eye = jnp.eye(H, dtype=att.dtype)
    return (eye[:, :, None] * att[None, :, :]).reshape(H, H * d)


def gat_forward(x, mask, params, *, num_heads, gat_hidden, gat_out, batch_block):
    """x: [B, gat_input, N] (module input layout); mask: [N, N] dense adjacency w/ self-loops."""
    B, c_in, n_nodes = x.shape
    assert gat_hidden % num_heads == 0 and gat_out % num_heads == 0
    assert gat_out == gat_hidden, "residual relu(h + h0) requires gat_out == gat_hidden"
    assert B % batch_block == 0
    assert n_nodes % 8 == 0, "node count should be a multiple of the sublane tile"
    bb = batch_block
    d_h = gat_hidden // num_heads

    x_bnc = jnp.transpose(x, (0, 2, 1)).astype(jnp.float32)     # the module's x.permute(0, 2, 1)
    add_mask = jnp.where(mask > 0, 0.0, NEG_INF).astype(jnp.float32)       # additive mask
    head_mask = jnp.repeat(jnp.eye(num_heads, dtype=jnp.float32), d_h, axis=1)  # [H, H*d]

    p = params
    ordered = [head_mask,
               p["w1"], _block_diag_att(p["a1d"]), _block_diag_att(p["a1s"]),
               p["b1"], p["g1w"], p["g1b"], p["g1m"],
               p["w2"], _block_diag_att(p["a2d"]), _block_diag_att(p["a2s"]),
               p["b2"], p["g2w"], p["g2b"], p["g2m"],
               p["w3"], _block_diag_att(p["a3d"]), _block_diag_att(p["a3s"]),
               p["b3"], p["g3w"], p["g3b"], p["g3m"],
               p["wc"], p["bc"]]

    def shared(arr):
        nd = arr.ndim
        return pl.BlockSpec(arr.shape, lambda i: (0,) * nd)

    in_specs = ([pl.BlockSpec((bb, n_nodes, c_in), lambda i: (i, 0, 0)),
                 shared(add_mask)]
                + [shared(a) for a in ordered])

    out = pl.pallas_call(
        _make_kernel(num_heads, n_nodes, bb, gat_hidden, gat_out),
        out_shape=jax.ShapeDtypeStruct((B, 1, 1), jnp.float32),
        grid=(B // bb,),
        in_specs=in_specs,
        out_specs=pl.BlockSpec((bb, 1, 1), lambda i: (i, 0, 0)),
        compiler_params=pltpu.CompilerParams(dimension_semantics=("parallel",)),
    )(x_bnc, add_mask, *ordered)
    return out.reshape(B, 1)


# -----------------------------------------------------------------------------
# Pure-JAX reference (same math incl. the bf16-operand MXU policy, exact softmax recip)
# -----------------------------------------------------------------------------
def _ref_gat_layer(h, add_mask, w, att_s, att_d, bias, num_heads, d):
    bf16 = jnp.bfloat16
    hp = jnp.dot(h.astype(bf16), w.astype(bf16), preferred_element_type=jnp.float32)
    outs = []
    for k in range(num_heads):
        hkb = hp[:, k * d:(k + 1) * d].astype(bf16)
        a_s = jnp.dot(hkb, att_s[k].astype(bf16), preferred_element_type=jnp.float32)
        a_d = jnp.dot(hkb, att_d[k].astype(bf16), preferred_element_type=jnp.float32)
        e = a_d[:, None] + a_s[None, :]
        e = jnp.where(e > 0, e, NEG_SLOPE * e) + add_mask
        e = e - jnp.max(e, axis=1, keepdims=True)
        pm = jnp.exp(e)
        alpha = pm / jnp.sum(pm, axis=1, keepdims=True)
        outs.append(jnp.dot(alpha.astype(bf16), hkb, preferred_element_type=jnp.float32))
    return jnp.concatenate(outs, axis=1) + bias


def _ref_graph_norm(h, w, b, ms):
    mean = jnp.mean(h, axis=0, keepdims=True)
    c = h - ms * mean
    var = jnp.mean(c * c, axis=0, keepdims=True)
    return w * c / jnp.sqrt(var + EPS) + b


def reference_forward(x, mask, p, *, num_heads, gat_hidden, gat_out):
    B = x.shape[0]
    xb = jnp.transpose(x, (0, 2, 1))
    add_mask = jnp.where(mask > 0, 0.0, NEG_INF).astype(jnp.float32)
    d_h = gat_hidden // num_heads
    d_o = gat_out // num_heads
    logits = []
    for b in range(B):
        h = xb[b]
        h1 = _ref_gat_layer(h, add_mask, p["w1"], p["a1s"], p["a1d"], p["b1"], num_heads, d_h)
        h1 = jnp.maximum(_ref_graph_norm(h1, p["g1w"], p["g1b"], p["g1m"]), 0.0)
        h2 = _ref_gat_layer(h1, add_mask, p["w2"], p["a2s"], p["a2d"], p["b2"], num_heads, d_h)
        h2 = jnp.maximum(_ref_graph_norm(h2, p["g2w"], p["g2b"], p["g2m"]) + h1, 0.0)
        h3 = _ref_gat_layer(h2, add_mask, p["w3"], p["a3s"], p["a3d"], p["b3"], num_heads, d_o)
        h3 = jnp.maximum(_ref_graph_norm(h3, p["g3w"], p["g3b"], p["g3m"]) + h2, 0.0)
        pooled = jnp.mean(h3, axis=0)
        logits.append(jnp.sum(pooled * p["wc"][0]) + p["bc"][0, 0])
    return jnp.stack(logits)[:, None]


if __name__ == "__main__":
    B, N = 16, 16
    GAT_INPUT, GAT_HIDDEN, GAT_OUT, HEADS = 20, 32, 32, 4
    BB = 8                          # bb*N = 128 MXU rows per projection; grid=(2,), "parallel"
    D_H = GAT_HIDDEN // HEADS
    D_O = GAT_OUT // HEADS

    key = jax.random.PRNGKey(0)
    ks = jax.random.split(key, 32)
    f32 = jnp.float32

    def nrm(k, shape, scale=0.1):
        return scale * jax.random.normal(k, shape, f32)

    # module input layout [B, gat_input, N] (forward does the permute)
    x = jax.random.normal(ks[0], (B, GAT_INPUT, N), f32)
    # dense analogue of a shared edge_index + add_self_loops: mask[i, j] = edge j->i, diag = 1
    adj = (jax.random.uniform(ks[1], (N, N)) > 0.5).astype(f32)
    mask = jnp.where(jnp.eye(N, dtype=bool), 1.0, adj)

    params = {
        # GATConv 1: in=GAT_INPUT, out_per_head=D_H, heads concat -> GAT_HIDDEN
        "w1": nrm(ks[2], (GAT_INPUT, GAT_HIDDEN)),
        "a1s": nrm(ks[3], (HEADS, D_H)), "a1d": nrm(ks[4], (HEADS, D_H)),
        "b1": nrm(ks[5], (1, GAT_HIDDEN), 0.05),
        "g1w": 1.0 + nrm(ks[6], (1, GAT_HIDDEN)), "g1b": nrm(ks[7], (1, GAT_HIDDEN), 0.05),
        "g1m": 1.0 + nrm(ks[8], (1, GAT_HIDDEN)),
        # GATConv 2
        "w2": nrm(ks[9], (GAT_HIDDEN, GAT_HIDDEN)),
        "a2s": nrm(ks[10], (HEADS, D_H)), "a2d": nrm(ks[11], (HEADS, D_H)),
        "b2": nrm(ks[12], (1, GAT_HIDDEN), 0.05),
        "g2w": 1.0 + nrm(ks[13], (1, GAT_HIDDEN)), "g2b": nrm(ks[14], (1, GAT_HIDDEN), 0.05),
        "g2m": 1.0 + nrm(ks[15], (1, GAT_HIDDEN)),
        # GATConv 3
        "w3": nrm(ks[16], (GAT_HIDDEN, GAT_OUT)),
        "a3s": nrm(ks[17], (HEADS, D_O)), "a3d": nrm(ks[18], (HEADS, D_O)),
        "b3": nrm(ks[19], (1, GAT_OUT), 0.05),
        "g3w": 1.0 + nrm(ks[20], (1, GAT_OUT)), "g3b": nrm(ks[21], (1, GAT_OUT), 0.05),
        "g3m": 1.0 + nrm(ks[22], (1, GAT_OUT)),
        # classifier Linear(gat_out, 1), weight stored as [1, gat_out] (nn.Linear layout)
        "wc": nrm(ks[23], (1, GAT_OUT)),
        "bc": nrm(ks[24], (1, 1), 0.05),
    }

    out = gat_forward(x, mask, params, num_heads=HEADS, gat_hidden=GAT_HIDDEN,
                      gat_out=GAT_OUT, batch_block=BB)
    out = jax.block_until_ready(out)

    ref = reference_forward(x, mask, params, num_heads=HEADS,
                            gat_hidden=GAT_HIDDEN, gat_out=GAT_OUT)

    assert out.shape == (B, 1), out.shape
    assert bool(jnp.all(jnp.isfinite(out)))
    assert jnp.allclose(out, ref, atol=3e-2, rtol=3e-2), (out, ref)
    print("KERNEL_OK")
</pallas_src>

<mosaic_0001>
module attributes {stable_mosaic.version = 11 : i64} {
  func.func @kernel(%arg0: i32, %arg1: memref<8x16x20xf32, #tpu.memory_space<vmem>>, %arg2: memref<16x16xf32, #tpu.memory_space<vmem>>, %arg3: memref<4x32xf32, #tpu.memory_space<vmem>>, %arg4: memref<20x32xf32, #tpu.memory_space<vmem>>, %arg5: memref<4x32xf32, #tpu.memory_space<vmem>>, %arg6: memref<4x32xf32, #tpu.memory_space<vmem>>, %arg7: memref<1x32xf32, #tpu.memory_space<vmem>>, %arg8: memref<1x32xf32, #tpu.memory_space<vmem>>, %arg9: memref<1x32xf32, #tpu.memory_space<vmem>>, %arg10: memref<1x32xf32, #tpu.memory_space<vmem>>, %arg11: memref<32x32xf32, #tpu.memory_space<vmem>>, %arg12: memref<4x32xf32, #tpu.memory_space<vmem>>, %arg13: memref<4x32xf32, #tpu.memory_space<vmem>>, %arg14: memref<1x32xf32, #tpu.memory_space<vmem>>, %arg15: memref<1x32xf32, #tpu.memory_space<vmem>>, %arg16: memref<1x32xf32, #tpu.memory_space<vmem>>, %arg17: memref<1x32xf32, #tpu.memory_space<vmem>>, %arg18: memref<32x32xf32, #tpu.memory_space<vmem>>, %arg19: memref<4x32xf32, #tpu.memory_space<vmem>>, %arg20: memref<4x32xf32, #tpu.memory_space<vmem>>, %arg21: memref<1x32xf32, #tpu.memory_space<vmem>>, %arg22: memref<1x32xf32, #tpu.memory_space<vmem>>, %arg23: memref<1x32xf32, #tpu.memory_space<vmem>>, %arg24: memref<1x32xf32, #tpu.memory_space<vmem>>, %arg25: memref<1x32xf32, #tpu.memory_space<vmem>>, %arg26: memref<1x1xf32, #tpu.memory_space<vmem>>, %arg27: memref<8x1x1xf32, #tpu.memory_space<vmem>>) attributes {dimension_semantics = [#tpu.dimension_semantics<parallel>], iteration_bounds = array<i64: 2>, scalar_prefetch = 0 : i64, scratch_operands = 0 : i64, tpu.core_type = #tpu.core_type<tc>, window_params = [{transform_indices = @transform_0, window_bounds = array<i64: 8, 16, 20>}, {pipeline_mode = #tpu.pipeline_mode<synchronous>, transform_indices = @transform_1, window_bounds = array<i64: 16, 16>}, {pipeline_mode = #tpu.pipeline_mode<synchronous>, transform_indices = @transform_2, window_bounds = array<i64: 4, 32>}, {pipeline_mode = #tpu.pipeline_mode<synchronous>, transform_indices = @transform_3, window_bounds = array<i64: 20, 32>}, {pipeline_mode = #tpu.pipeline_mode<synchronous>, transform_indices = @transform_4, window_bounds = array<i64: 4, 32>}, {pipeline_mode = #tpu.pipeline_mode<synchronous>, transform_indices = @transform_5, window_bounds = array<i64: 4, 32>}, {pipeline_mode = #tpu.pipeline_mode<synchronous>, transform_indices = @transform_6, window_bounds = array<i64: 1, 32>}, {pipeline_mode = #tpu.pipeline_mode<synchronous>, transform_indices = @transform_7, window_bounds = array<i64: 1, 32>}, {pipeline_mode = #tpu.pipeline_mode<synchronous>, transform_indices = @transform_8, window_bounds = array<i64: 1, 32>}, {pipeline_mode = #tpu.pipeline_mode<synchronous>, transform_indices = @transform_9, window_bounds = array<i64: 1, 32>}, {pipeline_mode = #tpu.pipeline_mode<synchronous>, transform_indices = @transform_10, window_bounds = array<i64: 32, 32>}, {pipeline_mode = #tpu.pipeline_mode<synchronous>, transform_indices = @transform_11, window_bounds = array<i64: 4, 32>}, {pipeline_mode = #tpu.pipeline_mode<synchronous>, transform_indices = @transform_12, window_bounds = array<i64: 4, 32>}, {pipeline_mode = #tpu.pipeline_mode<synchronous>, transform_indices = @transform_13, window_bounds = array<i64: 1, 32>}, {pipeline_mode = #tpu.pipeline_mode<synchronous>, transform_indices = @transform_14, window_bounds = array<i64: 1, 32>}, {pipeline_mode = #tpu.pipeline_mode<synchronous>, transform_indices = @transform_15, window_bounds = array<i64: 1, 32>}, {pipeline_mode = #tpu.pipeline_mode<synchronous>, transform_indices = @transform_16, window_bounds = array<i64: 1, 32>}, {pipeline_mode = #tpu.pipeline_mode<synchronous>, transform_indices = @transform_17, window_bounds = array<i64: 32, 32>}, {pipeline_mode = #tpu.pipeline_mode<synchronous>, transform_indices = @transform_18, window_bounds = array<i64: 4, 32>}, {pipeline_mode = #tpu.pipeline_mode<synchronous>, transform_indices = @transform_19, window_bounds = array<i64: 4, 32>}, {pipeline_mode = #tpu.pipeline_mode<synchronous>, transform_indices = @transform_20, window_bounds = array<i64: 1, 32>}, {pipeline_mode = #tpu.pipeline_mode<synchronous>, transform_indices = @transform_21, window_bounds = array<i64: 1, 32>}, {pipeline_mode = #tpu.pipeline_mode<synchronous>, transform_indices = @transform_22, window_bounds = array<i64: 1, 32>}, {pipeline_mode = #tpu.pipeline_mode<synchronous>, transform_indices = @transform_23, window_bounds = array<i64: 1, 32>}, {pipeline_mode = #tpu.pipeline_mode<synchronous>, transform_indices = @transform_24, window_bounds = array<i64: 1, 32>}, {pipeline_mode = #tpu.pipeline_mode<synchronous>, transform_indices = @transform_25, window_bounds = array<i64: 1, 1>}, {transform_indices = @transform_26, window_bounds = array<i64: 8, 1, 1>}]} {
    %c0 = arith.constant 0 : index
    %c0_0 = arith.constant 0 : index
    %0 = vector.load %arg2[%c0, %c0_0] : memref<16x16xf32, #tpu.memory_space<vmem>>, vector<16x16xf32>
    %1 = vector.shape_cast %0 : vector<16x16xf32> to vector<1x1x16x16xf32>
    %c0_1 = arith.constant 0 : index
    %c0_2 = arith.constant 0 : index
    %2 = vector.load %arg3[%c0_1, %c0_2] : memref<4x32xf32, #tpu.memory_space<vmem>>, vector<4x32xf32>
    %3 = vector.shape_cast %2 : vector<4x32xf32> to vector<1x4x1x32xf32>
    %c0_3 = arith.constant 0 : index
    %c0_4 = arith.constant 0 : index
    %c0_5 = arith.constant 0 : index
    %4 = vector.load %arg1[%c0_3, %c0_4, %c0_5] : memref<8x16x20xf32, #tpu.memory_space<vmem>>, vector<8x16x20xf32>
    %5 = vector.shape_cast %4 : vector<8x16x20xf32> to vector<128x20xf32>
    %6 = arith.truncf %5 : vector<128x20xf32> to vector<128x20xbf16>
    %c0_6 = arith.constant 0 : index
    %c0_7 = arith.constant 0 : index
    %7 = vector.load %arg4[%c0_6, %c0_7] : memref<20x32xf32, #tpu.memory_space<vmem>>, vector<20x32xf32>
    %8 = arith.truncf %7 : vector<20x32xf32> to vector<20x32xbf16>
    %cst = arith.constant dense<0.000000e+00> : vector<128x32xf32>
    %9 = tpu.matmul %6, %8, %cst {dimension_numbers = #tpu.dot_dimension_numbers<[1], [0], [0], [1], [0, 0, 1, 1], [], []>} : vector<128x20xbf16>, vector<20x32xbf16>, vector<128x32xf32> -> vector<128x32xf32>
    %10 = vector.shape_cast %9 : vector<128x32xf32> to vector<8x16x32xf32>
    %11 = arith.truncf %10 : vector<8x16x32xf32> to vector<8x16x32xbf16>
    %c0_8 = arith.constant 0 : index
    %c0_9 = arith.constant 0 : index
    %12 = vector.load %arg5[%c0_8, %c0_9] : memref<4x32xf32, #tpu.memory_space<vmem>>, vector<4x32xf32>
    %13 = arith.truncf %12 : vector<4x32xf32> to vector<4x32xbf16>
    %14 = vector.shape_cast %13 : vector<4x32xbf16> to vector<1x4x32xbf16>
    %15 = vector.shape_cast %14 : vector<1x4x32xbf16> to vector<1x4x32xbf16>
    %16 = vector.broadcast %15 : vector<1x4x32xbf16> to vector<8x4x32xbf16>
    %c0_10 = arith.constant 0 : index
    %c0_11 = arith.constant 0 : index
    %17 = vector.load %arg6[%c0_10, %c0_11] : memref<4x32xf32, #tpu.memory_space<vmem>>, vector<4x32xf32>
    %18 = arith.truncf %17 : vector<4x32xf32> to vector<4x32xbf16>
    %19 = vector.shape_cast %18 : vector<4x32xbf16> to vector<1x4x32xbf16>
    %20 = vector.shape_cast %19 : vector<1x4x32xbf16> to vector<1x4x32xbf16>
    %21 = vector.broadcast %20 : vector<1x4x32xbf16> to vector<8x4x32xbf16>
    "tpu.trace_start"() <{level = 10 : i32, message = "bhf,bnf->bhn"}> : () -> ()
    %cst_12 = arith.constant dense<0.000000e+00> : vector<8x4x16xf32>
    %22 = tpu.matmul %16, %11, %cst_12 {dimension_numbers = #tpu.dot_dimension_numbers<[2], [2], [1], [1], [0, 0, 0, 1, 1, 1], [0], [0]>} : vector<8x4x32xbf16>, vector<8x16x32xbf16>, vector<8x4x16xf32> -> vector<8x4x16xf32>
    %cst_13 = arith.constant dense<0.000000e+00> : vector<8x4x16xf32>
    %23 = tpu.matmul %21, %11, %cst_13 {dimension_numbers = #tpu.dot_dimension_numbers<[2], [2], [1], [1], [0, 0, 0, 1, 1, 1], [0], [0]>} : vector<8x4x32xbf16>, vector<8x16x32xbf16>, vector<8x4x16xf32> -> vector<8x4x16xf32>
    "tpu.trace_stop"() : () -> ()
    %24 = vector.shape_cast %22 : vector<8x4x16xf32> to vector<8x4x16x1xf32>
    %25 = vector.shape_cast %23 : vector<8x4x16xf32> to vector<8x4x1x16xf32>
    %26 = vector.broadcast %24 : vector<8x4x16x1xf32> to vector<8x4x16x16xf32>
    %27 = vector.broadcast %25 : vector<8x4x1x16xf32> to vector<8x4x16x16xf32>
    %28 = arith.addf %26, %27 : vector<8x4x16x16xf32>
    %cst_14 = arith.constant 0.000000e+00 : f32
    %29 = vector.broadcast %cst_14 : f32 to vector<8x4x16x16xf32>
    %30 = arith.cmpf ogt, %28, %29 : vector<8x4x16x16xf32>
    %cst_15 = arith.constant 2.000000e-01 : f32
    %31 = vector.broadcast %cst_15 : f32 to vector<8x4x16x16xf32>
    %32 = arith.mulf %31, %28 : vector<8x4x16x16xf32>
    %33 = arith.select %30, %28, %32 : vector<8x4x16x16xi1>, vector<8x4x16x16xf32>
    %34 = vector.broadcast %1 : vector<1x1x16x16xf32> to vector<8x4x16x16xf32>
    %35 = arith.addf %33, %34 : vector<8x4x16x16xf32>
    %cst_16 = arith.constant dense<0xFF800000> : vector<8x4x16xf32>
    %36 = vector.multi_reduction <maximumf>, %35, %cst_16 [3] : vector<8x4x16x16xf32> to vector<8x4x16xf32>
    %37 = vector.shape_cast %36 : vector<8x4x16xf32> to vector<8x4x16x1xf32>
    %38 = vector.broadcast %37 : vector<8x4x16x1xf32> to vector<8x4x16x16xf32>
    %39 = arith.subf %35, %38 : vector<8x4x16x16xf32>
    %40 = math.exp %39 : vector<8x4x16x16xf32>
    %cst_17 = arith.constant dense<0.000000e+00> : vector<8x4x16xf32>
    %41 = vector.multi_reduction <add>, %40, %cst_17 [3] : vector<8x4x16x16xf32> to vector<8x4x16xf32>
    %42 = vector.shape_cast %41 : vector<8x4x16xf32> to vector<8x4x16x1xf32>
    %43 = tpu.reciprocal %42 {approx = true} : vector<8x4x16x1xf32> -> vector<8x4x16x1xf32>
    %44 = vector.broadcast %43 : vector<8x4x16x1xf32> to vector<8x4x16x16xf32>
    %45 = arith.mulf %40, %44 : vector<8x4x16x16xf32>
    %46 = vector.shape_cast %45 : vector<8x4x16x16xf32> to vector<8x64x16xf32>
    %47 = arith.truncf %46 : vector<8x64x16xf32> to vector<8x64x16xbf16>
    "tpu.trace_start"() <{level = 10 : i32, message = "bij,bjf->bif"}> : () -> ()
    %cst_18 = arith.constant dense<0.000000e+00> : vector<8x64x32xf32>
    %48 = tpu.matmul %47, %11, %cst_18 {dimension_numbers = #tpu.dot_dimension_numbers<[2], [1], [1], [2], [0, 0, 0, 1, 1, 2], [0], [0]>} : vector<8x64x16xbf16>, vector<8x16x32xbf16>, vector<8x64x32xf32> -> vector<8x64x32xf32>
    "tpu.trace_stop"() : () -> ()
    %49 = vector.shape_cast %48 : vector<8x64x32xf32> to vector<8x4x16x32xf32>
    %50 = vector.broadcast %3 : vector<1x4x1x32xf32> to vector<8x4x16x32xf32>
    %51 = arith.mulf %49, %50 : vector<8x4x16x32xf32>
    %cst_19 = arith.constant dense<0.000000e+00> : vector<8x16x32xf32>
    %52 = vector.multi_reduction <add>, %51, %cst_19 [1] : vector<8x4x16x32xf32> to vector<8x16x32xf32>
    %c0_20 = arith.constant 0 : index
    %c0_21 = arith.constant 0 : index
    %53 = vector.load %arg7[%c0_20, %c0_21] : memref<1x32xf32, #tpu.memory_space<vmem>>, vector<1x32xf32>
    %54 = vector.shape_cast %53 : vector<1x32xf32> to vector<1x1x32xf32>
    %55 = vector.broadcast %54 : vector<1x1x32xf32> to vector<8x16x32xf32>
    %56 = arith.addf %52, %55 : vector<8x16x32xf32>
    %cst_22 = arith.constant dense<0.000000e+00> : vector<8x32xf32>
    %57 = vector.multi_reduction <add>, %56, %cst_22 [1] : vector<8x16x32xf32> to vector<8x32xf32>
    %58 = vector.shape_cast %57 : vector<8x32xf32> to vector<8x1x32xf32>
    %cst_23 = arith.constant 6.250000e-02 : f32
    %59 = vector.broadcast %cst_23 : f32 to vector<8x1x32xf32>
    %60 = arith.mulf %58, %59 : vector<8x1x32xf32>
    %c0_24 = arith.constant 0 : index
    %c0_25 = arith.constant 0 : index
    %61 = vector.load %arg10[%c0_24, %c0_25] : memref<1x32xf32, #tpu.memory_space<vmem>>, vector<1x32xf32>
    %62 = vector.shape_cast %61 : vector<1x32xf32> to vector<1x1x32xf32>
    %63 = vector.broadcast %62 : vector<1x1x32xf32> to vector<8x1x32xf32>
    %64 = arith.mulf %63, %60 : vector<8x1x32xf32>
    %65 = vector.broadcast %64 : vector<8x1x32xf32> to vector<8x16x32xf32>
    %66 = arith.subf %56, %65 : vector<8x16x32xf32>
    %67 = arith.mulf %66, %66 : vector<8x16x32xf32>
    %cst_26 = arith.constant dense<0.000000e+00> : vector<8x32xf32>
    %68 = vector.multi_reduction <add>, %67, %cst_26 [1] : vector<8x16x32xf32> to vector<8x32xf32>
    %69 = vector.shape_cast %68 : vector<8x32xf32> to vector<8x1x32xf32>
    %cst_27 = arith.constant 6.250000e-02 : f32
    %70 = vector.broadcast %cst_27 : f32 to vector<8x1x32xf32>
    %71 = arith.mulf %69, %70 : vector<8x1x32xf32>
    %c0_28 = arith.constant 0 : index
    %c0_29 = arith.constant 0 : index
    %72 = vector.load %arg8[%c0_28, %c0_29] : memref<1x32xf32, #tpu.memory_space<vmem>>, vector<1x32xf32>
    %73 = vector.shape_cast %72 : vector<1x32xf32> to vector<1x1x32xf32>
    %74 = vector.broadcast %73 : vector<1x1x32xf32> to vector<8x16x32xf32>
    %75 = arith.mulf %74, %66 : vector<8x16x32xf32>
    %cst_30 = arith.constant 9.99999974E-6 : f32
    %76 = vector.broadcast %cst_30 : f32 to vector<8x1x32xf32>
    %77 = arith.addf %71, %76 : vector<8x1x32xf32>
    %78 = math.rsqrt %77 : vector<8x1x32xf32>
    %79 = vector.broadcast %78 : vector<8x1x32xf32> to vector<8x16x32xf32>
    %80 = arith.mulf %75, %79 : vector<8x16x32xf32>
    %c0_31 = arith.constant 0 : index
    %c0_32 = arith.constant 0 : index
    %81 = vector.load %arg9[%c0_31, %c0_32] : memref<1x32xf32, #tpu.memory_space<vmem>>, vector<1x32xf32>
    %82 = vector.shape_cast %81 : vector<1x32xf32> to vector<1x1x32xf32>
    %83 = vector.broadcast %82 : vector<1x1x32xf32> to vector<8x16x32xf32>
    %84 = arith.addf %80, %83 : vector<8x16x32xf32>
    %cst_33 = arith.constant 0.000000e+00 : f32
    %85 = vector.broadcast %cst_33 : f32 to vector<8x16x32xf32>
    %86 = arith.maximumf %84, %85 : vector<8x16x32xf32>
    %87 = vector.shape_cast %86 : vector<8x16x32xf32> to vector<128x32xf32>
    %88 = arith.truncf %87 : vector<128x32xf32> to vector<128x32xbf16>
    %c0_34 = arith.constant 0 : index
    %c0_35 = arith.constant 0 : index
    %89 = vector.load %arg11[%c0_34, %c0_35] : memref<32x32xf32, #tpu.memory_space<vmem>>, vector<32x32xf32>
    %90 = arith.truncf %89 : vector<32x32xf32> to vector<32x32xbf16>
    %cst_36 = arith.constant dense<0.000000e+00> : vector<128x32xf32>
    %91 = tpu.matmul %88, %90, %cst_36 {dimension_numbers = #tpu.dot_dimension_numbers<[1], [0], [0], [1], [0, 0, 1, 1], [], []>} : vector<128x32xbf16>, vector<32x32xbf16>, vector<128x32xf32> -> vector<128x32xf32>
    %92 = vector.shape_cast %91 : vector<128x32xf32> to vector<8x16x32xf32>
    %93 = arith.truncf %92 : vector<8x16x32xf32> to vector<8x16x32xbf16>
    %c0_37 = arith.constant 0 : index
    %c0_38 = arith.constant 0 : index
    %94 = vector.load %arg12[%c0_37, %c0_38] : memref<4x32xf32, #tpu.memory_space<vmem>>, vector<4x32xf32>
    %95 = arith.truncf %94 : vector<4x32xf32> to vector<4x32xbf16>
    %96 = vector.shape_cast %95 : vector<4x32xbf16> to vector<1x4x32xbf16>
    %97 = vector.shape_cast %96 : vector<1x4x32xbf16> to vector<1x4x32xbf16>
    %98 = vector.broadcast %97 : vector<1x4x32xbf16> to vector<8x4x32xbf16>
    %c0_39 = arith.constant 0 : index
    %c0_40 = arith.constant 0 : index
    %99 = vector.load %arg13[%c0_39, %c0_40] : memref<4x32xf32, #tpu.memory_space<vmem>>, vector<4x32xf32>
    %100 = arith.truncf %99 : vector<4x32xf32> to vector<4x32xbf16>
    %101 = vector.shape_cast %100 : vector<4x32xbf16> to vector<1x4x32xbf16>
    %102 = vector.shape_cast %101 : vector<1x4x32xbf16> to vector<1x4x32xbf16>
    %103 = vector.broadcast %102 : vector<1x4x32xbf16> to vector<8x4x32xbf16>
    "tpu.trace_start"() <{level = 10 : i32, message = "bhf,bnf->bhn"}> : () -> ()
    %cst_41 = arith.constant dense<0.000000e+00> : vector<8x4x16xf32>
    %104 = tpu.matmul %98, %93, %cst_41 {dimension_numbers = #tpu.dot_dimension_numbers<[2], [2], [1], [1], [0, 0, 0, 1, 1, 1], [0], [0]>} : vector<8x4x32xbf16>, vector<8x16x32xbf16>, vector<8x4x16xf32> -> vector<8x4x16xf32>
    %cst_42 = arith.constant dense<0.000000e+00> : vector<8x4x16xf32>
    %105 = tpu.matmul %103, %93, %cst_42 {dimension_numbers = #tpu.dot_dimension_numbers<[2], [2], [1], [1], [0, 0, 0, 1, 1, 1], [0], [0]>} : vector<8x4x32xbf16>, vector<8x16x32xbf16>, vector<8x4x16xf32> -> vector<8x4x16xf32>
    "tpu.trace_stop"() : () -> ()
    %106 = vector.shape_cast %104 : vector<8x4x16xf32> to vector<8x4x16x1xf32>
    %107 = vector.shape_cast %105 : vector<8x4x16xf32> to vector<8x4x1x16xf32>
    %108 = vector.broadcast %106 : vector<8x4x16x1xf32> to vector<8x4x16x16xf32>
    %109 = vector.broadcast %107 : vector<8x4x1x16xf32> to vector<8x4x16x16xf32>
    %110 = arith.addf %108, %109 : vector<8x4x16x16xf32>
    %cst_43 = arith.constant 0.000000e+00 : f32
    %111 = vector.broadcast %cst_43 : f32 to vector<8x4x16x16xf32>
    %112 = arith.cmpf ogt, %110, %111 : vector<8x4x16x16xf32>
    %cst_44 = arith.constant 2.000000e-01 : f32
    %113 = vector.broadcast %cst_44 : f32 to vector<8x4x16x16xf32>
    %114 = arith.mulf %113, %110 : vector<8x4x16x16xf32>
    %115 = arith.select %112, %110, %114 : vector<8x4x16x16xi1>, vector<8x4x16x16xf32>
    %116 = vector.broadcast %1 : vector<1x1x16x16xf32> to vector<8x4x16x16xf32>
    %117 = arith.addf %115, %116 : vector<8x4x16x16xf32>
    %cst_45 = arith.constant dense<0xFF800000> : vector<8x4x16xf32>
    %118 = vector.multi_reduction <maximumf>, %117, %cst_45 [3] : vector<8x4x16x16xf32> to vector<8x4x16xf32>
    %119 = vector.shape_cast %118 : vector<8x4x16xf32> to vector<8x4x16x1xf32>
    %120 = vector.broadcast %119 : vector<8x4x16x1xf32> to vector<8x4x16x16xf32>
    %121 = arith.subf %117, %120 : vector<8x4x16x16xf32>
    %122 = math.exp %121 : vector<8x4x16x16xf32>
    %cst_46 = arith.constant dense<0.000000e+00> : vector<8x4x16xf32>
    %123 = vector.multi_reduction <add>, %122, %cst_46 [3] : vector<8x4x16x16xf32> to vector<8x4x16xf32>
    %124 = vector.shape_cast %123 : vector<8x4x16xf32> to vector<8x4x16x1xf32>
    %125 = tpu.reciprocal %124 {approx = true} : vector<8x4x16x1xf32> -> vector<8x4x16x1xf32>
    %126 = vector.broadcast %125 : vector<8x4x16x1xf32> to vector<8x4x16x16xf32>
    %127 = arith.mulf %122, %126 : vector<8x4x16x16xf32>
    %128 = vector.shape_cast %127 : vector<8x4x16x16xf32> to vector<8x64x16xf32>
    %129 = arith.truncf %128 : vector<8x64x16xf32> to vector<8x64x16xbf16>
    "tpu.trace_start"() <{level = 10 : i32, message = "bij,bjf->bif"}> : () -> ()
    %cst_47 = arith.constant dense<0.000000e+00> : vector<8x64x32xf32>
    %130 = tpu.matmul %129, %93, %cst_47 {dimension_numbers = #tpu.dot_dimension_numbers<[2], [1], [1], [2], [0, 0, 0, 1, 1, 2], [0], [0]>} : vector<8x64x16xbf16>, vector<8x16x32xbf16>, vector<8x64x32xf32> -> vector<8x64x32xf32>
    "tpu.trace_stop"() : () -> ()
    %131 = vector.shape_cast %130 : vector<8x64x32xf32> to vector<8x4x16x32xf32>
    %132 = vector.broadcast %3 : vector<1x4x1x32xf32> to vector<8x4x16x32xf32>
    %133 = arith.mulf %131, %132 : vector<8x4x16x32xf32>
    %cst_48 = arith.constant dense<0.000000e+00> : vector<8x16x32xf32>
    %134 = vector.multi_reduction <add>, %133, %cst_48 [1] : vector<8x4x16x32xf32> to vector<8x16x32xf32>
    %c0_49 = arith.constant 0 : index
    %c0_50 = arith.constant 0 : index
    %135 = vector.load %arg14[%c0_49, %c0_50] : memref<1x32xf32, #tpu.memory_space<vmem>>, vector<1x32xf32>
    %136 = vector.shape_cast %135 : vector<1x32xf32> to vector<1x1x32xf32>
    %137 = vector.broadcast %136 : vector<1x1x32xf32> to vector<8x16x32xf32>
    %138 = arith.addf %134, %137 : vector<8x16x32xf32>
    %cst_51 = arith.constant dense<0.000000e+00> : vector<8x32xf32>
    %139 = vector.multi_reduction <add>, %138, %cst_51 [1] : vector<8x16x32xf32> to vector<8x32xf32>
    %140 = vector.shape_cast %139 : vector<8x32xf32> to vector<8x1x32xf32>
    %cst_52 = arith.constant 6.250000e-02 : f32
    %141 = vector.broadcast %cst_52 : f32 to vector<8x1x32xf32>
    %142 = arith.mulf %140, %141 : vector<8x1x32xf32>
    %c0_53 = arith.constant 0 : index
    %c0_54 = arith.constant 0 : index
    %143 = vector.load %arg17[%c0_53, %c0_54] : memref<1x32xf32, #tpu.memory_space<vmem>>, vector<1x32xf32>
    %144 = vector.shape_cast %143 : vector<1x32xf32> to vector<1x1x32xf32>
    %145 = vector.broadcast %144 : vector<1x1x32xf32> to vector<8x1x32xf32>
    %146 = arith.mulf %145, %142 : vector<8x1x32xf32>
    %147 = vector.broadcast %146 : vector<8x1x32xf32> to vector<8x16x32xf32>
    %148 = arith.subf %138, %147 : vector<8x16x32xf32>
    %149 = arith.mulf %148, %148 : vector<8x16x32xf32>
    %cst_55 = arith.constant dense<0.000000e+00> : vector<8x32xf32>
    %150 = vector.multi_reduction <add>, %149, %cst_55 [1] : vector<8x16x32xf32> to vector<8x32xf32>
    %151 = vector.shape_cast %150 : vector<8x32xf32> to vector<8x1x32xf32>
    %cst_56 = arith.constant 6.250000e-02 : f32
    %152 = vector.broadcast %cst_56 : f32 to vector<8x1x32xf32>
    %153 = arith.mulf %151, %152 : vector<8x1x32xf32>
    %c0_57 = arith.constant 0 : index
    %c0_58 = arith.constant 0 : index
    %154 = vector.load %arg15[%c0_57, %c0_58] : memref<1x32xf32, #tpu.memory_space<vmem>>, vector<1x32xf32>
    %155 = vector.shape_cast %154 : vector<1x32xf32> to vector<1x1x32xf32>
    %156 = vector.broadcast %155 : vector<1x1x32xf32> to vector<8x16x32xf32>
    %157 = arith.mulf %156, %148 : vector<8x16x32xf32>
    %cst_59 = arith.constant 9.99999974E-6 : f32
    %158 = vector.broadcast %cst_59 : f32 to vector<8x1x32xf32>
    %159 = arith.addf %153, %158 : vector<8x1x32xf32>
    %160 = math.rsqrt %159 : vector<8x1x32xf32>
    %161 = vector.broadcast %160 : vector<8x1x32xf32> to vector<8x16x32xf32>
    %162 = arith.mulf %157, %161 : vector<8x16x32xf32>
    %c0_60 = arith.constant 0 : index
    %c0_61 = arith.constant 0 : index
    %163 = vector.load %arg16[%c0_60, %c0_61] : memref<1x32xf32, #tpu.memory_space<vmem>>, vector<1x32xf32>
    %164 = vector.shape_cast %163 : vector<1x32xf32> to vector<1x1x32xf32>
    %165 = vector.broadcast %164 : vector<1x1x32xf32> to vector<8x16x32xf32>
    %166 = arith.addf %162, %165 : vector<8x16x32xf32>
    %167 = arith.addf %166, %86 : vector<8x16x32xf32>
    %cst_62 = arith.constant 0.000000e+00 : f32
    %168 = vector.broadcast %cst_62 : f32 to vector<8x16x32xf32>
    %169 = arith.maximumf %167, %168 : vector<8x16x32xf32>
    %170 = vector.shape_cast %169 : vector<8x16x32xf32> to vector<128x32xf32>
    %171 = arith.truncf %170 : vector<128x32xf32> to vector<128x32xbf16>
    %c0_63 = arith.constant 0 : index
    %c0_64 = arith.constant 0 : index
    %172 = vector.load %arg18[%c0_63, %c0_64] : memref<32x32xf32, #tpu.memory_space<vmem>>, vector<32x32xf32>
    %173 = arith.truncf %172 : vector<32x32xf32> to vector<32x32xbf16>
    %cst_65 = arith.constant dense<0.000000e+00> : vector<128x32xf32>
    %174 = tpu.matmul %171, %173, %cst_65 {dimension_numbers = #tpu.dot_dimension_numbers<[1], [0], [0], [1], [0, 0, 1, 1], [], []>} : vector<128x32xbf16>, vector<32x32xbf16>, vector<128x32xf32> -> vector<128x32xf32>
    %175 = vector.shape_cast %174 : vector<128x32xf32> to vector<8x16x32xf32>
    %176 = arith.truncf %175 : vector<8x16x32xf32> to vector<8x16x32xbf16>
    %c0_66 = arith.constant 0 : index
    %c0_67 = arith.constant 0 : index
    %177 = vector.load %arg19[%c0_66, %c0_67] : memref<4x32xf32, #tpu.memory_space<vmem>>, vector<4x32xf32>
    %178 = arith.truncf %177 : vector<4x32xf32> to vector<4x32xbf16>
    %179 = vector.shape_cast %178 : vector<4x32xbf16> to vector<1x4x32xbf16>
    %180 = vector.shape_cast %179 : vector<1x4x32xbf16> to vector<1x4x32xbf16>
    %181 = vector.broadcast %180 : vector<1x4x32xbf16> to vector<8x4x32xbf16>
    %c0_68 = arith.constant 0 : index
    %c0_69 = arith.constant 0 : index
    %182 = vector.load %arg20[%c0_68, %c0_69] : memref<4x32xf32, #tpu.memory_space<vmem>>, vector<4x32xf32>
    %183 = arith.truncf %182 : vector<4x32xf32> to vector<4x32xbf16>
    %184 = vector.shape_cast %183 : vector<4x32xbf16> to vector<1x4x32xbf16>
    %185 = vector.shape_cast %184 : vector<1x4x32xbf16> to vector<1x4x32xbf16>
    %186 = vector.broadcast %185 : vector<1x4x32xbf16> to vector<8x4x32xbf16>
    "tpu.trace_start"() <{level = 10 : i32, message = "bhf,bnf->bhn"}> : () -> ()
    %cst_70 = arith.constant dense<0.000000e+00> : vector<8x4x16xf32>
    %187 = tpu.matmul %181, %176, %cst_70 {dimension_numbers = #tpu.dot_dimension_numbers<[2], [2], [1], [1], [0, 0, 0, 1, 1, 1], [0], [0]>} : vector<8x4x32xbf16>, vector<8x16x32xbf16>, vector<8x4x16xf32> -> vector<8x4x16xf32>
    %cst_71 = arith.constant dense<0.000000e+00> : vector<8x4x16xf32>
    %188 = tpu.matmul %186, %176, %cst_71 {dimension_numbers = #tpu.dot_dimension_numbers<[2], [2], [1], [1], [0, 0, 0, 1, 1, 1], [0], [0]>} : vector<8x4x32xbf16>, vector<8x16x32xbf16>, vector<8x4x16xf32> -> vector<8x4x16xf32>
    "tpu.trace_stop"() : () -> ()
    %189 = vector.shape_cast %187 : vector<8x4x16xf32> to vector<8x4x16x1xf32>
    %190 = vector.shape_cast %188 : vector<8x4x16xf32> to vector<8x4x1x16xf32>
    %191 = vector.broadcast %189 : vector<8x4x16x1xf32> to vector<8x4x16x16xf32>
    %192 = vector.broadcast %190 : vector<8x4x1x16xf32> to vector<8x4x16x16xf32>
    %193 = arith.addf %191, %192 : vector<8x4x16x16xf32>
    %cst_72 = arith.constant 0.000000e+00 : f32
    %194 = vector.broadcast %cst_72 : f32 to vector<8x4x16x16xf32>
    %195 = arith.cmpf ogt, %193, %194 : vector<8x4x16x16xf32>
    %cst_73 = arith.constant 2.000000e-01 : f32
    %196 = vector.broadcast %cst_73 : f32 to vector<8x4x16x16xf32>
    %197 = arith.mulf %196, %193 : vector<8x4x16x16xf32>
    %198 = arith.select %195, %193, %197 : vector<8x4x16x16xi1>, vector<8x4x16x16xf32>
    %199 = vector.broadcast %1 : vector<1x1x16x16xf32> to vector<8x4x16x16xf32>
    %200 = arith.addf %198, %199 : vector<8x4x16x16xf32>
    %cst_74 = arith.constant dense<0xFF800000> : vector<8x4x16xf32>
    %201 = vector.multi_reduction <maximumf>, %200, %cst_74 [3] : vector<8x4x16x16xf32> to vector<8x4x16xf32>
    %202 = vector.shape_cast %201 : vector<8x4x16xf32> to vector<8x4x16x1xf32>
    %203 = vector.broadcast %202 : vector<8x4x16x1xf32> to vector<8x4x16x16xf32>
    %204 = arith.subf %200, %203 : vector<8x4x16x16xf32>
    %205 = math.exp %204 : vector<8x4x16x16xf32>
    %cst_75 = arith.constant dense<0.000000e+00> : vector<8x4x16xf32>
    %206 = vector.multi_reduction <add>, %205, %cst_75 [3] : vector<8x4x16x16xf32> to vector<8x4x16xf32>
    %207 = vector.shape_cast %206 : vector<8x4x16xf32> to vector<8x4x16x1xf32>
    %208 = tpu.reciprocal %207 {approx = true} : vector<8x4x16x1xf32> -> vector<8x4x16x1xf32>
    %209 = vector.broadcast %208 : vector<8x4x16x1xf32> to vector<8x4x16x16xf32>
    %210 = arith.mulf %205, %209 : vector<8x4x16x16xf32>
    %211 = vector.shape_cast %210 : vector<8x4x16x16xf32> to vector<8x64x16xf32>
    %212 = arith.truncf %211 : vector<8x64x16xf32> to vector<8x64x16xbf16>
    "tpu.trace_start"() <{level = 10 : i32, message = "bij,bjf->bif"}> : () -> ()
    %cst_76 = arith.constant dense<0.000000e+00> : vector<8x64x32xf32>
    %213 = tpu.matmul %212, %176, %cst_76 {dimension_numbers = #tpu.dot_dimension_numbers<[2], [1], [1], [2], [0, 0, 0, 1, 1, 2], [0], [0]>} : vector<8x64x16xbf16>, vector<8x16x32xbf16>, vector<8x64x32xf32> -> vector<8x64x32xf32>
    "tpu.trace_stop"() : () -> ()
    %214 = vector.shape_cast %213 : vector<8x64x32xf32> to vector<8x4x16x32xf32>
    %215 = vector.broadcast %3 : vector<1x4x1x32xf32> to vector<8x4x16x32xf32>
    %216 = arith.mulf %214, %215 : vector<8x4x16x32xf32>
    %cst_77 = arith.constant dense<0.000000e+00> : vector<8x16x32xf32>
    %217 = vector.multi_reduction <add>, %216, %cst_77 [1] : vector<8x4x16x32xf32> to vector<8x16x32xf32>
    %c0_78 = arith.constant 0 : index
    %c0_79 = arith.constant 0 : index
    %218 = vector.load %arg21[%c0_78, %c0_79] : memref<1x32xf32, #tpu.memory_space<vmem>>, vector<1x32xf32>
    %219 = vector.shape_cast %218 : vector<1x32xf32> to vector<1x1x32xf32>
    %220 = vector.broadcast %219 : vector<1x1x32xf32> to vector<8x16x32xf32>
    %221 = arith.addf %217, %220 : vector<8x16x32xf32>
    %cst_80 = arith.constant dense<0.000000e+00> : vector<8x32xf32>
    %222 = vector.multi_reduction <add>, %221, %cst_80 [1] : vector<8x16x32xf32> to vector<8x32xf32>
    %223 = vector.shape_cast %222 : vector<8x32xf32> to vector<8x1x32xf32>
    %cst_81 = arith.constant 6.250000e-02 : f32
    %224 = vector.broadcast %cst_81 : f32 to vector<8x1x32xf32>
    %225 = arith.mulf %223, %224 : vector<8x1x32xf32>
    %c0_82 = arith.constant 0 : index
    %c0_83 = arith.constant 0 : index
    %226 = vector.load %arg24[%c0_82, %c0_83] : memref<1x32xf32, #tpu.memory_space<vmem>>, vector<1x32xf32>
    %227 = vector.shape_cast %226 : vector<1x32xf32> to vector<1x1x32xf32>
    %228 = vector.broadcast %227 : vector<1x1x32xf32> to vector<8x1x32xf32>
    %229 = arith.mulf %228, %225 : vector<8x1x32xf32>
    %230 = vector.broadcast %229 : vector<8x1x32xf32> to vector<8x16x32xf32>
    %231 = arith.subf %221, %230 : vector<8x16x32xf32>
    %232 = arith.mulf %231, %231 : vector<8x16x32xf32>
    %cst_84 = arith.constant dense<0.000000e+00> : vector<8x32xf32>
    %233 = vector.multi_reduction <add>, %232, %cst_84 [1] : vector<8x16x32xf32> to vector<8x32xf32>
    %234 = vector.shape_cast %233 : vector<8x32xf32> to vector<8x1x32xf32>
    %cst_85 = arith.constant 6.250000e-02 : f32
    %235 = vector.broadcast %cst_85 : f32 to vector<8x1x32xf32>
    %236 = arith.mulf %234, %235 : vector<8x1x32xf32>
    %c0_86 = arith.constant 0 : index
    %c0_87 = arith.constant 0 : index
    %237 = vector.load %arg22[%c0_86, %c0_87] : memref<1x32xf32, #tpu.memory_space<vmem>>, vector<1x32xf32>
    %238 = vector.shape_cast %237 : vector<1x32xf32> to vector<1x1x32xf32>
    %239 = vector.broadcast %238 : vector<1x1x32xf32> to vector<8x16x32xf32>
    %240 = arith.mulf %239, %231 : vector<8x16x32xf32>
    %cst_88 = arith.constant 9.99999974E-6 : f32
    %241 = vector.broadcast %cst_88 : f32 to vector<8x1x32xf32>
    %242 = arith.addf %236, %241 : vector<8x1x32xf32>
    %243 = math.rsqrt %242 : vector<8x1x32xf32>
    %244 = vector.broadcast %243 : vector<8x1x32xf32> to vector<8x16x32xf32>
    %245 = arith.mulf %240, %244 : vector<8x16x32xf32>
    %c0_89 = arith.constant 0 : index
    %c0_90 = arith.constant 0 : index
    %246 = vector.load %arg23[%c0_89, %c0_90] : memref<1x32xf32, #tpu.memory_space<vmem>>, vector<1x32xf32>
    %247 = vector.shape_cast %246 : vector<1x32xf32> to vector<1x1x32xf32>
    %248 = vector.broadcast %247 : vector<1x1x32xf32> to vector<8x16x32xf32>
    %249 = arith.addf %245, %248 : vector<8x16x32xf32>
    %250 = arith.addf %249, %169 : vector<8x16x32xf32>
    %cst_91 = arith.constant 0.000000e+00 : f32
    %251 = vector.broadcast %cst_91 : f32 to vector<8x16x32xf32>
    %252 = arith.maximumf %250, %251 : vector<8x16x32xf32>
    %cst_92 = arith.constant dense<0.000000e+00> : vector<8x32xf32>
    %253 = vector.multi_reduction <add>, %252, %cst_92 [1] : vector<8x16x32xf32> to vector<8x32xf32>
    %254 = vector.shape_cast %253 : vector<8x32xf32> to vector<8x1x32xf32>
    %cst_93 = arith.constant 6.250000e-02 : f32
    %255 = vector.broadcast %cst_93 : f32 to vector<8x1x32xf32>
    %256 = arith.mulf %254, %255 : vector<8x1x32xf32>
    %c0_94 = arith.constant 0 : index
    %c0_95 = arith.constant 0 : index
    %257 = vector.load %arg25[%c0_94, %c0_95] : memref<1x32xf32, #tpu.memory_space<vmem>>, vector<1x32xf32>
    %258 = vector.shape_cast %257 : vector<1x32xf32> to vector<1x1x32xf32>
    %259 = vector.broadcast %258 : vector<1x1x32xf32> to vector<8x1x32xf32>
    %260 = arith.mulf %256, %259 : vector<8x1x32xf32>
    %cst_96 = arith.constant dense<0.000000e+00> : vector<8x1xf32>
    %261 = vector.multi_reduction <add>, %260, %cst_96 [2] : vector<8x1x32xf32> to vector<8x1xf32>
    %262 = vector.shape_cast %261 : vector<8x1xf32> to vector<8x1x1xf32>
    %c0_97 = arith.constant 0 : index
    %c0_98 = arith.constant 0 : index
    %263 = vector.load %arg26[%c0_97, %c0_98] : memref<1x1xf32, #tpu.memory_space<vmem>>, vector<1x1xf32>
    %264 = vector.shape_cast %263 : vector<1x1xf32> to vector<1x1x1xf32>
    %265 = vector.broadcast %264 : vector<1x1x1xf32> to vector<8x1x1xf32>
    %266 = arith.addf %262, %265 : vector<8x1x1xf32>
    %c0_99 = arith.constant 0 : index
    %c0_100 = arith.constant 0 : index
    %c0_101 = arith.constant 0 : index
    %267 = vector.load %arg27[%c0_99, %c0_100, %c0_101] : memref<8x1x1xf32, #tpu.memory_space<vmem>>, vector<8x1x1xf32>
    tpu.vector_store %arg27[%c0_99, %c0_100, %c0_101], %266 {strides = array<i32>} : memref<8x1x1xf32, #tpu.memory_space<vmem>>, vector<8x1x1xf32>,
    return
  }
  func.func @transform_0(%arg0: i32) -> (i32, i32, i32) {
    %c0_i32 = arith.constant 0 : i32
    %c0_i32_0 = arith.constant 0 : i32
    %c0_i32_1 = arith.constant 0 : i32
    return %arg0, %c0_i32, %c0_i32_0 : i32, i32, i32
  }
  func.func @transform_1(%arg0: i32) -> (i32, i32) {
    %c0_i32 = arith.constant 0 : i32
    %c0_i32_0 = arith.constant 0 : i32
    %c0_i32_1 = arith.constant 0 : i32
    return %c0_i32, %c0_i32_0 : i32, i32
  }
  func.func @transform_2(%arg0: i32) -> (i32, i32) {
    %c0_i32 = arith.constant 0 : i32
    %c0_i32_0 = arith.constant 0 : i32
    %c0_i32_1 = arith.constant 0 : i32
    return %c0_i32, %c0_i32_0 : i32, i32
  }
  func.func @transform_3(%arg0: i32) -> (i32, i32) {
    %c0_i32 = arith.constant 0 : i32
    %c0_i32_0 = arith.constant 0 : i32
    %c0_i32_1 = arith.constant 0 : i32
    return %c0_i32, %c0_i32_0 : i32, i32
  }
  func.func @transform_4(%arg0: i32) -> (i32, i32) {
    %c0_i32 = arith.constant 0 : i32
    %c0_i32_0 = arith.constant 0 : i32
    %c0_i32_1 = arith.constant 0 : i32
    return %c0_i32, %c0_i32_0 : i32, i32
  }
  func.func @transform_5(%arg0: i32) -> (i32, i32) {
    %c0_i32 = arith.constant 0 : i32
    %c0_i32_0 = arith.constant 0 : i32
    %c0_i32_1 = arith.constant 0 : i32
    return %c0_i32, %c0_i32_0 : i32, i32
  }
  func.func @transform_6(%arg0: i32) -> (i32, i32) {
    %c0_i32 = arith.constant 0 : i32
    %c0_i32_0 = arith.constant 0 : i32
    %c0_i32_1 = arith.constant 0 : i32
    return %c0_i32, %c0_i32_0 : i32, i32
  }
  func.func @transform_7(%arg0: i32) -> (i32, i32) {
    %c0_i32 = arith.constant 0 : i32
    %c0_i32_0 = arith.constant 0 : i32
    %c0_i32_1 = arith.constant 0 : i32
    return %c0_i32, %c0_i32_0 : i32, i32
  }
  func.func @transform_8(%arg0: i32) -> (i32, i32) {
    %c0_i32 = arith.constant 0 : i32
    %c0_i32_0 = arith.constant 0 : i32
    %c0_i32_1 = arith.constant 0 : i32
    return %c0_i32, %c0_i32_0 : i32, i32
  }
  func.func @transform_9(%arg0: i32) -> (i32, i32) {
    %c0_i32 = arith.constant 0 : i32
    %c0_i32_0 = arith.constant 0 : i32
    %c0_i32_1 = arith.constant 0 : i32
    return %c0_i32, %c0_i32_0 : i32, i32
  }
  func.func @transform_10(%arg0: i32) -> (i32, i32) {
    %c0_i32 = arith.constant 0 : i32
    %c0_i32_0 = arith.constant 0 : i32
    %c0_i32_1 = arith.constant 0 : i32
    return %c0_i32, %c0_i32_0 : i32, i32
  }
  func.func @transform_11(%arg0: i32) -> (i32, i32) {
    %c0_i32 = arith.constant 0 : i32
    %c0_i32_0 = arith.constant 0 : i32
    %c0_i32_1 = arith.constant 0 : i32
    return %c0_i32, %c0_i32_0 : i32, i32
  }
  func.func @transform_12(%arg0: i32) -> (i32, i32) {
    %c0_i32 = arith.constant 0 : i32
    %c0_i32_0 = arith.constant 0 : i32
    %c0_i32_1 = arith.constant 0 : i32
    return %c0_i32, %c0_i32_0 : i32, i32
  }
  func.func @transform_13(%arg0: i32) -> (i32, i32) {
    %c0_i32 = arith.constant 0 : i32
    %c0_i32_0 = arith.constant 0 : i32
    %c0_i32_1 = arith.constant 0 : i32
    return %c0_i32, %c0_i32_0 : i32, i32
  }
  func.func @transform_14(%arg0: i32) -> (i32, i32) {
    %c0_i32 = arith.constant 0 : i32
    %c0_i32_0 = arith.constant 0 : i32
    %c0_i32_1 = arith.constant 0 : i32
    return %c0_i32, %c0_i32_0 : i32, i32
  }
  func.func @transform_15(%arg0: i32) -> (i32, i32) {
    %c0_i32 = arith.constant 0 : i32
    %c0_i32_0 = arith.constant 0 : i32
    %c0_i32_1 = arith.constant 0 : i32
    return %c0_i32, %c0_i32_0 : i32, i32
  }
  func.func @transform_16(%arg0: i32) -> (i32, i32) {
    %c0_i32 = arith.constant 0 : i32
    %c0_i32_0 = arith.constant 0 : i32
    %c0_i32_1 = arith.constant 0 : i32
    return %c0_i32, %c0_i32_0 : i32, i32
  }
  func.func @transform_17(%arg0: i32) -> (i32, i32) {
    %c0_i32 = arith.constant 0 : i32
    %c0_i32_0 = arith.constant 0 : i32
    %c0_i32_1 = arith.constant 0 : i32
    return %c0_i32, %c0_i32_0 : i32, i32
  }
  func.func @transform_18(%arg0: i32) -> (i32, i32) {
    %c0_i32 = arith.constant 0 : i32
    %c0_i32_0 = arith.constant 0 : i32
    %c0_i32_1 = arith.constant 0 : i32
    return %c0_i32, %c0_i32_0 : i32, i32
  }
  func.func @transform_19(%arg0: i32) -> (i32, i32) {
    %c0_i32 = arith.constant 0 : i32
    %c0_i32_0 = arith.constant 0 : i32
    %c0_i32_1 = arith.constant 0 : i32
    return %c0_i32, %c0_i32_0 : i32, i32
  }
  func.func @transform_20(%arg0: i32) -> (i32, i32) {
    %c0_i32 = arith.constant 0 : i32
    %c0_i32_0 = arith.constant 0 : i32
    %c0_i32_1 = arith.constant 0 : i32
    return %c0_i32, %c0_i32_0 : i32, i32
  }
  func.func @transform_21(%arg0: i32) -> (i32, i32) {
    %c0_i32 = arith.constant 0 : i32
    %c0_i32_0 = arith.constant 0 : i32
    %c0_i32_1 = arith.constant 0 : i32
    return %c0_i32, %c0_i32_0 : i32, i32
  }
  func.func @transform_22(%arg0: i32) -> (i32, i32) {
    %c0_i32 = arith.constant 0 : i32
    %c0_i32_0 = arith.constant 0 : i32
    %c0_i32_1 = arith.constant 0 : i32
    return %c0_i32, %c0_i32_0 : i32, i32
  }
  func.func @transform_23(%arg0: i32) -> (i32, i32) {
    %c0_i32 = arith.constant 0 : i32
    %c0_i32_0 = arith.constant 0 : i32
    %c0_i32_1 = arith.constant 0 : i32
    return %c0_i32, %c0_i32_0 : i32, i32
  }
  func.func @transform_24(%arg0: i32) -> (i32, i32) {
    %c0_i32 = arith.constant 0 : i32
    %c0_i32_0 = arith.constant 0 : i32
    %c0_i32_1 = arith.constant 0 : i32
    return %c0_i32, %c0_i32_0 : i32, i32
  }
  func.func @transform_25(%arg0: i32) -> (i32, i32) {
    %c0_i32 = arith.constant 0 : i32
    %c0_i32_0 = arith.constant 0 : i32
    %c0_i32_1 = arith.constant 0 : i32
    return %c0_i32, %c0_i32_0 : i32, i32
  }
  func.func @transform_26(%arg0: i32) -> (i32, i32, i32) {
    %c0_i32 = arith.constant 0 : i32
    %c0_i32_0 = arith.constant 0 : i32
    %c0_i32_1 = arith.constant 0 : i32
    return %arg0, %c0_i32, %c0_i32_0 : i32, i32, i32
  }
}

</mosaic_0001>

<llo_original>
// kernel: tpu_custom_call.1
$region0: #{tpu_custom_call.1}
  #allocation0 [shape = 'u32[]', space=smem, size = 0x4, offset = 0x4, fixed_abs, tag = 'smem constant byte address 0x4 - core index']
  #allocation1 [shape = 'u32[72,128]{1,0:T(1,128)}', space=vmem, size = 0x9000, scoped, tag = 'internal scratch']
  #allocation2 [shape = 'f32[1,1]{1,0:T(1,128)S(1)}', space=vmem, size = 0x200, scoped, tag = 'scoped memory for tpu_custom_call.1']
  %s0 = inlined_call_operand.hbm [shape: f32[16,16,20], index: 0, kind: input, shape index: {}]
  %s1 = inlined_call_operand.hbm [shape: f32[16,16], index: 1, kind: input, shape index: {}]
  %s2 = inlined_call_operand.hbm [shape: f32[4,32], index: 2, kind: input, shape index: {}]
  %s3 = inlined_call_operand.hbm [shape: f32[20,32], index: 3, kind: input, shape index: {}]
  %s4 = inlined_call_operand.vmem [shape: f32[4,32], index: 4, kind: input, shape index: {}]
  %s5 = inlined_call_operand.hbm [shape: f32[4,32], index: 5, kind: input, shape index: {}]
  %s6 = inlined_call_operand.hbm [shape: f32[1,32], index: 6, kind: input, shape index: {}]
  %s7 = inlined_call_operand.hbm [shape: f32[1,32], index: 7, kind: input, shape index: {}]
  %s8 = inlined_call_operand.hbm [shape: f32[1,32], index: 8, kind: input, shape index: {}]
  %s9 = inlined_call_operand.hbm [shape: f32[1,32], index: 9, kind: input, shape index: {}]
  %s10 = inlined_call_operand.hbm [shape: f32[32,32], index: 10, kind: input, shape index: {}]
  %s11 = inlined_call_operand.vmem [shape: f32[4,32], index: 11, kind: input, shape index: {}]
  %s12 = inlined_call_operand.vmem [shape: f32[4,32], index: 12, kind: input, shape index: {}]
  %s13 = inlined_call_operand.hbm [shape: f32[1,32], index: 13, kind: input, shape index: {}]
  %s14 = inlined_call_operand.hbm [shape: f32[1,32], index: 14, kind: input, shape index: {}]
  %s15 = inlined_call_operand.hbm [shape: f32[1,32], index: 15, kind: input, shape index: {}]
  %s16 = inlined_call_operand.hbm [shape: f32[1,32], index: 16, kind: input, shape index: {}]
  %s17 = inlined_call_operand.hbm [shape: f32[32,32], index: 17, kind: input, shape index: {}]
  %s18 = inlined_call_operand.vmem [shape: f32[4,32], index: 18, kind: input, shape index: {}]
  %s19 = inlined_call_operand.vmem [shape: f32[4,32], index: 19, kind: input, shape index: {}]
  %s20 = inlined_call_operand.vmem [shape: f32[1,32], index: 20, kind: input, shape index: {}]
  %s21 = inlined_call_operand.vmem [shape: f32[1,32], index: 21, kind: input, shape index: {}]
  %s22 = inlined_call_operand.vmem [shape: f32[1,32], index: 22, kind: input, shape index: {}]
  %s23 = inlined_call_operand.vmem [shape: f32[1,32], index: 23, kind: input, shape index: {}]
  %s24 = inlined_call_operand.vmem [shape: f32[1,32], index: 24, kind: input, shape index: {}]
  %s25 = inlined_call_operand.<no memory space> [shape: f32[1,1], index: 25, kind: input, shape index: {}]
  %s26 = inlined_call_operand.vmem [shape: f32[16,1,1], index: 26, kind: output, shape index: {}]
  %s27 = sld [smem:[#allocation0]]
  $region197: #{tpu_custom_call.1} parent=0
    _
  %s29 = ssub.s32 1, %s27
  %s30 = scalar_select 0, %s29, %s27
  %v31 = vstv %s25
  %32 = vst [vmem:[#allocation2] sm:$0x1] %v31
  $region1: #{tpu_custom_call.1} parent=0
    #allocation3 [shape = 'u8[131072]{0}', space=vmem, size = 0x20000, scoped, tag = 'input window, operand 0']
    #allocation4 [shape = 's32[2]{0}', space=sflag, size = 0x8, scoped, tag = 'scoped memory for tpu_custom_call.1']
    #allocation5 [shape = 'u8[8192]{0}', space=vmem, size = 0x2000, scoped, tag = 'input window, operand 1, single buffered']
    #allocation6 [shape = 's32[1]{0}', space=sflag, size = 0x4, scoped, tag = 'scoped memory for tpu_custom_call.1']
    #allocation7 [shape = 'u8[2048]{0}', space=vmem, size = 0x800, scoped, tag = 'input window, operand 2, single buffered']
    #allocation8 [shape = 'u8[12288]{0}', space=vmem, size = 0x3000, scoped, tag = 'input window, operand 3, single buffered']
    #allocation9 [shape = 's32[1]{0}', space=sflag, size = 0x4, scoped, tag = 'scoped memory for tpu_custom_call.1']
    #allocation10 [shape = 'u8[2048]{0}', space=vmem, size = 0x800, scoped, tag = 'input window, operand 5, single buffered']
    #allocation11 [shape = 'u8[512]{0}', space=vmem, size = 0x400, scoped, tag = 'input window, operand 6, single buffered']
    #allocation12 [shape = 's32[1]{0}', space=sflag, size = 0x4, scoped, tag = 'scoped memory for tpu_custom_call.1']
    #allocation13 [shape = 'u8[512]{0}', space=vmem, size = 0x400, scoped, tag = 'input window, operand 7, single buffered']
    #allocation14 [shape = 'u8[512]{0}', space=vmem, size = 0x400, scoped, tag = 'input window, operand 8, single buffered']
    #allocation15 [shape = 's32[1]{0}', space=sflag, size = 0x4, scoped, tag = 'scoped memory for tpu_custom_call.1']
    #allocation16 [shape = 'u8[512]{0}', space=vmem, size = 0x400, scoped, tag = 'input window, operand 9, single buffered']
    #allocation17 [shape = 'u8[16384]{0}', space=vmem, size = 0x4000, scoped, tag = 'input window, operand 10, single buffered']
    #allocation18 [shape = 's32[1]{0}', space=sflag, size = 0x4, scoped, tag = 'scoped memory for tpu_custom_call.1']
    #allocation19 [shape = 'u8[512]{0}', space=vmem, size = 0x400, scoped, tag = 'input window, operand 13, single buffered']
    #allocation20 [shape = 'u8[512]{0}', space=vmem, size = 0x400, scoped, tag = 'input window, operand 14, single buffered']
    #allocation21 [shape = 's32[1]{0}', space=sflag, size = 0x4, scoped, tag = 'scoped memory for tpu_custom_call.1']
    #allocation22 [shape = 'u8[512]{0}', space=vmem, size = 0x400, scoped, tag = 'input window, operand 15, single buffered']
    #allocation23 [shape = 'u8[512]{0}', space=vmem, size = 0x400, scoped, tag = 'input window, operand 16, single buffered']
    #allocation24 [shape = 's32[1]{0}', space=sflag, size = 0x4, scoped, tag = 'scoped memory for tpu_custom_call.1']
    #allocation25 [shape = 'u8[16384]{0}', space=vmem, size = 0x4000, scoped, tag = 'input window, operand 17, single buffered']
    %33 = vsyncpa [#allocation4], 0
    %s34 = scalar_lea.sflag [#allocation4], 1
    %35 = vsyncpa %s34, 0
    %36 = vsyncpa [#allocation6], 0
    %37 = vsyncpa [#allocation9], 0
    %38 = vsyncpa [#allocation12], 0
    %39 = vsyncpa [#allocation15], 0
    %40 = vsyncpa [#allocation18], 0
    %41 = vsyncpa [#allocation21], 0
    %42 = vsyncpa [#allocation24], 0
    loop: start=0, step=1, limit=4
    $region2: #{tpu_custom_call.1} parent=1 // loop_pre_header
      _
    $region3: #{tpu_custom_call.1} parent=1 // loop_header
      %s44 = sphi 0, %s48
      %p45 = scmp.ge.s32.totalorder %s44, 4
      %s54 = sphi 0, %s56
      %s57 = sphi 0, %s54
      %s58 = sphi 0, %s57
      %s74 = sphi 0, %s58
      %s78 = sphi 0, %s78
      %s80 = sphi 0, %s78
      %s81 = sphi 0, %s80
      %s95 = sphi 0, %s81
      %s99 = sphi 0, %s99
      %s101 = sphi 0, %s99
      %s102 = sphi 0, %s101
      %s116 = sphi 0, %s102
      %s120 = sphi 0, %s120
      %s122 = sphi 0, %s120
      %s123 = sphi 0, %s122
      %s137 = sphi 0, %s123
      %s141 = sphi 0, %s141
      %s143 = sphi 0, %s141
      %s144 = sphi 0, %s143
      %s158 = sphi 0, %s144
      %s162 = sphi 0, %s162
      %s164 = sphi 0, %s162
      %s165 = sphi 0, %s164
      %s179 = sphi 0, %s165
      %s183 = sphi 0, %s183
      %s185 = sphi 0, %s183
      %s186 = sphi 0, %s185
      %s200 = sphi 0, %s186
      %s204 = sphi 0, %s204
      %s206 = sphi 0, %s204
      %s207 = sphi 0, %s206
      %s221 = sphi 0, %s207
      %s225 = sphi 0, %s225
      %s227 = sphi 0, %s225
      %s228 = sphi 0, %s227
      %s242 = sphi 0, %s228
      %s246 = sphi 0, %s246
      %s248 = sphi 0, %s246
      %s249 = sphi 0, %s248
      %s263 = sphi 0, %s249
      %s267 = sphi 0, %s267
      %s269 = sphi 0, %s267
      %s270 = sphi 0, %s269
      %s284 = sphi 0, %s270
      %s288 = sphi 0, %s288
      %s290 = sphi 0, %s288
      %s291 = sphi 0, %s290
      %s305 = sphi 0, %s291
      %s309 = sphi 0, %s309
      %s311 = sphi 0, %s309
      %s312 = sphi 0, %s311
      %s326 = sphi 0, %s312
      %s330 = sphi 0, %s330
      %s332 = sphi 0, %s330
      %s333 = sphi 0, %s332
      %s347 = sphi 0, %s333
      %s351 = sphi 0, %s351
      %s353 = sphi 0, %s351
      %s354 = sphi 0, %s353
      %s368 = sphi 0, %s354
      %s372 = sphi 0, %s372
      %s374 = sphi 0, %s372
      %s375 = sphi 0, %s374
      %s389 = sphi 0, %s375
      %s393 = sphi 0, %s393
      %s395 = sphi 0, %s393
      %s396 = sphi 0, %s395
      %s410 = sphi 0, %s396
      %s414 = sphi 0, %s414
      %s416 = sphi 0, %s414
      %s417 = sphi 0, %s416
      %s431 = sphi 0, %s417
      %s435 = sphi 0, %s435
      %s437 = sphi 0, %s435
      %s438 = sphi 0, %s437
      %s452 = sphi 0, %s438
      %s456 = sphi 0, %s456
      %s458 = sphi 0, %s456
      %s459 = sphi 0, %s458
      %s473 = sphi 0, %s459
      %s477 = sphi 0, %s477
      %s479 = sphi 0, %s477
      %s480 = sphi 0, %s479
      %s494 = sphi 0, %s480
      %s498 = sphi 0, %s498
      %s500 = sphi 0, %s498
      %s501 = sphi 0, %s500
      %s515 = sphi 0, %s501
      %s519 = sphi 0, %s519
      %s521 = sphi 0, %s519
      %s522 = sphi 0, %s521
      %s536 = sphi 0, %s522
      %s540 = sphi 0, %s540
      %s542 = sphi 0, %s540
      %s543 = sphi 0, %s542
      %s557 = sphi 0, %s543
      %s561 = sphi 0, %s561
      %s563 = sphi 0, %s561
      %s564 = sphi 0, %s563
      %s578 = sphi 0, %s564
      %s582 = sphi 0, %s582
      %s584 = sphi 0, %s582
      %s585 = sphi 0, %s584
      %s599 = sphi 0, %s585
      %s605 = sphi 0, %s607
      %s608 = sphi 0, %s605
      %s609 = sphi 0, %s608
      %s625 = sphi 0, %s609
    $region4: #{tpu_custom_call.1} parent=1 // loop_header_branch
      %47 = sbr.rel (%p45) target = $region8
    $region5: #{tpu_custom_call.1} parent=1 // loop_body
      %s49 = ssub.s32 %s44, 1
      %s50 = ssub.s32 %s44, 2
      %s51 = sadd.s32 %s44, 1
      %s52 = ssub.s32 %s44, %s51
      %p53 = scmp.eq.s32.totalorder %s52, 0
      %s55 = sadd.s32 %s54, 1
      %s56 = scalar_select %p53, %s54, %s55
      %p59 = pneg %p53
      %p60 = scmp.eq.s32.totalorder %s44, 1
      %p61 = por %p59, %p60
      %p62 = scmp.ne.s32.totalorder %s54, %s57
      %p63 = scmp.eq.s32.totalorder %s44, 0
      %p64 = por %p62, %p63
      %p65 = scmp.ne.s32.totalorder %s54, %s57
      %p66 = scmp.eq.s32.totalorder %s49, 1
      %p67 = por %p65, %p66
      %p68 = scmp.ne.s32.totalorder %s57, %s58
      %p69 = scmp.eq.s32.totalorder %s49, 0
      %p70 = por %p68, %p69
      %p71 = scmp.ne.s32.totalorder %s57, %s58
      %p72 = scmp.eq.s32.totalorder %s50, 1
      %p73 = por %p71, %p72
      %p75 = scmp.ne.s32.totalorder %s58, %s74
      %p76 = scmp.eq.s32.totalorder %s50, 0
      %p77 = por %p75, %p76
      %s79 = sadd.s32 %s78, 1
      %p82 = scmp.eq.s32.totalorder %s44, 1
      %p83 = scmp.ne.s32.totalorder %s78, %s80
      %p84 = scmp.eq.s32.totalorder %s44, 0
      %p85 = por %p83, %p84
      %p86 = scmp.ne.s32.totalorder %s78, %s80
      %p87 = scmp.eq.s32.totalorder %s49, 1
      %p88 = por %p86, %p87
      %p89 = scmp.ne.s32.totalorder %s80, %s81
      %p90 = scmp.eq.s32.totalorder %s49, 0
      %p91 = por %p89, %p90
      %p92 = scmp.ne.s32.totalorder %s80, %s81
      %p93 = scmp.eq.s32.totalorder %s50, 1
      %p94 = por %p92, %p93
      %p96 = scmp.ne.s32.totalorder %s81, %s95
      %p97 = scmp.eq.s32.totalorder %s50, 0
      %p98 = por %p96, %p97
      %s100 = sadd.s32 %s99, 1
      %p103 = scmp.eq.s32.totalorder %s44, 1
      %p104 = scmp.ne.s32.totalorder %s99, %s101
      %p105 = scmp.eq.s32.totalorder %s44, 0
      %p106 = por %p104, %p105
      %p107 = scmp.ne.s32.totalorder %s99, %s101
      %p108 = scmp.eq.s32.totalorder %s49, 1
      %p109 = por %p107, %p108
      %p110 = scmp.ne.s32.totalorder %s101, %s102
      %p111 = scmp.eq.s32.totalorder %s49, 0
      %p112 = por %p110, %p111
      %p113 = scmp.ne.s32.totalorder %s101, %s102
      %p114 = scmp.eq.s32.totalorder %s50, 1
      %p115 = por %p113, %p114
      %p117 = scmp.ne.s32.totalorder %s102, %s116
      %p118 = scmp.eq.s32.totalorder %s50, 0
      %p119 = por %p117, %p118
      %s121 = sadd.s32 %s120, 1
      %p124 = scmp.eq.s32.totalorder %s44, 1
      %p125 = scmp.ne.s32.totalorder %s120, %s122
      %p126 = scmp.eq.s32.totalorder %s44, 0
      %p127 = por %p125, %p126
      %p128 = scmp.ne.s32.totalorder %s120, %s122
      %p129 = scmp.eq.s32.totalorder %s49, 1
      %p130 = por %p128, %p129
      %p131 = scmp.ne.s32.totalorder %s122, %s123
      %p132 = scmp.eq.s32.totalorder %s49, 0
      %p133 = por %p131, %p132
      %p134 = scmp.ne.s32.totalorder %s122, %s123
      %p135 = scmp.eq.s32.totalorder %s50, 1
      %p136 = por %p134, %p135
      %p138 = scmp.ne.s32.totalorder %s123, %s137
      %p139 = scmp.eq.s32.totalorder %s50, 0
      %p140 = por %p138, %p139
      %s142 = sadd.s32 %s141, 1
      %p145 = scmp.eq.s32.totalorder %s44, 1
      %p146 = scmp.ne.s32.totalorder %s141, %s143
      %p147 = scmp.eq.s32.totalorder %s44, 0
      %p148 = por %p146, %p147
      %p149 = scmp.ne.s32.totalorder %s141, %s143
      %p150 = scmp.eq.s32.totalorder %s49, 1
      %p151 = por %p149, %p150
      %p152 = scmp.ne.s32.totalorder %s143, %s144
      %p153 = scmp.eq.s32.totalorder %s49, 0
      %p154 = por %p152, %p153
      %p155 = scmp.ne.s32.totalorder %s143, %s144
      %p156 = scmp.eq.s32.totalorder %s50, 1
      %p157 = por %p155, %p156
      %p159 = scmp.ne.s32.totalorder %s144, %s158
      %p160 = scmp.eq.s32.totalorder %s50, 0
      %p161 = por %p159, %p160
      %s163 = sadd.s32 %s162, 1
      %p166 = scmp.eq.s32.totalorder %s44, 1
      %p167 = scmp.ne.s32.totalorder %s162, %s164
      %p168 = scmp.eq.s32.totalorder %s44, 0
      %p169 = por %p167, %p168
      %p170 = scmp.ne.s32.totalorder %s162, %s164
      %p171 = scmp.eq.s32.totalorder %s49, 1
      %p172 = por %p170, %p171
      %p173 = scmp.ne.s32.totalorder %s164, %s165
      %p174 = scmp.eq.s32.totalorder %s49, 0
      %p175 = por %p173, %p174
      %p176 = scmp.ne.s32.totalorder %s164, %s165
      %p177 = scmp.eq.s32.totalorder %s50, 1
      %p178 = por %p176, %p177
      %p180 = scmp.ne.s32.totalorder %s165, %s179
      %p181 = scmp.eq.s32.totalorder %s50, 0
      %p182 = por %p180, %p181
      %s184 = sadd.s32 %s183, 1
      %p187 = scmp.eq.s32.totalorder %s44, 1
      %p188 = scmp.ne.s32.totalorder %s183, %s185
      %p189 = scmp.eq.s32.totalorder %s44, 0
      %p190 = por %p188, %p189
      %p191 = scmp.ne.s32.totalorder %s183, %s185
      %p192 = scmp.eq.s32.totalorder %s49, 1
      %p193 = por %p191, %p192
      %p194 = scmp.ne.s32.totalorder %s185, %s186
      %p195 = scmp.eq.s32.totalorder %s49, 0
      %p196 = por %p194, %p195
      %p197 = scmp.ne.s32.totalorder %s185, %s186
      %p198 = scmp.eq.s32.totalorder %s50, 1
      %p199 = por %p197, %p198
      %p201 = scmp.ne.s32.totalorder %s186, %s200
      %p202 = scmp.eq.s32.totalorder %s50, 0
      %p203 = por %p201, %p202
      %s205 = sadd.s32 %s204, 1
      %p208 = scmp.eq.s32.totalorder %s44, 1
      %p209 = scmp.ne.s32.totalorder %s204, %s206
      %p210 = scmp.eq.s32.totalorder %s44, 0
      %p211 = por %p209, %p210
      %p212 = scmp.ne.s32.totalorder %s204, %s206
      %p213 = scmp.eq.s32.totalorder %s49, 1
      %p214 = por %p212, %p213
      %p215 = scmp.ne.s32.totalorder %s206, %s207
      %p216 = scmp.eq.s32.totalorder %s49, 0
      %p217 = por %p215, %p216
      %p218 = scmp.ne.s32.totalorder %s206, %s207
      %p219 = scmp.eq.s32.totalorder %s50, 1
      %p220 = por %p218, %p219
      %p222 = scmp.ne.s32.totalorder %s207, %s221
      %p223 = scmp.eq.s32.totalorder %s50, 0
      %p224 = por %p222, %p223
      %s226 = sadd.s32 %s225, 1
      %p229 = scmp.eq.s32.totalorder %s44, 1
      %p230 = scmp.ne.s32.totalorder %s225, %s227
      %p231 = scmp.eq.s32.totalorder %s44, 0
      %p232 = por %p230, %p231
      %p233 = scmp.ne.s32.totalorder %s225, %s227
      %p234 = scmp.eq.s32.totalorder %s49, 1
      %p235 = por %p233, %p234
      %p236 = scmp.ne.s32.totalorder %s227, %s228
      %p237 = scmp.eq.s32.totalorder %s49, 0
      %p238 = por %p236, %p237
      %p239 = scmp.ne.s32.totalorder %s227, %s228
      %p240 = scmp.eq.s32.totalorder %s50, 1
      %p241 = por %p239, %p240
      %p243 = scmp.ne.s32.totalorder %s228, %s242
      %p244 = scmp.eq.s32.totalorder %s50, 0
      %p245 = por %p243, %p244
      %s247 = sadd.s32 %s246, 1
      %p250 = scmp.eq.s32.totalorder %s44, 1
      %p251 = scmp.ne.s32.totalorder %s246, %s248
      %p252 = scmp.eq.s32.totalorder %s44, 0
      %p253 = por %p251, %p252
      %p254 = scmp.ne.s32.totalorder %s246, %s248
      %p255 = scmp.eq.s32.totalorder %s49, 1
      %p256 = por %p254, %p255
      %p257 = scmp.ne.s32.totalorder %s248, %s249
      %p258 = scmp.eq.s32.totalorder %s49, 0
      %p259 = por %p257, %p258
      %p260 = scmp.ne.s32.totalorder %s248, %s249
      %p261 = scmp.eq.s32.totalorder %s50, 1
      %p262 = por %p260, %p261
      %p264 = scmp.ne.s32.totalorder %s249, %s263
      %p265 = scmp.eq.s32.totalorder %s50, 0
      %p266 = por %p264, %p265
      %s268 = sadd.s32 %s267, 1
      %p271 = scmp.eq.s32.totalorder %s44, 1
      %p272 = scmp.ne.s32.totalorder %s267, %s269
      %p273 = scmp.eq.s32.totalorder %s44, 0
      %p274 = por %p272, %p273
      %p275 = scmp.ne.s32.totalorder %s267, %s269
      %p276 = scmp.eq.s32.totalorder %s49, 1
      %p277 = por %p275, %p276
      %p278 = scmp.ne.s32.totalorder %s269, %s270
      %p279 = scmp.eq.s32.totalorder %s49, 0
      %p280 = por %p278, %p279
      %p281 = scmp.ne.s32.totalorder %s269, %s270
      %p282 = scmp.eq.s32.totalorder %s50, 1
      %p283 = por %p281, %p282
      %p285 = scmp.ne.s32.totalorder %s270, %s284
      %p286 = scmp.eq.s32.totalorder %s50, 0
      %p287 = por %p285, %p286
      %s289 = sadd.s32 %s288, 1
      %p292 = scmp.eq.s32.totalorder %s44, 1
      %p293 = scmp.ne.s32.totalorder %s288, %s290
      %p294 = scmp.eq.s32.totalorder %s44, 0
      %p295 = por %p293, %p294
      %p296 = scmp.ne.s32.totalorder %s288, %s290
      %p297 = scmp.eq.s32.totalorder %s49, 1
      %p298 = por %p296, %p297
      %p299 = scmp.ne.s32.totalorder %s290, %s291
      %p300 = scmp.eq.s32.totalorder %s49, 0
      %p301 = por %p299, %p300
      %p302 = scmp.ne.s32.totalorder %s290, %s291
      %p303 = scmp.eq.s32.totalorder %s50, 1
      %p304 = por %p302, %p303
      %p306 = scmp.ne.s32.totalorder %s291, %s305
      %p307 = scmp.eq.s32.totalorder %s50, 0
      %p308 = por %p306, %p307
      %s310 = sadd.s32 %s309, 1
      %p313 = scmp.eq.s32.totalorder %s44, 1
      %p314 = scmp.ne.s32.totalorder %s309, %s311
      %p315 = scmp.eq.s32.totalorder %s44, 0
      %p316 = por %p314, %p315
      %p317 = scmp.ne.s32.totalorder %s309, %s311
      %p318 = scmp.eq.s32.totalorder %s49, 1
      %p319 = por %p317, %p318
      %p320 = scmp.ne.s32.totalorder %s311, %s312
      %p321 = scmp.eq.s32.totalorder %s49, 0
      %p322 = por %p320, %p321
      %p323 = scmp.ne.s32.totalorder %s311, %s312
      %p324 = scmp.eq.s32.totalorder %s50, 1
      %p325 = por %p323, %p324
      %p327 = scmp.ne.s32.totalorder %s312, %s326
      %p328 = scmp.eq.s32.totalorder %s50, 0
      %p329 = por %p327, %p328
      %s331 = sadd.s32 %s330, 1
      %p334 = scmp.eq.s32.totalorder %s44, 1
      %p335 = scmp.ne.s32.totalorder %s330, %s332
      %p336 = scmp.eq.s32.totalorder %s44, 0
      %p337 = por %p335, %p336
      %p338 = scmp.ne.s32.totalorder %s330, %s332
      %p339 = scmp.eq.s32.totalorder %s49, 1
      %p340 = por %p338, %p339
      %p341 = scmp.ne.s32.totalorder %s332, %s333
      %p342 = scmp.eq.s32.totalorder %s49, 0
      %p343 = por %p341, %p342
      %p344 = scmp.ne.s32.totalorder %s332, %s333
      %p345 = scmp.eq.s32.totalorder %s50, 1
      %p346 = por %p344, %p345
      %p348 = scmp.ne.s32.totalorder %s333, %s347
      %p349 = scmp.eq.s32.totalorder %s50, 0
      %p350 = por %p348, %p349
      %s352 = sadd.s32 %s351, 1
      %p355 = scmp.eq.s32.totalorder %s44, 1
      %p356 = scmp.ne.s32.totalorder %s351, %s353
      %p357 = scmp.eq.s32.totalorder %s44, 0
      %p358 = por %p356, %p357
      %p359 = scmp.ne.s32.totalorder %s351, %s353
      %p360 = scmp.eq.s32.totalorder %s49, 1
      %p361 = por %p359, %p360
      %p362 = scmp.ne.s32.totalorder %s353, %s354
      %p363 = scmp.eq.s32.totalorder %s49, 0
      %p364 = por %p362, %p363
      %p365 = scmp.ne.s32.totalorder %s353, %s354
      %p366 = scmp.eq.s32.totalorder %s50, 1
      %p367 = por %p365, %p366
      %p369 = scmp.ne.s32.totalorder %s354, %s368
      %p370 = scmp.eq.s32.totalorder %s50, 0
      %p371 = por %p369, %p370
      %s373 = sadd.s32 %s372, 1
      %p376 = scmp.eq.s32.totalorder %s44, 1
      %p377 = scmp.ne.s32.totalorder %s372, %s374
      %p378 = scmp.eq.s32.totalorder %s44, 0
      %p379 = por %p377, %p378
      %p380 = scmp.ne.s32.totalorder %s372, %s374
      %p381 = scmp.eq.s32.totalorder %s49, 1
      %p382 = por %p380, %p381
      %p383 = scmp.ne.s32.totalorder %s374, %s375
      %p384 = scmp.eq.s32.totalorder %s49, 0
      %p385 = por %p383, %p384
      %p386 = scmp.ne.s32.totalorder %s374, %s375
      %p387 = scmp.eq.s32.totalorder %s50, 1
      %p388 = por %p386, %p387
      %p390 = scmp.ne.s32.totalorder %s375, %s389
      %p391 = scmp.eq.s32.totalorder %s50, 0
      %p392 = por %p390, %p391
      %s394 = sadd.s32 %s393, 1
      %p397 = scmp.eq.s32.totalorder %s44, 1
      %p398 = scmp.ne.s32.totalorder %s393, %s395
      %p399 = scmp.eq.s32.totalorder %s44, 0
      %p400 = por %p398, %p399
      %p401 = scmp.ne.s32.totalorder %s393, %s395
      %p402 = scmp.eq.s32.totalorder %s49, 1
      %p403 = por %p401, %p402
      %p404 = scmp.ne.s32.totalorder %s395, %s396
      %p405 = scmp.eq.s32.totalorder %s49, 0
      %p406 = por %p404, %p405
      %p407 = scmp.ne.s32.totalorder %s395, %s396
      %p408 = scmp.eq.s32.totalorder %s50, 1
      %p409 = por %p407, %p408
      %p411 = scmp.ne.s32.totalorder %s396, %s410
      %p412 = scmp.eq.s32.totalorder %s50, 0
      %p413 = por %p411, %p412
      %s415 = sadd.s32 %s414, 1
      %p418 = scmp.eq.s32.totalorder %s44, 1
      %p419 = scmp.ne.s32.totalorder %s414, %s416
      %p420 = scmp.eq.s32.totalorder %s44, 0
      %p421 = por %p419, %p420
      %p422 = scmp.ne.s32.totalorder %s414, %s416
      %p423 = scmp.eq.s32.totalorder %s49, 1
      %p424 = por %p422, %p423
      %p425 = scmp.ne.s32.totalorder %s416, %s417
      %p426 = scmp.eq.s32.totalorder %s49, 0
      %p427 = por %p425, %p426
      %p428 = scmp.ne.s32.totalorder %s416, %s417
      %p429 = scmp.eq.s32.totalorder %s50, 1
      %p430 = por %p428, %p429
      %p432 = scmp.ne.s32.totalorder %s417, %s431
      %p433 = scmp.eq.s32.totalorder %s50, 0
      %p434 = por %p432, %p433
      %s436 = sadd.s32 %s435, 1
      %p439 = scmp.eq.s32.totalorder %s44, 1
      %p440 = scmp.ne.s32.totalorder %s435, %s437
      %p441 = scmp.eq.s32.totalorder %s44, 0
      %p442 = por %p440, %p441
      %p443 = scmp.ne.s32.totalorder %s435, %s437
      %p444 = scmp.eq.s32.totalorder %s49, 1
      %p445 = por %p443, %p444
      %p446 = scmp.ne.s32.totalorder %s437, %s438
      %p447 = scmp.eq.s32.totalorder %s49, 0
      %p448 = por %p446, %p447
      %p449 = scmp.ne.s32.totalorder %s437, %s438
      %p450 = scmp.eq.s32.totalorder %s50, 1
      %p451 = por %p449, %p450
      %p453 = scmp.ne.s32.totalorder %s438, %s452
      %p454 = scmp.eq.s32.totalorder %s50, 0
      %p455 = por %p453, %p454
      %s457 = sadd.s32 %s456, 1
      %p460 = scmp.eq.s32.totalorder %s44, 1
      %p461 = scmp.ne.s32.totalorder %s456, %s458
      %p462 = scmp.eq.s32.totalorder %s44, 0
      %p463 = por %p461, %p462
      %p464 = scmp.ne.s32.totalorder %s456, %s458
      %p465 = scmp.eq.s32.totalorder %s49, 1
      %p466 = por %p464, %p465
      %p467 = scmp.ne.s32.totalorder %s458, %s459
      %p468 = scmp.eq.s32.totalorder %s49, 0
      %p469 = por %p467, %p468
      %p470 = scmp.ne.s32.totalorder %s458, %s459
      %p471 = scmp.eq.s32.totalorder %s50, 1
      %p472 = por %p470, %p471
      %p474 = scmp.ne.s32.totalorder %s459, %s473
      %p475 = scmp.eq.s32.totalorder %s50, 0
      %p476 = por %p474, %p475
      %s478 = sadd.s32 %s477, 1
      %p481 = scmp.eq.s32.totalorder %s44, 1
      %p482 = scmp.ne.s32.totalorder %s477, %s479
      %p483 = scmp.eq.s32.totalorder %s44, 0
      %p484 = por %p482, %p483
      %p485 = scmp.ne.s32.totalorder %s477, %s479
      %p486 = scmp.eq.s32.totalorder %s49, 1
      %p487 = por %p485, %p486
      %p488 = scmp.ne.s32.totalorder %s479, %s480
      %p489 = scmp.eq.s32.totalorder %s49, 0
      %p490 = por %p488, %p489
      %p491 = scmp.ne.s32.totalorder %s479, %s480
      %p492 = scmp.eq.s32.totalorder %s50, 1
      %p493 = por %p491, %p492
      %p495 = scmp.ne.s32.totalorder %s480, %s494
      %p496 = scmp.eq.s32.totalorder %s50, 0
      %p497 = por %p495, %p496
      %s499 = sadd.s32 %s498, 1
      %p502 = scmp.eq.s32.totalorder %s44, 1
      %p503 = scmp.ne.s32.totalorder %s498, %s500
      %p504 = scmp.eq.s32.totalorder %s44, 0
      %p505 = por %p503, %p504
      %p506 = scmp.ne.s32.totalorder %s498, %s500
      %p507 = scmp.eq.s32.totalorder %s49, 1
      %p508 = por %p506, %p507
      %p509 = scmp.ne.s32.totalorder %s500, %s501
      %p510 = scmp.eq.s32.totalorder %s49, 0
      %p511 = por %p509, %p510
      %p512 = scmp.ne.s32.totalorder %s500, %s501
      %p513 = scmp.eq.s32.totalorder %s50, 1
      %p514 = por %p512, %p513
      %p516 = scmp.ne.s32.totalorder %s501, %s515
      %p517 = scmp.eq.s32.totalorder %s50, 0
      %p518 = por %p516, %p517
      %s520 = sadd.s32 %s519, 1
      %p523 = scmp.eq.s32.totalorder %s44, 1
      %p524 = scmp.ne.s32.totalorder %s519, %s521
      %p525 = scmp.eq.s32.totalorder %s44, 0
      %p526 = por %p524, %p525
      %p527 = scmp.ne.s32.totalorder %s519, %s521
      %p528 = scmp.eq.s32.totalorder %s49, 1
      %p529 = por %p527, %p528
      %p530 = scmp.ne.s32.totalorder %s521, %s522
      %p531 = scmp.eq.s32.totalorder %s49, 0
      %p532 = por %p530, %p531
      %p533 = scmp.ne.s32.totalorder %s521, %s522
      %p534 = scmp.eq.s32.totalorder %s50, 1
      %p535 = por %p533, %p534
      %p537 = scmp.ne.s32.totalorder %s522, %s536
      %p538 = scmp.eq.s32.totalorder %s50, 0
      %p539 = por %p537, %p538
      %s541 = sadd.s32 %s540, 1
      %p544 = scmp.eq.s32.totalorder %s44, 1
      %p545 = scmp.ne.s32.totalorder %s540, %s542
      %p546 = scmp.eq.s32.totalorder %s44, 0
      %p547 = por %p545, %p546
      %p548 = scmp.ne.s32.totalorder %s540, %s542
      %p549 = scmp.eq.s32.totalorder %s49, 1
      %p550 = por %p548, %p549
      %p551 = scmp.ne.s32.totalorder %s542, %s543
      %p552 = scmp.eq.s32.totalorder %s49, 0
      %p553 = por %p551, %p552
      %p554 = scmp.ne.s32.totalorder %s542, %s543
      %p555 = scmp.eq.s32.totalorder %s50, 1
      %p556 = por %p554, %p555
      %p558 = scmp.ne.s32.totalorder %s543, %s557
      %p559 = scmp.eq.s32.totalorder %s50, 0
      %p560 = por %p558, %p559
      %s562 = sadd.s32 %s561, 1
      %p565 = scmp.eq.s32.totalorder %s44, 1
      %p566 = scmp.ne.s32.totalorder %s561, %s563
      %p567 = scmp.eq.s32.totalorder %s44, 0
      %p568 = por %p566, %p567
      %p569 = scmp.ne.s32.totalorder %s561, %s563
      %p570 = scmp.eq.s32.totalorder %s49, 1
      %p571 = por %p569, %p570
      %p572 = scmp.ne.s32.totalorder %s563, %s564
      %p573 = scmp.eq.s32.totalorder %s49, 0
      %p574 = por %p572, %p573
      %p575 = scmp.ne.s32.totalorder %s563, %s564
      %p576 = scmp.eq.s32.totalorder %s50, 1
      %p577 = por %p575, %p576
      %p579 = scmp.ne.s32.totalorder %s564, %s578
      %p580 = scmp.eq.s32.totalorder %s50, 0
      %p581 = por %p579, %p580
      %s583 = sadd.s32 %s582, 1
      %p586 = scmp.eq.s32.totalorder %s44, 1
      %p587 = scmp.ne.s32.totalorder %s582, %s584
      %p588 = scmp.eq.s32.totalorder %s44, 0
      %p589 = por %p587, %p588
      %p590 = scmp.ne.s32.totalorder %s582, %s584
      %p591 = scmp.eq.s32.totalorder %s49, 1
      %p592 = por %p590, %p591
      %p593 = scmp.ne.s32.totalorder %s584, %s585
      %p594 = scmp.eq.s32.totalorder %s49, 0
      %p595 = por %p593, %p594
      %p596 = scmp.ne.s32.totalorder %s584, %s585
      %p597 = scmp.eq.s32.totalorder %s50, 1
      %p598 = por %p596, %p597
      %p600 = scmp.ne.s32.totalorder %s585, %s599
      %p601 = scmp.eq.s32.totalorder %s50, 0
      %p602 = por %p600, %p601
      %s603 = ssub.s32 %s44, %s51
      %p604 = scmp.eq.s32.totalorder %s603, 0
      %s606 = sadd.s32 %s605, 1
      %s607 = scalar_select %p604, %s605, %s606
      %p610 = pneg %p604
      %p611 = scmp.eq.s32.totalorder %s44, 1
      %p612 = por %p610, %p611
      %p613 = scmp.ne.s32.totalorder %s605, %s608
      %p614 = scmp.eq.s32.totalorder %s44, 0
      %p615 = por %p613, %p614
      %p616 = scmp.ne.s32.totalorder %s605, %s608
      %p617 = scmp.eq.s32.totalorder %s49, 1
      %p618 = por %p616, %p617
      %p619 = scmp.ne.s32.totalorder %s608, %s609
      %p620 = scmp.eq.s32.totalorder %s49, 0
      %p621 = por %p619, %p620
      %p622 = scmp.ne.s32.totalorder %s608, %s609
      %p623 = scmp.eq.s32.totalorder %s50, 1
      %p624 = por %p622, %p623
      %p626 = scmp.ne.s32.totalorder %s609, %s625
      %p627 = scmp.eq.s32.totalorder %s50, 0
      %p628 = por %p626, %p627
      %p629 = scmp.le.s32.totalorder 1, %s44
      %p630 = scmp.lt.s32.totalorder %s44, 3
      %p631 = pnand %p629, %p630
      %p632 = pneg %p631
      // Predicated region
      $region9: #{tpu_custom_call.1} parent=5 // pred_check
        _
      $region10: #{tpu_custom_call.1} parent=5 // pred_check_branch
        %634 = sbr.rel (%p631) target = $region12
      $region11: #{tpu_custom_call.1} parent=5 // pred_region
        %s635 = ssub.s32 %s44, 1
        // Predicated region
        $region13: #{tpu_custom_call.1} parent=11 // pred_check
          %p636 = pneg %p91
        $region14: #{tpu_custom_call.1} parent=11 // pred_check_branch
          %638 = sbr.rel (%p636) target = $region16
        $region15: #{tpu_custom_call.1} parent=11 // pred_region
          %640 = vsyncadd [#allocation6], 0
          %s641 = sshll.u32 %s1, 4
          %s642 = int_to_ptr.hbm [resolvable:$true] %s641
          %s643 = sshll.u32 [#allocation5], 4
          %s644 = int_to_ptr.vmem [resolvable:$true] %s643
          %649 = dma.hbm_to_vmem [thread:$0]  %s642, 256, %s644, [#allocation6], 128, 128, 8
        $region16: #{tpu_custom_call.1} parent=11 // pred_fallthru
          _
        // Predicated region
        $region17: #{tpu_custom_call.1} parent=11 // pred_check
          %p650 = pneg %p112
        $region18: #{tpu_custom_call.1} parent=11 // pred_check_branch
          %652 = sbr.rel (%p650) target = $region20
        $region19: #{tpu_custom_call.1} parent=11 // pred_region
          %654 = vsyncadd [#allocation6], 0
          %s656 = sshll.u32 %s2, 4
          %s657 = int_to_ptr.hbm [resolvable:$true] %s656
          %s658 = sshll.u32 [#allocation7], 4
          %s659 = int_to_ptr.vmem [resolvable:$true] %s658
          %661 = dma.hbm_to_vmem [thread:$0]  %s657, 64, %s659, [#allocation6]
        $region20: #{tpu_custom_call.1} parent=11 // pred_fallthru
          _
        // Predicated region
        $region21: #{tpu_custom_call.1} parent=11 // pred_check
          %p662 = pneg %p133
        $region22: #{tpu_custom_call.1} parent=11 // pred_check_branch
          %664 = sbr.rel (%p662) target = $region24
        $region23: #{tpu_custom_call.1} parent=11 // pred_region
          %666 = vsyncadd [#allocation9], 0
          %s667 = sshll.u32 %s3, 4
          %s668 = int_to_ptr.hbm [resolvable:$true] %s667
          %s669 = sshll.u32 [#allocation8], 4
          %s670 = int_to_ptr.vmem [resolvable:$true] %s669
          %675 = dma.hbm_to_vmem [thread:$0]  %s668, 384, %s670, [#allocation9], 128, 128, 8
        $region24: #{tpu_custom_call.1} parent=11 // pred_fallthru
          _
        // Predicated region
        $region25: #{tpu_custom_call.1} parent=11 // pred_check
          %p676 = pneg %p154
        $region26: #{tpu_custom_call.1} parent=11 // pred_check_branch
          %678 = sbr.rel (%p676) target = $region28
        $region27: #{tpu_custom_call.1} parent=11 // pred_region
          _
        $region28: #{tpu_custom_call.1} parent=11 // pred_fallthru
          _
        // Predicated region
        $region29: #{tpu_custom_call.1} parent=11 // pred_check
          %p679 = pneg %p175
        $region30: #{tpu_custom_call.1} parent=11 // pred_check_branch
          %681 = sbr.rel (%p679) target = $region32
        $region31: #{tpu_custom_call.1} parent=11 // pred_region
          %683 = vsyncadd [#allocation9], 0
          %s685 = sshll.u32 %s5, 4
          %s686 = int_to_ptr.hbm [resolvable:$true] %s685
          %s687 = sshll.u32 [#allocation10], 4
          %s688 = int_to_ptr.vmem [resolvable:$true] %s687
          %690 = dma.hbm_to_vmem [thread:$0]  %s686, 64, %s688, [#allocation9]
        $region32: #{tpu_custom_call.1} parent=11 // pred_fallthru
          _
        // Predicated region
        $region33: #{tpu_custom_call.1} parent=11 // pred_check
          %p691 = pneg %p196
        $region34: #{tpu_custom_call.1} parent=11 // pred_check_branch
          %693 = sbr.rel (%p691) target = $region36
        $region35: #{tpu_custom_call.1} parent=11 // pred_region
          %695 = vsyncadd [#allocation12], 0
          %s697 = sshll.u32 %s6, 4
          %s698 = int_to_ptr.hbm [resolvable:$true] %s697
          %s699 = sshll.u32 [#allocation11], 4
          %s700 = int_to_ptr.vmem [resolvable:$true] %s699
          %702 = dma.hbm_to_vmem [thread:$0]  %s698, 16, %s700, [#allocation12]
        $region36: #{tpu_custom_call.1} parent=11 // pred_fallthru
          _
        // Predicated region
        $region37: #{tpu_custom_call.1} parent=11 // pred_check
          %p703 = pneg %p217
        $region38: #{tpu_custom_call.1} parent=11 // pred_check_branch
          %705 = sbr.rel (%p703) target = $region40
        $region39: #{tpu_custom_call.1} parent=11 // pred_region
          %707 = vsyncadd [#allocation12], 0
          %s709 = sshll.u32 %s7, 4
          %s710 = int_to_ptr.hbm [resolvable:$true] %s709
          %s711 = sshll.u32 [#allocation13], 4
          %s712 = int_to_ptr.vmem [resolvable:$true] %s711
          %714 = dma.hbm_to_vmem [thread:$0]  %s710, 16, %s712, [#allocation12]
        $region40: #{tpu_custom_call.1} parent=11 // pred_fallthru
          _
        // Predicated region
        $region41: #{tpu_custom_call.1} parent=11 // pred_check
          %p715 = pneg %p238
        $region42: #{tpu_custom_call.1} parent=11 // pred_check_branch
          %717 = sbr.rel (%p715) target = $region44
        $region43: #{tpu_custom_call.1} parent=11 // pred_region
          %719 = vsyncadd [#allocation15], 0
          %s721 = sshll.u32 %s8, 4
          %s722 = int_to_ptr.hbm [resolvable:$true] %s721
          %s723 = sshll.u32 [#allocation14], 4
          %s724 = int_to_ptr.vmem [resolvable:$true] %s723
          %726 = dma.hbm_to_vmem [thread:$0]  %s722, 16, %s724, [#allocation15]
        $region44: #{tpu_custom_call.1} parent=11 // pred_fallthru
          _
        // Predicated region
        $region45: #{tpu_custom_call.1} parent=11 // pred_check
          %p727 = pneg %p259
        $region46: #{tpu_custom_call.1} parent=11 // pred_check_branch
          %729 = sbr.rel (%p727) target = $region48
        $region47: #{tpu_custom_call.1} parent=11 // pred_region
          %731 = vsyncadd [#allocation15], 0
          %s733 = sshll.u32 %s9, 4
          %s734 = int_to_ptr.hbm [resolvable:$true] %s733
          %s735 = sshll.u32 [#allocation16], 4
          %s736 = int_to_ptr.vmem [resolvable:$true] %s735
          %738 = dma.hbm_to_vmem [thread:$0]  %s734, 16, %s736, [#allocation15]
        $region48: #{tpu_custom_call.1} parent=11 // pred_fallthru
          _
        // Predicated region
        $region49: #{tpu_custom_call.1} parent=11 // pred_check
          %p739 = pneg %p280
        $region50: #{tpu_custom_call.1} parent=11 // pred_check_branch
          %741 = sbr.rel (%p739) target = $region52
        $region51: #{tpu_custom_call.1} parent=11 // pred_region
          %743 = vsyncadd [#allocation18], 0
          %s744 = sshll.u32 %s10, 4
          %s745 = int_to_ptr.hbm [resolvable:$true] %s744
          %s746 = sshll.u32 [#allocation17], 4
          %s747 = int_to_ptr.vmem [resolvable:$true] %s746
          %752 = dma.hbm_to_vmem [thread:$0]  %s745, 512, %s747, [#allocation18], 128, 128, 8
        $region52: #{tpu_custom_call.1} parent=11 // pred_fallthru
          _
        // Predicated region
        $region53: #{tpu_custom_call.1} parent=11 // pred_check
          %p753 = pneg %p301
        $region54: #{tpu_custom_call.1} parent=11 // pred_check_branch
          %755 = sbr.rel (%p753) target = $region56
        $region55: #{tpu_custom_call.1} parent=11 // pred_region
          _
        $region56: #{tpu_custom_call.1} parent=11 // pred_fallthru
          _
        // Predicated region
        $region57: #{tpu_custom_call.1} parent=11 // pred_check
          %p756 = pneg %p322
        $region58: #{tpu_custom_call.1} parent=11 // pred_check_branch
          %758 = sbr.rel (%p756) target = $region60
        $region59: #{tpu_custom_call.1} parent=11 // pred_region
          _
        $region60: #{tpu_custom_call.1} parent=11 // pred_fallthru
          _
        // Predicated region
        $region61: #{tpu_custom_call.1} parent=11 // pred_check
          %p759 = pneg %p343
        $region62: #{tpu_custom_call.1} parent=11 // pred_check_branch
          %761 = sbr.rel (%p759) target = $region64
        $region63: #{tpu_custom_call.1} parent=11 // pred_region
          %763 = vsyncadd [#allocation18], 0
          %s765 = sshll.u32 %s13, 4
          %s766 = int_to_ptr.hbm [resolvable:$true] %s765
          %s767 = sshll.u32 [#allocation19], 4
          %s768 = int_to_ptr.vmem [resolvable:$true] %s767
          %770 = dma.hbm_to_vmem [thread:$0]  %s766, 16, %s768, [#allocation18]
        $region64: #{tpu_custom_call.1} parent=11 // pred_fallthru
          _
        // Predicated region
        $region65: #{tpu_custom_call.1} parent=11 // pred_check
          %p771 = pneg %p364
        $region66: #{tpu_custom_call.1} parent=11 // pred_check_branch
          %773 = sbr.rel (%p771) target = $region68
        $region67: #{tpu_custom_call.1} parent=11 // pred_region
          %775 = vsyncadd [#allocation21], 0
          %s777 = sshll.u32 %s14, 4
          %s778 = int_to_ptr.hbm [resolvable:$true] %s777
          %s779 = sshll.u32 [#allocation20], 4
          %s780 = int_to_ptr.vmem [resolvable:$true] %s779
          %782 = dma.hbm_to_vmem [thread:$0]  %s778, 16, %s780, [#allocation21]
        $region68: #{tpu_custom_call.1} parent=11 // pred_fallthru
          _
        // Predicated region
        $region69: #{tpu_custom_call.1} parent=11 // pred_check
          %p783 = pneg %p385
        $region70: #{tpu_custom_call.1} parent=11 // pred_check_branch
          %785 = sbr.rel (%p783) target = $region72
        $region71: #{tpu_custom_call.1} parent=11 // pred_region
          %787 = vsyncadd [#allocation21], 0
          %s789 = sshll.u32 %s15, 4
          %s790 = int_to_ptr.hbm [resolvable:$true] %s789
          %s791 = sshll.u32 [#allocation22], 4
          %s792 = int_to_ptr.vmem [resolvable:$true] %s791
          %794 = dma.hbm_to_vmem [thread:$0]  %s790, 16, %s792, [#allocation21]
        $region72: #{tpu_custom_call.1} parent=11 // pred_fallthru
          _
        // Predicated region
        $region73: #{tpu_custom_call.1} parent=11 // pred_check
          %p795 = pneg %p406
        $region74: #{tpu_custom_call.1} parent=11 // pred_check_branch
          %797 = sbr.rel (%p795) target = $region76
        $region75: #{tpu_custom_call.1} parent=11 // pred_region
          %799 = vsyncadd [#allocation24], 0
          %s801 = sshll.u32 %s16, 4
          %s802 = int_to_ptr.hbm [resolvable:$true] %s801
          %s803 = sshll.u32 [#allocation23], 4
          %s804 = int_to_ptr.vmem [resolvable:$true] %s803
          %806 = dma.hbm_to_vmem [thread:$0]  %s802, 16, %s804, [#allocation24]
        $region76: #{tpu_custom_call.1} parent=11 // pred_fallthru
          _
        // Predicated region
        $region77: #{tpu_custom_call.1} parent=11 // pred_check
          %p807 = pneg %p427
        $region78: #{tpu_custom_call.1} parent=11 // pred_check_branch
          %809 = sbr.rel (%p807) target = $region80
        $region79: #{tpu_custom_call.1} parent=11 // pred_region
          %811 = vsyncadd [#allocation24], 0
          %s812 = sshll.u32 %s17, 4
          %s813 = int_to_ptr.hbm [resolvable:$true] %s812
          %s814 = sshll.u32 [#allocation25], 4
          %s815 = int_to_ptr.vmem [resolvable:$true] %s814
          %820 = dma.hbm_to_vmem [thread:$0]  %s813, 512, %s815, [#allocation24], 128, 128, 8
        $region80: #{tpu_custom_call.1} parent=11 // pred_fallthru
          _
        // Predicated region
        $region81: #{tpu_custom_call.1} parent=11 // pred_check
          %p821 = pneg %p448
        $region82: #{tpu_custom_call.1} parent=11 // pred_check_branch
          %823 = sbr.rel (%p821) target = $region84
        $region83: #{tpu_custom_call.1} parent=11 // pred_region
          _
        $region84: #{tpu_custom_call.1} parent=11 // pred_fallthru
          _
        // Predicated region
        $region85: #{tpu_custom_call.1} parent=11 // pred_check
          %p824 = pneg %p469
        $region86: #{tpu_custom_call.1} parent=11 // pred_check_branch
          %826 = sbr.rel (%p824) target = $region88
        $region87: #{tpu_custom_call.1} parent=11 // pred_region
          _
        $region88: #{tpu_custom_call.1} parent=11 // pred_fallthru
          _
        // Predicated region
        $region89: #{tpu_custom_call.1} parent=11 // pred_check
          %p827 = pneg %p490
        $region90: #{tpu_custom_call.1} parent=11 // pred_check_branch
          %829 = sbr.rel (%p827) target = $region92
        $region91: #{tpu_custom_call.1} parent=11 // pred_region
          _
        $region92: #{tpu_custom_call.1} parent=11 // pred_fallthru
          _
        // Predicated region
        $region93: #{tpu_custom_call.1} parent=11 // pred_check
          %p830 = pneg %p511
        $region94: #{tpu_custom_call.1} parent=11 // pred_check_branch
          %832 = sbr.rel (%p830) target = $region96
        $region95: #{tpu_custom_call.1} parent=11 // pred_region
          _
        $region96: #{tpu_custom_call.1} parent=11 // pred_fallthru
          _
        // Predicated region
        $region97: #{tpu_custom_call.1} parent=11 // pred_check
          %p833 = pneg %p532
        $region98: #{tpu_custom_call.1} parent=11 // pred_check_branch
          %835 = sbr.rel (%p833) target = $region100
        $region99: #{tpu_custom_call.1} parent=11 // pred_region
          _
        $region100: #{tpu_custom_call.1} parent=11 // pred_fallthru
          _
        // Predicated region
        $region101: #{tpu_custom_call.1} parent=11 // pred_check
          %p836 = pneg %p553
        $region102: #{tpu_custom_call.1} parent=11 // pred_check_branch
          %838 = sbr.rel (%p836) target = $region104
        $region103: #{tpu_custom_call.1} parent=11 // pred_region
          _
        $region104: #{tpu_custom_call.1} parent=11 // pred_fallthru
          _
        // Predicated region
        $region105: #{tpu_custom_call.1} parent=11 // pred_check
          %p839 = pneg %p574
        $region106: #{tpu_custom_call.1} parent=11 // pred_check_branch
          %841 = sbr.rel (%p839) target = $region108
        $region107: #{tpu_custom_call.1} parent=11 // pred_region
          _
        $region108: #{tpu_custom_call.1} parent=11 // pred_fallthru
          _
        // Predicated region
        $region109: #{tpu_custom_call.1} parent=11 // pred_check
          %p842 = pneg %p595
        $region110: #{tpu_custom_call.1} parent=11 // pred_check_branch
          %844 = sbr.rel (%p842) target = $region112
        $region111: #{tpu_custom_call.1} parent=11 // pred_region
          _
        $region112: #{tpu_custom_call.1} parent=11 // pred_fallthru
          _
      $region12: #{tpu_custom_call.1} parent=5 // pred_fallthru
        _
      %p845 = scmp.lt.s32.totalorder %s44, 2
      // Predicated region
      $region113: #{tpu_custom_call.1} parent=5 // pred_check
        %p846 = pneg %p845
      $region114: #{tpu_custom_call.1} parent=5 // pred_check_branch
        %848 = sbr.rel (%p846) target = $region116
      $region115: #{tpu_custom_call.1} parent=5 // pred_region
        // Predicated region
        $region117: #{tpu_custom_call.1} parent=115 // pred_check
          %p849 = pneg %p64
        $region118: #{tpu_custom_call.1} parent=115 // pred_check_branch
          %851 = sbr.rel (%p849) target = $region120
        $region119: #{tpu_custom_call.1} parent=115 // pred_region
          %s852 = sand.u32 %s54, 1
          %s853 = scalar_lea.sflag [#allocation4], %s852
          %s854 = sand.u32 %s54, 1
          %s855 = smul.addr %s854, 128
          %s856 = scalar_lea.vmem [#allocation3], %s855
          %s857 = smul.u32 8, %s44
          %859 = vsyncadd %s853, 0
          %s860 = smul.addr %s857, 2
          %s861 = smul.addr %s860, 8
          %s862 = scalar_lea.hbm %s0, %s861
          %s863 = sshll.u32 %s862, 4
          %s864 = int_to_ptr.hbm [resolvable:$true] %s863
          %s865 = sshll.u32 %s856, 4
          %s866 = int_to_ptr.vmem [resolvable:$true] %s865
          %871 = dma.hbm_to_vmem [thread:$0]  %s864, 2048, %s866, %s853, 128, 128, 8
        $region120: #{tpu_custom_call.1} parent=115 // pred_fallthru
          _
      $region116: #{tpu_custom_call.1} parent=5 // pred_fallthru
        _
      %p872 = scmp.le.s32.totalorder 1, %s44
      %p873 = scmp.lt.s32.totalorder %s44, 3
      %p874 = pnand %p872, %p873
      %p875 = pneg %p874
      // Predicated region
      $region121: #{tpu_custom_call.1} parent=5 // pred_check
        _
      $region122: #{tpu_custom_call.1} parent=5 // pred_check_branch
        %877 = sbr.rel (%p874) target = $region124
      $region123: #{tpu_custom_call.1} parent=5 // pred_region
        %s878 = ssub.s32 %s44, 1
        %s879 = sand.u32 %s57, 1
        %s880 = scalar_lea.sflag [#allocation4], %s879
        %s881 = sand.u32 %s57, 1
        %s882 = smul.addr %s881, 128
        %s883 = scalar_lea.vmem [#allocation3], %s882
        // Predicated region
        $region125: #{tpu_custom_call.1} parent=123 // pred_check
          %p884 = pneg %p70
        $region126: #{tpu_custom_call.1} parent=123 // pred_check_branch
          %886 = sbr.rel (%p884) target = $region128
        $region127: #{tpu_custom_call.1} parent=123 // pred_region
          %888 = dma.done %s880, 2048
        $region128: #{tpu_custom_call.1} parent=123 // pred_fallthru
          _
        // Predicated region
        $region129: #{tpu_custom_call.1} parent=123 // pred_check
          %p889 = pneg %p91
        $region130: #{tpu_custom_call.1} parent=123 // pred_check_branch
          %891 = sbr.rel (%p889) target = $region132
        $region131: #{tpu_custom_call.1} parent=123 // pred_region
          %893 = dma.done [#allocation6], 256
        $region132: #{tpu_custom_call.1} parent=123 // pred_fallthru
          _
        // Predicated region
        $region133: #{tpu_custom_call.1} parent=123 // pred_check
          %p894 = pneg %p112
        $region134: #{tpu_custom_call.1} parent=123 // pred_check_branch
          %896 = sbr.rel (%p894) target = $region136
        $region135: #{tpu_custom_call.1} parent=123 // pred_region
          %898 = dma.done [#allocation6], 64
        $region136: #{tpu_custom_call.1} parent=123 // pred_fallthru
          _
        // Predicated region
        $region137: #{tpu_custom_call.1} parent=123 // pred_check
          %p899 = pneg %p133
        $region138: #{tpu_custom_call.1} parent=123 // pred_check_branch
          %901 = sbr.rel (%p899) target = $region140
        $region139: #{tpu_custom_call.1} parent=123 // pred_region
          %903 = dma.done [#allocation9], 384
        $region140: #{tpu_custom_call.1} parent=123 // pred_fallthru
          _
        // Predicated region
        $region141: #{tpu_custom_call.1} parent=123 // pred_check
          %p904 = pneg %p175
        $region142: #{tpu_custom_call.1} parent=123 // pred_check_branch
          %906 = sbr.rel (%p904) target = $region144
        $region143: #{tpu_custom_call.1} parent=123 // pred_region
          %908 = dma.done [#allocation9], 64
        $region144: #{tpu_custom_call.1} parent=123 // pred_fallthru
          _
        // Predicated region
        $region145: #{tpu_custom_call.1} parent=123 // pred_check
          %p909 = pneg %p196
        $region146: #{tpu_custom_call.1} parent=123 // pred_check_branch
          %911 = sbr.rel (%p909) target = $region148
        $region147: #{tpu_custom_call.1} parent=123 // pred_region
          %913 = dma.done [#allocation12], 16
        $region148: #{tpu_custom_call.1} parent=123 // pred_fallthru
          _
        // Predicated region
        $region149: #{tpu_custom_call.1} parent=123 // pred_check
          %p914 = pneg %p217
        $region150: #{tpu_custom_call.1} parent=123 // pred_check_branch
          %916 = sbr.rel (%p914) target = $region152
        $region151: #{tpu_custom_call.1} parent=123 // pred_region
          %918 = dma.done [#allocation12], 16
        $region152: #{tpu_custom_call.1} parent=123 // pred_fallthru
          _
        // Predicated region
        $region153: #{tpu_custom_call.1} parent=123 // pred_check
          %p919 = pneg %p238
        $region154: #{tpu_custom_call.1} parent=123 // pred_check_branch
          %921 = sbr.rel (%p919) target = $region156
        $region155: #{tpu_custom_call.1} parent=123 // pred_region
          %923 = dma.done [#allocation15], 16
        $region156: #{tpu_custom_call.1} parent=123 // pred_fallthru
          _
        // Predicated region
        $region157: #{tpu_custom_call.1} parent=123 // pred_check
          %p924 = pneg %p259
        $region158: #{tpu_custom_call.1} parent=123 // pred_check_branch
          %926 = sbr.rel (%p924) target = $region160
        $region159: #{tpu_custom_call.1} parent=123 // pred_region
          %928 = dma.done [#allocation15], 16
        $region160: #{tpu_custom_call.1} parent=123 // pred_fallthru
          _
        // Predicated region
        $region161: #{tpu_custom_call.1} parent=123 // pred_check
          %p929 = pneg %p280
        $region162: #{tpu_custom_call.1} parent=123 // pred_check_branch
          %931 = sbr.rel (%p929) target = $region164
        $region163: #{tpu_custom_call.1} parent=123 // pred_region
          %933 = dma.done [#allocation18], 512
        $region164: #{tpu_custom_call.1} parent=123 // pred_fallthru
          _
        // Predicated region
        $region165: #{tpu_custom_call.1} parent=123 // pred_check
          %p934 = pneg %p343
        $region166: #{tpu_custom_call.1} parent=123 // pred_check_branch
          %936 = sbr.rel (%p934) target = $region168
        $region167: #{tpu_custom_call.1} parent=123 // pred_region
          %938 = dma.done [#allocation18], 16
        $region168: #{tpu_custom_call.1} parent=123 // pred_fallthru
          _
        // Predicated region
        $region169: #{tpu_custom_call.1} parent=123 // pred_check
          %p939 = pneg %p364
        $region170: #{tpu_custom_call.1} parent=123 // pred_check_branch
          %941 = sbr.rel (%p939) target = $region172
        $region171: #{tpu_custom_call.1} parent=123 // pred_region
          %943 = dma.done [#allocation21], 16
        $region172: #{tpu_custom_call.1} parent=123 // pred_fallthru
          _
        // Predicated region
        $region173: #{tpu_custom_call.1} parent=123 // pred_check
          %p944 = pneg %p385
        $region174: #{tpu_custom_call.1} parent=123 // pred_check_branch
          %946 = sbr.rel (%p944) target = $region176
        $region175: #{tpu_custom_call.1} parent=123 // pred_region
          %948 = dma.done [#allocation21], 16
        $region176: #{tpu_custom_call.1} parent=123 // pred_fallthru
          _
        // Predicated region
        $region177: #{tpu_custom_call.1} parent=123 // pred_check
          %p949 = pneg %p406
        $region178: #{tpu_custom_call.1} parent=123 // pred_check_branch
          %951 = sbr.rel (%p949) target = $region180
        $region179: #{tpu_custom_call.1} parent=123 // pred_region
          %953 = dma.done [#allocation24], 16
        $region180: #{tpu_custom_call.1} parent=123 // pred_fallthru
          _
        // Predicated region
        $region181: #{tpu_custom_call.1} parent=123 // pred_check
          %p954 = pneg %p427
        $region182: #{tpu_custom_call.1} parent=123 // pred_check_branch
          %956 = sbr.rel (%p954) target = $region184
        $region183: #{tpu_custom_call.1} parent=123 // pred_region
          %958 = dma.done [#allocation24], 512
        $region184: #{tpu_custom_call.1} parent=123 // pred_fallthru
          _
        %s959 = sand.u32 %s57, 1
        %s960 = scalar_lea.sflag [#allocation4], %s959
        %s961 = sand.u32 %s57, 1
        %s962 = smul.addr %s961, 128
        %s963 = scalar_lea.vmem [#allocation3], %s962
        %p964 = pneg %p70
        %p965 = pneg %p67
        %p966 = pneg %p91
        %p967 = pneg %p88
        %p968 = pneg %p112
        %p969 = pneg %p109
        %p970 = pneg %p133
        %p971 = pneg %p130
        %p972 = pneg %p154
        %p973 = pneg %p151
        %p974 = pneg %p175
        %p975 = pneg %p172
        %p976 = pneg %p196
        %p977 = pneg %p193
        %p978 = pneg %p217
        %p979 = pneg %p214
        %p980 = pneg %p238
        %p981 = pneg %p235
        %p982 = pneg %p259
        %p983 = pneg %p256
        %p984 = pneg %p280
        %p985 = pneg %p277
        %p986 = pneg %p301
        %p987 = pneg %p298
        %p988 = pneg %p322
        %p989 = pneg %p319
        %p990 = pneg %p343
        %p991 = pneg %p340
        %p992 = pneg %p364
        %p993 = pneg %p361
        %p994 = pneg %p385
        %p995 = pneg %p382
        %p996 = pneg %p406
        %p997 = pneg %p403
        %p998 = pneg %p427
        %p999 = pneg %p424
        %p1000 = pneg %p448
        %p1001 = pneg %p445
        %p1002 = pneg %p469
        %p1003 = pneg %p466
        %p1004 = pneg %p490
        %p1005 = pneg %p487
        %p1006 = pneg %p511
        %p1007 = pneg %p508
        %p1008 = pneg %p532
        %p1009 = pneg %p529
        %p1010 = pneg %p553
        %p1011 = pneg %p550
        %p1012 = pneg %p574
        %p1013 = pneg %p571
        %p1014 = pneg %p595
        %p1015 = pneg %p592
        %p1016 = pneg %p621
        %p1017 = pneg %p618
        %s1018 = smul.u32 8, %s49
        %p1019 = scmp.lt.s32.totalorder %s1018, 15
        %s1020 = scalar_select %p1019, %s1018, 15
        %s1021 = scalar_lea.vmem %s26, %s1020
        %s1022 = smul.u32 8, %s49
        %s1023 = smul.u32 8, %s49
        %p1024 = scmp.lt.s32.totalorder %s1023, 15
        %s1025 = scalar_select %p1024, %s1023, 15
        %s1026 = scalar_lea.vmem %s26, %s1025
        %s1027 = smul.u32 8, %s49
        %v1029 = vld [vmem:[#allocation5] sm:$0xff]
        %v1030 = vld [vmem:[#allocation5 + $0x8] sm:$0xff]
        %v1031 = vld [vmem:[#allocation7] sm:$0xf]
        %v1033 = vrot.slane %v1031, 1
        %v1034 = vrot.slane %v1031, 2
        %v1035 = vrot.slane %v1031, 3
        %v1036 = vld [vmem:[%s883] sm:$0xff]
        %v1037 = vld [vmem:[%s883 + $0x8] sm:$0xff]
        %v1038 = vld [vmem:[%s883 + $0x10] sm:$0xff]
        %v1039 = vld [vmem:[%s883 + $0x18] sm:$0xff]
        %v1040 = vld [vmem:[%s883 + $0x20] sm:$0xff]
        %v1041 = vld [vmem:[%s883 + $0x28] sm:$0xff]
        %v1042 = vld [vmem:[%s883 + $0x30] sm:$0xff]
        %v1043 = vld [vmem:[%s883 + $0x38] sm:$0xff]
        %v1044 = vld [vmem:[%s883 + $0x40] sm:$0xff]
        %v1045 = vld [vmem:[%s883 + $0x48] sm:$0xff]
        %v1046 = vld [vmem:[%s883 + $0x50] sm:$0xff]
        %v1047 = vld [vmem:[%s883 + $0x58] sm:$0xff]
        %v1048 = vld [vmem:[%s883 + $0x60] sm:$0xff]
        %v1049 = vld [vmem:[%s883 + $0x68] sm:$0xff]
        %v1050 = vld [vmem:[%s883 + $0x70] sm:$0xff]
        %v1051 = vld [vmem:[%s883 + $0x78] sm:$0xff]
        %v1052 = vpack.c.bf16 %v1037, %v1036
        %v1053 = vpack.c.bf16 %v1039, %v1038
        %v1054 = vpack.c.bf16 %v1041, %v1040
        %v1055 = vpack.c.bf16 %v1043, %v1042
        %v1056 = vpack.c.bf16 %v1045, %v1044
        %v1057 = vpack.c.bf16 %v1047, %v1046
        %v1058 = vpack.c.bf16 %v1049, %v1048
        %v1059 = vpack.c.bf16 %v1051, %v1050
        %v1060 = vld [vmem:[#allocation8] sm:$0xff]
        %v1061 = vld [vmem:[#allocation8 + $0x8] sm:$0xff]
        %v1062 = vld [vmem:[#allocation8 + $0x10] sm:$0xf]
        %v1063 = vpack.c.bf16 %v1061, %v1060
        %v1064 = vpack.c.bf16 %v1062, %v1062
        %vm1065 = vcmask 162816
        %v1067 = vsel %vm1065, %v1052, 0
        %v1070 = vsel %vm1065, %v1053, 0
        %v1073 = vsel %vm1065, %v1054, 0
        %v1076 = vsel %vm1065, %v1055, 0
        %v1079 = vsel %vm1065, %v1056, 0
        %v1082 = vsel %vm1065, %v1057, 0
        %v1085 = vsel %vm1065, %v1058, 0
        %v1088 = vsel %vm1065, %v1059, 0
        %vm1090 = vcmask 1041408
        %v1092 = vsel %vm1090, %v1064, 0
        %1094 = vmatpush.bf16.msra.mxu0 0
        %1095 = vmatpush.bf16.msra.mxu0 0
        %1096 = vmatpush.bf16.msra.mxu0 0
        %1097 = vmatpush.bf16.msra.mxu0 0
        %1098 = vmatpush.bf16.msra.mxu0 0
        %1099 = vmatpush.bf16.msra.mxu0 0
        %1100 = vmatpush.bf16.msra.mxu0 %v1092
        %1101 = vmatpush.bf16.msra.mxu0 %v1063
        %1102 = vmatmul.bf16.gmra.mxu0 %v1067
        %v1103 = vpop.f32.mrf.mxu0
        %v1104 = vadd.f32 0.0, %v1103
        %v1105 = vpop.f32.mrf.mxu0
        %v1106 = vadd.f32 0.0, %v1105
        %1107 = vmatmul.bf16.gmra.mxu0 %v1070
        %v1108 = vpop.f32.mrf.mxu0
        %v1109 = vadd.f32 0.0, %v1108
        %v1110 = vpop.f32.mrf.mxu0
        %v1111 = vadd.f32 0.0, %v1110
        %1112 = vmatmul.bf16.gmra.mxu0 %v1073
        %v1113 = vpop.f32.mrf.mxu0
        %v1114 = vadd.f32 0.0, %v1113
        %v1115 = vpop.f32.mrf.mxu0
        %v1116 = vadd.f32 0.0, %v1115
        %1117 = vmatmul.bf16.gmra.mxu0 %v1076
        %v1118 = vpop.f32.mrf.mxu0
        %v1119 = vadd.f32 0.0, %v1118
        %v1120 = vpop.f32.mrf.mxu0
        %v1121 = vadd.f32 0.0, %v1120
        %1122 = vmatmul.bf16.gmra.mxu0 %v1079
        %v1123 = vpop.f32.mrf.mxu0
        %v1124 = vadd.f32 0.0, %v1123
        %v1125 = vpop.f32.mrf.mxu0
        %v1126 = vadd.f32 0.0, %v1125
        %1127 = vmatmul.bf16.gmra.mxu0 %v1082
        %v1128 = vpop.f32.mrf.mxu0
        %v1129 = vadd.f32 0.0, %v1128
        %v1130 = vpop.f32.mrf.mxu0
        %v1131 = vadd.f32 0.0, %v1130
        %1132 = vmatmul.bf16.gmra.mxu0 %v1085
        %v1133 = vpop.f32.mrf.mxu0
        %v1134 = vadd.f32 0.0, %v1133
        %v1135 = vpop.f32.mrf.mxu0
        %v1136 = vadd.f32 0.0, %v1135
        %1137 = vmatmul.bf16.gmra.mxu0 %v1088
        %v1138 = vpop.f32.mrf.mxu0
        %v1139 = vadd.f32 0.0, %v1138
        %v1140 = vpop.f32.mrf.mxu0
        %v1141 = vadd.f32 0.0, %v1140
        %1142 = vdwg.mxu0
        %v1143 = vpack.c.bf16 %v1104, %v1104
        %v1144 = vpack.c.bf16 %v1106, %v1106
        %v1145 = vpack.c.bf16 %v1109, %v1109
        %v1146 = vpack.c.bf16 %v1111, %v1111
        %v1147 = vpack.c.bf16 %v1114, %v1114
        %v1148 = vpack.c.bf16 %v1116, %v1116
        %v1149 = vpack.c.bf16 %v1119, %v1119
        %v1150 = vpack.c.bf16 %v1121, %v1121
        %v1151 = vpack.c.bf16 %v1124, %v1124
        %v1152 = vpack.c.bf16 %v1126, %v1126
        %v1153 = vpack.c.bf16 %v1129, %v1129
        %v1154 = vpack.c.bf16 %v1131, %v1131
        %v1155 = vpack.c.bf16 %v1134, %v1134
        %v1156 = vpack.c.bf16 %v1136, %v1136
        %v1157 = vpack.c.bf16 %v1139, %v1139
        %v1158 = vpack.c.bf16 %v1141, %v1141
        %v1159 = vld [vmem:[%s4] sm:$0xf]
        %v1160 = vpack.c.bf16 %v1159, %v1159
        %v1161 = vld [vmem:[#allocation10] sm:$0xf]
        %v1162 = vpack.c.bf16 %v1161, %v1161
        %v1165 = vunpack.c.l.b16 %v1143
        %v1166 = vunpack.c.l.b16 %v1144
        %v1167 = vpack.c.b16 %v1166, %v1165
        %vm1168 = vcmask 261120
        %v1170 = vsel %vm1168, %v1160, 0
        %v1173 = vsel %vm1168, %v1167, 0
        %1175 = vmatpush.bf16.xpose.msra.mxu0 0
        %1176 = vmatpush.bf16.xpose.msra.mxu0 0
        %1177 = vmatpush.bf16.xpose.msra.mxu0 0
        %1178 = vmatpush.bf16.xpose.msra.mxu0 0
        %1179 = vmatpush.bf16.xpose.msra.mxu0 0
        %1180 = vmatpush.bf16.xpose.msra.mxu0 0
        %1181 = vmatpush.bf16.xpose.msra.mxu0 0
        %1182 = vmatpush.bf16.xpose.msra.mxu0 %v1173
        %1183 = vmatmul.bf16.gmra.mxu0 %v1170
        %v1184 = vpop.f32.mrf.mxu0
        %v1185 = vadd.f32 0.0, %v1184
        %v1186 = vpop.f32.mrf.mxu0
        %1187 = vdwg.mxu0
        %v1190 = vunpack.c.l.b16 %v1145
        %v1191 = vunpack.c.l.b16 %v1146
        %v1192 = vpack.c.b16 %v1191, %v1190
        %v1194 = vsel %vm1168, %v1192, 0
        %1196 = vmatpush.bf16.xpose.msra.mxu0 0
        %1197 = vmatpush.bf16.xpose.msra.mxu0 0
        %1198 = vmatpush.bf16.xpose.msra.mxu0 0
        %1199 = vmatpush.bf16.xpose.msra.mxu0 0
        %1200 = vmatpush.bf16.xpose.msra.mxu0 0
        %1201 = vmatpush.bf16.xpose.msra.mxu0 0
        %1202 = vmatpush.bf16.xpose.msra.mxu0 0
        %1203 = vmatpush.bf16.xpose.msra.mxu0 %v1194
        %1204 = vmatmul.bf16.gmra.mxu0 %v1170
        %v1205 = vpop.f32.mrf.mxu0
        %v1206 = vadd.f32 0.0, %v1205
        %v1207 = vpop.f32.mrf.mxu0
        %1208 = vdwg.mxu0
        %v1211 = vunpack.c.l.b16 %v1147
        %v1212 = vunpack.c.l.b16 %v1148
        %v1213 = vpack.c.b16 %v1212, %v1211
        %v1215 = vsel %vm1168, %v1213, 0
        %1217 = vmatpush.bf16.xpose.msra.mxu0 0
        %1218 = vmatpush.bf16.xpose.msra.mxu0 0
        %1219 = vmatpush.bf16.xpose.msra.mxu0 0
        %1220 = vmatpush.bf16.xpose.msra.mxu0 0
        %1221 = vmatpush.bf16.xpose.msra.mxu0 0
        %1222 = vmatpush.bf16.xpose.msra.mxu0 0
        %1223 = vmatpush.bf16.xpose.msra.mxu0 0
        %1224 = vmatpush.bf16.xpose.msra.mxu0 %v1215
        %1225 = vmatmul.bf16.gmra.mxu0 %v1170
        %v1226 = vpop.f32.mrf.mxu0
        %v1227 = vadd.f32 0.0, %v1226
        %v1228 = vpop.f32.mrf.mxu0
        %1229 = vdwg.mxu0
        %v1232 = vunpack.c.l.b16 %v1149
        %v1233 = vunpack.c.l.b16 %v1150
        %v1234 = vpack.c.b16 %v1233, %v1232
        %v1236 = vsel %vm1168, %v1234, 0
        %1238 = vmatpush.bf16.xpose.msra.mxu0 0
        %1239 = vmatpush.bf16.xpose.msra.mxu0 0
        %1240 = vmatpush.bf16.xpose.msra.mxu0 0
        %1241 = vmatpush.bf16.xpose.msra.mxu0 0
        %1242 = vmatpush.bf16.xpose.msra.mxu0 0
        %1243 = vmatpush.bf16.xpose.msra.mxu0 0
        %1244 = vmatpush.bf16.xpose.msra.mxu0 0
        %1245 = vmatpush.bf16.xpose.msra.mxu0 %v1236
        %1246 = vmatmul.bf16.gmra.mxu0 %v1170
        %v1247 = vpop.f32.mrf.mxu0
        %v1248 = vadd.f32 0.0, %v1247
        %v1249 = vpop.f32.mrf.mxu0
        %1250 = vdwg.mxu0
        %v1253 = vunpack.c.l.b16 %v1151
        %v1254 = vunpack.c.l.b16 %v1152
        %v1255 = vpack.c.b16 %v1254, %v1253
        %v1257 = vsel %vm1168, %v1255, 0
        %1259 = vmatpush.bf16.xpose.msra.mxu0 0
        %1260 = vmatpush.bf16.xpose.msra.mxu0 0
        %1261 = vmatpush.bf16.xpose.msra.mxu0 0
        %1262 = vmatpush.bf16.xpose.msra.mxu0 0
        %1263 = vmatpush.bf16.xpose.msra.mxu0 0
        %1264 = vmatpush.bf16.xpose.msra.mxu0 0
        %1265 = vmatpush.bf16.xpose.msra.mxu0 0
        %1266 = vmatpush.bf16.xpose.msra.mxu0 %v1257
        %1267 = vmatmul.bf16.gmra.mxu0 %v1170
        %v1268 = vpop.f32.mrf.mxu0
        %v1269 = vadd.f32 0.0, %v1268
        %v1270 = vpop.f32.mrf.mxu0
        %1271 = vdwg.mxu0
        %v1274 = vunpack.c.l.b16 %v1153
        %v1275 = vunpack.c.l.b16 %v1154
        %v1276 = vpack.c.b16 %v1275, %v1274
        %v1278 = vsel %vm1168, %v1276, 0
        %1280 = vmatpush.bf16.xpose.msra.mxu0 0
        %1281 = vmatpush.bf16.xpose.msra.mxu0 0
        %1282 = vmatpush.bf16.xpose.msra.mxu0 0
        %1283 = vmatpush.bf16.xpose.msra.mxu0 0
        %1284 = vmatpush.bf16.xpose.msra.mxu0 0
        %1285 = vmatpush.bf16.xpose.msra.mxu0 0
        %1286 = vmatpush.bf16.xpose.msra.mxu0 0
        %1287 = vmatpush.bf16.xpose.msra.mxu0 %v1278
        %1288 = vmatmul.bf16.gmra.mxu0 %v1170
        %v1289 = vpop.f32.mrf.mxu0
        %v1290 = vadd.f32 0.0, %v1289
        %v1291 = vpop.f32.mrf.mxu0
        %1292 = vdwg.mxu0
        %v1295 = vunpack.c.l.b16 %v1155
        %v1296 = vunpack.c.l.b16 %v1156
        %v1297 = vpack.c.b16 %v1296, %v1295
        %v1299 = vsel %vm1168, %v1297, 0
        %1301 = vmatpush.bf16.xpose.msra.mxu0 0
        %1302 = vmatpush.bf16.xpose.msra.mxu0 0
        %1303 = vmatpush.bf16.xpose.msra.mxu0 0
        %1304 = vmatpush.bf16.xpose.msra.mxu0 0
        %1305 = vmatpush.bf16.xpose.msra.mxu0 0
        %1306 = vmatpush.bf16.xpose.msra.mxu0 0
        %1307 = vmatpush.bf16.xpose.msra.mxu0 0
        %1308 = vmatpush.bf16.xpose.msra.mxu0 %v1299
        %1309 = vmatmul.bf16.gmra.mxu0 %v1170
        %v1310 = vpop.f32.mrf.mxu0
        %v1311 = vadd.f32 0.0, %v1310
        %v1312 = vpop.f32.mrf.mxu0
        %1313 = vdwg.mxu0
        %v1316 = vunpack.c.l.b16 %v1157
        %v1317 = vunpack.c.l.b16 %v1158
        %v1318 = vpack.c.b16 %v1317, %v1316
        %v1320 = vsel %vm1168, %v1318, 0
        %1322 = vmatpush.bf16.xpose.msra.mxu0 0
        %1323 = vmatpush.bf16.xpose.msra.mxu0 0
        %1324 = vmatpush.bf16.xpose.msra.mxu0 0
        %1325 = vmatpush.bf16.xpose.msra.mxu0 0
        %1326 = vmatpush.bf16.xpose.msra.mxu0 0
        %1327 = vmatpush.bf16.xpose.msra.mxu0 0
        %1328 = vmatpush.bf16.xpose.msra.mxu0 0
        %1329 = vmatpush.bf16.xpose.msra.mxu0 %v1320
        %1330 = vmatmul.bf16.gmra.mxu0 %v1170
        %v1331 = vpop.f32.mrf.mxu0
        %v1332 = vadd.f32 0.0, %v1331
        %v1333 = vpop.f32.mrf.mxu0
        %1334 = vdwg.mxu0
        %v1336 = vsel %vm1168, %v1162, 0
        %1338 = vmatpush.bf16.xpose.msra.mxu0 0
        %1339 = vmatpush.bf16.xpose.msra.mxu0 0
        %1340 = vmatpush.bf16.xpose.msra.mxu0 0
        %1341 = vmatpush.bf16.xpose.msra.mxu0 0
        %1342 = vmatpush.bf16.xpose.msra.mxu0 0
        %1343 = vmatpush.bf16.xpose.msra.mxu0 0
        %1344 = vmatpush.bf16.xpose.msra.mxu0 0
        %1345 = vmatpush.bf16.xpose.msra.mxu0 %v1173
        %1346 = vmatmul.bf16.gmra.mxu0 %v1336
        %v1347 = vpop.f32.mrf.mxu0
        %v1348 = vadd.f32 0.0, %v1347
        %v1349 = vpop.f32.mrf.mxu0
        %1350 = vdwg.mxu0
        %1351 = vmatpush.bf16.xpose.msra.mxu0 0
        %1352 = vmatpush.bf16.xpose.msra.mxu0 0
        %1353 = vmatpush.bf16.xpose.msra.mxu0 0
        %1354 = vmatpush.bf16.xpose.msra.mxu0 0
        %1355 = vmatpush.bf16.xpose.msra.mxu0 0
        %1356 = vmatpush.bf16.xpose.msra.mxu0 0
        %1357 = vmatpush.bf16.xpose.msra.mxu0 0
        %1358 = vmatpush.bf16.xpose.msra.mxu0 %v1194
        %1359 = vmatmul.bf16.gmra.mxu0 %v1336
        %v1360 = vpop.f32.mrf.mxu0
        %v1361 = vadd.f32 0.0, %v1360
        %v1362 = vpop.f32.mrf.mxu0
        %1363 = vdwg.mxu0
        %1364 = vmatpush.bf16.xpose.msra.mxu0 0
        %1365 = vmatpush.bf16.xpose.msra.mxu0 0
        %1366 = vmatpush.bf16.xpose.msra.mxu0 0
        %1367 = vmatpush.bf16.xpose.msra.mxu0 0
        %1368 = vmatpush.bf16.xpose.msra.mxu0 0
        %1369 = vmatpush.bf16.xpose.msra.mxu0 0
        %1370 = vmatpush.bf16.xpose.msra.mxu0 0
        %1371 = vmatpush.bf16.xpose.msra.mxu0 %v1215
        %1372 = vmatmul.bf16.gmra.mxu0 %v1336
        %v1373 = vpop.f32.mrf.mxu0
        %v1374 = vadd.f32 0.0, %v1373
        %v1375 = vpop.f32.mrf.mxu0
        %1376 = vdwg.mxu0
        %1377 = vmatpush.bf16.xpose.msra.mxu0 0
        %1378 = vmatpush.bf16.xpose.msra.mxu0 0
        %1379 = vmatpush.bf16.xpose.msra.mxu0 0
        %1380 = vmatpush.bf16.xpose.msra.mxu0 0
        %1381 = vmatpush.bf16.xpose.msra.mxu0 0
        %1382 = vmatpush.bf16.xpose.msra.mxu0 0
        %1383 = vmatpush.bf16.xpose.msra.mxu0 0
        %1384 = vmatpush.bf16.xpose.msra.mxu0 %v1236
        %1385 = vmatmul.bf16.gmra.mxu0 %v1336
        %v1386 = vpop.f32.mrf.mxu0
        %v1387 = vadd.f32 0.0, %v1386
        %v1388 = vpop.f32.mrf.mxu0
        %1389 = vdwg.mxu0
        %1390 = vmatpush.bf16.xpose.msra.mxu0 0
        %1391 = vmatpush.bf16.xpose.msra.mxu0 0
        %1392 = vmatpush.bf16.xpose.msra.mxu0 0
        %1393 = vmatpush.bf16.xpose.msra.mxu0 0
        %1394 = vmatpush.bf16.xpose.msra.mxu0 0
        %1395 = vmatpush.bf16.xpose.msra.mxu0 0
        %1396 = vmatpush.bf16.xpose.msra.mxu0 0
        %1397 = vmatpush.bf16.xpose.msra.mxu0 %v1257
        %1398 = vmatmul.bf16.gmra.mxu0 %v1336
        %v1399 = vpop.f32.mrf.mxu0
        %v1400 = vadd.f32 0.0, %v1399
        %v1401 = vpop.f32.mrf.mxu0
        %1402 = vdwg.mxu0
        %1403 = vmatpush.bf16.xpose.msra.mxu0 0
        %1404 = vmatpush.bf16.xpose.msra.mxu0 0
        %1405 = vmatpush.bf16.xpose.msra.mxu0 0
        %1406 = vmatpush.bf16.xpose.msra.mxu0 0
        %1407 = vmatpush.bf16.xpose.msra.mxu0 0
        %1408 = vmatpush.bf16.xpose.msra.mxu0 0
        %1409 = vmatpush.bf16.xpose.msra.mxu0 0
        %1410 = vmatpush.bf16.xpose.msra.mxu0 %v1278
        %1411 = vmatmul.bf16.gmra.mxu0 %v1336
        %v1412 = vpop.f32.mrf.mxu0
        %v1413 = vadd.f32 0.0, %v1412
        %v1414 = vpop.f32.mrf.mxu0
        %1415 = vdwg.mxu0
        %1416 = vmatpush.bf16.xpose.msra.mxu0 0
        %1417 = vmatpush.bf16.xpose.msra.mxu0 0
        %1418 = vmatpush.bf16.xpose.msra.mxu0 0
        %1419 = vmatpush.bf16.xpose.msra.mxu0 0
        %1420 = vmatpush.bf16.xpose.msra.mxu0 0
        %1421 = vmatpush.bf16.xpose.msra.mxu0 0
        %1422 = vmatpush.bf16.xpose.msra.mxu0 0
        %1423 = vmatpush.bf16.xpose.msra.mxu0 %v1299
        %1424 = vmatmul.bf16.gmra.mxu0 %v1336
        %v1425 = vpop.f32.mrf.mxu0
        %v1426 = vadd.f32 0.0, %v1425
        %v1427 = vpop.f32.mrf.mxu0
        %1428 = vdwg.mxu0
        %1429 = vmatpush.bf16.xpose.msra.mxu0 0
        %1430 = vmatpush.bf16.xpose.msra.mxu0 0
        %1431 = vmatpush.bf16.xpose.msra.mxu0 0
        %1432 = vmatpush.bf16.xpose.msra.mxu0 0
        %1433 = vmatpush.bf16.xpose.msra.mxu0 0
        %1434 = vmatpush.bf16.xpose.msra.mxu0 0
        %1435 = vmatpush.bf16.xpose.msra.mxu0 0
        %1436 = vmatpush.bf16.xpose.msra.mxu0 %v1320
        %1437 = vmatmul.bf16.gmra.mxu0 %v1336
        %v1438 = vpop.f32.mrf.mxu0
        %v1439 = vadd.f32 0.0, %v1438
        %v1440 = vpop.f32.mrf.mxu0
        %1441 = vdwg.mxu0
        %v1442 = vperm.slane %v1185, 0
        %v1443 = vlaneseq
        %v1444 = vshrl.u32 %v1443, 7
        %1446 = vset.pattern.permute.xlu0 %v1444
        %1447 = vperm.xlu0 %1446, %v1442
        %v1448 = vpop.permute.xlu0 %1447
        %v1449 = vlaneseq
        %v1450 = vshrl.u32 %v1449, 7
        %v1451 = vadd.s32 %v1450, 8
        %1452 = vset.pattern.permute.xlu0 %v1451
        %1453 = vperm.xlu0 %1452, %v1442
        %v1454 = vpop.permute.xlu0 %1453
        %v1455 = vperm.slane %v1185, 1
        %v1456 = vlaneseq
        %v1457 = vshrl.u32 %v1456, 7
        %1459 = vset.pattern.permute.xlu0 %v1457
        %1460 = vperm.xlu0 %1459, %v1455
        %v1461 = vpop.permute.xlu0 %1460
        %v1462 = vlaneseq
        %v1463 = vshrl.u32 %v1462, 7
        %v1464 = vadd.s32 %v1463, 8
        %1465 = vset.pattern.permute.xlu0 %v1464
        %1466 = vperm.xlu0 %1465, %v1455
        %v1467 = vpop.permute.xlu0 %1466
        %v1468 = vperm.slane %v1185, 2
        %v1469 = vlaneseq
        %v1470 = vshrl.u32 %v1469, 7
        %1472 = vset.pattern.permute.xlu0 %v1470
        %1473 = vperm.xlu0 %1472, %v1468
        %v1474 = vpop.permute.xlu0 %1473
        %v1475 = vlaneseq
        %v1476 = vshrl.u32 %v1475, 7
        %v1477 = vadd.s32 %v1476, 8
        %1478 = vset.pattern.permute.xlu0 %v1477
        %1479 = vperm.xlu0 %1478, %v1468
        %v1480 = vpop.permute.xlu0 %1479
        %v1481 = vperm.slane %v1185, 3
        %v1482 = vlaneseq
        %v1483 = vshrl.u32 %v1482, 7
        %1485 = vset.pattern.permute.xlu0 %v1483
        %1486 = vperm.xlu0 %1485, %v1481
        %v1487 = vpop.permute.xlu0 %1486
        %v1488 = vlaneseq
        %v1489 = vshrl.u32 %v1488, 7
        %v1490 = vadd.s32 %v1489, 8
        %1491 = vset.pattern.permute.xlu0 %v1490
        %1492 = vperm.xlu0 %1491, %v1481
        %v1493 = vpop.permute.xlu0 %1492
        %v1494 = vperm.slane %v1206, 0
        %v1495 = vlaneseq
        %v1496 = vshrl.u32 %v1495, 7
        %1498 = vset.pattern.permute.xlu0 %v1496
        %1499 = vperm.xlu0 %1498, %v1494
        %v1500 = vpop.permute.xlu0 %1499
        %v1501 = vlaneseq
        %v1502 = vshrl.u32 %v1501, 7
        %v1503 = vadd.s32 %v1502, 8
        %1504 = vset.pattern.permute.xlu0 %v1503
        %1505 = vperm.xlu0 %1504, %v1494
        %v1506 = vpop.permute.xlu0 %1505
        %v1507 = vperm.slane %v1206, 1
        %v1508 = vlaneseq
        %v1509 = vshrl.u32 %v1508, 7
        %1511 = vset.pattern.permute.xlu0 %v1509
        %1512 = vperm.xlu0 %1511, %v1507
        %v1513 = vpop.permute.xlu0 %1512
        %v1514 = vlaneseq
        %v1515 = vshrl.u32 %v1514, 7
        %v1516 = vadd.s32 %v1515, 8
        %1517 = vset.pattern.permute.xlu0 %v1516
        %1518 = vperm.xlu0 %1517, %v1507
        %v1519 = vpop.permute.xlu0 %1518
        %v1520 = vperm.slane %v1206, 2
        %v1521 = vlaneseq
        %v1522 = vshrl.u32 %v1521, 7
        %1524 = vset.pattern.permute.xlu0 %v1522
        %1525 = vperm.xlu0 %1524, %v1520
        %v1526 = vpop.permute.xlu0 %1525
        %v1527 = vlaneseq
        %v1528 = vshrl.u32 %v1527, 7
        %v1529 = vadd.s32 %v1528, 8
        %1530 = vset.pattern.permute.xlu0 %v1529
        %1531 = vperm.xlu0 %1530, %v1520
        %v1532 = vpop.permute.xlu0 %1531
        %v1533 = vperm.slane %v1206, 3
        %v1534 = vlaneseq
        %v1535 = vshrl.u32 %v1534, 7
        %1537 = vset.pattern.permute.xlu0 %v1535
        %1538 = vperm.xlu0 %1537, %v1533
        %v1539 = vpop.permute.xlu0 %1538
        %v1540 = vlaneseq
        %v1541 = vshrl.u32 %v1540, 7
        %v1542 = vadd.s32 %v1541, 8
        %1543 = vset.pattern.permute.xlu0 %v1542
        %1544 = vperm.xlu0 %1543, %v1533
        %v1545 = vpop.permute.xlu0 %1544
        %v1546 = vperm.slane %v1227, 0
        %v1547 = vlaneseq
        %v1548 = vshrl.u32 %v1547, 7
        %1550 = vset.pattern.permute.xlu0 %v1548
        %1551 = vperm.xlu0 %1550, %v1546
        %v1552 = vpop.permute.xlu0 %1551
        %v1553 = vlaneseq
        %v1554 = vshrl.u32 %v1553, 7
        %v1555 = vadd.s32 %v1554, 8
        %1556 = vset.pattern.permute.xlu0 %v1555
        %1557 = vperm.xlu0 %1556, %v1546
        %v1558 = vpop.permute.xlu0 %1557
        %v1559 = vperm.slane %v1227, 1
        %v1560 = vlaneseq
        %v1561 = vshrl.u32 %v1560, 7
        %1563 = vset.pattern.permute.xlu0 %v1561
        %1564 = vperm.xlu0 %1563, %v1559
        %v1565 = vpop.permute.xlu0 %1564
        %v1566 = vlaneseq
        %v1567 = vshrl.u32 %v1566, 7
        %v1568 = vadd.s32 %v1567, 8
        %1569 = vset.pattern.permute.xlu0 %v1568
        %1570 = vperm.xlu0 %1569, %v1559
        %v1571 = vpop.permute.xlu0 %1570
        %v1572 = vperm.slane %v1227, 2
        %v1573 = vlaneseq
        %v1574 = vshrl.u32 %v1573, 7
        %1576 = vset.pattern.permute.xlu0 %v1574
        %1577 = vperm.xlu0 %1576, %v1572
        %v1578 = vpop.permute.xlu0 %1577
        %v1579 = vlaneseq
        %v1580 = vshrl.u32 %v1579, 7
        %v1581 = vadd.s32 %v1580, 8
        %1582 = vset.pattern.permute.xlu0 %v1581
        %1583 = vperm.xlu0 %1582, %v1572
        %v1584 = vpop.permute.xlu0 %1583
        %v1585 = vperm.slane %v1227, 3
        %v1586 = vlaneseq
        %v1587 = vshrl.u32 %v1586, 7
        %1589 = vset.pattern.permute.xlu0 %v1587
        %1590 = vperm.xlu0 %1589, %v1585
        %v1591 = vpop.permute.xlu0 %1590
        %v1592 = vlaneseq
        %v1593 = vshrl.u32 %v1592, 7
        %v1594 = vadd.s32 %v1593, 8
        %1595 = vset.pattern.permute.xlu0 %v1594
        %1596 = vperm.xlu0 %1595, %v1585
        %v1597 = vpop.permute.xlu0 %1596
        %v1598 = vperm.slane %v1248, 0
        %v1599 = vlaneseq
        %v1600 = vshrl.u32 %v1599, 7
        %1602 = vset.pattern.permute.xlu0 %v1600
        %1603 = vperm.xlu0 %1602, %v1598
        %v1604 = vpop.permute.xlu0 %1603
        %v1605 = vlaneseq
        %v1606 = vshrl.u32 %v1605, 7
        %v1607 = vadd.s32 %v1606, 8
        %1608 = vset.pattern.permute.xlu0 %v1607
        %1609 = vperm.xlu0 %1608, %v1598
        %v1610 = vpop.permute.xlu0 %1609
        %v1611 = vperm.slane %v1248, 1
        %v1612 = vlaneseq
        %v1613 = vshrl.u32 %v1612, 7
        %1615 = vset.pattern.permute.xlu0 %v1613
        %1616 = vperm.xlu0 %1615, %v1611
        %v1617 = vpop.permute.xlu0 %1616
        %v1618 = vlaneseq
        %v1619 = vshrl.u32 %v1618, 7
        %v1620 = vadd.s32 %v1619, 8
        %1621 = vset.pattern.permute.xlu0 %v1620
        %1622 = vperm.xlu0 %1621, %v1611
        %v1623 = vpop.permute.xlu0 %1622
        %v1624 = vperm.slane %v1248, 2
        %v1625 = vlaneseq
        %v1626 = vshrl.u32 %v1625, 7
        %1628 = vset.pattern.permute.xlu0 %v1626
        %1629 = vperm.xlu0 %1628, %v1624
        %v1630 = vpop.permute.xlu0 %1629
        %v1631 = vlaneseq
        %v1632 = vshrl.u32 %v1631, 7
        %v1633 = vadd.s32 %v1632, 8
        %1634 = vset.pattern.permute.xlu0 %v1633
        %1635 = vperm.xlu0 %1634, %v1624
        %v1636 = vpop.permute.xlu0 %1635
        %v1637 = vperm.slane %v1248, 3
        %v1638 = vlaneseq
        %v1639 = vshrl.u32 %v1638, 7
        %1641 = vset.pattern.permute.xlu0 %v1639
        %1642 = vperm.xlu0 %1641, %v1637
        %v1643 = vpop.permute.xlu0 %1642
        %v1644 = vlaneseq
        %v1645 = vshrl.u32 %v1644, 7
        %v1646 = vadd.s32 %v1645, 8
        %1647 = vset.pattern.permute.xlu0 %v1646
        %1648 = vperm.xlu0 %1647, %v1637
        %v1649 = vpop.permute.xlu0 %1648
        %v1650 = vperm.slane %v1269, 0
        %v1651 = vlaneseq
        %v1652 = vshrl.u32 %v1651, 7
        %1654 = vset.pattern.permute.xlu0 %v1652
        %1655 = vperm.xlu0 %1654, %v1650
        %v1656 = vpop.permute.xlu0 %1655
        %v1657 = vlaneseq
        %v1658 = vshrl.u32 %v1657, 7
        %v1659 = vadd.s32 %v1658, 8
        %1660 = vset.pattern.permute.xlu0 %v1659
        %1661 = vperm.xlu0 %1660, %v1650
        %v1662 = vpop.permute.xlu0 %1661
        %v1663 = vperm.slane %v1269, 1
        %v1664 = vlaneseq
        %v1665 = vshrl.u32 %v1664, 7
        %1667 = vset.pattern.permute.xlu0 %v1665
        %1668 = vperm.xlu0 %1667, %v1663
        %v1669 = vpop.permute.xlu0 %1668
        %v1670 = vlaneseq
        %v1671 = vshrl.u32 %v1670, 7
        %v1672 = vadd.s32 %v1671, 8
        %1673 = vset.pattern.permute.xlu0 %v1672
        %1674 = vperm.xlu0 %1673, %v1663
        %v1675 = vpop.permute.xlu0 %1674
        %v1676 = vperm.slane %v1269, 2
        %v1677 = vlaneseq
        %v1678 = vshrl.u32 %v1677, 7
        %1680 = vset.pattern.permute.xlu0 %v1678
        %1681 = vperm.xlu0 %1680, %v1676
        %v1682 = vpop.permute.xlu0 %1681
        %v1683 = vlaneseq
        %v1684 = vshrl.u32 %v1683, 7
        %v1685 = vadd.s32 %v1684, 8
        %1686 = vset.pattern.permute.xlu0 %v1685
        %1687 = vperm.xlu0 %1686, %v1676
        %v1688 = vpop.permute.xlu0 %1687
        %v1689 = vperm.slane %v1269, 3
        %v1690 = vlaneseq
        %v1691 = vshrl.u32 %v1690, 7
        %1693 = vset.pattern.permute.xlu0 %v1691
        %1694 = vperm.xlu0 %1693, %v1689
        %v1695 = vpop.permute.xlu0 %1694
        %v1696 = vlaneseq
        %v1697 = vshrl.u32 %v1696, 7
        %v1698 = vadd.s32 %v1697, 8
        %1699 = vset.pattern.permute.xlu0 %v1698
        %1700 = vperm.xlu0 %1699, %v1689
        %v1701 = vpop.permute.xlu0 %1700
        %v1702 = vperm.slane %v1290, 0
        %v1703 = vlaneseq
        %v1704 = vshrl.u32 %v1703, 7
        %1706 = vset.pattern.permute.xlu0 %v1704
        %1707 = vperm.xlu0 %1706, %v1702
        %v1708 = vpop.permute.xlu0 %1707
        %v1709 = vlaneseq
        %v1710 = vshrl.u32 %v1709, 7
        %v1711 = vadd.s32 %v1710, 8
        %1712 = vset.pattern.permute.xlu0 %v1711
        %1713 = vperm.xlu0 %1712, %v1702
        %v1714 = vpop.permute.xlu0 %1713
        %v1715 = vperm.slane %v1290, 1
        %v1716 = vlaneseq
        %v1717 = vshrl.u32 %v1716, 7
        %1719 = vset.pattern.permute.xlu0 %v1717
        %1720 = vperm.xlu0 %1719, %v1715
        %v1721 = vpop.permute.xlu0 %1720
        %v1722 = vlaneseq
        %v1723 = vshrl.u32 %v1722, 7
        %v1724 = vadd.s32 %v1723, 8
        %1725 = vset.pattern.permute.xlu0 %v1724
        %1726 = vperm.xlu0 %1725, %v1715
        %v1727 = vpop.permute.xlu0 %1726
        %v1728 = vperm.slane %v1290, 2
        %v1729 = vlaneseq
        %v1730 = vshrl.u32 %v1729, 7
        %1732 = vset.pattern.permute.xlu0 %v1730
        %1733 = vperm.xlu0 %1732, %v1728
        %v1734 = vpop.permute.xlu0 %1733
        %v1735 = vlaneseq
        %v1736 = vshrl.u32 %v1735, 7
        %v1737 = vadd.s32 %v1736, 8
        %1738 = vset.pattern.permute.xlu0 %v1737
        %1739 = vperm.xlu0 %1738, %v1728
        %v1740 = vpop.permute.xlu0 %1739
        %v1741 = vperm.slane %v1290, 3
        %v1742 = vlaneseq
        %v1743 = vshrl.u32 %v1742, 7
        %1745 = vset.pattern.permute.xlu0 %v1743
        %1746 = vperm.xlu0 %1745, %v1741
        %v1747 = vpop.permute.xlu0 %1746
        %v1748 = vlaneseq
        %v1749 = vshrl.u32 %v1748, 7
        %v1750 = vadd.s32 %v1749, 8
        %1751 = vset.pattern.permute.xlu0 %v1750
        %1752 = vperm.xlu0 %1751, %v1741
        %v1753 = vpop.permute.xlu0 %1752
        %v1754 = vperm.slane %v1311, 0
        %v1755 = vlaneseq
        %v1756 = vshrl.u32 %v1755, 7
        %1758 = vset.pattern.permute.xlu0 %v1756
        %1759 = vperm.xlu0 %1758, %v1754
        %v1760 = vpop.permute.xlu0 %1759
        %v1761 = vlaneseq
        %v1762 = vshrl.u32 %v1761, 7
        %v1763 = vadd.s32 %v1762, 8
        %1764 = vset.pattern.permute.xlu0 %v1763
        %1765 = vperm.xlu0 %1764, %v1754
        %v1766 = vpop.permute.xlu0 %1765
        %v1767 = vperm.slane %v1311, 1
        %v1768 = vlaneseq
        %v1769 = vshrl.u32 %v1768, 7
        %1771 = vset.pattern.permute.xlu0 %v1769
        %1772 = vperm.xlu0 %1771, %v1767
        %v1773 = vpop.permute.xlu0 %1772
        %v1774 = vlaneseq
        %v1775 = vshrl.u32 %v1774, 7
        %v1776 = vadd.s32 %v1775, 8
        %1777 = vset.pattern.permute.xlu0 %v1776
        %1778 = vperm.xlu0 %1777, %v1767
        %v1779 = vpop.permute.xlu0 %1778
        %v1780 = vperm.slane %v1311, 2
        %v1781 = vlaneseq
        %v1782 = vshrl.u32 %v1781, 7
        %1784 = vset.pattern.permute.xlu0 %v1782
        %1785 = vperm.xlu0 %1784, %v1780
        %v1786 = vpop.permute.xlu0 %1785
        %v1787 = vlaneseq
        %v1788 = vshrl.u32 %v1787, 7
        %v1789 = vadd.s32 %v1788, 8
        %1790 = vset.pattern.permute.xlu0 %v1789
        %1791 = vperm.xlu0 %1790, %v1780
        %v1792 = vpop.permute.xlu0 %1791
        %v1793 = vperm.slane %v1311, 3
        %v1794 = vlaneseq
        %v1795 = vshrl.u32 %v1794, 7
        %1797 = vset.pattern.permute.xlu0 %v1795
        %1798 = vperm.xlu0 %1797, %v1793
        %v1799 = vpop.permute.xlu0 %1798
        %v1800 = vlaneseq
        %v1801 = vshrl.u32 %v1800, 7
        %v1802 = vadd.s32 %v1801, 8
        %1803 = vset.pattern.permute.xlu0 %v1802
        %1804 = vperm.xlu0 %1803, %v1793
        %v1805 = vpop.permute.xlu0 %1804
        %v1806 = vperm.slane %v1332, 0
        %v1807 = vlaneseq
        %v1808 = vshrl.u32 %v1807, 7
        %1810 = vset.pattern.permute.xlu0 %v1808
        %1811 = vperm.xlu0 %1810, %v1806
        %v1812 = vpop.permute.xlu0 %1811
        %v1813 = vlaneseq
        %v1814 = vshrl.u32 %v1813, 7
        %v1815 = vadd.s32 %v1814, 8
        %1816 = vset.pattern.permute.xlu0 %v1815
        %1817 = vperm.xlu0 %1816, %v1806
        %v1818 = vpop.permute.xlu0 %1817
        %v1819 = vperm.slane %v1332, 1
        %v1820 = vlaneseq
        %v1821 = vshrl.u32 %v1820, 7
        %1823 = vset.pattern.permute.xlu0 %v1821
        %1824 = vperm.xlu0 %1823, %v1819
        %v1825 = vpop.permute.xlu0 %1824
        %v1826 = vlaneseq
        %v1827 = vshrl.u32 %v1826, 7
        %v1828 = vadd.s32 %v1827, 8
        %1829 = vset.pattern.permute.xlu0 %v1828
        %1830 = vperm.xlu0 %1829, %v1819
        %v1831 = vpop.permute.xlu0 %1830
        %v1832 = vperm.slane %v1332, 2
        %v1833 = vlaneseq
        %v1834 = vshrl.u32 %v1833, 7
        %1836 = vset.pattern.permute.xlu0 %v1834
        %1837 = vperm.xlu0 %1836, %v1832
        %v1838 = vpop.permute.xlu0 %1837
        %v1839 = vlaneseq
        %v1840 = vshrl.u32 %v1839, 7
        %v1841 = vadd.s32 %v1840, 8
        %1842 = vset.pattern.permute.xlu0 %v1841
        %1843 = vperm.xlu0 %1842, %v1832
        %v1844 = vpop.permute.xlu0 %1843
        %v1845 = vperm.slane %v1332, 3
        %v1846 = vlaneseq
        %v1847 = vshrl.u32 %v1846, 7
        %1849 = vset.pattern.permute.xlu0 %v1847
        %1850 = vperm.xlu0 %1849, %v1845
        %v1851 = vpop.permute.xlu0 %1850
        %v1852 = vlaneseq
        %v1853 = vshrl.u32 %v1852, 7
        %v1854 = vadd.s32 %v1853, 8
        %1855 = vset.pattern.permute.xlu0 %v1854
        %1856 = vperm.xlu0 %1855, %v1845
        %v1857 = vpop.permute.xlu0 %1856
        %v1866 = vrot.slane %v1348, 1
        %v1867 = vrot.slane %v1348, 2
        %v1868 = vrot.slane %v1348, 3
        %v1869 = vrot.slane %v1361, 1
        %v1870 = vrot.slane %v1361, 2
        %v1871 = vrot.slane %v1361, 3
        %v1872 = vrot.slane %v1374, 1
        %v1873 = vrot.slane %v1374, 2
        %v1874 = vrot.slane %v1374, 3
        %v1875 = vrot.slane %v1387, 1
        %v1876 = vrot.slane %v1387, 2
        %v1877 = vrot.slane %v1387, 3
        %v1878 = vrot.slane %v1400, 1
        %v1879 = vrot.slane %v1400, 2
        %v1880 = vrot.slane %v1400, 3
        %v1881 = vrot.slane %v1413, 1
        %v1882 = vrot.slane %v1413, 2
        %v1883 = vrot.slane %v1413, 3
        %v1884 = vrot.slane %v1426, 1
        %v1885 = vrot.slane %v1426, 2
        %v1886 = vrot.slane %v1426, 3
        %v1887 = vrot.slane %v1439, 1
        %v1888 = vrot.slane %v1439, 2
        %v1889 = vrot.slane %v1439, 3
        %v1890 = vperm.slane %v1348, 0
        %v1891 = vperm.slane %v1866, 0
        %v1892 = vperm.slane %v1867, 0
        %v1893 = vperm.slane %v1868, 0
        %v1894 = vperm.slane %v1361, 0
        %v1895 = vperm.slane %v1869, 0
        %v1896 = vperm.slane %v1870, 0
        %v1897 = vperm.slane %v1871, 0
        %v1898 = vperm.slane %v1374, 0
        %v1899 = vperm.slane %v1872, 0
        %v1900 = vperm.slane %v1873, 0
        %v1901 = vperm.slane %v1874, 0
        %v1902 = vperm.slane %v1387, 0
        %v1903 = vperm.slane %v1875, 0
        %v1904 = vperm.slane %v1876, 0
        %v1905 = vperm.slane %v1877, 0
        %v1906 = vperm.slane %v1400, 0
        %v1907 = vperm.slane %v1878, 0
        %v1908 = vperm.slane %v1879, 0
        %v1909 = vperm.slane %v1880, 0
        %v1910 = vperm.slane %v1413, 0
        %v1911 = vperm.slane %v1881, 0
        %v1912 = vperm.slane %v1882, 0
        %v1913 = vperm.slane %v1883, 0
        %v1914 = vperm.slane %v1426, 0
        %v1915 = vperm.slane %v1884, 0
        %v1916 = vperm.slane %v1885, 0
        %v1917 = vperm.slane %v1886, 0
        %v1918 = vperm.slane %v1439, 0
        %v1919 = vperm.slane %v1887, 0
        %v1920 = vperm.slane %v1888, 0
        %v1921 = vperm.slane %v1889, 0
        %v1954 = vadd.f32 %v1448, %v1890
        %v1955 = vadd.f32 %v1454, %v1890
        %v1956 = vadd.f32 %v1461, %v1891
        %v1957 = vadd.f32 %v1467, %v1891
        %v1958 = vadd.f32 %v1474, %v1892
        %v1959 = vadd.f32 %v1480, %v1892
        %v1960 = vadd.f32 %v1487, %v1893
        %v1961 = vadd.f32 %v1493, %v1893
        %v1962 = vadd.f32 %v1500, %v1894
        %v1963 = vadd.f32 %v1506, %v1894
        %v1964 = vadd.f32 %v1513, %v1895
        %v1965 = vadd.f32 %v1519, %v1895
        %v1966 = vadd.f32 %v1526, %v1896
        %v1967 = vadd.f32 %v1532, %v1896
        %v1968 = vadd.f32 %v1539, %v1897
        %v1969 = vadd.f32 %v1545, %v1897
        %v1970 = vadd.f32 %v1552, %v1898
        %v1971 = vadd.f32 %v1558, %v1898
        %v1972 = vadd.f32 %v1565, %v1899
        %v1973 = vadd.f32 %v1571, %v1899
        %v1974 = vadd.f32 %v1578, %v1900
        %v1975 = vadd.f32 %v1584, %v1900
        %v1976 = vadd.f32 %v1591, %v1901
        %v1977 = vadd.f32 %v1597, %v1901
        %v1978 = vadd.f32 %v1604, %v1902
        %v1979 = vadd.f32 %v1610, %v1902
        %v1980 = vadd.f32 %v1617, %v1903
        %v1981 = vadd.f32 %v1623, %v1903
        %v1982 = vadd.f32 %v1630, %v1904
        %v1983 = vadd.f32 %v1636, %v1904
        %v1984 = vadd.f32 %v1643, %v1905
        %v1985 = vadd.f32 %v1649, %v1905
        %v1986 = vadd.f32 %v1656, %v1906
        %v1987 = vadd.f32 %v1662, %v1906
        %v1988 = vadd.f32 %v1669, %v1907
        %v1989 = vadd.f32 %v1675, %v1907
        %v1990 = vadd.f32 %v1682, %v1908
        %v1991 = vadd.f32 %v1688, %v1908
        %v1992 = vadd.f32 %v1695, %v1909
        %v1993 = vadd.f32 %v1701, %v1909
        %v1994 = vadd.f32 %v1708, %v1910
        %v1995 = vadd.f32 %v1714, %v1910
        %v1996 = vadd.f32 %v1721, %v1911
        %v1997 = vadd.f32 %v1727, %v1911
        %v1998 = vadd.f32 %v1734, %v1912
        %v1999 = vadd.f32 %v1740, %v1912
        %v2000 = vadd.f32 %v1747, %v1913
        %v2001 = vadd.f32 %v1753, %v1913
        %v2002 = vadd.f32 %v1760, %v1914
        %v2003 = vadd.f32 %v1766, %v1914
        %v2004 = vadd.f32 %v1773, %v1915
        %v2005 = vadd.f32 %v1779, %v1915
        %v2006 = vadd.f32 %v1786, %v1916
        %v2007 = vadd.f32 %v1792, %v1916
        %v2008 = vadd.f32 %v1799, %v1917
        %v2009 = vadd.f32 %v1805, %v1917
        %v2010 = vadd.f32 %v1812, %v1918
        %v2011 = vadd.f32 %v1818, %v1918
        %v2012 = vadd.f32 %v1825, %v1919
        %v2013 = vadd.f32 %v1831, %v1919
        %v2014 = vadd.f32 %v1838, %v1920
        %v2015 = vadd.f32 %v1844, %v1920
        %v2016 = vadd.f32 %v1851, %v1921
        %v2017 = vadd.f32 %v1857, %v1921
        %vm2018 = vcmp.gt.f32.partialorder %v1954, 0.0
        %vm2019 = vcmp.gt.f32.partialorder %v1955, 0.0
        %vm2020 = vcmp.gt.f32.partialorder %v1956, 0.0
        %vm2021 = vcmp.gt.f32.partialorder %v1957, 0.0
        %vm2022 = vcmp.gt.f32.partialorder %v1958, 0.0
        %vm2023 = vcmp.gt.f32.partialorder %v1959, 0.0
        %vm2024 = vcmp.gt.f32.partialorder %v1960, 0.0
        %vm2025 = vcmp.gt.f32.partialorder %v1961, 0.0
        %vm2026 = vcmp.gt.f32.partialorder %v1962, 0.0
        %vm2027 = vcmp.gt.f32.partialorder %v1963, 0.0
        %vm2028 = vcmp.gt.f32.partialorder %v1964, 0.0
        %vm2029 = vcmp.gt.f32.partialorder %v1965, 0.0
        %vm2030 = vcmp.gt.f32.partialorder %v1966, 0.0
        %vm2031 = vcmp.gt.f32.partialorder %v1967, 0.0
        %vm2032 = vcmp.gt.f32.partialorder %v1968, 0.0
        %vm2033 = vcmp.gt.f32.partialorder %v1969, 0.0
        %vm2034 = vcmp.gt.f32.partialorder %v1970, 0.0
        %vm2035 = vcmp.gt.f32.partialorder %v1971, 0.0
        %vm2036 = vcmp.gt.f32.partialorder %v1972, 0.0
        %vm2037 = vcmp.gt.f32.partialorder %v1973, 0.0
        %vm2038 = vcmp.gt.f32.partialorder %v1974, 0.0
        %vm2039 = vcmp.gt.f32.partialorder %v1975, 0.0
        %vm2040 = vcmp.gt.f32.partialorder %v1976, 0.0
        %vm2041 = vcmp.gt.f32.partialorder %v1977, 0.0
        %vm2042 = vcmp.gt.f32.partialorder %v1978, 0.0
        %vm2043 = vcmp.gt.f32.partialorder %v1979, 0.0
        %vm2044 = vcmp.gt.f32.partialorder %v1980, 0.0
        %vm2045 = vcmp.gt.f32.partialorder %v1981, 0.0
        %vm2046 = vcmp.gt.f32.partialorder %v1982, 0.0
        %vm2047 = vcmp.gt.f32.partialorder %v1983, 0.0
        %vm2048 = vcmp.gt.f32.partialorder %v1984, 0.0
        %vm2049 = vcmp.gt.f32.partialorder %v1985, 0.0
        %vm2050 = vcmp.gt.f32.partialorder %v1986, 0.0
        %vm2051 = vcmp.gt.f32.partialorder %v1987, 0.0
        %vm2052 = vcmp.gt.f32.partialorder %v1988, 0.0
        %vm2053 = vcmp.gt.f32.partialorder %v1989, 0.0
        %vm2054 = vcmp.gt.f32.partialorder %v1990, 0.0
        %vm2055 = vcmp.gt.f32.partialorder %v1991, 0.0
        %vm2056 = vcmp.gt.f32.partialorder %v1992, 0.0
        %vm2057 = vcmp.gt.f32.partialorder %v1993, 0.0
        %vm2058 = vcmp.gt.f32.partialorder %v1994, 0.0
        %vm2059 = vcmp.gt.f32.partialorder %v1995, 0.0
        %vm2060 = vcmp.gt.f32.partialorder %v1996, 0.0
        %vm2061 = vcmp.gt.f32.partialorder %v1997, 0.0
        %vm2062 = vcmp.gt.f32.partialorder %v1998, 0.0
        %vm2063 = vcmp.gt.f32.partialorder %v1999, 0.0
        %vm2064 = vcmp.gt.f32.partialorder %v2000, 0.0
        %vm2065 = vcmp.gt.f32.partialorder %v2001, 0.0
        %vm2066 = vcmp.gt.f32.partialorder %v2002, 0.0
        %vm2067 = vcmp.gt.f32.partialorder %v2003, 0.0
        %vm2068 = vcmp.gt.f32.partialorder %v2004, 0.0
        %vm2069 = vcmp.gt.f32.partialorder %v2005, 0.0
        %vm2070 = vcmp.gt.f32.partialorder %v2006, 0.0
        %vm2071 = vcmp.gt.f32.partialorder %v2007, 0.0
        %vm2072 = vcmp.gt.f32.partialorder %v2008, 0.0
        %vm2073 = vcmp.gt.f32.partialorder %v2009, 0.0
        %vm2074 = vcmp.gt.f32.partialorder %v2010, 0.0
        %vm2075 = vcmp.gt.f32.partialorder %v2011, 0.0
        %vm2076 = vcmp.gt.f32.partialorder %v2012, 0.0
        %vm2077 = vcmp.gt.f32.partialorder %v2013, 0.0
        %vm2078 = vcmp.gt.f32.partialorder %v2014, 0.0
        %vm2079 = vcmp.gt.f32.partialorder %v2015, 0.0
        %vm2080 = vcmp.gt.f32.partialorder %v2016, 0.0
        %vm2081 = vcmp.gt.f32.partialorder %v2017, 0.0
        %v2082 = vmul.f32 %v1954, 0.2
        %v2083 = vmul.f32 %v1955, 0.2
        %v2084 = vmul.f32 %v1956, 0.2
        %v2085 = vmul.f32 %v1957, 0.2
        %v2086 = vmul.f32 %v1958, 0.2
        %v2087 = vmul.f32 %v1959, 0.2
        %v2088 = vmul.f32 %v1960, 0.2
        %v2089 = vmul.f32 %v1961, 0.2
        %v2090 = vmul.f32 %v1962, 0.2
        %v2091 = vmul.f32 %v1963, 0.2
        %v2092 = vmul.f32 %v1964, 0.2
        %v2093 = vmul.f32 %v1965, 0.2
        %v2094 = vmul.f32 %v1966, 0.2
        %v2095 = vmul.f32 %v1967, 0.2
        %v2096 = vmul.f32 %v1968, 0.2
        %v2097 = vmul.f32 %v1969, 0.2
        %v2098 = vmul.f32 %v1970, 0.2
        %v2099 = vmul.f32 %v1971, 0.2
        %v2100 = vmul.f32 %v1972, 0.2
        %v2101 = vmul.f32 %v1973, 0.2
        %v2102 = vmul.f32 %v1974, 0.2
        %v2103 = vmul.f32 %v1975, 0.2
        %v2104 = vmul.f32 %v1976, 0.2
        %v2105 = vmul.f32 %v1977, 0.2
        %v2106 = vmul.f32 %v1978, 0.2
        %v2107 = vmul.f32 %v1979, 0.2
        %v2108 = vmul.f32 %v1980, 0.2
        %v2109 = vmul.f32 %v1981, 0.2
        %v2110 = vmul.f32 %v1982, 0.2
        %v2111 = vmul.f32 %v1983, 0.2
        %v2112 = vmul.f32 %v1984, 0.2
        %v2113 = vmul.f32 %v1985, 0.2
        %v2114 = vmul.f32 %v1986, 0.2
        %v2115 = vmul.f32 %v1987, 0.2
        %v2116 = vmul.f32 %v1988, 0.2
        %v2117 = vmul.f32 %v1989, 0.2
        %v2118 = vmul.f32 %v1990, 0.2
        %v2119 = vmul.f32 %v1991, 0.2
        %v2120 = vmul.f32 %v1992, 0.2
        %v2121 = vmul.f32 %v1993, 0.2
        %v2122 = vmul.f32 %v1994, 0.2
        %v2123 = vmul.f32 %v1995, 0.2
        %v2124 = vmul.f32 %v1996, 0.2
        %v2125 = vmul.f32 %v1997, 0.2
        %v2126 = vmul.f32 %v1998, 0.2
        %v2127 = vmul.f32 %v1999, 0.2
        %v2128 = vmul.f32 %v2000, 0.2
        %v2129 = vmul.f32 %v2001, 0.2
        %v2130 = vmul.f32 %v2002, 0.2
        %v2131 = vmul.f32 %v2003, 0.2
        %v2132 = vmul.f32 %v2004, 0.2
        %v2133 = vmul.f32 %v2005, 0.2
        %v2134 = vmul.f32 %v2006, 0.2
        %v2135 = vmul.f32 %v2007, 0.2
        %v2136 = vmul.f32 %v2008, 0.2
        %v2137 = vmul.f32 %v2009, 0.2
        %v2138 = vmul.f32 %v2010, 0.2
        %v2139 = vmul.f32 %v2011, 0.2
        %v2140 = vmul.f32 %v2012, 0.2
        %v2141 = vmul.f32 %v2013, 0.2
        %v2142 = vmul.f32 %v2014, 0.2
        %v2143 = vmul.f32 %v2015, 0.2
        %v2144 = vmul.f32 %v2016, 0.2
        %v2145 = vmul.f32 %v2017, 0.2
        %v2146 = vsel %vm2018, %v1954, %v2082
        %v2147 = vsel %vm2019, %v1955, %v2083
        %v2148 = vsel %vm2020, %v1956, %v2084
        %v2149 = vsel %vm2021, %v1957, %v2085
        %v2150 = vsel %vm2022, %v1958, %v2086
        %v2151 = vsel %vm2023, %v1959, %v2087
        %v2152 = vsel %vm2024, %v1960, %v2088
        %v2153 = vsel %vm2025, %v1961, %v2089
        %v2154 = vsel %vm2026, %v1962, %v2090
        %v2155 = vsel %vm2027, %v1963, %v2091
        %v2156 = vsel %vm2028, %v1964, %v2092
        %v2157 = vsel %vm2029, %v1965, %v2093
        %v2158 = vsel %vm2030, %v1966, %v2094
        %v2159 = vsel %vm2031, %v1967, %v2095
        %v2160 = vsel %vm2032, %v1968, %v2096
        %v2161 = vsel %vm2033, %v1969, %v2097
        %v2162 = vsel %vm2034, %v1970, %v2098
        %v2163 = vsel %vm2035, %v1971, %v2099
        %v2164 = vsel %vm2036, %v1972, %v2100
        %v2165 = vsel %vm2037, %v1973, %v2101
        %v2166 = vsel %vm2038, %v1974, %v2102
        %v2167 = vsel %vm2039, %v1975, %v2103
        %v2168 = vsel %vm2040, %v1976, %v2104
        %v2169 = vsel %vm2041, %v1977, %v2105
        %v2170 = vsel %vm2042, %v1978, %v2106
        %v2171 = vsel %vm2043, %v1979, %v2107
        %v2172 = vsel %vm2044, %v1980, %v2108
        %v2173 = vsel %vm2045, %v1981, %v2109
        %v2174 = vsel %vm2046, %v1982, %v2110
        %v2175 = vsel %vm2047, %v1983, %v2111
        %v2176 = vsel %vm2048, %v1984, %v2112
        %v2177 = vsel %vm2049, %v1985, %v2113
        %v2178 = vsel %vm2050, %v1986, %v2114
        %v2179 = vsel %vm2051, %v1987, %v2115
        %v2180 = vsel %vm2052, %v1988, %v2116
        %v2181 = vsel %vm2053, %v1989, %v2117
        %v2182 = vsel %vm2054, %v1990, %v2118
        %v2183 = vsel %vm2055, %v1991, %v2119
        %v2184 = vsel %vm2056, %v1992, %v2120
        %v2185 = vsel %vm2057, %v1993, %v2121
        %v2186 = vsel %vm2058, %v1994, %v2122
        %v2187 = vsel %vm2059, %v1995, %v2123
        %v2188 = vsel %vm2060, %v1996, %v2124
        %v2189 = vsel %vm2061, %v1997, %v2125
        %v2190 = vsel %vm2062, %v1998, %v2126
        %v2191 = vsel %vm2063, %v1999, %v2127
        %v2192 = vsel %vm2064, %v2000, %v2128
        %v2193 = vsel %vm2065, %v2001, %v2129
        %v2194 = vsel %vm2066, %v2002, %v2130
        %v2195 = vsel %vm2067, %v2003, %v2131
        %v2196 = vsel %vm2068, %v2004, %v2132
        %v2197 = vsel %vm2069, %v2005, %v2133
        %v2198 = vsel %vm2070, %v2006, %v2134
        %v2199 = vsel %vm2071, %v2007, %v2135
        %v2200 = vsel %vm2072, %v2008, %v2136
        %v2201 = vsel %vm2073, %v2009, %v2137
        %v2202 = vsel %vm2074, %v2010, %v2138
        %v2203 = vsel %vm2075, %v2011, %v2139
        %v2204 = vsel %vm2076, %v2012, %v2140
        %v2205 = vsel %vm2077, %v2013, %v2141
        %v2206 = vsel %vm2078, %v2014, %v2142
        %v2207 = vsel %vm2079, %v2015, %v2143
        %v2208 = vsel %vm2080, %v2016, %v2144
        %v2209 = vsel %vm2081, %v2017, %v2145
        %v2210 = vadd.f32 %v2146, %v1029
        %v2211 = vadd.f32 %v2147, %v1030
        %v2212 = vadd.f32 %v2148, %v1029
        %v2213 = vadd.f32 %v2149, %v1030
        %v2214 = vadd.f32 %v2150, %v1029
        %v2215 = vadd.f32 %v2151, %v1030
        %v2216 = vadd.f32 %v2152, %v1029
        %v2217 = vadd.f32 %v2153, %v1030
        %v2218 = vadd.f32 %v2154, %v1029
        %v2219 = vadd.f32 %v2155, %v1030
        %v2220 = vadd.f32 %v2156, %v1029
        %v2221 = vadd.f32 %v2157, %v1030
        %v2222 = vadd.f32 %v2158, %v1029
        %v2223 = vadd.f32 %v2159, %v1030
        %v2224 = vadd.f32 %v2160, %v1029
        %v2225 = vadd.f32 %v2161, %v1030
        %v2226 = vadd.f32 %v2162, %v1029
        %v2227 = vadd.f32 %v2163, %v1030
        %v2228 = vadd.f32 %v2164, %v1029
        %v2229 = vadd.f32 %v2165, %v1030
        %v2230 = vadd.f32 %v2166, %v1029
        %v2231 = vadd.f32 %v2167, %v1030
        %v2232 = vadd.f32 %v2168, %v1029
        %v2233 = vadd.f32 %v2169, %v1030
        %v2234 = vadd.f32 %v2170, %v1029
        %v2235 = vadd.f32 %v2171, %v1030
        %v2236 = vadd.f32 %v2172, %v1029
        %v2237 = vadd.f32 %v2173, %v1030
        %v2238 = vadd.f32 %v2174, %v1029
        %v2239 = vadd.f32 %v2175, %v1030
        %v2240 = vadd.f32 %v2176, %v1029
        %v2241 = vadd.f32 %v2177, %v1030
        %v2242 = vadd.f32 %v2178, %v1029
        %v2243 = vadd.f32 %v2179, %v1030
        %v2244 = vadd.f32 %v2180, %v1029
        %v2245 = vadd.f32 %v2181, %v1030
        %v2246 = vadd.f32 %v2182, %v1029
        %v2247 = vadd.f32 %v2183, %v1030
        %v2248 = vadd.f32 %v2184, %v1029
        %v2249 = vadd.f32 %v2185, %v1030
        %v2250 = vadd.f32 %v2186, %v1029
        %v2251 = vadd.f32 %v2187, %v1030
        %v2252 = vadd.f32 %v2188, %v1029
        %v2253 = vadd.f32 %v2189, %v1030
        %v2254 = vadd.f32 %v2190, %v1029
        %v2255 = vadd.f32 %v2191, %v1030
        %v2256 = vadd.f32 %v2192, %v1029
        %v2257 = vadd.f32 %v2193, %v1030
        %v2258 = vadd.f32 %v2194, %v1029
        %v2259 = vadd.f32 %v2195, %v1030
        %v2260 = vadd.f32 %v2196, %v1029
        %v2261 = vadd.f32 %v2197, %v1030
        %v2262 = vadd.f32 %v2198, %v1029
        %v2263 = vadd.f32 %v2199, %v1030
        %v2264 = vadd.f32 %v2200, %v1029
        %v2265 = vadd.f32 %v2201, %v1030
        %v2266 = vadd.f32 %v2202, %v1029
        %v2267 = vadd.f32 %v2203, %v1030
        %v2268 = vadd.f32 %v2204, %v1029
        %v2269 = vadd.f32 %v2205, %v1030
        %v2270 = vadd.f32 %v2206, %v1029
        %v2271 = vadd.f32 %v2207, %v1030
        %v2272 = vadd.f32 %v2208, %v1029
        %v2273 = vadd.f32 %v2209, %v1030
        %vm2274 = vcmask 130048
        %v2275 = vsel %vm2274, %v2210, -inf
        %2276 = vmax.xlane.f32.xlu0 %v2275
        %v2277 = vpop.xlane.xlu0 %2276
        %v2278 = vsel %vm2274, %v2211, -inf
        %2279 = vmax.xlane.f32.xlu0 %v2278
        %v2280 = vpop.xlane.xlu0 %2279
        %v2281 = vsel %vm2274, %v2212, -inf
        %2282 = vmax.xlane.f32.xlu0 %v2281
        %v2283 = vpop.xlane.xlu0 %2282
        %v2284 = vsel %vm2274, %v2213, -inf
        %2285 = vmax.xlane.f32.xlu0 %v2284
        %v2286 = vpop.xlane.xlu0 %2285
        %v2287 = vsel %vm2274, %v2214, -inf
        %2288 = vmax.xlane.f32.xlu0 %v2287
        %v2289 = vpop.xlane.xlu0 %2288
        %v2290 = vsel %vm2274, %v2215, -inf
        %2291 = vmax.xlane.f32.xlu0 %v2290
        %v2292 = vpop.xlane.xlu0 %2291
        %v2293 = vsel %vm2274, %v2216, -inf
        %2294 = vmax.xlane.f32.xlu0 %v2293
        %v2295 = vpop.xlane.xlu0 %2294
        %v2296 = vsel %vm2274, %v2217, -inf
        %2297 = vmax.xlane.f32.xlu0 %v2296
        %v2298 = vpop.xlane.xlu0 %2297
        %v2299 = vsel %vm2274, %v2218, -inf
        %2300 = vmax.xlane.f32.xlu0 %v2299
        %v2301 = vpop.xlane.xlu0 %2300
        %v2302 = vsel %vm2274, %v2219, -inf
        %2303 = vmax.xlane.f32.xlu0 %v2302
        %v2304 = vpop.xlane.xlu0 %2303
        %v2305 = vsel %vm2274, %v2220, -inf
        %2306 = vmax.xlane.f32.xlu0 %v2305
        %v2307 = vpop.xlane.xlu0 %2306
        %v2308 = vsel %vm2274, %v2221, -inf
        %2309 = vmax.xlane.f32.xlu0 %v2308
        %v2310 = vpop.xlane.xlu0 %2309
        %v2311 = vsel %vm2274, %v2222, -inf
        %2312 = vmax.xlane.f32.xlu0 %v2311
        %v2313 = vpop.xlane.xlu0 %2312
        %v2314 = vsel %vm2274, %v2223, -inf
        %2315 = vmax.xlane.f32.xlu0 %v2314
        %v2316 = vpop.xlane.xlu0 %2315
        %v2317 = vsel %vm2274, %v2224, -inf
        %2318 = vmax.xlane.f32.xlu0 %v2317
        %v2319 = vpop.xlane.xlu0 %2318
        %v2320 = vsel %vm2274, %v2225, -inf
        %2321 = vmax.xlane.f32.xlu0 %v2320
        %v2322 = vpop.xlane.xlu0 %2321
        %v2323 = vsel %vm2274, %v2226, -inf
        %2324 = vmax.xlane.f32.xlu0 %v2323
        %v2325 = vpop.xlane.xlu0 %2324
        %v2326 = vsel %vm2274, %v2227, -inf
        %2327 = vmax.xlane.f32.xlu0 %v2326
        %v2328 = vpop.xlane.xlu0 %2327
        %v2329 = vsel %vm2274, %v2228, -inf
        %2330 = vmax.xlane.f32.xlu0 %v2329
        %v2331 = vpop.xlane.xlu0 %2330
        %v2332 = vsel %vm2274, %v2229, -inf
        %2333 = vmax.xlane.f32.xlu0 %v2332
        %v2334 = vpop.xlane.xlu0 %2333
        %v2335 = vsel %vm2274, %v2230, -inf
        %2336 = vmax.xlane.f32.xlu0 %v2335
        %v2337 = vpop.xlane.xlu0 %2336
        %v2338 = vsel %vm2274, %v2231, -inf
        %2339 = vmax.xlane.f32.xlu0 %v2338
        %v2340 = vpop.xlane.xlu0 %2339
        %v2341 = vsel %vm2274, %v2232, -inf
        %2342 = vmax.xlane.f32.xlu0 %v2341
        %v2343 = vpop.xlane.xlu0 %2342
        %v2344 = vsel %vm2274, %v2233, -inf
        %2345 = vmax.xlane.f32.xlu0 %v2344
        %v2346 = vpop.xlane.xlu0 %2345
        %v2347 = vsel %vm2274, %v2234, -inf
        %2348 = vmax.xlane.f32.xlu0 %v2347
        %v2349 = vpop.xlane.xlu0 %2348
        %v2350 = vsel %vm2274, %v2235, -inf
        %2351 = vmax.xlane.f32.xlu0 %v2350
        %v2352 = vpop.xlane.xlu0 %2351
        %v2353 = vsel %vm2274, %v2236, -inf
        %2354 = vmax.xlane.f32.xlu0 %v2353
        %v2355 = vpop.xlane.xlu0 %2354
        %v2356 = vsel %vm2274, %v2237, -inf
        %2357 = vmax.xlane.f32.xlu0 %v2356
        %v2358 = vpop.xlane.xlu0 %2357
        %v2359 = vsel %vm2274, %v2238, -inf
        %2360 = vmax.xlane.f32.xlu0 %v2359
        %v2361 = vpop.xlane.xlu0 %2360
        %v2362 = vsel %vm2274, %v2239, -inf
        %2363 = vmax.xlane.f32.xlu0 %v2362
        %v2364 = vpop.xlane.xlu0 %2363
        %v2365 = vsel %vm2274, %v2240, -inf
        %2366 = vmax.xlane.f32.xlu0 %v2365
        %v2367 = vpop.xlane.xlu0 %2366
        %v2368 = vsel %vm2274, %v2241, -inf
        %2369 = vmax.xlane.f32.xlu0 %v2368
        %v2370 = vpop.xlane.xlu0 %2369
        %v2371 = vsel %vm2274, %v2242, -inf
        %2372 = vmax.xlane.f32.xlu0 %v2371
        %v2373 = vpop.xlane.xlu0 %2372
        %v2374 = vsel %vm2274, %v2243, -inf
        %2375 = vmax.xlane.f32.xlu0 %v2374
        %v2376 = vpop.xlane.xlu0 %2375
        %v2377 = vsel %vm2274, %v2244, -inf
        %2378 = vmax.xlane.f32.xlu0 %v2377
        %v2379 = vpop.xlane.xlu0 %2378
        %v2380 = vsel %vm2274, %v2245, -inf
        %2381 = vmax.xlane.f32.xlu0 %v2380
        %v2382 = vpop.xlane.xlu0 %2381
        %v2383 = vsel %vm2274, %v2246, -inf
        %2384 = vmax.xlane.f32.xlu0 %v2383
        %v2385 = vpop.xlane.xlu0 %2384
        %v2386 = vsel %vm2274, %v2247, -inf
        %2387 = vmax.xlane.f32.xlu0 %v2386
        %v2388 = vpop.xlane.xlu0 %2387
        %v2389 = vsel %vm2274, %v2248, -inf
        %2390 = vmax.xlane.f32.xlu0 %v2389
        %v2391 = vpop.xlane.xlu0 %2390
        %v2392 = vsel %vm2274, %v2249, -inf
        %2393 = vmax.xlane.f32.xlu0 %v2392
        %v2394 = vpop.xlane.xlu0 %2393
        %v2395 = vsel %vm2274, %v2250, -inf
        %2396 = vmax.xlane.f32.xlu0 %v2395
        %v2397 = vpop.xlane.xlu0 %2396
        %v2398 = vsel %vm2274, %v2251, -inf
        %2399 = vmax.xlane.f32.xlu0 %v2398
        %v2400 = vpop.xlane.xlu0 %2399
        %v2401 = vsel %vm2274, %v2252, -inf
        %2402 = vmax.xlane.f32.xlu0 %v2401
        %v2403 = vpop.xlane.xlu0 %2402
        %v2404 = vsel %vm2274, %v2253, -inf
        %2405 = vmax.xlane.f32.xlu0 %v2404
        %v2406 = vpop.xlane.xlu0 %2405
        %v2407 = vsel %vm2274, %v2254, -inf
        %2408 = vmax.xlane.f32.xlu0 %v2407
        %v2409 = vpop.xlane.xlu0 %2408
        %v2410 = vsel %vm2274, %v2255, -inf
        %2411 = vmax.xlane.f32.xlu0 %v2410
        %v2412 = vpop.xlane.xlu0 %2411
        %v2413 = vsel %vm2274, %v2256, -inf
        %2414 = vmax.xlane.f32.xlu0 %v2413
        %v2415 = vpop.xlane.xlu0 %2414
        %v2416 = vsel %vm2274, %v2257, -inf
        %2417 = vmax.xlane.f32.xlu0 %v2416
        %v2418 = vpop.xlane.xlu0 %2417
        %v2419 = vsel %vm2274, %v2258, -inf
        %2420 = vmax.xlane.f32.xlu0 %v2419
        %v2421 = vpop.xlane.xlu0 %2420
        %v2422 = vsel %vm2274, %v2259, -inf
        %2423 = vmax.xlane.f32.xlu0 %v2422
        %v2424 = vpop.xlane.xlu0 %2423
        %v2425 = vsel %vm2274, %v2260, -inf
        %2426 = vmax.xlane.f32.xlu0 %v2425
        %v2427 = vpop.xlane.xlu0 %2426
        %v2428 = vsel %vm2274, %v2261, -inf
        %2429 = vmax.xlane.f32.xlu0 %v2428
        %v2430 = vpop.xlane.xlu0 %2429
        %v2431 = vsel %vm2274, %v2262, -inf
        %2432 = vmax.xlane.f32.xlu0 %v2431
        %v2433 = vpop.xlane.xlu0 %2432
        %v2434 = vsel %vm2274, %v2263, -inf
        %2435 = vmax.xlane.f32.xlu0 %v2434
        %v2436 = vpop.xlane.xlu0 %2435
        %v2437 = vsel %vm2274, %v2264, -inf
        %2438 = vmax.xlane.f32.xlu0 %v2437
        %v2439 = vpop.xlane.xlu0 %2438
        %v2440 = vsel %vm2274, %v2265, -inf
        %2441 = vmax.xlane.f32.xlu0 %v2440
        %v2442 = vpop.xlane.xlu0 %2441
        %v2443 = vsel %vm2274, %v2266, -inf
        %2444 = vmax.xlane.f32.xlu0 %v2443
        %v2445 = vpop.xlane.xlu0 %2444
        %v2446 = vsel %vm2274, %v2267, -inf
        %2447 = vmax.xlane.f32.xlu0 %v2446
        %v2448 = vpop.xlane.xlu0 %2447
        %v2449 = vsel %vm2274, %v2268, -inf
        %2450 = vmax.xlane.f32.xlu0 %v2449
        %v2451 = vpop.xlane.xlu0 %2450
        %v2452 = vsel %vm2274, %v2269, -inf
        %2453 = vmax.xlane.f32.xlu0 %v2452
        %v2454 = vpop.xlane.xlu0 %2453
        %v2455 = vsel %vm2274, %v2270, -inf
        %2456 = vmax.xlane.f32.xlu0 %v2455
        %v2457 = vpop.xlane.xlu0 %2456
        %v2458 = vsel %vm2274, %v2271, -inf
        %2459 = vmax.xlane.f32.xlu0 %v2458
        %v2460 = vpop.xlane.xlu0 %2459
        %v2461 = vsel %vm2274, %v2272, -inf
        %2462 = vmax.xlane.f32.xlu0 %v2461
        %v2463 = vpop.xlane.xlu0 %2462
        %v2464 = vsel %vm2274, %v2273, -inf
        %2465 = vmax.xlane.f32.xlu0 %v2464
        %v2466 = vpop.xlane.xlu0 %2465
        %v2467 = vsub.f32 %v2210, %v2277
        %v2468 = vsub.f32 %v2211, %v2280
        %v2469 = vsub.f32 %v2212, %v2283
        %v2470 = vsub.f32 %v2213, %v2286
        %v2471 = vsub.f32 %v2214, %v2289
        %v2472 = vsub.f32 %v2215, %v2292
        %v2473 = vsub.f32 %v2216, %v2295
        %v2474 = vsub.f32 %v2217, %v2298
        %v2475 = vsub.f32 %v2218, %v2301
        %v2476 = vsub.f32 %v2219, %v2304
        %v2477 = vsub.f32 %v2220, %v2307
        %v2478 = vsub.f32 %v2221, %v2310
        %v2479 = vsub.f32 %v2222, %v2313
        %v2480 = vsub.f32 %v2223, %v2316
        %v2481 = vsub.f32 %v2224, %v2319
        %v2482 = vsub.f32 %v2225, %v2322
        %v2483 = vsub.f32 %v2226, %v2325
        %v2484 = vsub.f32 %v2227, %v2328
        %v2485 = vsub.f32 %v2228, %v2331
        %v2486 = vsub.f32 %v2229, %v2334
        %v2487 = vsub.f32 %v2230, %v2337
        %v2488 = vsub.f32 %v2231, %v2340
        %v2489 = vsub.f32 %v2232, %v2343
        %v2490 = vsub.f32 %v2233, %v2346
        %v2491 = vsub.f32 %v2234, %v2349
        %v2492 = vsub.f32 %v2235, %v2352
        %v2493 = vsub.f32 %v2236, %v2355
        %v2494 = vsub.f32 %v2237, %v2358
        %v2495 = vsub.f32 %v2238, %v2361
        %v2496 = vsub.f32 %v2239, %v2364
        %v2497 = vsub.f32 %v2240, %v2367
        %v2498 = vsub.f32 %v2241, %v2370
        %v2499 = vsub.f32 %v2242, %v2373
        %v2500 = vsub.f32 %v2243, %v2376
        %v2501 = vsub.f32 %v2244, %v2379
        %v2502 = vsub.f32 %v2245, %v2382
        %v2503 = vsub.f32 %v2246, %v2385
        %v2504 = vsub.f32 %v2247, %v2388
        %v2505 = vsub.f32 %v2248, %v2391
        %v2506 = vsub.f32 %v2249, %v2394
        %v2507 = vsub.f32 %v2250, %v2397
        %v2508 = vsub.f32 %v2251, %v2400
        %v2509 = vsub.f32 %v2252, %v2403
        %v2510 = vsub.f32 %v2253, %v2406
        %v2511 = vsub.f32 %v2254, %v2409
        %v2512 = vsub.f32 %v2255, %v2412
        %v2513 = vsub.f32 %v2256, %v2415
        %v2514 = vsub.f32 %v2257, %v2418
        %v2515 = vsub.f32 %v2258, %v2421
        %v2516 = vsub.f32 %v2259, %v2424
        %v2517 = vsub.f32 %v2260, %v2427
        %v2518 = vsub.f32 %v2261, %v2430
        %v2519 = vsub.f32 %v2262, %v2433
        %v2520 = vsub.f32 %v2263, %v2436
        %v2521 = vsub.f32 %v2264, %v2439
        %v2522 = vsub.f32 %v2265, %v2442
        %v2523 = vsub.f32 %v2266, %v2445
        %v2524 = vsub.f32 %v2267, %v2448
        %v2525 = vsub.f32 %v2268, %v2451
        %v2526 = vsub.f32 %v2269, %v2454
        %v2527 = vsub.f32 %v2270, %v2457
        %v2528 = vsub.f32 %v2271, %v2460
        %v2529 = vsub.f32 %v2272, %v2463
        %v2530 = vsub.f32 %v2273, %v2466
        %v2531 = vmul.f32 %v2467, 1.442695
        %v2532 = vpow.pop %v2531
        %v2533 = vmul.f32 %v2468, 1.442695
        %v2534 = vpow.pop %v2533
        %v2535 = vmul.f32 %v2469, 1.442695
        %v2536 = vpow.pop %v2535
        %v2537 = vmul.f32 %v2470, 1.442695
        %v2538 = vpow.pop %v2537
        %v2539 = vmul.f32 %v2471, 1.442695
        %v2540 = vpow.pop %v2539
        %v2541 = vmul.f32 %v2472, 1.442695
        %v2542 = vpow.pop %v2541
        %v2543 = vmul.f32 %v2473, 1.442695
        %v2544 = vpow.pop %v2543
        %v2545 = vmul.f32 %v2474, 1.442695
        %v2546 = vpow.pop %v2545
        %v2547 = vmul.f32 %v2475, 1.442695
        %v2548 = vpow.pop %v2547
        %v2549 = vmul.f32 %v2476, 1.442695
        %v2550 = vpow.pop %v2549
        %v2551 = vmul.f32 %v2477, 1.442695
        %v2552 = vpow.pop %v2551
        %v2553 = vmul.f32 %v2478, 1.442695
        %v2554 = vpow.pop %v2553
        %v2555 = vmul.f32 %v2479, 1.442695
        %v2556 = vpow.pop %v2555
        %v2557 = vmul.f32 %v2480, 1.442695
        %v2558 = vpow.pop %v2557
        %v2559 = vmul.f32 %v2481, 1.442695
        %v2560 = vpow.pop %v2559
        %v2561 = vmul.f32 %v2482, 1.442695
        %v2562 = vpow.pop %v2561
        %v2563 = vmul.f32 %v2483, 1.442695
        %v2564 = vpow.pop %v2563
        %v2565 = vmul.f32 %v2484, 1.442695
        %v2566 = vpow.pop %v2565
        %v2567 = vmul.f32 %v2485, 1.442695
        %v2568 = vpow.pop %v2567
        %v2569 = vmul.f32 %v2486, 1.442695
        %v2570 = vpow.pop %v2569
        %v2571 = vmul.f32 %v2487, 1.442695
        %v2572 = vpow.pop %v2571
        %v2573 = vmul.f32 %v2488, 1.442695
        %v2574 = vpow.pop %v2573
        %v2575 = vmul.f32 %v2489, 1.442695
        %v2576 = vpow.pop %v2575
        %v2577 = vmul.f32 %v2490, 1.442695
        %v2578 = vpow.pop %v2577
        %v2579 = vmul.f32 %v2491, 1.442695
        %v2580 = vpow.pop %v2579
        %v2581 = vmul.f32 %v2492, 1.442695
        %v2582 = vpow.pop %v2581
        %v2583 = vmul.f32 %v2493, 1.442695
        %v2584 = vpow.pop %v2583
        %v2585 = vmul.f32 %v2494, 1.442695
        %v2586 = vpow.pop %v2585
        %v2587 = vmul.f32 %v2495, 1.442695
        %v2588 = vpow.pop %v2587
        %v2589 = vmul.f32 %v2496, 1.442695
        %v2590 = vpow.pop %v2589
        %v2591 = vmul.f32 %v2497, 1.442695
        %v2592 = vpow.pop %v2591
        %v2593 = vmul.f32 %v2498, 1.442695
        %v2594 = vpow.pop %v2593
        %v2595 = vmul.f32 %v2499, 1.442695
        %v2596 = vpow.pop %v2595
        %v2597 = vmul.f32 %v2500, 1.442695
        %v2598 = vpow.pop %v2597
        %v2599 = vmul.f32 %v2501, 1.442695
        %v2600 = vpow.pop %v2599
        %v2601 = vmul.f32 %v2502, 1.442695
        %v2602 = vpow.pop %v2601
        %v2603 = vmul.f32 %v2503, 1.442695
        %v2604 = vpow.pop %v2603
        %v2605 = vmul.f32 %v2504, 1.442695
        %v2606 = vpow.pop %v2605
        %v2607 = vmul.f32 %v2505, 1.442695
        %v2608 = vpow.pop %v2607
        %v2609 = vmul.f32 %v2506, 1.442695
        %v2610 = vpow.pop %v2609
        %v2611 = vmul.f32 %v2507, 1.442695
        %v2612 = vpow.pop %v2611
        %v2613 = vmul.f32 %v2508, 1.442695
        %v2614 = vpow.pop %v2613
        %v2615 = vmul.f32 %v2509, 1.442695
        %v2616 = vpow.pop %v2615
        %v2617 = vmul.f32 %v2510, 1.442695
        %v2618 = vpow.pop %v2617
        %v2619 = vmul.f32 %v2511, 1.442695
        %v2620 = vpow.pop %v2619
        %v2621 = vmul.f32 %v2512, 1.442695
        %v2622 = vpow.pop %v2621
        %v2623 = vmul.f32 %v2513, 1.442695
        %v2624 = vpow.pop %v2623
        %v2625 = vmul.f32 %v2514, 1.442695
        %v2626 = vpow.pop %v2625
        %v2627 = vmul.f32 %v2515, 1.442695
        %v2628 = vpow.pop %v2627
        %v2629 = vmul.f32 %v2516, 1.442695
        %v2630 = vpow.pop %v2629
        %v2631 = vmul.f32 %v2517, 1.442695
        %v2632 = vpow.pop %v2631
        %v2633 = vmul.f32 %v2518, 1.442695
        %v2634 = vpow.pop %v2633
        %v2635 = vmul.f32 %v2519, 1.442695
        %v2636 = vpow.pop %v2635
        %v2637 = vmul.f32 %v2520, 1.442695
        %v2638 = vpow.pop %v2637
        %v2639 = vmul.f32 %v2521, 1.442695
        %v2640 = vpow.pop %v2639
        %v2641 = vmul.f32 %v2522, 1.442695
        %v2642 = vpow.pop %v2641
        %v2643 = vmul.f32 %v2523, 1.442695
        %v2644 = vpow.pop %v2643
        %v2645 = vmul.f32 %v2524, 1.442695
        %v2646 = vpow.pop %v2645
        %v2647 = vmul.f32 %v2525, 1.442695
        %v2648 = vpow.pop %v2647
        %v2649 = vmul.f32 %v2526, 1.442695
        %v2650 = vpow.pop %v2649
        %v2651 = vmul.f32 %v2527, 1.442695
        %v2652 = vpow.pop %v2651
        %v2653 = vmul.f32 %v2528, 1.442695
        %v2654 = vpow.pop %v2653
        %v2655 = vmul.f32 %v2529, 1.442695
        %v2656 = vpow.pop %v2655
        %v2657 = vmul.f32 %v2530, 1.442695
        %v2658 = vpow.pop %v2657
        %v2659 = vsel %vm2274, %v2532, 0.0
        %2660 = vadd.xlane.f32.xlu0 %v2659
        %v2661 = vpop.xlane.xlu0 %2660
        %v2662 = vsel %vm2274, %v2534, 0.0
        %2663 = vadd.xlane.f32.xlu0 %v2662
        %v2664 = vpop.xlane.xlu0 %2663
        %v2665 = vsel %vm2274, %v2536, 0.0
        %2666 = vadd.xlane.f32.xlu0 %v2665
        %v2667 = vpop.xlane.xlu0 %2666
        %v2668 = vsel %vm2274, %v2538, 0.0
        %2669 = vadd.xlane.f32.xlu0 %v2668
        %v2670 = vpop.xlane.xlu0 %2669
        %v2671 = vsel %vm2274, %v2540, 0.0
        %2672 = vadd.xlane.f32.xlu0 %v2671
        %v2673 = vpop.xlane.xlu0 %2672
        %v2674 = vsel %vm2274, %v2542, 0.0
        %2675 = vadd.xlane.f32.xlu0 %v2674
        %v2676 = vpop.xlane.xlu0 %2675
        %v2677 = vsel %vm2274, %v2544, 0.0
        %2678 = vadd.xlane.f32.xlu0 %v2677
        %v2679 = vpop.xlane.xlu0 %2678
        %v2680 = vsel %vm2274, %v2546, 0.0
        %2681 = vadd.xlane.f32.xlu0 %v2680
        %v2682 = vpop.xlane.xlu0 %2681
        %v2683 = vsel %vm2274, %v2548, 0.0
        %2684 = vadd.xlane.f32.xlu0 %v2683
        %v2685 = vpop.xlane.xlu0 %2684
        %v2686 = vsel %vm2274, %v2550, 0.0
        %2687 = vadd.xlane.f32.xlu0 %v2686
        %v2688 = vpop.xlane.xlu0 %2687
        %v2689 = vsel %vm2274, %v2552, 0.0
        %2690 = vadd.xlane.f32.xlu0 %v2689
        %v2691 = vpop.xlane.xlu0 %2690
        %v2692 = vsel %vm2274, %v2554, 0.0
        %2693 = vadd.xlane.f32.xlu0 %v2692
        %v2694 = vpop.xlane.xlu0 %2693
        %v2695 = vsel %vm2274, %v2556, 0.0
        %2696 = vadd.xlane.f32.xlu0 %v2695
        %v2697 = vpop.xlane.xlu0 %2696
        %v2698 = vsel %vm2274, %v2558, 0.0
        %2699 = vadd.xlane.f32.xlu0 %v2698
        %v2700 = vpop.xlane.xlu0 %2699
        %v2701 = vsel %vm2274, %v2560, 0.0
        %2702 = vadd.xlane.f32.xlu0 %v2701
        %v2703 = vpop.xlane.xlu0 %2702
        %v2704 = vsel %vm2274, %v2562, 0.0
        %2705 = vadd.xlane.f32.xlu0 %v2704
        %v2706 = vpop.xlane.xlu0 %2705
        %v2707 = vsel %vm2274, %v2564, 0.0
        %2708 = vadd.xlane.f32.xlu0 %v2707
        %v2709 = vpop.xlane.xlu0 %2708
        %v2710 = vsel %vm2274, %v2566, 0.0
        %2711 = vadd.xlane.f32.xlu0 %v2710
        %v2712 = vpop.xlane.xlu0 %2711
        %v2713 = vsel %vm2274, %v2568, 0.0
        %2714 = vadd.xlane.f32.xlu0 %v2713
        %v2715 = vpop.xlane.xlu0 %2714
        %v2716 = vsel %vm2274, %v2570, 0.0
        %2717 = vadd.xlane.f32.xlu0 %v2716
        %v2718 = vpop.xlane.xlu0 %2717
        %v2719 = vsel %vm2274, %v2572, 0.0
        %2720 = vadd.xlane.f32.xlu0 %v2719
        %v2721 = vpop.xlane.xlu0 %2720
        %v2722 = vsel %vm2274, %v2574, 0.0
        %2723 = vadd.xlane.f32.xlu0 %v2722
        %v2724 = vpop.xlane.xlu0 %2723
        %v2725 = vsel %vm2274, %v2576, 0.0
        %2726 = vadd.xlane.f32.xlu0 %v2725
        %v2727 = vpop.xlane.xlu0 %2726
        %v2728 = vsel %vm2274, %v2578, 0.0
        %2729 = vadd.xlane.f32.xlu0 %v2728
        %v2730 = vpop.xlane.xlu0 %2729
        %v2731 = vsel %vm2274, %v2580, 0.0
        %2732 = vadd.xlane.f32.xlu0 %v2731
        %v2733 = vpop.xlane.xlu0 %2732
        %v2734 = vsel %vm2274, %v2582, 0.0
        %2735 = vadd.xlane.f32.xlu0 %v2734
        %v2736 = vpop.xlane.xlu0 %2735
        %v2737 = vsel %vm2274, %v2584, 0.0
        %2738 = vadd.xlane.f32.xlu0 %v2737
        %v2739 = vpop.xlane.xlu0 %2738
        %v2740 = vsel %vm2274, %v2586, 0.0
        %2741 = vadd.xlane.f32.xlu0 %v2740
        %v2742 = vpop.xlane.xlu0 %2741
        %v2743 = vsel %vm2274, %v2588, 0.0
        %2744 = vadd.xlane.f32.xlu0 %v2743
        %v2745 = vpop.xlane.xlu0 %2744
        %v2746 = vsel %vm2274, %v2590, 0.0
        %2747 = vadd.xlane.f32.xlu0 %v2746
        %v2748 = vpop.xlane.xlu0 %2747
        %v2749 = vsel %vm2274, %v2592, 0.0
        %2750 = vadd.xlane.f32.xlu0 %v2749
        %v2751 = vpop.xlane.xlu0 %2750
        %v2752 = vsel %vm2274, %v2594, 0.0
        %2753 = vadd.xlane.f32.xlu0 %v2752
        %v2754 = vpop.xlane.xlu0 %2753
        %v2755 = vsel %vm2274, %v2596, 0.0
        %2756 = vadd.xlane.f32.xlu0 %v2755
        %v2757 = vpop.xlane.xlu0 %2756
        %v2758 = vsel %vm2274, %v2598, 0.0
        %2759 = vadd.xlane.f32.xlu0 %v2758
        %v2760 = vpop.xlane.xlu0 %2759
        %v2761 = vsel %vm2274, %v2600, 0.0
        %2762 = vadd.xlane.f32.xlu0 %v2761
        %v2763 = vpop.xlane.xlu0 %2762
        %v2764 = vsel %vm2274, %v2602, 0.0
        %2765 = vadd.xlane.f32.xlu0 %v2764
        %v2766 = vpop.xlane.xlu0 %2765
        %v2767 = vsel %vm2274, %v2604, 0.0
        %2768 = vadd.xlane.f32.xlu0 %v2767
        %v2769 = vpop.xlane.xlu0 %2768
        %v2770 = vsel %vm2274, %v2606, 0.0
        %2771 = vadd.xlane.f32.xlu0 %v2770
        %v2772 = vpop.xlane.xlu0 %2771
        %v2773 = vsel %vm2274, %v2608, 0.0
        %2774 = vadd.xlane.f32.xlu0 %v2773
        %v2775 = vpop.xlane.xlu0 %2774
        %v2776 = vsel %vm2274, %v2610, 0.0
        %2777 = vadd.xlane.f32.xlu0 %v2776
        %v2778 = vpop.xlane.xlu0 %2777
        %v2779 = vsel %vm2274, %v2612, 0.0
        %2780 = vadd.xlane.f32.xlu0 %v2779
        %v2781 = vpop.xlane.xlu0 %2780
        %v2782 = vsel %vm2274, %v2614, 0.0
        %2783 = vadd.xlane.f32.xlu0 %v2782
        %v2784 = vpop.xlane.xlu0 %2783
        %v2785 = vsel %vm2274, %v2616, 0.0
        %2786 = vadd.xlane.f32.xlu0 %v2785
        %v2787 = vpop.xlane.xlu0 %2786
        %v2788 = vsel %vm2274, %v2618, 0.0
        %2789 = vadd.xlane.f32.xlu0 %v2788
        %v2790 = vpop.xlane.xlu0 %2789
        %v2791 = vsel %vm2274, %v2620, 0.0
        %2792 = vadd.xlane.f32.xlu0 %v2791
        %v2793 = vpop.xlane.xlu0 %2792
        %v2794 = vsel %vm2274, %v2622, 0.0
        %2795 = vadd.xlane.f32.xlu0 %v2794
        %v2796 = vpop.xlane.xlu0 %2795
        %v2797 = vsel %vm2274, %v2624, 0.0
        %2798 = vadd.xlane.f32.xlu0 %v2797
        %v2799 = vpop.xlane.xlu0 %2798
        %v2800 = vsel %vm2274, %v2626, 0.0
        %2801 = vadd.xlane.f32.xlu0 %v2800
        %v2802 = vpop.xlane.xlu0 %2801
        %v2803 = vsel %vm2274, %v2628, 0.0
        %2804 = vadd.xlane.f32.xlu0 %v2803
        %v2805 = vpop.xlane.xlu0 %2804
        %v2806 = vsel %vm2274, %v2630, 0.0
        %2807 = vadd.xlane.f32.xlu0 %v2806
        %v2808 = vpop.xlane.xlu0 %2807
        %v2809 = vsel %vm2274, %v2632, 0.0
        %2810 = vadd.xlane.f32.xlu0 %v2809
        %v2811 = vpop.xlane.xlu0 %2810
        %v2812 = vsel %vm2274, %v2634, 0.0
        %2813 = vadd.xlane.f32.xlu0 %v2812
        %v2814 = vpop.xlane.xlu0 %2813
        %v2815 = vsel %vm2274, %v2636, 0.0
        %2816 = vadd.xlane.f32.xlu0 %v2815
        %v2817 = vpop.xlane.xlu0 %2816
        %v2818 = vsel %vm2274, %v2638, 0.0
        %2819 = vadd.xlane.f32.xlu0 %v2818
        %v2820 = vpop.xlane.xlu0 %2819
        %v2821 = vsel %vm2274, %v2640, 0.0
        %2822 = vadd.xlane.f32.xlu0 %v2821
        %v2823 = vpop.xlane.xlu0 %2822
        %v2824 = vsel %vm2274, %v2642, 0.0
        %2825 = vadd.xlane.f32.xlu0 %v2824
        %v2826 = vpop.xlane.xlu0 %2825
        %v2827 = vsel %vm2274, %v2644, 0.0
        %2828 = vadd.xlane.f32.xlu0 %v2827
        %v2829 = vpop.xlane.xlu0 %2828
        %v2830 = vsel %vm2274, %v2646, 0.0
        %2831 = vadd.xlane.f32.xlu0 %v2830
        %v2832 = vpop.xlane.xlu0 %2831
        %v2833 = vsel %vm2274, %v2648, 0.0
        %2834 = vadd.xlane.f32.xlu0 %v2833
        %v2835 = vpop.xlane.xlu0 %2834
        %v2836 = vsel %vm2274, %v2650, 0.0
        %2837 = vadd.xlane.f32.xlu0 %v2836
        %v2838 = vpop.xlane.xlu0 %2837
        %v2839 = vsel %vm2274, %v2652, 0.0
        %2840 = vadd.xlane.f32.xlu0 %v2839
        %v2841 = vpop.xlane.xlu0 %2840
        %v2842 = vsel %vm2274, %v2654, 0.0
        %2843 = vadd.xlane.f32.xlu0 %v2842
        %v2844 = vpop.xlane.xlu0 %2843
        %v2845 = vsel %vm2274, %v2656, 0.0
        %2846 = vadd.xlane.f32.xlu0 %v2845
        %v2847 = vpop.xlane.xlu0 %2846
        %v2848 = vsel %vm2274, %v2658, 0.0
        %2849 = vadd.xlane.f32.xlu0 %v2848
        %v2850 = vpop.xlane.xlu0 %2849
        %v2851 = vrcp.pop %v2661
        %v2852 = vrcp.pop %v2664
        %v2853 = vrcp.pop %v2667
        %v2854 = vrcp.pop %v2670
        %v2855 = vrcp.pop %v2673
        %v2856 = vrcp.pop %v2676
        %v2857 = vrcp.pop %v2679
        %v2858 = vrcp.pop %v2682
        %v2859 = vrcp.pop %v2685
        %v2860 = vrcp.pop %v2688
        %v2861 = vrcp.pop %v2691
        %v2862 = vrcp.pop %v2694
        %v2863 = vrcp.pop %v2697
        %v2864 = vrcp.pop %v2700
        %v2865 = vrcp.pop %v2703
        %v2866 = vrcp.pop %v2706
        %v2867 = vrcp.pop %v2709
        %v2868 = vrcp.pop %v2712
        %v2869 = vrcp.pop %v2715
        %v2870 = vrcp.pop %v2718
        %v2871 = vrcp.pop %v2721
        %v2872 = vrcp.pop %v2724
        %v2873 = vrcp.pop %v2727
        %v2874 = vrcp.pop %v2730
        %v2875 = vrcp.pop %v2733
        %v2876 = vrcp.pop %v2736
        %v2877 = vrcp.pop %v2739
        %v2878 = vrcp.pop %v2742
        %v2879 = vrcp.pop %v2745
        %v2880 = vrcp.pop %v2748
        %v2881 = vrcp.pop %v2751
        %v2882 = vrcp.pop %v2754
        %v2883 = vrcp.pop %v2757
        %v2884 = vrcp.pop %v2760
        %v2885 = vrcp.pop %v2763
        %v2886 = vrcp.pop %v2766
        %v2887 = vrcp.pop %v2769
        %v2888 = vrcp.pop %v2772
        %v2889 = vrcp.pop %v2775
        %v2890 = vrcp.pop %v2778
        %v2891 = vrcp.pop %v2781
        %v2892 = vrcp.pop %v2784
        %v2893 = vrcp.pop %v2787
        %v2894 = vrcp.pop %v2790
        %v2895 = vrcp.pop %v2793
        %v2896 = vrcp.pop %v2796
        %v2897 = vrcp.pop %v2799
        %v2898 = vrcp.pop %v2802
        %v2899 = vrcp.pop %v2805
        %v2900 = vrcp.pop %v2808
        %v2901 = vrcp.pop %v2811
        %v2902 = vrcp.pop %v2814
        %v2903 = vrcp.pop %v2817
        %v2904 = vrcp.pop %v2820
        %v2905 = vrcp.pop %v2823
        %v2906 = vrcp.pop %v2826
        %v2907 = vrcp.pop %v2829
        %v2908 = vrcp.pop %v2832
        %v2909 = vrcp.pop %v2835
        %v2910 = vrcp.pop %v2838
        %v2911 = vrcp.pop %v2841
        %v2912 = vrcp.pop %v2844
        %v2913 = vrcp.pop %v2847
        %v2914 = vrcp.pop %v2850
        %v2915 = vmul.f32 %v2532, %v2851
        %v2916 = vmul.f32 %v2534, %v2852
        %v2917 = vmul.f32 %v2536, %v2853
        %v2918 = vmul.f32 %v2538, %v2854
        %v2919 = vmul.f32 %v2540, %v2855
        %v2920 = vmul.f32 %v2542, %v2856
        %v2921 = vmul.f32 %v2544, %v2857
        %v2922 = vmul.f32 %v2546, %v2858
        %v2923 = vmul.f32 %v2548, %v2859
        %v2924 = vmul.f32 %v2550, %v2860
        %v2925 = vmul.f32 %v2552, %v2861
        %v2926 = vmul.f32 %v2554, %v2862
        %v2927 = vmul.f32 %v2556, %v2863
        %v2928 = vmul.f32 %v2558, %v2864
        %v2929 = vmul.f32 %v2560, %v2865
        %v2930 = vmul.f32 %v2562, %v2866
        %v2931 = vmul.f32 %v2564, %v2867
        %v2932 = vmul.f32 %v2566, %v2868
        %v2933 = vmul.f32 %v2568, %v2869
        %v2934 = vmul.f32 %v2570, %v2870
        %v2935 = vmul.f32 %v2572, %v2871
        %v2936 = vmul.f32 %v2574, %v2872
        %v2937 = vmul.f32 %v2576, %v2873
        %v2938 = vmul.f32 %v2578, %v2874
        %v2939 = vmul.f32 %v2580, %v2875
        %v2940 = vmul.f32 %v2582, %v2876
        %v2941 = vmul.f32 %v2584, %v2877
        %v2942 = vmul.f32 %v2586, %v2878
        %v2943 = vmul.f32 %v2588, %v2879
        %v2944 = vmul.f32 %v2590, %v2880
        %v2945 = vmul.f32 %v2592, %v2881
        %v2946 = vmul.f32 %v2594, %v2882
        %v2947 = vmul.f32 %v2596, %v2883
        %v2948 = vmul.f32 %v2598, %v2884
        %v2949 = vmul.f32 %v2600, %v2885
        %v2950 = vmul.f32 %v2602, %v2886
        %v2951 = vmul.f32 %v2604, %v2887
        %v2952 = vmul.f32 %v2606, %v2888
        %v2953 = vmul.f32 %v2608, %v2889
        %v2954 = vmul.f32 %v2610, %v2890
        %v2955 = vmul.f32 %v2612, %v2891
        %v2956 = vmul.f32 %v2614, %v2892
        %v2957 = vmul.f32 %v2616, %v2893
        %v2958 = vmul.f32 %v2618, %v2894
        %v2959 = vmul.f32 %v2620, %v2895
        %v2960 = vmul.f32 %v2622, %v2896
        %v2961 = vmul.f32 %v2624, %v2897
        %v2962 = vmul.f32 %v2626, %v2898
        %v2963 = vmul.f32 %v2628, %v2899
        %v2964 = vmul.f32 %v2630, %v2900
        %v2965 = vmul.f32 %v2632, %v2901
        %v2966 = vmul.f32 %v2634, %v2902
        %v2967 = vmul.f32 %v2636, %v2903
        %v2968 = vmul.f32 %v2638, %v2904
        %v2969 = vmul.f32 %v2640, %v2905
        %v2970 = vmul.f32 %v2642, %v2906
        %v2971 = vmul.f32 %v2644, %v2907
        %v2972 = vmul.f32 %v2646, %v2908
        %v2973 = vmul.f32 %v2648, %v2909
        %v2974 = vmul.f32 %v2650, %v2910
        %v2975 = vmul.f32 %v2652, %v2911
        %v2976 = vmul.f32 %v2654, %v2912
        %v2977 = vmul.f32 %v2656, %v2913
        %v2978 = vmul.f32 %v2658, %v2914
        %v2979 = vpack.c.bf16 %v2915, %v2915
        %v2980 = vpack.c.bf16 %v2916, %v2916
        %v2981 = vpack.c.bf16 %v2917, %v2917
        %v2982 = vpack.c.bf16 %v2918, %v2918
        %v2983 = vpack.c.bf16 %v2919, %v2919
        %v2984 = vpack.c.bf16 %v2920, %v2920
        %v2985 = vpack.c.bf16 %v2921, %v2921
        %v2986 = vpack.c.bf16 %v2922, %v2922
        %v2987 = vpack.c.bf16 %v2923, %v2923
        %v2988 = vpack.c.bf16 %v2924, %v2924
        %v2989 = vpack.c.bf16 %v2925, %v2925
        %v2990 = vpack.c.bf16 %v2926, %v2926
        %v2991 = vpack.c.bf16 %v2927, %v2927
        %v2992 = vpack.c.bf16 %v2928, %v2928
        %v2993 = vpack.c.bf16 %v2929, %v2929
        %v2994 = vpack.c.bf16 %v2930, %v2930
        %v2995 = vpack.c.bf16 %v2931, %v2931
        %v2996 = vpack.c.bf16 %v2932, %v2932
        %v2997 = vpack.c.bf16 %v2933, %v2933
        %v2998 = vpack.c.bf16 %v2934, %v2934
        %v2999 = vpack.c.bf16 %v2935, %v2935
        %v3000 = vpack.c.bf16 %v2936, %v2936
        %v3001 = vpack.c.bf16 %v2937, %v2937
        %v3002 = vpack.c.bf16 %v2938, %v2938
        %v3003 = vpack.c.bf16 %v2939, %v2939
        %v3004 = vpack.c.bf16 %v2940, %v2940
        %v3005 = vpack.c.bf16 %v2941, %v2941
        %v3006 = vpack.c.bf16 %v2942, %v2942
        %v3007 = vpack.c.bf16 %v2943, %v2943
        %v3008 = vpack.c.bf16 %v2944, %v2944
        %v3009 = vpack.c.bf16 %v2945, %v2945
        %v3010 = vpack.c.bf16 %v2946, %v2946
        %v3011 = vpack.c.bf16 %v2947, %v2947
        %v3012 = vpack.c.bf16 %v2948, %v2948
        %v3013 = vpack.c.bf16 %v2949, %v2949
        %v3014 = vpack.c.bf16 %v2950, %v2950
        %v3015 = vpack.c.bf16 %v2951, %v2951
        %v3016 = vpack.c.bf16 %v2952, %v2952
        %v3017 = vpack.c.bf16 %v2953, %v2953
        %v3018 = vpack.c.bf16 %v2954, %v2954
        %v3019 = vpack.c.bf16 %v2955, %v2955
        %v3020 = vpack.c.bf16 %v2956, %v2956
        %v3021 = vpack.c.bf16 %v2957, %v2957
        %v3022 = vpack.c.bf16 %v2958, %v2958
        %v3023 = vpack.c.bf16 %v2959, %v2959
        %v3024 = vpack.c.bf16 %v2960, %v2960
        %v3025 = vpack.c.bf16 %v2961, %v2961
        %v3026 = vpack.c.bf16 %v2962, %v2962
        %v3027 = vpack.c.bf16 %v2963, %v2963
        %v3028 = vpack.c.bf16 %v2964, %v2964
        %v3029 = vpack.c.bf16 %v2965, %v2965
        %v3030 = vpack.c.bf16 %v2966, %v2966
        %v3031 = vpack.c.bf16 %v2967, %v2967
        %v3032 = vpack.c.bf16 %v2968, %v2968
        %v3033 = vpack.c.bf16 %v2969, %v2969
        %v3034 = vpack.c.bf16 %v2970, %v2970
        %v3035 = vpack.c.bf16 %v2971, %v2971
        %v3036 = vpack.c.bf16 %v2972, %v2972
        %v3037 = vpack.c.bf16 %v2973, %v2973
        %v3038 = vpack.c.bf16 %v2974, %v2974
        %v3039 = vpack.c.bf16 %v2975, %v2975
        %v3040 = vpack.c.bf16 %v2976, %v2976
        %v3041 = vpack.c.bf16 %v2977, %v2977
        %v3042 = vpack.c.bf16 %v2978, %v2978
        %v3051 = vunpack.c.l.b16 %v2979
        %v3052 = vunpack.c.l.b16 %v2980
        %v3053 = vunpack.c.l.b16 %v2981
        %v3054 = vunpack.c.l.b16 %v2982
        %v3055 = vunpack.c.l.b16 %v2983
        %v3056 = vunpack.c.l.b16 %v2984
        %v3057 = vunpack.c.l.b16 %v2985
        %v3058 = vunpack.c.l.b16 %v2986
        %v3059 = vpack.c.b16 %v3052, %v3051
        %v3060 = vpack.c.b16 %v3054, %v3053
        %v3061 = vpack.c.b16 %v3056, %v3055
        %v3062 = vpack.c.b16 %v3058, %v3057
        %v3065 = vsel %vm2274, %v3059, 0
        %v3068 = vsel %vm2274, %v3060, 0
        %v3071 = vsel %vm2274, %v3061, 0
        %v3074 = vsel %vm2274, %v3062, 0
        %3076 = vmatpush.bf16.msra.mxu0 0
        %3077 = vmatpush.bf16.msra.mxu0 0
        %3078 = vmatpush.bf16.msra.mxu0 0
        %3079 = vmatpush.bf16.msra.mxu0 0
        %3080 = vmatpush.bf16.msra.mxu0 0
        %3081 = vmatpush.bf16.msra.mxu0 0
        %3082 = vmatpush.bf16.msra.mxu0 0
        %3083 = vmatpush.bf16.msra.mxu0 %v1167
        %3084 = vmatmul.bf16.gmra.mxu0 %v3065
        %v3085 = vpop.f32.mrf.mxu0
        %v3086 = vadd.f32 0.0, %v3085
        %v3087 = vpop.f32.mrf.mxu0
        %v3088 = vadd.f32 0.0, %v3087
        %3089 = vmatmul.bf16.gmra.mxu0 %v3068
        %v3090 = vpop.f32.mrf.mxu0
        %v3091 = vadd.f32 0.0, %v3090
        %v3092 = vpop.f32.mrf.mxu0
        %v3093 = vadd.f32 0.0, %v3092
        %3094 = vmatmul.bf16.gmra.mxu0 %v3071
        %v3095 = vpop.f32.mrf.mxu0
        %v3096 = vadd.f32 0.0, %v3095
        %v3097 = vpop.f32.mrf.mxu0
        %v3098 = vadd.f32 0.0, %v3097
        %3099 = vmatmul.bf16.gmra.mxu0 %v3074
        %v3100 = vpop.f32.mrf.mxu0
        %v3101 = vadd.f32 0.0, %v3100
        %v3102 = vpop.f32.mrf.mxu0
        %v3103 = vadd.f32 0.0, %v3102
        %3104 = vdwg.mxu0
        %v3113 = vunpack.c.l.b16 %v2987
        %v3114 = vunpack.c.l.b16 %v2988
        %v3115 = vunpack.c.l.b16 %v2989
        %v3116 = vunpack.c.l.b16 %v2990
        %v3117 = vunpack.c.l.b16 %v2991
        %v3118 = vunpack.c.l.b16 %v2992
        %v3119 = vunpack.c.l.b16 %v2993
        %v3120 = vunpack.c.l.b16 %v2994
        %v3121 = vpack.c.b16 %v3114, %v3113
        %v3122 = vpack.c.b16 %v3116, %v3115
        %v3123 = vpack.c.b16 %v3118, %v3117
        %v3124 = vpack.c.b16 %v3120, %v3119
        %v3127 = vsel %vm2274, %v3121, 0
        %v3130 = vsel %vm2274, %v3122, 0
        %v3133 = vsel %vm2274, %v3123, 0
        %v3136 = vsel %vm2274, %v3124, 0
        %3138 = vmatpush.bf16.msra.mxu0 0
        %3139 = vmatpush.bf16.msra.mxu0 0
        %3140 = vmatpush.bf16.msra.mxu0 0
        %3141 = vmatpush.bf16.msra.mxu0 0
        %3142 = vmatpush.bf16.msra.mxu0 0
        %3143 = vmatpush.bf16.msra.mxu0 0
        %3144 = vmatpush.bf16.msra.mxu0 0
        %3145 = vmatpush.bf16.msra.mxu0 %v1192
        %3146 = vmatmul.bf16.gmra.mxu0 %v3127
        %v3147 = vpop.f32.mrf.mxu0
        %v3148 = vadd.f32 0.0, %v3147
        %v3149 = vpop.f32.mrf.mxu0
        %v3150 = vadd.f32 0.0, %v3149
        %3151 = vmatmul.bf16.gmra.mxu0 %v3130
        %v3152 = vpop.f32.mrf.mxu0
        %v3153 = vadd.f32 0.0, %v3152
        %v3154 = vpop.f32.mrf.mxu0
        %v3155 = vadd.f32 0.0, %v3154
        %3156 = vmatmul.bf16.gmra.mxu0 %v3133
        %v3157 = vpop.f32.mrf.mxu0
        %v3158 = vadd.f32 0.0, %v3157
        %v3159 = vpop.f32.mrf.mxu0
        %v3160 = vadd.f32 0.0, %v3159
        %3161 = vmatmul.bf16.gmra.mxu0 %v3136
        %v3162 = vpop.f32.mrf.mxu0
        %v3163 = vadd.f32 0.0, %v3162
        %v3164 = vpop.f32.mrf.mxu0
        %v3165 = vadd.f32 0.0, %v3164
        %3166 = vdwg.mxu0
        %v3175 = vunpack.c.l.b16 %v2995
        %v3176 = vunpack.c.l.b16 %v2996
        %v3177 = vunpack.c.l.b16 %v2997
        %v3178 = vunpack.c.l.b16 %v2998
        %v3179 = vunpack.c.l.b16 %v2999
        %v3180 = vunpack.c.l.b16 %v3000
        %v3181 = vunpack.c.l.b16 %v3001
        %v3182 = vunpack.c.l.b16 %v3002
        %v3183 = vpack.c.b16 %v3176, %v3175
        %v3184 = vpack.c.b16 %v3178, %v3177
        %v3185 = vpack.c.b16 %v3180, %v3179
        %v3186 = vpack.c.b16 %v3182, %v3181
        %v3189 = vsel %vm2274, %v3183, 0
        %v3192 = vsel %vm2274, %v3184, 0
        %v3195 = vsel %vm2274, %v3185, 0
        %v3198 = vsel %vm2274, %v3186, 0
        %3200 = vmatpush.bf16.msra.mxu0 0
        %3201 = vmatpush.bf16.msra.mxu0 0
        %3202 = vmatpush.bf16.msra.mxu0 0
        %3203 = vmatpush.bf16.msra.mxu0 0
        %3204 = vmatpush.bf16.msra.mxu0 0
        %3205 = vmatpush.bf16.msra.mxu0 0
        %3206 = vmatpush.bf16.msra.mxu0 0
        %3207 = vmatpush.bf16.msra.mxu0 %v1213
        %3208 = vmatmul.bf16.gmra.mxu0 %v3189
        %v3209 = vpop.f32.mrf.mxu0
        %v3210 = vadd.f32 0.0, %v3209
        %v3211 = vpop.f32.mrf.mxu0
        %v3212 = vadd.f32 0.0, %v3211
        %3213 = vmatmul.bf16.gmra.mxu0 %v3192
        %v3214 = vpop.f32.mrf.mxu0
        %v3215 = vadd.f32 0.0, %v3214
        %v3216 = vpop.f32.mrf.mxu0
        %v3217 = vadd.f32 0.0, %v3216
        %3218 = vmatmul.bf16.gmra.mxu0 %v3195
        %v3219 = vpop.f32.mrf.mxu0
        %v3220 = vadd.f32 0.0, %v3219
        %v3221 = vpop.f32.mrf.mxu0
        %v3222 = vadd.f32 0.0, %v3221
        %3223 = vmatmul.bf16.gmra.mxu0 %v3198
        %v3224 = vpop.f32.mrf.mxu0
        %v3225 = vadd.f32 0.0, %v3224
        %v3226 = vpop.f32.mrf.mxu0
        %v3227 = vadd.f32 0.0, %v3226
        %3228 = vdwg.mxu0
        %v3237 = vunpack.c.l.b16 %v3003
        %v3238 = vunpack.c.l.b16 %v3004
        %v3239 = vunpack.c.l.b16 %v3005
        %v3240 = vunpack.c.l.b16 %v3006
        %v3241 = vunpack.c.l.b16 %v3007
        %v3242 = vunpack.c.l.b16 %v3008
        %v3243 = vunpack.c.l.b16 %v3009
        %v3244 = vunpack.c.l.b16 %v3010
        %v3245 = vpack.c.b16 %v3238, %v3237
        %v3246 = vpack.c.b16 %v3240, %v3239
        %v3247 = vpack.c.b16 %v3242, %v3241
        %v3248 = vpack.c.b16 %v3244, %v3243
        %v3251 = vsel %vm2274, %v3245, 0
        %v3254 = vsel %vm2274, %v3246, 0
        %v3257 = vsel %vm2274, %v3247, 0
        %v3260 = vsel %vm2274, %v3248, 0
        %3262 = vmatpush.bf16.msra.mxu0 0
        %3263 = vmatpush.bf16.msra.mxu0 0
        %3264 = vmatpush.bf16.msra.mxu0 0
        %3265 = vmatpush.bf16.msra.mxu0 0
        %3266 = vmatpush.bf16.msra.mxu0 0
        %3267 = vmatpush.bf16.msra.mxu0 0
        %3268 = vmatpush.bf16.msra.mxu0 0
        %3269 = vmatpush.bf16.msra.mxu0 %v1234
        %3270 = vmatmul.bf16.gmra.mxu0 %v3251
        %v3271 = vpop.f32.mrf.mxu0
        %v3272 = vadd.f32 0.0, %v3271
        %v3273 = vpop.f32.mrf.mxu0
        %v3274 = vadd.f32 0.0, %v3273
        %3275 = vmatmul.bf16.gmra.mxu0 %v3254
        %v3276 = vpop.f32.mrf.mxu0
        %v3277 = vadd.f32 0.0, %v3276
        %v3278 = vpop.f32.mrf.mxu0
        %v3279 = vadd.f32 0.0, %v3278
        %3280 = vmatmul.bf16.gmra.mxu0 %v3257
        %v3281 = vpop.f32.mrf.mxu0
        %v3282 = vadd.f32 0.0, %v3281
        %v3283 = vpop.f32.mrf.mxu0
        %v3284 = vadd.f32 0.0, %v3283
        %3285 = vmatmul.bf16.gmra.mxu0 %v3260
        %v3286 = vpop.f32.mrf.mxu0
        %v3287 = vadd.f32 0.0, %v3286
        %v3288 = vpop.f32.mrf.mxu0
        %v3289 = vadd.f32 0.0, %v3288
        %3290 = vdwg.mxu0
        %v3299 = vunpack.c.l.b16 %v3011
        %v3300 = vunpack.c.l.b16 %v3012
        %v3301 = vunpack.c.l.b16 %v3013
        %v3302 = vunpack.c.l.b16 %v3014
        %v3303 = vunpack.c.l.b16 %v3015
        %v3304 = vunpack.c.l.b16 %v3016
        %v3305 = vunpack.c.l.b16 %v3017
        %v3306 = vunpack.c.l.b16 %v3018
        %v3307 = vpack.c.b16 %v3300, %v3299
        %v3308 = vpack.c.b16 %v3302, %v3301
        %v3309 = vpack.c.b16 %v3304, %v3303
        %v3310 = vpack.c.b16 %v3306, %v3305
        %v3313 = vsel %vm2274, %v3307, 0
        %v3316 = vsel %vm2274, %v3308, 0
        %v3319 = vsel %vm2274, %v3309, 0
        %v3322 = vsel %vm2274, %v3310, 0
        %3324 = vmatpush.bf16.msra.mxu0 0
        %3325 = vmatpush.bf16.msra.mxu0 0
        %3326 = vmatpush.bf16.msra.mxu0 0
        %3327 = vmatpush.bf16.msra.mxu0 0
        %3328 = vmatpush.bf16.msra.mxu0 0
        %3329 = vmatpush.bf16.msra.mxu0 0
        %3330 = vmatpush.bf16.msra.mxu0 0
        %3331 = vmatpush.bf16.msra.mxu0 %v1255
        %3332 = vmatmul.bf16.gmra.mxu0 %v3313
        %v3333 = vpop.f32.mrf.mxu0
        %v3334 = vadd.f32 0.0, %v3333
        %v3335 = vpop.f32.mrf.mxu0
        %v3336 = vadd.f32 0.0, %v3335
        %3337 = vmatmul.bf16.gmra.mxu0 %v3316
        %v3338 = vpop.f32.mrf.mxu0
        %v3339 = vadd.f32 0.0, %v3338
        %v3340 = vpop.f32.mrf.mxu0
        %v3341 = vadd.f32 0.0, %v3340
        %3342 = vmatmul.bf16.gmra.mxu0 %v3319
        %v3343 = vpop.f32.mrf.mxu0
        %v3344 = vadd.f32 0.0, %v3343
        %v3345 = vpop.f32.mrf.mxu0
        %v3346 = vadd.f32 0.0, %v3345
        %3347 = vmatmul.bf16.gmra.mxu0 %v3322
        %v3348 = vpop.f32.mrf.mxu0
        %v3349 = vadd.f32 0.0, %v3348
        %v3350 = vpop.f32.mrf.mxu0
        %v3351 = vadd.f32 0.0, %v3350
        %3352 = vdwg.mxu0
        %v3361 = vunpack.c.l.b16 %v3019
        %v3362 = vunpack.c.l.b16 %v3020
        %v3363 = vunpack.c.l.b16 %v3021
        %v3364 = vunpack.c.l.b16 %v3022
        %v3365 = vunpack.c.l.b16 %v3023
        %v3366 = vunpack.c.l.b16 %v3024
        %v3367 = vunpack.c.l.b16 %v3025
        %v3368 = vunpack.c.l.b16 %v3026
        %v3369 = vpack.c.b16 %v3362, %v3361
        %v3370 = vpack.c.b16 %v3364, %v3363
        %v3371 = vpack.c.b16 %v3366, %v3365
        %v3372 = vpack.c.b16 %v3368, %v3367
        %v3375 = vsel %vm2274, %v3369, 0
        %v3378 = vsel %vm2274, %v3370, 0
        %v3381 = vsel %vm2274, %v3371, 0
        %v3384 = vsel %vm2274, %v3372, 0
        %3386 = vmatpush.bf16.msra.mxu0 0
        %3387 = vmatpush.bf16.msra.mxu0 0
        %3388 = vmatpush.bf16.msra.mxu0 0
        %3389 = vmatpush.bf16.msra.mxu0 0
        %3390 = vmatpush.bf16.msra.mxu0 0
        %3391 = vmatpush.bf16.msra.mxu0 0
        %3392 = vmatpush.bf16.msra.mxu0 0
        %3393 = vmatpush.bf16.msra.mxu0 %v1276
        %3394 = vmatmul.bf16.gmra.mxu0 %v3375
        %v3395 = vpop.f32.mrf.mxu0
        %v3396 = vadd.f32 0.0, %v3395
        %v3397 = vpop.f32.mrf.mxu0
        %v3398 = vadd.f32 0.0, %v3397
        %3399 = vmatmul.bf16.gmra.mxu0 %v3378
        %v3400 = vpop.f32.mrf.mxu0
        %v3401 = vadd.f32 0.0, %v3400
        %v3402 = vpop.f32.mrf.mxu0
        %v3403 = vadd.f32 0.0, %v3402
        %3404 = vmatmul.bf16.gmra.mxu0 %v3381
        %v3405 = vpop.f32.mrf.mxu0
        %v3406 = vadd.f32 0.0, %v3405
        %v3407 = vpop.f32.mrf.mxu0
        %v3408 = vadd.f32 0.0, %v3407
        %3409 = vmatmul.bf16.gmra.mxu0 %v3384
        %v3410 = vpop.f32.mrf.mxu0
        %v3411 = vadd.f32 0.0, %v3410
        %v3412 = vpop.f32.mrf.mxu0
        %v3413 = vadd.f32 0.0, %v3412
        %3414 = vdwg.mxu0
        %v3423 = vunpack.c.l.b16 %v3027
        %v3424 = vunpack.c.l.b16 %v3028
        %v3425 = vunpack.c.l.b16 %v3029
        %v3426 = vunpack.c.l.b16 %v3030
        %v3427 = vunpack.c.l.b16 %v3031
        %v3428 = vunpack.c.l.b16 %v3032
        %v3429 = vunpack.c.l.b16 %v3033
        %v3430 = vunpack.c.l.b16 %v3034
        %v3431 = vpack.c.b16 %v3424, %v3423
        %v3432 = vpack.c.b16 %v3426, %v3425
        %v3433 = vpack.c.b16 %v3428, %v3427
        %v3434 = vpack.c.b16 %v3430, %v3429
        %v3437 = vsel %vm2274, %v3431, 0
        %v3440 = vsel %vm2274, %v3432, 0
        %v3443 = vsel %vm2274, %v3433, 0
        %v3446 = vsel %vm2274, %v3434, 0
        %3448 = vmatpush.bf16.msra.mxu0 0
        %3449 = vmatpush.bf16.msra.mxu0 0
        %3450 = vmatpush.bf16.msra.mxu0 0
        %3451 = vmatpush.bf16.msra.mxu0 0
        %3452 = vmatpush.bf16.msra.mxu0 0
        %3453 = vmatpush.bf16.msra.mxu0 0
        %3454 = vmatpush.bf16.msra.mxu0 0
        %3455 = vmatpush.bf16.msra.mxu0 %v1297
        %3456 = vmatmul.bf16.gmra.mxu0 %v3437
        %v3457 = vpop.f32.mrf.mxu0
        %v3458 = vadd.f32 0.0, %v3457
        %v3459 = vpop.f32.mrf.mxu0
        %v3460 = vadd.f32 0.0, %v3459
        %3461 = vmatmul.bf16.gmra.mxu0 %v3440
        %v3462 = vpop.f32.mrf.mxu0
        %v3463 = vadd.f32 0.0, %v3462
        %v3464 = vpop.f32.mrf.mxu0
        %v3465 = vadd.f32 0.0, %v3464
        %3466 = vmatmul.bf16.gmra.mxu0 %v3443
        %v3467 = vpop.f32.mrf.mxu0
        %v3468 = vadd.f32 0.0, %v3467
        %v3469 = vpop.f32.mrf.mxu0
        %v3470 = vadd.f32 0.0, %v3469
        %3471 = vmatmul.bf16.gmra.mxu0 %v3446
        %v3472 = vpop.f32.mrf.mxu0
        %v3473 = vadd.f32 0.0, %v3472
        %v3474 = vpop.f32.mrf.mxu0
        %v3475 = vadd.f32 0.0, %v3474
        %3476 = vdwg.mxu0
        %v3485 = vunpack.c.l.b16 %v3035
        %v3486 = vunpack.c.l.b16 %v3036
        %v3487 = vunpack.c.l.b16 %v3037
        %v3488 = vunpack.c.l.b16 %v3038
        %v3489 = vunpack.c.l.b16 %v3039
        %v3490 = vunpack.c.l.b16 %v3040
        %v3491 = vunpack.c.l.b16 %v3041
        %v3492 = vunpack.c.l.b16 %v3042
        %v3493 = vpack.c.b16 %v3486, %v3485
        %v3494 = vpack.c.b16 %v3488, %v3487
        %v3495 = vpack.c.b16 %v3490, %v3489
        %v3496 = vpack.c.b16 %v3492, %v3491
        %v3499 = vsel %vm2274, %v3493, 0
        %v3502 = vsel %vm2274, %v3494, 0
        %v3505 = vsel %vm2274, %v3495, 0
        %v3508 = vsel %vm2274, %v3496, 0
        %3510 = vmatpush.bf16.msra.mxu0 0
        %3511 = vmatpush.bf16.msra.mxu0 0
        %3512 = vmatpush.bf16.msra.mxu0 0
        %3513 = vmatpush.bf16.msra.mxu0 0
        %3514 = vmatpush.bf16.msra.mxu0 0
        %3515 = vmatpush.bf16.msra.mxu0 0
        %3516 = vmatpush.bf16.msra.mxu0 0
        %3517 = vmatpush.bf16.msra.mxu0 %v1318
        %3518 = vmatmul.bf16.gmra.mxu0 %v3499
        %v3519 = vpop.f32.mrf.mxu0
        %v3520 = vadd.f32 0.0, %v3519
        %v3521 = vpop.f32.mrf.mxu0
        %v3522 = vadd.f32 0.0, %v3521
        %3523 = vmatmul.bf16.gmra.mxu0 %v3502
        %v3524 = vpop.f32.mrf.mxu0
        %v3525 = vadd.f32 0.0, %v3524
        %v3526 = vpop.f32.mrf.mxu0
        %v3527 = vadd.f32 0.0, %v3526
        %3528 = vmatmul.bf16.gmra.mxu0 %v3505
        %v3529 = vpop.f32.mrf.mxu0
        %v3530 = vadd.f32 0.0, %v3529
        %v3531 = vpop.f32.mrf.mxu0
        %v3532 = vadd.f32 0.0, %v3531
        %3533 = vmatmul.bf16.gmra.mxu0 %v3508
        %v3534 = vpop.f32.mrf.mxu0
        %v3535 = vadd.f32 0.0, %v3534
        %v3536 = vpop.f32.mrf.mxu0
        %v3537 = vadd.f32 0.0, %v3536
        %3538 = vdwg.mxu0
        %v3539 = vperm.slane %v1031, 0
        %v3540 = vperm.slane %v1033, 0
        %v3541 = vperm.slane %v1034, 0
        %v3542 = vperm.slane %v1035, 0
        %v3547 = vmul.f32 %v3086, %v3539
        %v3548 = vmul.f32 %v3088, %v3539
        %v3549 = vmul.f32 %v3091, %v3540
        %v3550 = vmul.f32 %v3093, %v3540
        %v3551 = vmul.f32 %v3096, %v3541
        %v3552 = vmul.f32 %v3098, %v3541
        %v3553 = vmul.f32 %v3101, %v3542
        %v3554 = vmul.f32 %v3103, %v3542
        %v3555 = vmul.f32 %v3148, %v3539
        %v3556 = vmul.f32 %v3150, %v3539
        %v3557 = vmul.f32 %v3153, %v3540
        %v3558 = vmul.f32 %v3155, %v3540
        %v3559 = vmul.f32 %v3158, %v3541
        %v3560 = vmul.f32 %v3160, %v3541
        %v3561 = vmul.f32 %v3163, %v3542
        %v3562 = vmul.f32 %v3165, %v3542
        %v3563 = vmul.f32 %v3210, %v3539
        %v3564 = vmul.f32 %v3212, %v3539
        %v3565 = vmul.f32 %v3215, %v3540
        %v3566 = vmul.f32 %v3217, %v3540
        %v3567 = vmul.f32 %v3220, %v3541
        %v3568 = vmul.f32 %v3222, %v3541
        %v3569 = vmul.f32 %v3225, %v3542
        %v3570 = vmul.f32 %v3227, %v3542
        %v3571 = vmul.f32 %v3272, %v3539
        %v3572 = vmul.f32 %v3274, %v3539
        %v3573 = vmul.f32 %v3277, %v3540
        %v3574 = vmul.f32 %v3279, %v3540
        %v3575 = vmul.f32 %v3282, %v3541
        %v3576 = vmul.f32 %v3284, %v3541
        %v3577 = vmul.f32 %v3287, %v3542
        %v3578 = vmul.f32 %v3289, %v3542
        %v3579 = vmul.f32 %v3334, %v3539
        %v3580 = vmul.f32 %v3336, %v3539
        %v3581 = vmul.f32 %v3339, %v3540
        %v3582 = vmul.f32 %v3341, %v3540
        %v3583 = vmul.f32 %v3344, %v3541
        %v3584 = vmul.f32 %v3346, %v3541
        %v3585 = vmul.f32 %v3349, %v3542
        %v3586 = vmul.f32 %v3351, %v3542
        %v3587 = vmul.f32 %v3396, %v3539
        %v3588 = vmul.f32 %v3398, %v3539
        %v3589 = vmul.f32 %v3401, %v3540
        %v3590 = vmul.f32 %v3403, %v3540
        %v3591 = vmul.f32 %v3406, %v3541
        %v3592 = vmul.f32 %v3408, %v3541
        %v3593 = vmul.f32 %v3411, %v3542
        %v3594 = vmul.f32 %v3413, %v3542
        %v3595 = vmul.f32 %v3458, %v3539
        %v3596 = vmul.f32 %v3460, %v3539
        %v3597 = vmul.f32 %v3463, %v3540
        %v3598 = vmul.f32 %v3465, %v3540
        %v3599 = vmul.f32 %v3468, %v3541
        %v3600 = vmul.f32 %v3470, %v3541
        %v3601 = vmul.f32 %v3473, %v3542
        %v3602 = vmul.f32 %v3475, %v3542
        %v3603 = vmul.f32 %v3520, %v3539
        %v3604 = vmul.f32 %v3522, %v3539
        %v3605 = vmul.f32 %v3525, %v3540
        %v3606 = vmul.f32 %v3527, %v3540
        %v3607 = vmul.f32 %v3530, %v3541
        %v3608 = vmul.f32 %v3532, %v3541
        %v3609 = vmul.f32 %v3535, %v3542
        %v3610 = vmul.f32 %v3537, %v3542
        %v3611 = vsel %vm1168, %v3547, 0.0
        %v3612 = vsel %vm1168, %v3549, 0.0
        %v3613 = vadd.f32 %v3611, %v3612
        %v3614 = vsel %vm1168, %v3551, 0.0
        %v3615 = vadd.f32 %v3613, %v3614
        %v3616 = vsel %vm1168, %v3553, 0.0
        %v3617 = vadd.f32 %v3615, %v3616
        %v3618 = vsel %vm1168, %v3548, 0.0
        %v3619 = vsel %vm1168, %v3550, 0.0
        %v3620 = vadd.f32 %v3618, %v3619
        %v3621 = vsel %vm1168, %v3552, 0.0
        %v3622 = vadd.f32 %v3620, %v3621
        %v3623 = vsel %vm1168, %v3554, 0.0
        %v3624 = vadd.f32 %v3622, %v3623
        %v3625 = vsel %vm1168, %v3555, 0.0
        %v3626 = vsel %vm1168, %v3557, 0.0
        %v3627 = vadd.f32 %v3625, %v3626
        %v3628 = vsel %vm1168, %v3559, 0.0
        %v3629 = vadd.f32 %v3627, %v3628
        %v3630 = vsel %vm1168, %v3561, 0.0
        %v3631 = vadd.f32 %v3629, %v3630
        %v3632 = vsel %vm1168, %v3556, 0.0
        %v3633 = vsel %vm1168, %v3558, 0.0
        %v3634 = vadd.f32 %v3632, %v3633
        %v3635 = vsel %vm1168, %v3560, 0.0
        %v3636 = vadd.f32 %v3634, %v3635
        %v3637 = vsel %vm1168, %v3562, 0.0
        %v3638 = vadd.f32 %v3636, %v3637
        %v3639 = vsel %vm1168, %v3563, 0.0
        %v3640 = vsel %vm1168, %v3565, 0.0
        %v3641 = vadd.f32 %v3639, %v3640
        %v3642 = vsel %vm1168, %v3567, 0.0
        %v3643 = vadd.f32 %v3641, %v3642
        %v3644 = vsel %vm1168, %v3569, 0.0
        %v3645 = vadd.f32 %v3643, %v3644
        %v3646 = vsel %vm1168, %v3564, 0.0
        %v3647 = vsel %vm1168, %v3566, 0.0
        %v3648 = vadd.f32 %v3646, %v3647
        %v3649 = vsel %vm1168, %v3568, 0.0
        %v3650 = vadd.f32 %v3648, %v3649
        %v3651 = vsel %vm1168, %v3570, 0.0
        %v3652 = vadd.f32 %v3650, %v3651
        %v3653 = vsel %vm1168, %v3571, 0.0
        %v3654 = vsel %vm1168, %v3573, 0.0
        %v3655 = vadd.f32 %v3653, %v3654
        %v3656 = vsel %vm1168, %v3575, 0.0
        %v3657 = vadd.f32 %v3655, %v3656
        %v3658 = vsel %vm1168, %v3577, 0.0
        %v3659 = vadd.f32 %v3657, %v3658
        %v3660 = vsel %vm1168, %v3572, 0.0
        %v3661 = vsel %vm1168, %v3574, 0.0
        %v3662 = vadd.f32 %v3660, %v3661
        %v3663 = vsel %vm1168, %v3576, 0.0
        %v3664 = vadd.f32 %v3662, %v3663
        %v3665 = vsel %vm1168, %v3578, 0.0
        %v3666 = vadd.f32 %v3664, %v3665
        %v3667 = vsel %vm1168, %v3579, 0.0
        %v3668 = vsel %vm1168, %v3581, 0.0
        %v3669 = vadd.f32 %v3667, %v3668
        %v3670 = vsel %vm1168, %v3583, 0.0
        %v3671 = vadd.f32 %v3669, %v3670
        %v3672 = vsel %vm1168, %v3585, 0.0
        %v3673 = vadd.f32 %v3671, %v3672
        %v3674 = vsel %vm1168, %v3580, 0.0
        %v3675 = vsel %vm1168, %v3582, 0.0
        %v3676 = vadd.f32 %v3674, %v3675
        %v3677 = vsel %vm1168, %v3584, 0.0
        %v3678 = vadd.f32 %v3676, %v3677
        %v3679 = vsel %vm1168, %v3586, 0.0
        %v3680 = vadd.f32 %v3678, %v3679
        %v3681 = vsel %vm1168, %v3587, 0.0
        %v3682 = vsel %vm1168, %v3589, 0.0
        %v3683 = vadd.f32 %v3681, %v3682
        %v3684 = vsel %vm1168, %v3591, 0.0
        %v3685 = vadd.f32 %v3683, %v3684
        %v3686 = vsel %vm1168, %v3593, 0.0
        %v3687 = vadd.f32 %v3685, %v3686
        %v3688 = vsel %vm1168, %v3588, 0.0
        %v3689 = vsel %vm1168, %v3590, 0.0
        %v3690 = vadd.f32 %v3688, %v3689
        %v3691 = vsel %vm1168, %v3592, 0.0
        %v3692 = vadd.f32 %v3690, %v3691
        %v3693 = vsel %vm1168, %v3594, 0.0
        %v3694 = vadd.f32 %v3692, %v3693
        %v3695 = vsel %vm1168, %v3595, 0.0
        %v3696 = vsel %vm1168, %v3597, 0.0
        %v3697 = vadd.f32 %v3695, %v3696
        %v3698 = vsel %vm1168, %v3599, 0.0
        %v3699 = vadd.f32 %v3697, %v3698
        %v3700 = vsel %vm1168, %v3601, 0.0
        %v3701 = vadd.f32 %v3699, %v3700
        %v3702 = vsel %vm1168, %v3596, 0.0
        %v3703 = vsel %vm1168, %v3598, 0.0
        %v3704 = vadd.f32 %v3702, %v3703
        %v3705 = vsel %vm1168, %v3600, 0.0
        %v3706 = vadd.f32 %v3704, %v3705
        %v3707 = vsel %vm1168, %v3602, 0.0
        %v3708 = vadd.f32 %v3706, %v3707
        %v3709 = vsel %vm1168, %v3603, 0.0
        %v3710 = vsel %vm1168, %v3605, 0.0
        %v3711 = vadd.f32 %v3709, %v3710
        %v3712 = vsel %vm1168, %v3607, 0.0
        %v3713 = vadd.f32 %v3711, %v3712
        %v3714 = vsel %vm1168, %v3609, 0.0
        %v3715 = vadd.f32 %v3713, %v3714
        %v3716 = vsel %vm1168, %v3604, 0.0
        %v3717 = vsel %vm1168, %v3606, 0.0
        %v3718 = vadd.f32 %v3716, %v3717
        %v3719 = vsel %vm1168, %v3608, 0.0
        %v3720 = vadd.f32 %v3718, %v3719
        %v3721 = vsel %vm1168, %v3610, 0.0
        %v3722 = vadd.f32 %v3720, %v3721
        %v3723 = vld [vmem:[#allocation11] sm:$0x1]
        %v3725 = vperm.slane %v3723, 0
        %v3727 = vadd.f32 %v3617, %v3725
        %v3728 = vadd.f32 %v3624, %v3725
        %v3729 = vadd.f32 %v3631, %v3725
        %v3730 = vadd.f32 %v3638, %v3725
        %v3731 = vadd.f32 %v3645, %v3725
        %v3732 = vadd.f32 %v3652, %v3725
        %v3733 = vadd.f32 %v3659, %v3725
        %v3734 = vadd.f32 %v3666, %v3725
        %v3735 = vadd.f32 %v3673, %v3725
        %v3736 = vadd.f32 %v3680, %v3725
        %v3737 = vadd.f32 %v3687, %v3725
        %v3738 = vadd.f32 %v3694, %v3725
        %v3739 = vadd.f32 %v3701, %v3725
        %v3740 = vadd.f32 %v3708, %v3725
        %v3741 = vadd.f32 %v3715, %v3725
        %v3742 = vadd.f32 %v3722, %v3725
        %v3743 = vsel %vm1168, %v3727, 0.0
        %v3744 = vsel %vm1168, %v3728, 0.0
        %v3745 = vadd.f32 %v3743, %v3744
        %v3746 = vrot.slane %v3745, 4
        %v3747 = vadd.f32 %v3745, %v3746
        %v3748 = vrot.slane %v3747, 2
        %v3749 = vadd.f32 %v3747, %v3748
        %v3750 = vrot.slane %v3749, 1
        %v3751 = vadd.f32 %v3749, %v3750
        %v3752 = vsel %vm1168, %v3729, 0.0
        %v3753 = vsel %vm1168, %v3730, 0.0
        %v3754 = vadd.f32 %v3752, %v3753
        %v3755 = vrot.slane %v3754, 4
        %v3756 = vadd.f32 %v3754, %v3755
        %v3757 = vrot.slane %v3756, 2
        %v3758 = vadd.f32 %v3756, %v3757
        %v3759 = vrot.slane %v3758, 1
        %v3760 = vadd.f32 %v3758, %v3759
        %v3761 = vsel %vm1168, %v3731, 0.0
        %v3762 = vsel %vm1168, %v3732, 0.0
        %v3763 = vadd.f32 %v3761, %v3762
        %v3764 = vrot.slane %v3763, 4
        %v3765 = vadd.f32 %v3763, %v3764
        %v3766 = vrot.slane %v3765, 2
        %v3767 = vadd.f32 %v3765, %v3766
        %v3768 = vrot.slane %v3767, 1
        %v3769 = vadd.f32 %v3767, %v3768
        %v3770 = vsel %vm1168, %v3733, 0.0
        %v3771 = vsel %vm1168, %v3734, 0.0
        %v3772 = vadd.f32 %v3770, %v3771
        %v3773 = vrot.slane %v3772, 4
        %v3774 = vadd.f32 %v3772, %v3773
        %v3775 = vrot.slane %v3774, 2
        %v3776 = vadd.f32 %v3774, %v3775
        %v3777 = vrot.slane %v3776, 1
        %v3778 = vadd.f32 %v3776, %v3777
        %v3779 = vsel %vm1168, %v3735, 0.0
        %v3780 = vsel %vm1168, %v3736, 0.0
        %v3781 = vadd.f32 %v3779, %v3780
        %v3782 = vrot.slane %v3781, 4
        %v3783 = vadd.f32 %v3781, %v3782
        %v3784 = vrot.slane %v3783, 2
        %v3785 = vadd.f32 %v3783, %v3784
        %v3786 = vrot.slane %v3785, 1
        %v3787 = vadd.f32 %v3785, %v3786
        %v3788 = vsel %vm1168, %v3737, 0.0
        %v3789 = vsel %vm1168, %v3738, 0.0
        %v3790 = vadd.f32 %v3788, %v3789
        %v3791 = vrot.slane %v3790, 4
        %v3792 = vadd.f32 %v3790, %v3791
        %v3793 = vrot.slane %v3792, 2
        %v3794 = vadd.f32 %v3792, %v3793
        %v3795 = vrot.slane %v3794, 1
        %v3796 = vadd.f32 %v3794, %v3795
        %v3797 = vsel %vm1168, %v3739, 0.0
        %v3798 = vsel %vm1168, %v3740, 0.0
        %v3799 = vadd.f32 %v3797, %v3798
        %v3800 = vrot.slane %v3799, 4
        %v3801 = vadd.f32 %v3799, %v3800
        %v3802 = vrot.slane %v3801, 2
        %v3803 = vadd.f32 %v3801, %v3802
        %v3804 = vrot.slane %v3803, 1
        %v3805 = vadd.f32 %v3803, %v3804
        %v3806 = vsel %vm1168, %v3741, 0.0
        %v3807 = vsel %vm1168, %v3742, 0.0
        %v3808 = vadd.f32 %v3806, %v3807
        %v3809 = vrot.slane %v3808, 4
        %v3810 = vadd.f32 %v3808, %v3809
        %v3811 = vrot.slane %v3810, 2
        %v3812 = vadd.f32 %v3810, %v3811
        %v3813 = vrot.slane %v3812, 1
        %v3814 = vadd.f32 %v3812, %v3813
        %v3815 = vmul.f32 %v3751, 0.0625
        %v3816 = vmul.f32 %v3760, 0.0625
        %v3817 = vmul.f32 %v3769, 0.0625
        %v3818 = vmul.f32 %v3778, 0.0625
        %v3819 = vmul.f32 %v3787, 0.0625
        %v3820 = vmul.f32 %v3796, 0.0625
        %v3821 = vmul.f32 %v3805, 0.0625
        %v3822 = vmul.f32 %v3814, 0.0625
        %v3823 = vld [vmem:[#allocation16] sm:$0x1]
        %v3824 = vmul.f32 %v3823, %v3815
        %v3825 = vmul.f32 %v3823, %v3816
        %v3826 = vmul.f32 %v3823, %v3817
        %v3827 = vmul.f32 %v3823, %v3818
        %v3828 = vmul.f32 %v3823, %v3819
        %v3829 = vmul.f32 %v3823, %v3820
        %v3830 = vmul.f32 %v3823, %v3821
        %v3831 = vmul.f32 %v3823, %v3822
        %v3840 = vperm.slane %v3824, 0
        %v3841 = vperm.slane %v3825, 0
        %v3842 = vperm.slane %v3826, 0
        %v3843 = vperm.slane %v3827, 0
        %v3844 = vperm.slane %v3828, 0
        %v3845 = vperm.slane %v3829, 0
        %v3846 = vperm.slane %v3830, 0
        %v3847 = vperm.slane %v3831, 0
        %v3856 = vsub.f32 %v3727, %v3840
        %v3857 = vsub.f32 %v3728, %v3840
        %v3858 = vsub.f32 %v3729, %v3841
        %v3859 = vsub.f32 %v3730, %v3841
        %v3860 = vsub.f32 %v3731, %v3842
        %v3861 = vsub.f32 %v3732, %v3842
        %v3862 = vsub.f32 %v3733, %v3843
        %v3863 = vsub.f32 %v3734, %v3843
        %v3864 = vsub.f32 %v3735, %v3844
        %v3865 = vsub.f32 %v3736, %v3844
        %v3866 = vsub.f32 %v3737, %v3845
        %v3867 = vsub.f32 %v3738, %v3845
        %v3868 = vsub.f32 %v3739, %v3846
        %v3869 = vsub.f32 %v3740, %v3846
        %v3870 = vsub.f32 %v3741, %v3847
        %v3871 = vsub.f32 %v3742, %v3847
        %v3872 = vmul.f32 %v3856, %v3856
        %v3873 = vmul.f32 %v3857, %v3857
        %v3874 = vmul.f32 %v3858, %v3858
        %v3875 = vmul.f32 %v3859, %v3859
        %v3876 = vmul.f32 %v3860, %v3860
        %v3877 = vmul.f32 %v3861, %v3861
        %v3878 = vmul.f32 %v3862, %v3862
        %v3879 = vmul.f32 %v3863, %v3863
        %v3880 = vmul.f32 %v3864, %v3864
        %v3881 = vmul.f32 %v3865, %v3865
        %v3882 = vmul.f32 %v3866, %v3866
        %v3883 = vmul.f32 %v3867, %v3867
        %v3884 = vmul.f32 %v3868, %v3868
        %v3885 = vmul.f32 %v3869, %v3869
        %v3886 = vmul.f32 %v3870, %v3870
        %v3887 = vmul.f32 %v3871, %v3871
        %v3888 = vsel %vm1168, %v3872, 0.0
        %v3889 = vsel %vm1168, %v3873, 0.0
        %v3890 = vadd.f32 %v3888, %v3889
        %v3891 = vrot.slane %v3890, 4
        %v3892 = vadd.f32 %v3890, %v3891
        %v3893 = vrot.slane %v3892, 2
        %v3894 = vadd.f32 %v3892, %v3893
        %v3895 = vrot.slane %v3894, 1
        %v3896 = vadd.f32 %v3894, %v3895
        %v3897 = vsel %vm1168, %v3874, 0.0
        %v3898 = vsel %vm1168, %v3875, 0.0
        %v3899 = vadd.f32 %v3897, %v3898
        %v3900 = vrot.slane %v3899, 4
        %v3901 = vadd.f32 %v3899, %v3900
        %v3902 = vrot.slane %v3901, 2
        %v3903 = vadd.f32 %v3901, %v3902
        %v3904 = vrot.slane %v3903, 1
        %v3905 = vadd.f32 %v3903, %v3904
        %v3906 = vsel %vm1168, %v3876, 0.0
        %v3907 = vsel %vm1168, %v3877, 0.0
        %v3908 = vadd.f32 %v3906, %v3907
        %v3909 = vrot.slane %v3908, 4
        %v3910 = vadd.f32 %v3908, %v3909
        %v3911 = vrot.slane %v3910, 2
        %v3912 = vadd.f32 %v3910, %v3911
        %v3913 = vrot.slane %v3912, 1
        %v3914 = vadd.f32 %v3912, %v3913
        %v3915 = vsel %vm1168, %v3878, 0.0
        %v3916 = vsel %vm1168, %v3879, 0.0
        %v3917 = vadd.f32 %v3915, %v3916
        %v3918 = vrot.slane %v3917, 4
        %v3919 = vadd.f32 %v3917, %v3918
        %v3920 = vrot.slane %v3919, 2
        %v3921 = vadd.f32 %v3919, %v3920
        %v3922 = vrot.slane %v3921, 1
        %v3923 = vadd.f32 %v3921, %v3922
        %v3924 = vsel %vm1168, %v3880, 0.0
        %v3925 = vsel %vm1168, %v3881, 0.0
        %v3926 = vadd.f32 %v3924, %v3925
        %v3927 = vrot.slane %v3926, 4
        %v3928 = vadd.f32 %v3926, %v3927
        %v3929 = vrot.slane %v3928, 2
        %v3930 = vadd.f32 %v3928, %v3929
        %v3931 = vrot.slane %v3930, 1
        %v3932 = vadd.f32 %v3930, %v3931
        %v3933 = vsel %vm1168, %v3882, 0.0
        %v3934 = vsel %vm1168, %v3883, 0.0
        %v3935 = vadd.f32 %v3933, %v3934
        %v3936 = vrot.slane %v3935, 4
        %v3937 = vadd.f32 %v3935, %v3936
        %v3938 = vrot.slane %v3937, 2
        %v3939 = vadd.f32 %v3937, %v3938
        %v3940 = vrot.slane %v3939, 1
        %v3941 = vadd.f32 %v3939, %v3940
        %v3942 = vsel %vm1168, %v3884, 0.0
        %v3943 = vsel %vm1168, %v3885, 0.0
        %v3944 = vadd.f32 %v3942, %v3943
        %v3945 = vrot.slane %v3944, 4
        %v3946 = vadd.f32 %v3944, %v3945
        %v3947 = vrot.slane %v3946, 2
        %v3948 = vadd.f32 %v3946, %v3947
        %v3949 = vrot.slane %v3948, 1
        %v3950 = vadd.f32 %v3948, %v3949
        %v3951 = vsel %vm1168, %v3886, 0.0
        %v3952 = vsel %vm1168, %v3887, 0.0
        %v3953 = vadd.f32 %v3951, %v3952
        %v3954 = vrot.slane %v3953, 4
        %v3955 = vadd.f32 %v3953, %v3954
        %v3956 = vrot.slane %v3955, 2
        %v3957 = vadd.f32 %v3955, %v3956
        %v3958 = vrot.slane %v3957, 1
        %v3959 = vadd.f32 %v3957, %v3958
        %v3960 = vmul.f32 %v3896, 0.0625
        %v3961 = vmul.f32 %v3905, 0.0625
        %v3962 = vmul.f32 %v3914, 0.0625
        %v3963 = vmul.f32 %v3923, 0.0625
        %v3964 = vmul.f32 %v3932, 0.0625
        %v3965 = vmul.f32 %v3941, 0.0625
        %v3966 = vmul.f32 %v3950, 0.0625
        %v3967 = vmul.f32 %v3959, 0.0625
        %v3968 = vld [vmem:[#allocation13] sm:$0x1]
        %v3970 = vperm.slane %v3968, 0
        %v3972 = vmul.f32 %v3970, %v3856
        %v3973 = vmul.f32 %v3970, %v3857
        %v3974 = vmul.f32 %v3970, %v3858
        %v3975 = vmul.f32 %v3970, %v3859
        %v3976 = vmul.f32 %v3970, %v3860
        %v3977 = vmul.f32 %v3970, %v3861
        %v3978 = vmul.f32 %v3970, %v3862
        %v3979 = vmul.f32 %v3970, %v3863
        %v3980 = vmul.f32 %v3970, %v3864
        %v3981 = vmul.f32 %v3970, %v3865
        %v3982 = vmul.f32 %v3970, %v3866
        %v3983 = vmul.f32 %v3970, %v3867
        %v3984 = vmul.f32 %v3970, %v3868
        %v3985 = vmul.f32 %v3970, %v3869
        %v3986 = vmul.f32 %v3970, %v3870
        %v3987 = vmul.f32 %v3970, %v3871
        %v3988 = vadd.f32 %v3960, 1e-05
        %v3989 = vadd.f32 %v3961, 1e-05
        %v3990 = vadd.f32 %v3962, 1e-05
        %v3991 = vadd.f32 %v3963, 1e-05
        %v3992 = vadd.f32 %v3964, 1e-05
        %v3993 = vadd.f32 %v3965, 1e-05
        %v3994 = vadd.f32 %v3966, 1e-05
        %v3995 = vadd.f32 %v3967, 1e-05
        %v3996 = vrsqrt.pop %v3988
        %v3997 = vmul.f32 %v3996, %v3988
        %v3998 = vmul.f32 %v3997, %v3996
        %v3999 = vmul.f32 0.5, %v3998
        %v4000 = vsub.f32 1.5, %v3999
        %v4001 = vmul.f32 %v3996, %v4000
        %vm4002 = vweird.f32 %v3988
        %vm4003 = vweird.f32 %v3996
        %vm4004 = vmor %vm4002, %vm4003
        %v4005 = vsel %vm4004, %v3996, %v4001
        %v4006 = vrsqrt.pop %v3989
        %v4007 = vmul.f32 %v4006, %v3989
        %v4008 = vmul.f32 %v4007, %v4006
        %v4009 = vmul.f32 0.5, %v4008
        %v4010 = vsub.f32 1.5, %v4009
        %v4011 = vmul.f32 %v4006, %v4010
        %vm4012 = vweird.f32 %v3989
        %vm4013 = vweird.f32 %v4006
        %vm4014 = vmor %vm4012, %vm4013
        %v4015 = vsel %vm4014, %v4006, %v4011
        %v4016 = vrsqrt.pop %v3990
        %v4017 = vmul.f32 %v4016, %v3990
        %v4018 = vmul.f32 %v4017, %v4016
        %v4019 = vmul.f32 0.5, %v4018
        %v4020 = vsub.f32 1.5, %v4019
        %v4021 = vmul.f32 %v4016, %v4020
        %vm4022 = vweird.f32 %v3990
        %vm4023 = vweird.f32 %v4016
        %vm4024 = vmor %vm4022, %vm4023
        %v4025 = vsel %vm4024, %v4016, %v4021
        %v4026 = vrsqrt.pop %v3991
        %v4027 = vmul.f32 %v4026, %v3991
        %v4028 = vmul.f32 %v4027, %v4026
        %v4029 = vmul.f32 0.5, %v4028
        %v4030 = vsub.f32 1.5, %v4029
        %v4031 = vmul.f32 %v4026, %v4030
        %vm4032 = vweird.f32 %v3991
        %vm4033 = vweird.f32 %v4026
        %vm4034 = vmor %vm4032, %vm4033
        %v4035 = vsel %vm4034, %v4026, %v4031
        %v4036 = vrsqrt.pop %v3992
        %v4037 = vmul.f32 %v4036, %v3992
        %v4038 = vmul.f32 %v4037, %v4036
        %v4039 = vmul.f32 0.5, %v4038
        %v4040 = vsub.f32 1.5, %v4039
        %v4041 = vmul.f32 %v4036, %v4040
        %vm4042 = vweird.f32 %v3992
        %vm4043 = vweird.f32 %v4036
        %vm4044 = vmor %vm4042, %vm4043
        %v4045 = vsel %vm4044, %v4036, %v4041
        %v4046 = vrsqrt.pop %v3993
        %v4047 = vmul.f32 %v4046, %v3993
        %v4048 = vmul.f32 %v4047, %v4046
        %v4049 = vmul.f32 0.5, %v4048
        %v4050 = vsub.f32 1.5, %v4049
        %v4051 = vmul.f32 %v4046, %v4050
        %vm4052 = vweird.f32 %v3993
        %vm4053 = vweird.f32 %v4046
        %vm4054 = vmor %vm4052, %vm4053
        %v4055 = vsel %vm4054, %v4046, %v4051
        %v4056 = vrsqrt.pop %v3994
        %v4057 = vmul.f32 %v4056, %v3994
        %v4058 = vmul.f32 %v4057, %v4056
        %v4059 = vmul.f32 0.5, %v4058
        %v4060 = vsub.f32 1.5, %v4059
        %v4061 = vmul.f32 %v4056, %v4060
        %vm4062 = vweird.f32 %v3994
        %vm4063 = vweird.f32 %v4056
        %vm4064 = vmor %vm4062, %vm4063
        %v4065 = vsel %vm4064, %v4056, %v4061
        %v4066 = vrsqrt.pop %v3995
        %v4067 = vmul.f32 %v4066, %v3995
        %v4068 = vmul.f32 %v4067, %v4066
        %v4069 = vmul.f32 0.5, %v4068
        %v4070 = vsub.f32 1.5, %v4069
        %v4071 = vmul.f32 %v4066, %v4070
        %vm4072 = vweird.f32 %v3995
        %vm4073 = vweird.f32 %v4066
        %vm4074 = vmor %vm4072, %vm4073
        %v4075 = vsel %vm4074, %v4066, %v4071
        %v4076 = vmul.f32 %v3972, %v4005
        %v4077 = vmul.f32 %v3973, %v4005
        %v4078 = vmul.f32 %v3974, %v4015
        %v4079 = vmul.f32 %v3975, %v4015
        %v4080 = vmul.f32 %v3976, %v4025
        %v4081 = vmul.f32 %v3977, %v4025
        %v4082 = vmul.f32 %v3978, %v4035
        %v4083 = vmul.f32 %v3979, %v4035
        %v4084 = vmul.f32 %v3980, %v4045
        %v4085 = vmul.f32 %v3981, %v4045
        %v4086 = vmul.f32 %v3982, %v4055
        %v4087 = vmul.f32 %v3983, %v4055
        %v4088 = vmul.f32 %v3984, %v4065
        %v4089 = vmul.f32 %v3985, %v4065
        %v4090 = vmul.f32 %v3986, %v4075
        %v4091 = vmul.f32 %v3987, %v4075
        %v4092 = vld [vmem:[#allocation14] sm:$0x1]
        %v4094 = vperm.slane %v4092, 0
        %v4096 = vadd.f32 %v4076, %v4094
        %v4097 = vadd.f32 %v4077, %v4094
        %v4098 = vadd.f32 %v4078, %v4094
        %v4099 = vadd.f32 %v4079, %v4094
        %v4100 = vadd.f32 %v4080, %v4094
        %v4101 = vadd.f32 %v4081, %v4094
        %v4102 = vadd.f32 %v4082, %v4094
        %v4103 = vadd.f32 %v4083, %v4094
        %v4104 = vadd.f32 %v4084, %v4094
        %v4105 = vadd.f32 %v4085, %v4094
        %v4106 = vadd.f32 %v4086, %v4094
        %v4107 = vadd.f32 %v4087, %v4094
        %v4108 = vadd.f32 %v4088, %v4094
        %v4109 = vadd.f32 %v4089, %v4094
        %v4110 = vadd.f32 %v4090, %v4094
        %v4111 = vadd.f32 %v4091, %v4094
        %v4112 = vmax.f32 %v4096, 0.0
        %v4113 = vmax.f32 %v4097, 0.0
        %v4114 = vmax.f32 %v4098, 0.0
        %v4115 = vmax.f32 %v4099, 0.0
        %v4116 = vmax.f32 %v4100, 0.0
        %v4117 = vmax.f32 %v4101, 0.0
        %v4118 = vmax.f32 %v4102, 0.0
        %v4119 = vmax.f32 %v4103, 0.0
        %v4120 = vmax.f32 %v4104, 0.0
        %v4121 = vmax.f32 %v4105, 0.0
        %v4122 = vmax.f32 %v4106, 0.0
        %v4123 = vmax.f32 %v4107, 0.0
        %v4124 = vmax.f32 %v4108, 0.0
        %v4125 = vmax.f32 %v4109, 0.0
        %v4126 = vmax.f32 %v4110, 0.0
        %v4127 = vmax.f32 %v4111, 0.0
        %v4128 = vpack.c.bf16 %v4113, %v4112
        %v4129 = vpack.c.bf16 %v4115, %v4114
        %v4130 = vpack.c.bf16 %v4117, %v4116
        %v4131 = vpack.c.bf16 %v4119, %v4118
        %v4132 = vpack.c.bf16 %v4121, %v4120
        %v4133 = vpack.c.bf16 %v4123, %v4122
        %v4134 = vpack.c.bf16 %v4125, %v4124
        %v4135 = vpack.c.bf16 %v4127, %v4126
        %v4136 = vld [vmem:[#allocation17] sm:$0xff]
        %v4137 = vld [vmem:[#allocation17 + $0x8] sm:$0xff]
        %v4138 = vld [vmem:[#allocation17 + $0x10] sm:$0xff]
        %v4139 = vld [vmem:[#allocation17 + $0x18] sm:$0xff]
        %v4140 = vpack.c.bf16 %v4137, %v4136
        %v4141 = vpack.c.bf16 %v4139, %v4138
        %v4143 = vsel %vm1168, %v4128, 0
        %v4146 = vsel %vm1168, %v4129, 0
        %v4149 = vsel %vm1168, %v4130, 0
        %v4152 = vsel %vm1168, %v4131, 0
        %v4155 = vsel %vm1168, %v4132, 0
        %v4158 = vsel %vm1168, %v4133, 0
        %v4161 = vsel %vm1168, %v4134, 0
        %v4164 = vsel %vm1168, %v4135, 0
        %4166 = vmatpush.bf16.msra.mxu0 0
        %4167 = vmatpush.bf16.msra.mxu0 0
        %4168 = vmatpush.bf16.msra.mxu0 0
        %4169 = vmatpush.bf16.msra.mxu0 0
        %4170 = vmatpush.bf16.msra.mxu0 0
        %4171 = vmatpush.bf16.msra.mxu0 0
        %4172 = vmatpush.bf16.msra.mxu0 %v4141
        %4173 = vmatpush.bf16.msra.mxu0 %v4140
        %4174 = vmatmul.bf16.gmra.mxu0 %v4143
        %v4175 = vpop.f32.mrf.mxu0
        %v4176 = vadd.f32 0.0, %v4175
        %v4177 = vpop.f32.mrf.mxu0
        %v4178 = vadd.f32 0.0, %v4177
        %4179 = vmatmul.bf16.gmra.mxu0 %v4146
        %v4180 = vpop.f32.mrf.mxu0
        %v4181 = vadd.f32 0.0, %v4180
        %v4182 = vpop.f32.mrf.mxu0
        %v4183 = vadd.f32 0.0, %v4182
        %4184 = vmatmul.bf16.gmra.mxu0 %v4149
        %v4185 = vpop.f32.mrf.mxu0
        %v4186 = vadd.f32 0.0, %v4185
        %v4187 = vpop.f32.mrf.mxu0
        %v4188 = vadd.f32 0.0, %v4187
        %4189 = vmatmul.bf16.gmra.mxu0 %v4152
        %v4190 = vpop.f32.mrf.mxu0
        %v4191 = vadd.f32 0.0, %v4190
        %v4192 = vpop.f32.mrf.mxu0
        %v4193 = vadd.f32 0.0, %v4192
        %4194 = vmatmul.bf16.gmra.mxu0 %v4155
        %v4195 = vpop.f32.mrf.mxu0
        %v4196 = vadd.f32 0.0, %v4195
        %v4197 = vpop.f32.mrf.mxu0
        %v4198 = vadd.f32 0.0, %v4197
        %4199 = vmatmul.bf16.gmra.mxu0 %v4158
        %v4200 = vpop.f32.mrf.mxu0
        %v4201 = vadd.f32 0.0, %v4200
        %v4202 = vpop.f32.mrf.mxu0
        %v4203 = vadd.f32 0.0, %v4202
        %4204 = vmatmul.bf16.gmra.mxu0 %v4161
        %v4205 = vpop.f32.mrf.mxu0
        %v4206 = vadd.f32 0.0, %v4205
        %v4207 = vpop.f32.mrf.mxu0
        %v4208 = vadd.f32 0.0, %v4207
        %4209 = vmatmul.bf16.gmra.mxu0 %v4164
        %v4210 = vpop.f32.mrf.mxu0
        %v4211 = vadd.f32 0.0, %v4210
        %v4212 = vpop.f32.mrf.mxu0
        %v4213 = vadd.f32 0.0, %v4212
        %4214 = vdwg.mxu0
        %v4215 = vpack.c.bf16 %v4176, %v4176
        %v4216 = vpack.c.bf16 %v4178, %v4178
        %v4217 = vpack.c.bf16 %v4181, %v4181
        %v4218 = vpack.c.bf16 %v4183, %v4183
        %v4219 = vpack.c.bf16 %v4186, %v4186
        %v4220 = vpack.c.bf16 %v4188, %v4188
        %v4221 = vpack.c.bf16 %v4191, %v4191
        %v4222 = vpack.c.bf16 %v4193, %v4193
        %v4223 = vpack.c.bf16 %v4196, %v4196
        %v4224 = vpack.c.bf16 %v4198, %v4198
        %v4225 = vpack.c.bf16 %v4201, %v4201
        %v4226 = vpack.c.bf16 %v4203, %v4203
        %v4227 = vpack.c.bf16 %v4206, %v4206
        %v4228 = vpack.c.bf16 %v4208, %v4208
        %v4229 = vpack.c.bf16 %v4211, %v4211
        %v4230 = vpack.c.bf16 %v4213, %v4213
        %v4231 = vld [vmem:[%s11] sm:$0xf]
        %v4232 = vpack.c.bf16 %v4231, %v4231
        %v4233 = vld [vmem:[%s12] sm:$0xf]
        %v4234 = vpack.c.bf16 %v4233, %v4233
        %v4237 = vunpack.c.l.b16 %v4215
        %v4238 = vunpack.c.l.b16 %v4216
        %v4239 = vpack.c.b16 %v4238, %v4237
        %v4241 = vsel %vm1168, %v4232, 0
        %v4244 = vsel %vm1168, %v4239, 0
        %4246 = vmatpush.bf16.xpose.msra.mxu0 0
        %4247 = vmatpush.bf16.xpose.msra.mxu0 0
        %4248 = vmatpush.bf16.xpose.msra.mxu0 0
        %4249 = vmatpush.bf16.xpose.msra.mxu0 0
        %4250 = vmatpush.bf16.xpose.msra.mxu0 0
        %4251 = vmatpush.bf16.xpose.msra.mxu0 0
        %4252 = vmatpush.bf16.xpose.msra.mxu0 0
        %4253 = vmatpush.bf16.xpose.msra.mxu0 %v4244
        %4254 = vmatmul.bf16.gmra.mxu0 %v4241
        %v4255 = vpop.f32.mrf.mxu0
        %v4256 = vadd.f32 0.0, %v4255
        %v4257 = vpop.f32.mrf.mxu0
        %4258 = vdwg.mxu0
        %v4261 = vunpack.c.l.b16 %v4217
        %v4262 = vunpack.c.l.b16 %v4218
        %v4263 = vpack.c.b16 %v4262, %v4261
        %v4265 = vsel %vm1168, %v4263, 0
        %4267 = vmatpush.bf16.xpose.msra.mxu0 0
        %4268 = vmatpush.bf16.xpose.msra.mxu0 0
        %4269 = vmatpush.bf16.xpose.msra.mxu0 0
        %4270 = vmatpush.bf16.xpose.msra.mxu0 0
        %4271 = vmatpush.bf16.xpose.msra.mxu0 0
        %4272 = vmatpush.bf16.xpose.msra.mxu0 0
        %4273 = vmatpush.bf16.xpose.msra.mxu0 0
        %4274 = vmatpush.bf16.xpose.msra.mxu0 %v4265
        %4275 = vmatmul.bf16.gmra.mxu0 %v4241
        %v4276 = vpop.f32.mrf.mxu0
        %v4277 = vadd.f32 0.0, %v4276
        %v4278 = vpop.f32.mrf.mxu0
        %4279 = vdwg.mxu0
        %v4282 = vunpack.c.l.b16 %v4219
        %v4283 = vunpack.c.l.b16 %v4220
        %v4284 = vpack.c.b16 %v4283, %v4282
        %v4286 = vsel %vm1168, %v4284, 0
        %4288 = vmatpush.bf16.xpose.msra.mxu0 0
        %4289 = vmatpush.bf16.xpose.msra.mxu0 0
        %4290 = vmatpush.bf16.xpose.msra.mxu0 0
        %4291 = vmatpush.bf16.xpose.msra.mxu0 0
        %4292 = vmatpush.bf16.xpose.msra.mxu0 0
        %4293 = vmatpush.bf16.xpose.msra.mxu0 0
        %4294 = vmatpush.bf16.xpose.msra.mxu0 0
        %4295 = vmatpush.bf16.xpose.msra.mxu0 %v4286
        %4296 = vmatmul.bf16.gmra.mxu0 %v4241
        %v4297 = vpop.f32.mrf.mxu0
        %v4298 = vadd.f32 0.0, %v4297
        %v4299 = vpop.f32.mrf.mxu0
        %4300 = vdwg.mxu0
        %v4303 = vunpack.c.l.b16 %v4221
        %v4304 = vunpack.c.l.b16 %v4222
        %v4305 = vpack.c.b16 %v4304, %v4303
        %v4307 = vsel %vm1168, %v4305, 0
        %4309 = vmatpush.bf16.xpose.msra.mxu0 0
        %4310 = vmatpush.bf16.xpose.msra.mxu0 0
        %4311 = vmatpush.bf16.xpose.msra.mxu0 0
        %4312 = vmatpush.bf16.xpose.msra.mxu0 0
        %4313 = vmatpush.bf16.xpose.msra.mxu0 0
        %4314 = vmatpush.bf16.xpose.msra.mxu0 0
        %4315 = vmatpush.bf16.xpose.msra.mxu0 0
        %4316 = vmatpush.bf16.xpose.msra.mxu0 %v4307
        %4317 = vmatmul.bf16.gmra.mxu0 %v4241
        %v4318 = vpop.f32.mrf.mxu0
        %v4319 = vadd.f32 0.0, %v4318
        %v4320 = vpop.f32.mrf.mxu0
        %4321 = vdwg.mxu0
        %v4324 = vunpack.c.l.b16 %v4223
        %v4325 = vunpack.c.l.b16 %v4224
        %v4326 = vpack.c.b16 %v4325, %v4324
        %v4328 = vsel %vm1168, %v4326, 0
        %4330 = vmatpush.bf16.xpose.msra.mxu0 0
        %4331 = vmatpush.bf16.xpose.msra.mxu0 0
        %4332 = vmatpush.bf16.xpose.msra.mxu0 0
        %4333 = vmatpush.bf16.xpose.msra.mxu0 0
        %4334 = vmatpush.bf16.xpose.msra.mxu0 0
        %4335 = vmatpush.bf16.xpose.msra.mxu0 0
        %4336 = vmatpush.bf16.xpose.msra.mxu0 0
        %4337 = vmatpush.bf16.xpose.msra.mxu0 %v4328
        %4338 = vmatmul.bf16.gmra.mxu0 %v4241
        %v4339 = vpop.f32.mrf.mxu0
        %v4340 = vadd.f32 0.0, %v4339
        %v4341 = vpop.f32.mrf.mxu0
        %4342 = vdwg.mxu0
        %v4345 = vunpack.c.l.b16 %v4225
        %v4346 = vunpack.c.l.b16 %v4226
        %v4347 = vpack.c.b16 %v4346, %v4345
        %v4349 = vsel %vm1168, %v4347, 0
        %4351 = vmatpush.bf16.xpose.msra.mxu0 0
        %4352 = vmatpush.bf16.xpose.msra.mxu0 0
        %4353 = vmatpush.bf16.xpose.msra.mxu0 0
        %4354 = vmatpush.bf16.xpose.msra.mxu0 0
        %4355 = vmatpush.bf16.xpose.msra.mxu0 0
        %4356 = vmatpush.bf16.xpose.msra.mxu0 0
        %4357 = vmatpush.bf16.xpose.msra.mxu0 0
        %4358 = vmatpush.bf16.xpose.msra.mxu0 %v4349
        %4359 = vmatmul.bf16.gmra.mxu0 %v4241
        %v4360 = vpop.f32.mrf.mxu0
        %v4361 = vadd.f32 0.0, %v4360
        %v4362 = vpop.f32.mrf.mxu0
        %4363 = vdwg.mxu0
        %v4366 = vunpack.c.l.b16 %v4227
        %v4367 = vunpack.c.l.b16 %v4228
        %v4368 = vpack.c.b16 %v4367, %v4366
        %v4370 = vsel %vm1168, %v4368, 0
        %4372 = vmatpush.bf16.xpose.msra.mxu0 0
        %4373 = vmatpush.bf16.xpose.msra.mxu0 0
        %4374 = vmatpush.bf16.xpose.msra.mxu0 0
        %4375 = vmatpush.bf16.xpose.msra.mxu0 0
        %4376 = vmatpush.bf16.xpose.msra.mxu0 0
        %4377 = vmatpush.bf16.xpose.msra.mxu0 0
        %4378 = vmatpush.bf16.xpose.msra.mxu0 0
        %4379 = vmatpush.bf16.xpose.msra.mxu0 %v4370
        %4380 = vmatmul.bf16.gmra.mxu0 %v4241
        %v4381 = vpop.f32.mrf.mxu0
        %v4382 = vadd.f32 0.0, %v4381
        %v4383 = vpop.f32.mrf.mxu0
        %4384 = vdwg.mxu0
        %v4387 = vunpack.c.l.b16 %v4229
        %v4388 = vunpack.c.l.b16 %v4230
        %v4389 = vpack.c.b16 %v4388, %v4387
        %v4391 = vsel %vm1168, %v4389, 0
        %4393 = vmatpush.bf16.xpose.msra.mxu0 0
        %4394 = vmatpush.bf16.xpose.msra.mxu0 0
        %4395 = vmatpush.bf16.xpose.msra.mxu0 0
        %4396 = vmatpush.bf16.xpose.msra.mxu0 0
        %4397 = vmatpush.bf16.xpose.msra.mxu0 0
        %4398 = vmatpush.bf16.xpose.msra.mxu0 0
        %4399 = vmatpush.bf16.xpose.msra.mxu0 0
        %4400 = vmatpush.bf16.xpose.msra.mxu0 %v4391
        %4401 = vmatmul.bf16.gmra.mxu0 %v4241
        %v4402 = vpop.f32.mrf.mxu0
        %v4403 = vadd.f32 0.0, %v4402
        %v4404 = vpop.f32.mrf.mxu0
        %4405 = vdwg.mxu0
        %v4407 = vsel %vm1168, %v4234, 0
        %4409 = vmatpush.bf16.xpose.msra.mxu0 0
        %4410 = vmatpush.bf16.xpose.msra.mxu0 0
        %4411 = vmatpush.bf16.xpose.msra.mxu0 0
        %4412 = vmatpush.bf16.xpose.msra.mxu0 0
        %4413 = vmatpush.bf16.xpose.msra.mxu0 0
        %4414 = vmatpush.bf16.xpose.msra.mxu0 0
        %4415 = vmatpush.bf16.xpose.msra.mxu0 0
        %4416 = vmatpush.bf16.xpose.msra.mxu0 %v4244
        %4417 = vmatmul.bf16.gmra.mxu0 %v4407
        %v4418 = vpop.f32.mrf.mxu0
        %v4419 = vadd.f32 0.0, %v4418
        %v4420 = vpop.f32.mrf.mxu0
        %4421 = vdwg.mxu0
        %4422 = vmatpush.bf16.xpose.msra.mxu0 0
        %4423 = vmatpush.bf16.xpose.msra.mxu0 0
        %4424 = vmatpush.bf16.xpose.msra.mxu0 0
        %4425 = vmatpush.bf16.xpose.msra.mxu0 0
        %4426 = vmatpush.bf16.xpose.msra.mxu0 0
        %4427 = vmatpush.bf16.xpose.msra.mxu0 0
        %4428 = vmatpush.bf16.xpose.msra.mxu0 0
        %4429 = vmatpush.bf16.xpose.msra.mxu0 %v4265
        %4430 = vmatmul.bf16.gmra.mxu0 %v4407
        %v4431 = vpop.f32.mrf.mxu0
        %v4432 = vadd.f32 0.0, %v4431
        %v4433 = vpop.f32.mrf.mxu0
        %4434 = vdwg.mxu0
        %4435 = vmatpush.bf16.xpose.msra.mxu0 0
        %4436 = vmatpush.bf16.xpose.msra.mxu0 0
        %4437 = vmatpush.bf16.xpose.msra.mxu0 0
        %4438 = vmatpush.bf16.xpose.msra.mxu0 0
        %4439 = vmatpush.bf16.xpose.msra.mxu0 0
        %4440 = vmatpush.bf16.xpose.msra.mxu0 0
        %4441 = vmatpush.bf16.xpose.msra.mxu0 0
        %4442 = vmatpush.bf16.xpose.msra.mxu0 %v4286
        %4443 = vmatmul.bf16.gmra.mxu0 %v4407
        %v4444 = vpop.f32.mrf.mxu0
        %v4445 = vadd.f32 0.0, %v4444
        %v4446 = vpop.f32.mrf.mxu0
        %4447 = vdwg.mxu0
        %4448 = vmatpush.bf16.xpose.msra.mxu0 0
        %4449 = vmatpush.bf16.xpose.msra.mxu0 0
        %4450 = vmatpush.bf16.xpose.msra.mxu0 0
        %4451 = vmatpush.bf16.xpose.msra.mxu0 0
        %4452 = vmatpush.bf16.xpose.msra.mxu0 0
        %4453 = vmatpush.bf16.xpose.msra.mxu0 0
        %4454 = vmatpush.bf16.xpose.msra.mxu0 0
        %4455 = vmatpush.bf16.xpose.msra.mxu0 %v4307
        %4456 = vmatmul.bf16.gmra.mxu0 %v4407
        %v4457 = vpop.f32.mrf.mxu0
        %v4458 = vadd.f32 0.0, %v4457
        %v4459 = vpop.f32.mrf.mxu0
        %4460 = vdwg.mxu0
        %4461 = vmatpush.bf16.xpose.msra.mxu0 0
        %4462 = vmatpush.bf16.xpose.msra.mxu0 0
        %4463 = vmatpush.bf16.xpose.msra.mxu0 0
        %4464 = vmatpush.bf16.xpose.msra.mxu0 0
        %4465 = vmatpush.bf16.xpose.msra.mxu0 0
        %4466 = vmatpush.bf16.xpose.msra.mxu0 0
        %4467 = vmatpush.bf16.xpose.msra.mxu0 0
        %4468 = vmatpush.bf16.xpose.msra.mxu0 %v4328
        %4469 = vmatmul.bf16.gmra.mxu0 %v4407
        %v4470 = vpop.f32.mrf.mxu0
        %v4471 = vadd.f32 0.0, %v4470
        %v4472 = vpop.f32.mrf.mxu0
        %4473 = vdwg.mxu0
        %4474 = vmatpush.bf16.xpose.msra.mxu0 0
        %4475 = vmatpush.bf16.xpose.msra.mxu0 0
        %4476 = vmatpush.bf16.xpose.msra.mxu0 0
        %4477 = vmatpush.bf16.xpose.msra.mxu0 0
        %4478 = vmatpush.bf16.xpose.msra.mxu0 0
        %4479 = vmatpush.bf16.xpose.msra.mxu0 0
        %4480 = vmatpush.bf16.xpose.msra.mxu0 0
        %4481 = vmatpush.bf16.xpose.msra.mxu0 %v4349
        %4482 = vmatmul.bf16.gmra.mxu0 %v4407
        %v4483 = vpop.f32.mrf.mxu0
        %v4484 = vadd.f32 0.0, %v4483
        %v4485 = vpop.f32.mrf.mxu0
        %4486 = vdwg.mxu0
        %4487 = vmatpush.bf16.xpose.msra.mxu0 0
        %4488 = vmatpush.bf16.xpose.msra.mxu0 0
        %4489 = vmatpush.bf16.xpose.msra.mxu0 0
        %4490 = vmatpush.bf16.xpose.msra.mxu0 0
        %4491 = vmatpush.bf16.xpose.msra.mxu0 0
        %4492 = vmatpush.bf16.xpose.msra.mxu0 0
        %4493 = vmatpush.bf16.xpose.msra.mxu0 0
        %4494 = vmatpush.bf16.xpose.msra.mxu0 %v4370
        %4495 = vmatmul.bf16.gmra.mxu0 %v4407
        %v4496 = vpop.f32.mrf.mxu0
        %v4497 = vadd.f32 0.0, %v4496
        %v4498 = vpop.f32.mrf.mxu0
        %4499 = vdwg.mxu0
        %4500 = vmatpush.bf16.xpose.msra.mxu0 0
        %4501 = vmatpush.bf16.xpose.msra.mxu0 0
        %4502 = vmatpush.bf16.xpose.msra.mxu0 0
        %4503 = vmatpush.bf16.xpose.msra.mxu0 0
        %4504 = vmatpush.bf16.xpose.msra.mxu0 0
        %4505 = vmatpush.bf16.xpose.msra.mxu0 0
        %4506 = vmatpush.bf16.xpose.msra.mxu0 0
        %4507 = vmatpush.bf16.xpose.msra.mxu0 %v4391
        %4508 = vmatmul.bf16.gmra.mxu0 %v4407
        %v4509 = vpop.f32.mrf.mxu0
        %v4510 = vadd.f32 0.0, %v4509
        %v4511 = vpop.f32.mrf.mxu0
        %4512 = vdwg.mxu0
        %v4513 = vperm.slane %v4256, 0
        %v4514 = vlaneseq
        %v4515 = vshrl.u32 %v4514, 7
        %4517 = vset.pattern.permute.xlu0 %v4515
        %4518 = vperm.xlu0 %4517, %v4513
        %v4519 = vpop.permute.xlu0 %4518
        %v4520 = vlaneseq
        %v4521 = vshrl.u32 %v4520, 7
        %v4522 = vadd.s32 %v4521, 8
        %4523 = vset.pattern.permute.xlu0 %v4522
        %4524 = vperm.xlu0 %4523, %v4513
        %v4525 = vpop.permute.xlu0 %4524
        %v4526 = vperm.slane %v4256, 1
        %v4527 = vlaneseq
        %v4528 = vshrl.u32 %v4527, 7
        %4530 = vset.pattern.permute.xlu0 %v4528
        %4531 = vperm.xlu0 %4530, %v4526
        %v4532 = vpop.permute.xlu0 %4531
        %v4533 = vlaneseq
        %v4534 = vshrl.u32 %v4533, 7
        %v4535 = vadd.s32 %v4534, 8
        %4536 = vset.pattern.permute.xlu0 %v4535
        %4537 = vperm.xlu0 %4536, %v4526
        %v4538 = vpop.permute.xlu0 %4537
        %v4539 = vperm.slane %v4256, 2
        %v4540 = vlaneseq
        %v4541 = vshrl.u32 %v4540, 7
        %4543 = vset.pattern.permute.xlu0 %v4541
        %4544 = vperm.xlu0 %4543, %v4539
        %v4545 = vpop.permute.xlu0 %4544
        %v4546 = vlaneseq
        %v4547 = vshrl.u32 %v4546, 7
        %v4548 = vadd.s32 %v4547, 8
        %4549 = vset.pattern.permute.xlu0 %v4548
        %4550 = vperm.xlu0 %4549, %v4539
        %v4551 = vpop.permute.xlu0 %4550
        %v4552 = vperm.slane %v4256, 3
        %v4553 = vlaneseq
        %v4554 = vshrl.u32 %v4553, 7
        %4556 = vset.pattern.permute.xlu0 %v4554
        %4557 = vperm.xlu0 %4556, %v4552
        %v4558 = vpop.permute.xlu0 %4557
        %v4559 = vlaneseq
        %v4560 = vshrl.u32 %v4559, 7
        %v4561 = vadd.s32 %v4560, 8
        %4562 = vset.pattern.permute.xlu0 %v4561
        %4563 = vperm.xlu0 %4562, %v4552
        %v4564 = vpop.permute.xlu0 %4563
        %v4565 = vperm.slane %v4277, 0
        %v4566 = vlaneseq
        %v4567 = vshrl.u32 %v4566, 7
        %4569 = vset.pattern.permute.xlu0 %v4567
        %4570 = vperm.xlu0 %4569, %v4565
        %v4571 = vpop.permute.xlu0 %4570
        %v4572 = vlaneseq
        %v4573 = vshrl.u32 %v4572, 7
        %v4574 = vadd.s32 %v4573, 8
        %4575 = vset.pattern.permute.xlu0 %v4574
        %4576 = vperm.xlu0 %4575, %v4565
        %v4577 = vpop.permute.xlu0 %4576
        %v4578 = vperm.slane %v4277, 1
        %v4579 = vlaneseq
        %v4580 = vshrl.u32 %v4579, 7
        %4582 = vset.pattern.permute.xlu0 %v4580
        %4583 = vperm.xlu0 %4582, %v4578
        %v4584 = vpop.permute.xlu0 %4583
        %v4585 = vlaneseq
        %v4586 = vshrl.u32 %v4585, 7
        %v4587 = vadd.s32 %v4586, 8
        %4588 = vset.pattern.permute.xlu0 %v4587
        %4589 = vperm.xlu0 %4588, %v4578
        %v4590 = vpop.permute.xlu0 %4589
        %v4591 = vperm.slane %v4277, 2
        %v4592 = vlaneseq
        %v4593 = vshrl.u32 %v4592, 7
        %4595 = vset.pattern.permute.xlu0 %v4593
        %4596 = vperm.xlu0 %4595, %v4591
        %v4597 = vpop.permute.xlu0 %4596
        %v4598 = vlaneseq
        %v4599 = vshrl.u32 %v4598, 7
        %v4600 = vadd.s32 %v4599, 8
        %4601 = vset.pattern.permute.xlu0 %v4600
        %4602 = vperm.xlu0 %4601, %v4591
        %v4603 = vpop.permute.xlu0 %4602
        %v4604 = vperm.slane %v4277, 3
        %v4605 = vlaneseq
        %v4606 = vshrl.u32 %v4605, 7
        %4608 = vset.pattern.permute.xlu0 %v4606
        %4609 = vperm.xlu0 %4608, %v4604
        %v4610 = vpop.permute.xlu0 %4609
        %v4611 = vlaneseq
        %v4612 = vshrl.u32 %v4611, 7
        %v4613 = vadd.s32 %v4612, 8
        %4614 = vset.pattern.permute.xlu0 %v4613
        %4615 = vperm.xlu0 %4614, %v4604
        %v4616 = vpop.permute.xlu0 %4615
        %v4617 = vperm.slane %v4298, 0
        %v4618 = vlaneseq
        %v4619 = vshrl.u32 %v4618, 7
        %4621 = vset.pattern.permute.xlu0 %v4619
        %4622 = vperm.xlu0 %4621, %v4617
        %v4623 = vpop.permute.xlu0 %4622
        %v4624 = vlaneseq
        %v4625 = vshrl.u32 %v4624, 7
        %v4626 = vadd.s32 %v4625, 8
        %4627 = vset.pattern.permute.xlu0 %v4626
        %4628 = vperm.xlu0 %4627, %v4617
        %v4629 = vpop.permute.xlu0 %4628
        %v4630 = vperm.slane %v4298, 1
        %v4631 = vlaneseq
        %v4632 = vshrl.u32 %v4631, 7
        %4634 = vset.pattern.permute.xlu0 %v4632
        %4635 = vperm.xlu0 %4634, %v4630
        %v4636 = vpop.permute.xlu0 %4635
        %v4637 = vlaneseq
        %v4638 = vshrl.u32 %v4637, 7
        %v4639 = vadd.s32 %v4638, 8
        %4640 = vset.pattern.permute.xlu0 %v4639
        %4641 = vperm.xlu0 %4640, %v4630
        %v4642 = vpop.permute.xlu0 %4641
        %v4643 = vperm.slane %v4298, 2
        %v4644 = vlaneseq
        %v4645 = vshrl.u32 %v4644, 7
        %4647 = vset.pattern.permute.xlu0 %v4645
        %4648 = vperm.xlu0 %4647, %v4643
        %v4649 = vpop.permute.xlu0 %4648
        %v4650 = vlaneseq
        %v4651 = vshrl.u32 %v4650, 7
        %v4652 = vadd.s32 %v4651, 8
        %4653 = vset.pattern.permute.xlu0 %v4652
        %4654 = vperm.xlu0 %4653, %v4643
        %v4655 = vpop.permute.xlu0 %4654
        %v4656 = vperm.slane %v4298, 3
        %v4657 = vlaneseq
        %v4658 = vshrl.u32 %v4657, 7
        %4660 = vset.pattern.permute.xlu0 %v4658
        %4661 = vperm.xlu0 %4660, %v4656
        %v4662 = vpop.permute.xlu0 %4661
        %v4663 = vlaneseq
        %v4664 = vshrl.u32 %v4663, 7
        %v4665 = vadd.s32 %v4664, 8
        %4666 = vset.pattern.permute.xlu0 %v4665
        %4667 = vperm.xlu0 %4666, %v4656
        %v4668 = vpop.permute.xlu0 %4667
        %v4669 = vperm.slane %v4319, 0
        %v4670 = vlaneseq
        %v4671 = vshrl.u32 %v4670, 7
        %4673 = vset.pattern.permute.xlu0 %v4671
        %4674 = vperm.xlu0 %4673, %v4669
        %v4675 = vpop.permute.xlu0 %4674
        %v4676 = vlaneseq
        %v4677 = vshrl.u32 %v4676, 7
        %v4678 = vadd.s32 %v4677, 8
        %4679 = vset.pattern.permute.xlu0 %v4678
        %4680 = vperm.xlu0 %4679, %v4669
        %v4681 = vpop.permute.xlu0 %4680
        %v4682 = vperm.slane %v4319, 1
        %v4683 = vlaneseq
        %v4684 = vshrl.u32 %v4683, 7
        %4686 = vset.pattern.permute.xlu0 %v4684
        %4687 = vperm.xlu0 %4686, %v4682
        %v4688 = vpop.permute.xlu0 %4687
        %v4689 = vlaneseq
        %v4690 = vshrl.u32 %v4689, 7
        %v4691 = vadd.s32 %v4690, 8
        %4692 = vset.pattern.permute.xlu0 %v4691
        %4693 = vperm.xlu0 %4692, %v4682
        %v4694 = vpop.permute.xlu0 %4693
        %v4695 = vperm.slane %v4319, 2
        %v4696 = vlaneseq
        %v4697 = vshrl.u32 %v4696, 7
        %4699 = vset.pattern.permute.xlu0 %v4697
        %4700 = vperm.xlu0 %4699, %v4695
        %v4701 = vpop.permute.xlu0 %4700
        %v4702 = vlaneseq
        %v4703 = vshrl.u32 %v4702, 7
        %v4704 = vadd.s32 %v4703, 8
        %4705 = vset.pattern.permute.xlu0 %v4704
        %4706 = vperm.xlu0 %4705, %v4695
        %v4707 = vpop.permute.xlu0 %4706
        %v4708 = vperm.slane %v4319, 3
        %v4709 = vlaneseq
        %v4710 = vshrl.u32 %v4709, 7
        %4712 = vset.pattern.permute.xlu0 %v4710
        %4713 = vperm.xlu0 %4712, %v4708
        %v4714 = vpop.permute.xlu0 %4713
        %v4715 = vlaneseq
        %v4716 = vshrl.u32 %v4715, 7
        %v4717 = vadd.s32 %v4716, 8
        %4718 = vset.pattern.permute.xlu0 %v4717
        %4719 = vperm.xlu0 %4718, %v4708
        %v4720 = vpop.permute.xlu0 %4719
        %v4721 = vperm.slane %v4340, 0
        %v4722 = vlaneseq
        %v4723 = vshrl.u32 %v4722, 7
        %4725 = vset.pattern.permute.xlu0 %v4723
        %4726 = vperm.xlu0 %4725, %v4721
        %v4727 = vpop.permute.xlu0 %4726
        %v4728 = vlaneseq
        %v4729 = vshrl.u32 %v4728, 7
        %v4730 = vadd.s32 %v4729, 8
        %4731 = vset.pattern.permute.xlu0 %v4730
        %4732 = vperm.xlu0 %4731, %v4721
        %v4733 = vpop.permute.xlu0 %4732
        %v4734 = vperm.slane %v4340, 1
        %v4735 = vlaneseq
        %v4736 = vshrl.u32 %v4735, 7
        %4738 = vset.pattern.permute.xlu0 %v4736
        %4739 = vperm.xlu0 %4738, %v4734
        %v4740 = vpop.permute.xlu0 %4739
        %v4741 = vlaneseq
        %v4742 = vshrl.u32 %v4741, 7
        %v4743 = vadd.s32 %v4742, 8
        %4744 = vset.pattern.permute.xlu0 %v4743
        %4745 = vperm.xlu0 %4744, %v4734
        %v4746 = vpop.permute.xlu0 %4745
        %v4747 = vperm.slane %v4340, 2
        %v4748 = vlaneseq
        %v4749 = vshrl.u32 %v4748, 7
        %4751 = vset.pattern.permute.xlu0 %v4749
        %4752 = vperm.xlu0 %4751, %v4747
        %v4753 = vpop.permute.xlu0 %4752
        %v4754 = vlaneseq
        %v4755 = vshrl.u32 %v4754, 7
        %v4756 = vadd.s32 %v4755, 8
        %4757 = vset.pattern.permute.xlu0 %v4756
        %4758 = vperm.xlu0 %4757, %v4747
        %v4759 = vpop.permute.xlu0 %4758
        %v4760 = vperm.slane %v4340, 3
        %v4761 = vlaneseq
        %v4762 = vshrl.u32 %v4761, 7
        %4764 = vset.pattern.permute.xlu0 %v4762
        %4765 = vperm.xlu0 %4764, %v4760
        %v4766 = vpop.permute.xlu0 %4765
        %v4767 = vlaneseq
        %v4768 = vshrl.u32 %v4767, 7
        %v4769 = vadd.s32 %v4768, 8
        %4770 = vset.pattern.permute.xlu0 %v4769
        %4771 = vperm.xlu0 %4770, %v4760
        %v4772 = vpop.permute.xlu0 %4771
        %v4773 = vperm.slane %v4361, 0
        %v4774 = vlaneseq
        %v4775 = vshrl.u32 %v4774, 7
        %4777 = vset.pattern.permute.xlu0 %v4775
        %4778 = vperm.xlu0 %4777, %v4773
        %v4779 = vpop.permute.xlu0 %4778
        %v4780 = vlaneseq
        %v4781 = vshrl.u32 %v4780, 7
        %v4782 = vadd.s32 %v4781, 8
        %4783 = vset.pattern.permute.xlu0 %v4782
        %4784 = vperm.xlu0 %4783, %v4773
        %v4785 = vpop.permute.xlu0 %4784
        %v4786 = vperm.slane %v4361, 1
        %v4787 = vlaneseq
        %v4788 = vshrl.u32 %v4787, 7
        %4790 = vset.pattern.permute.xlu0 %v4788
        %4791 = vperm.xlu0 %4790, %v4786
        %v4792 = vpop.permute.xlu0 %4791
        %v4793 = vlaneseq
        %v4794 = vshrl.u32 %v4793, 7
        %v4795 = vadd.s32 %v4794, 8
        %4796 = vset.pattern.permute.xlu0 %v4795
        %4797 = vperm.xlu0 %4796, %v4786
        %v4798 = vpop.permute.xlu0 %4797
        %v4799 = vperm.slane %v4361, 2
        %v4800 = vlaneseq
        %v4801 = vshrl.u32 %v4800, 7
        %4803 = vset.pattern.permute.xlu0 %v4801
        %4804 = vperm.xlu0 %4803, %v4799
        %v4805 = vpop.permute.xlu0 %4804
        %v4806 = vlaneseq
        %v4807 = vshrl.u32 %v4806, 7
        %v4808 = vadd.s32 %v4807, 8
        %4809 = vset.pattern.permute.xlu0 %v4808
        %4810 = vperm.xlu0 %4809, %v4799
        %v4811 = vpop.permute.xlu0 %4810
        %v4812 = vperm.slane %v4361, 3
        %v4813 = vlaneseq
        %v4814 = vshrl.u32 %v4813, 7
        %4816 = vset.pattern.permute.xlu0 %v4814
        %4817 = vperm.xlu0 %4816, %v4812
        %v4818 = vpop.permute.xlu0 %4817
        %v4819 = vlaneseq
        %v4820 = vshrl.u32 %v4819, 7
        %v4821 = vadd.s32 %v4820, 8
        %4822 = vset.pattern.permute.xlu0 %v4821
        %4823 = vperm.xlu0 %4822, %v4812
        %v4824 = vpop.permute.xlu0 %4823
        %v4825 = vperm.slane %v4382, 0
        %v4826 = vlaneseq
        %v4827 = vshrl.u32 %v4826, 7
        %4829 = vset.pattern.permute.xlu0 %v4827
        %4830 = vperm.xlu0 %4829, %v4825
        %v4831 = vpop.permute.xlu0 %4830
        %v4832 = vlaneseq
        %v4833 = vshrl.u32 %v4832, 7
        %v4834 = vadd.s32 %v4833, 8
        %4835 = vset.pattern.permute.xlu0 %v4834
        %4836 = vperm.xlu0 %4835, %v4825
        %v4837 = vpop.permute.xlu0 %4836
        %v4838 = vperm.slane %v4382, 1
        %v4839 = vlaneseq
        %v4840 = vshrl.u32 %v4839, 7
        %4842 = vset.pattern.permute.xlu0 %v4840
        %4843 = vperm.xlu0 %4842, %v4838
        %v4844 = vpop.permute.xlu0 %4843
        %v4845 = vlaneseq
        %v4846 = vshrl.u32 %v4845, 7
        %v4847 = vadd.s32 %v4846, 8
        %4848 = vset.pattern.permute.xlu0 %v4847
        %4849 = vperm.xlu0 %4848, %v4838
        %v4850 = vpop.permute.xlu0 %4849
        %v4851 = vperm.slane %v4382, 2
        %v4852 = vlaneseq
        %v4853 = vshrl.u32 %v4852, 7
        %4855 = vset.pattern.permute.xlu0 %v4853
        %4856 = vperm.xlu0 %4855, %v4851
        %v4857 = vpop.permute.xlu0 %4856
        %v4858 = vlaneseq
        %v4859 = vshrl.u32 %v4858, 7
        %v4860 = vadd.s32 %v4859, 8
        %4861 = vset.pattern.permute.xlu0 %v4860
        %4862 = vperm.xlu0 %4861, %v4851
        %v4863 = vpop.permute.xlu0 %4862
        %v4864 = vperm.slane %v4382, 3
        %v4865 = vlaneseq
        %v4866 = vshrl.u32 %v4865, 7
        %4868 = vset.pattern.permute.xlu0 %v4866
        %4869 = vperm.xlu0 %4868, %v4864
        %v4870 = vpop.permute.xlu0 %4869
        %v4871 = vlaneseq
        %v4872 = vshrl.u32 %v4871, 7
        %v4873 = vadd.s32 %v4872, 8
        %4874 = vset.pattern.permute.xlu0 %v4873
        %4875 = vperm.xlu0 %4874, %v4864
        %v4876 = vpop.permute.xlu0 %4875
        %v4877 = vperm.slane %v4403, 0
        %v4878 = vlaneseq
        %v4879 = vshrl.u32 %v4878, 7
        %4881 = vset.pattern.permute.xlu0 %v4879
        %4882 = vperm.xlu0 %4881, %v4877
        %v4883 = vpop.permute.xlu0 %4882
        %v4884 = vlaneseq
        %v4885 = vshrl.u32 %v4884, 7
        %v4886 = vadd.s32 %v4885, 8
        %4887 = vset.pattern.permute.xlu0 %v4886
        %4888 = vperm.xlu0 %4887, %v4877
        %v4889 = vpop.permute.xlu0 %4888
        %v4890 = vperm.slane %v4403, 1
        %v4891 = vlaneseq
        %v4892 = vshrl.u32 %v4891, 7
        %4894 = vset.pattern.permute.xlu0 %v4892
        %4895 = vperm.xlu0 %4894, %v4890
        %v4896 = vpop.permute.xlu0 %4895
        %v4897 = vlaneseq
        %v4898 = vshrl.u32 %v4897, 7
        %v4899 = vadd.s32 %v4898, 8
        %4900 = vset.pattern.permute.xlu0 %v4899
        %4901 = vperm.xlu0 %4900, %v4890
        %v4902 = vpop.permute.xlu0 %4901
        %v4903 = vperm.slane %v4403, 2
        %v4904 = vlaneseq
        %v4905 = vshrl.u32 %v4904, 7
        %4907 = vset.pattern.permute.xlu0 %v4905
        %4908 = vperm.xlu0 %4907, %v4903
        %v4909 = vpop.permute.xlu0 %4908
        %v4910 = vlaneseq
        %v4911 = vshrl.u32 %v4910, 7
        %v4912 = vadd.s32 %v4911, 8
        %4913 = vset.pattern.permute.xlu0 %v4912
        %4914 = vperm.xlu0 %4913, %v4903
        %v4915 = vpop.permute.xlu0 %4914
        %v4916 = vperm.slane %v4403, 3
        %v4917 = vlaneseq
        %v4918 = vshrl.u32 %v4917, 7
        %4920 = vset.pattern.permute.xlu0 %v4918
        %4921 = vperm.xlu0 %4920, %v4916
        %v4922 = vpop.permute.xlu0 %4921
        %v4923 = vlaneseq
        %v4924 = vshrl.u32 %v4923, 7
        %v4925 = vadd.s32 %v4924, 8
        %4926 = vset.pattern.permute.xlu0 %v4925
        %4927 = vperm.xlu0 %4926, %v4916
        %v4928 = vpop.permute.xlu0 %4927
        %v4937 = vrot.slane %v4419, 1
        %v4938 = vrot.slane %v4419, 2
        %v4939 = vrot.slane %v4419, 3
        %v4940 = vrot.slane %v4432, 1
        %v4941 = vrot.slane %v4432, 2
        %v4942 = vrot.slane %v4432, 3
        %v4943 = vrot.slane %v4445, 1
        %v4944 = vrot.slane %v4445, 2
        %v4945 = vrot.slane %v4445, 3
        %v4946 = vrot.slane %v4458, 1
        %v4947 = vrot.slane %v4458, 2
        %v4948 = vrot.slane %v4458, 3
        %v4949 = vrot.slane %v4471, 1
        %v4950 = vrot.slane %v4471, 2
        %v4951 = vrot.slane %v4471, 3
        %v4952 = vrot.slane %v4484, 1
        %v4953 = vrot.slane %v4484, 2
        %v4954 = vrot.slane %v4484, 3
        %v4955 = vrot.slane %v4497, 1
        %v4956 = vrot.slane %v4497, 2
        %v4957 = vrot.slane %v4497, 3
        %v4958 = vrot.slane %v4510, 1
        %v4959 = vrot.slane %v4510, 2
        %v4960 = vrot.slane %v4510, 3
        %v4961 = vperm.slane %v4419, 0
        %v4962 = vperm.slane %v4937, 0
        %v4963 = vperm.slane %v4938, 0
        %v4964 = vperm.slane %v4939, 0
        %v4965 = vperm.slane %v4432, 0
        %v4966 = vperm.slane %v4940, 0
        %v4967 = vperm.slane %v4941, 0
        %v4968 = vperm.slane %v4942, 0
        %v4969 = vperm.slane %v4445, 0
        %v4970 = vperm.slane %v4943, 0
        %v4971 = vperm.slane %v4944, 0
        %v4972 = vperm.slane %v4945, 0
        %v4973 = vperm.slane %v4458, 0
        %v4974 = vperm.slane %v4946, 0
        %v4975 = vperm.slane %v4947, 0
        %v4976 = vperm.slane %v4948, 0
        %v4977 = vperm.slane %v4471, 0
        %v4978 = vperm.slane %v4949, 0
        %v4979 = vperm.slane %v4950, 0
        %v4980 = vperm.slane %v4951, 0
        %v4981 = vperm.slane %v4484, 0
        %v4982 = vperm.slane %v4952, 0
        %v4983 = vperm.slane %v4953, 0
        %v4984 = vperm.slane %v4954, 0
        %v4985 = vperm.slane %v4497, 0
        %v4986 = vperm.slane %v4955, 0
        %v4987 = vperm.slane %v4956, 0
        %v4988 = vperm.slane %v4957, 0
        %v4989 = vperm.slane %v4510, 0
        %v4990 = vperm.slane %v4958, 0
        %v4991 = vperm.slane %v4959, 0
        %v4992 = vperm.slane %v4960, 0
        %v5025 = vadd.f32 %v4519, %v4961
        %v5026 = vadd.f32 %v4525, %v4961
        %v5027 = vadd.f32 %v4532, %v4962
        %v5028 = vadd.f32 %v4538, %v4962
        %v5029 = vadd.f32 %v4545, %v4963
        %v5030 = vadd.f32 %v4551, %v4963
        %v5031 = vadd.f32 %v4558, %v4964
        %v5032 = vadd.f32 %v4564, %v4964
        %v5033 = vadd.f32 %v4571, %v4965
        %v5034 = vadd.f32 %v4577, %v4965
        %v5035 = vadd.f32 %v4584, %v4966
        %v5036 = vadd.f32 %v4590, %v4966
        %v5037 = vadd.f32 %v4597, %v4967
        %v5038 = vadd.f32 %v4603, %v4967
        %v5039 = vadd.f32 %v4610, %v4968
        %v5040 = vadd.f32 %v4616, %v4968
        %v5041 = vadd.f32 %v4623, %v4969
        %v5042 = vadd.f32 %v4629, %v4969
        %v5043 = vadd.f32 %v4636, %v4970
        %v5044 = vadd.f32 %v4642, %v4970
        %v5045 = vadd.f32 %v4649, %v4971
        %v5046 = vadd.f32 %v4655, %v4971
        %v5047 = vadd.f32 %v4662, %v4972
        %v5048 = vadd.f32 %v4668, %v4972
        %v5049 = vadd.f32 %v4675, %v4973
        %v5050 = vadd.f32 %v4681, %v4973
        %v5051 = vadd.f32 %v4688, %v4974
        %v5052 = vadd.f32 %v4694, %v4974
        %v5053 = vadd.f32 %v4701, %v4975
        %v5054 = vadd.f32 %v4707, %v4975
        %v5055 = vadd.f32 %v4714, %v4976
        %v5056 = vadd.f32 %v4720, %v4976
        %v5057 = vadd.f32 %v4727, %v4977
        %v5058 = vadd.f32 %v4733, %v4977
        %v5059 = vadd.f32 %v4740, %v4978
        %v5060 = vadd.f32 %v4746, %v4978
        %v5061 = vadd.f32 %v4753, %v4979
        %v5062 = vadd.f32 %v4759, %v4979
        %v5063 = vadd.f32 %v4766, %v4980
        %v5064 = vadd.f32 %v4772, %v4980
        %v5065 = vadd.f32 %v4779, %v4981
        %v5066 = vadd.f32 %v4785, %v4981
        %v5067 = vadd.f32 %v4792, %v4982
        %v5068 = vadd.f32 %v4798, %v4982
        %v5069 = vadd.f32 %v4805, %v4983
        %v5070 = vadd.f32 %v4811, %v4983
        %v5071 = vadd.f32 %v4818, %v4984
        %v5072 = vadd.f32 %v4824, %v4984
        %v5073 = vadd.f32 %v4831, %v4985
        %v5074 = vadd.f32 %v4837, %v4985
        %v5075 = vadd.f32 %v4844, %v4986
        %v5076 = vadd.f32 %v4850, %v4986
        %v5077 = vadd.f32 %v4857, %v4987
        %v5078 = vadd.f32 %v4863, %v4987
        %v5079 = vadd.f32 %v4870, %v4988
        %v5080 = vadd.f32 %v4876, %v4988
        %v5081 = vadd.f32 %v4883, %v4989
        %v5082 = vadd.f32 %v4889, %v4989
        %v5083 = vadd.f32 %v4896, %v4990
        %v5084 = vadd.f32 %v4902, %v4990
        %v5085 = vadd.f32 %v4909, %v4991
        %v5086 = vadd.f32 %v4915, %v4991
        %v5087 = vadd.f32 %v4922, %v4992
        %v5088 = vadd.f32 %v4928, %v4992
        %vm5089 = vcmp.gt.f32.partialorder %v5025, 0.0
        %vm5090 = vcmp.gt.f32.partialorder %v5026, 0.0
        %vm5091 = vcmp.gt.f32.partialorder %v5027, 0.0
        %vm5092 = vcmp.gt.f32.partialorder %v5028, 0.0
        %vm5093 = vcmp.gt.f32.partialorder %v5029, 0.0
        %vm5094 = vcmp.gt.f32.partialorder %v5030, 0.0
        %vm5095 = vcmp.gt.f32.partialorder %v5031, 0.0
        %vm5096 = vcmp.gt.f32.partialorder %v5032, 0.0
        %vm5097 = vcmp.gt.f32.partialorder %v5033, 0.0
        %vm5098 = vcmp.gt.f32.partialorder %v5034, 0.0
        %vm5099 = vcmp.gt.f32.partialorder %v5035, 0.0
        %vm5100 = vcmp.gt.f32.partialorder %v5036, 0.0
        %vm5101 = vcmp.gt.f32.partialorder %v5037, 0.0
        %vm5102 = vcmp.gt.f32.partialorder %v5038, 0.0
        %vm5103 = vcmp.gt.f32.partialorder %v5039, 0.0
        %vm5104 = vcmp.gt.f32.partialorder %v5040, 0.0
        %vm5105 = vcmp.gt.f32.partialorder %v5041, 0.0
        %vm5106 = vcmp.gt.f32.partialorder %v5042, 0.0
        %vm5107 = vcmp.gt.f32.partialorder %v5043, 0.0
        %vm5108 = vcmp.gt.f32.partialorder %v5044, 0.0
        %vm5109 = vcmp.gt.f32.partialorder %v5045, 0.0
        %vm5110 = vcmp.gt.f32.partialorder %v5046, 0.0
        %vm5111 = vcmp.gt.f32.partialorder %v5047, 0.0
        %vm5112 = vcmp.gt.f32.partialorder %v5048, 0.0
        %vm5113 = vcmp.gt.f32.partialorder %v5049, 0.0
        %vm5114 = vcmp.gt.f32.partialorder %v5050, 0.0
        %vm5115 = vcmp.gt.f32.partialorder %v5051, 0.0
        %vm5116 = vcmp.gt.f32.partialorder %v5052, 0.0
        %vm5117 = vcmp.gt.f32.partialorder %v5053, 0.0
        %vm5118 = vcmp.gt.f32.partialorder %v5054, 0.0
        %vm5119 = vcmp.gt.f32.partialorder %v5055, 0.0
        %vm5120 = vcmp.gt.f32.partialorder %v5056, 0.0
        %vm5121 = vcmp.gt.f32.partialorder %v5057, 0.0
        %vm5122 = vcmp.gt.f32.partialorder %v5058, 0.0
        %vm5123 = vcmp.gt.f32.partialorder %v5059, 0.0
        %vm5124 = vcmp.gt.f32.partialorder %v5060, 0.0
        %vm5125 = vcmp.gt.f32.partialorder %v5061, 0.0
        %vm5126 = vcmp.gt.f32.partialorder %v5062, 0.0
        %vm5127 = vcmp.gt.f32.partialorder %v5063, 0.0
        %vm5128 = vcmp.gt.f32.partialorder %v5064, 0.0
        %vm5129 = vcmp.gt.f32.partialorder %v5065, 0.0
        %vm5130 = vcmp.gt.f32.partialorder %v5066, 0.0
        %vm5131 = vcmp.gt.f32.partialorder %v5067, 0.0
        %vm5132 = vcmp.gt.f32.partialorder %v5068, 0.0
        %vm5133 = vcmp.gt.f32.partialorder %v5069, 0.0
        %vm5134 = vcmp.gt.f32.partialorder %v5070, 0.0
        %vm5135 = vcmp.gt.f32.partialorder %v5071, 0.0
        %vm5136 = vcmp.gt.f32.partialorder %v5072, 0.0
        %vm5137 = vcmp.gt.f32.partialorder %v5073, 0.0
        %vm5138 = vcmp.gt.f32.partialorder %v5074, 0.0
        %vm5139 = vcmp.gt.f32.partialorder %v5075, 0.0
        %vm5140 = vcmp.gt.f32.partialorder %v5076, 0.0
        %vm5141 = vcmp.gt.f32.partialorder %v5077, 0.0
        %vm5142 = vcmp.gt.f32.partialorder %v5078, 0.0
        %vm5143 = vcmp.gt.f32.partialorder %v5079, 0.0
        %vm5144 = vcmp.gt.f32.partialorder %v5080, 0.0
        %vm5145 = vcmp.gt.f32.partialorder %v5081, 0.0
        %vm5146 = vcmp.gt.f32.partialorder %v5082, 0.0
        %vm5147 = vcmp.gt.f32.partialorder %v5083, 0.0
        %vm5148 = vcmp.gt.f32.partialorder %v5084, 0.0
        %vm5149 = vcmp.gt.f32.partialorder %v5085, 0.0
        %vm5150 = vcmp.gt.f32.partialorder %v5086, 0.0
        %vm5151 = vcmp.gt.f32.partialorder %v5087, 0.0
        %vm5152 = vcmp.gt.f32.partialorder %v5088, 0.0
        %v5153 = vmul.f32 %v5025, 0.2
        %v5154 = vmul.f32 %v5026, 0.2
        %v5155 = vmul.f32 %v5027, 0.2
        %v5156 = vmul.f32 %v5028, 0.2
        %v5157 = vmul.f32 %v5029, 0.2
        %v5158 = vmul.f32 %v5030, 0.2
        %v5159 = vmul.f32 %v5031, 0.2
        %v5160 = vmul.f32 %v5032, 0.2
        %v5161 = vmul.f32 %v5033, 0.2
        %v5162 = vmul.f32 %v5034, 0.2
        %v5163 = vmul.f32 %v5035, 0.2
        %v5164 = vmul.f32 %v5036, 0.2
        %v5165 = vmul.f32 %v5037, 0.2
        %v5166 = vmul.f32 %v5038, 0.2
        %v5167 = vmul.f32 %v5039, 0.2
        %v5168 = vmul.f32 %v5040, 0.2
        %v5169 = vmul.f32 %v5041, 0.2
        %v5170 = vmul.f32 %v5042, 0.2
        %v5171 = vmul.f32 %v5043, 0.2
        %v5172 = vmul.f32 %v5044, 0.2
        %v5173 = vmul.f32 %v5045, 0.2
        %v5174 = vmul.f32 %v5046, 0.2
        %v5175 = vmul.f32 %v5047, 0.2
        %v5176 = vmul.f32 %v5048, 0.2
        %v5177 = vmul.f32 %v5049, 0.2
        %v5178 = vmul.f32 %v5050, 0.2
        %v5179 = vmul.f32 %v5051, 0.2
        %v5180 = vmul.f32 %v5052, 0.2
        %v5181 = vmul.f32 %v5053, 0.2
        %v5182 = vmul.f32 %v5054, 0.2
        %v5183 = vmul.f32 %v5055, 0.2
        %v5184 = vmul.f32 %v5056, 0.2
        %v5185 = vmul.f32 %v5057, 0.2
        %v5186 = vmul.f32 %v5058, 0.2
        %v5187 = vmul.f32 %v5059, 0.2
        %v5188 = vmul.f32 %v5060, 0.2
        %v5189 = vmul.f32 %v5061, 0.2
        %v5190 = vmul.f32 %v5062, 0.2
        %v5191 = vmul.f32 %v5063, 0.2
        %v5192 = vmul.f32 %v5064, 0.2
        %v5193 = vmul.f32 %v5065, 0.2
        %v5194 = vmul.f32 %v5066, 0.2
        %v5195 = vmul.f32 %v5067, 0.2
        %v5196 = vmul.f32 %v5068, 0.2
        %v5197 = vmul.f32 %v5069, 0.2
        %v5198 = vmul.f32 %v5070, 0.2
        %v5199 = vmul.f32 %v5071, 0.2
        %v5200 = vmul.f32 %v5072, 0.2
        %v5201 = vmul.f32 %v5073, 0.2
        %v5202 = vmul.f32 %v5074, 0.2
        %v5203 = vmul.f32 %v5075, 0.2
        %v5204 = vmul.f32 %v5076, 0.2
        %v5205 = vmul.f32 %v5077, 0.2
        %v5206 = vmul.f32 %v5078, 0.2
        %v5207 = vmul.f32 %v5079, 0.2
        %v5208 = vmul.f32 %v5080, 0.2
        %v5209 = vmul.f32 %v5081, 0.2
        %v5210 = vmul.f32 %v5082, 0.2
        %v5211 = vmul.f32 %v5083, 0.2
        %v5212 = vmul.f32 %v5084, 0.2
        %v5213 = vmul.f32 %v5085, 0.2
        %v5214 = vmul.f32 %v5086, 0.2
        %v5215 = vmul.f32 %v5087, 0.2
        %v5216 = vmul.f32 %v5088, 0.2
        %v5217 = vsel %vm5089, %v5025, %v5153
        %v5218 = vsel %vm5090, %v5026, %v5154
        %v5219 = vsel %vm5091, %v5027, %v5155
        %v5220 = vsel %vm5092, %v5028, %v5156
        %v5221 = vsel %vm5093, %v5029, %v5157
        %v5222 = vsel %vm5094, %v5030, %v5158
        %v5223 = vsel %vm5095, %v5031, %v5159
        %v5224 = vsel %vm5096, %v5032, %v5160
        %v5225 = vsel %vm5097, %v5033, %v5161
        %v5226 = vsel %vm5098, %v5034, %v5162
        %v5227 = vsel %vm5099, %v5035, %v5163
        %v5228 = vsel %vm5100, %v5036, %v5164
        %v5229 = vsel %vm5101, %v5037, %v5165
        %v5230 = vsel %vm5102, %v5038, %v5166
        %v5231 = vsel %vm5103, %v5039, %v5167
        %v5232 = vsel %vm5104, %v5040, %v5168
        %v5233 = vsel %vm5105, %v5041, %v5169
        %v5234 = vsel %vm5106, %v5042, %v5170
        %v5235 = vsel %vm5107, %v5043, %v5171
        %v5236 = vsel %vm5108, %v5044, %v5172
        %v5237 = vsel %vm5109, %v5045, %v5173
        %v5238 = vsel %vm5110, %v5046, %v5174
        %v5239 = vsel %vm5111, %v5047, %v5175
        %v5240 = vsel %vm5112, %v5048, %v5176
        %v5241 = vsel %vm5113, %v5049, %v5177
        %v5242 = vsel %vm5114, %v5050, %v5178
        %v5243 = vsel %vm5115, %v5051, %v5179
        %v5244 = vsel %vm5116, %v5052, %v5180
        %v5245 = vsel %vm5117, %v5053, %v5181
        %v5246 = vsel %vm5118, %v5054, %v5182
        %v5247 = vsel %vm5119, %v5055, %v5183
        %v5248 = vsel %vm5120, %v5056, %v5184
        %v5249 = vsel %vm5121, %v5057, %v5185
        %v5250 = vsel %vm5122, %v5058, %v5186
        %v5251 = vsel %vm5123, %v5059, %v5187
        %v5252 = vsel %vm5124, %v5060, %v5188
        %v5253 = vsel %vm5125, %v5061, %v5189
        %v5254 = vsel %vm5126, %v5062, %v5190
        %v5255 = vsel %vm5127, %v5063, %v5191
        %v5256 = vsel %vm5128, %v5064, %v5192
        %v5257 = vsel %vm5129, %v5065, %v5193
        %v5258 = vsel %vm5130, %v5066, %v5194
        %v5259 = vsel %vm5131, %v5067, %v5195
        %v5260 = vsel %vm5132, %v5068, %v5196
        %v5261 = vsel %vm5133, %v5069, %v5197
        %v5262 = vsel %vm5134, %v5070, %v5198
        %v5263 = vsel %vm5135, %v5071, %v5199
        %v5264 = vsel %vm5136, %v5072, %v5200
        %v5265 = vsel %vm5137, %v5073, %v5201
        %v5266 = vsel %vm5138, %v5074, %v5202
        %v5267 = vsel %vm5139, %v5075, %v5203
        %v5268 = vsel %vm5140, %v5076, %v5204
        %v5269 = vsel %vm5141, %v5077, %v5205
        %v5270 = vsel %vm5142, %v5078, %v5206
        %v5271 = vsel %vm5143, %v5079, %v5207
        %v5272 = vsel %vm5144, %v5080, %v5208
        %v5273 = vsel %vm5145, %v5081, %v5209
        %v5274 = vsel %vm5146, %v5082, %v5210
        %v5275 = vsel %vm5147, %v5083, %v5211
        %v5276 = vsel %vm5148, %v5084, %v5212
        %v5277 = vsel %vm5149, %v5085, %v5213
        %v5278 = vsel %vm5150, %v5086, %v5214
        %v5279 = vsel %vm5151, %v5087, %v5215
        %v5280 = vsel %vm5152, %v5088, %v5216
        %v5281 = vadd.f32 %v5217, %v1029
        %v5282 = vadd.f32 %v5218, %v1030
        %v5283 = vadd.f32 %v5219, %v1029
        %v5284 = vadd.f32 %v5220, %v1030
        %v5285 = vadd.f32 %v5221, %v1029
        %v5286 = vadd.f32 %v5222, %v1030
        %v5287 = vadd.f32 %v5223, %v1029
        %v5288 = vadd.f32 %v5224, %v1030
        %v5289 = vadd.f32 %v5225, %v1029
        %v5290 = vadd.f32 %v5226, %v1030
        %v5291 = vadd.f32 %v5227, %v1029
        %v5292 = vadd.f32 %v5228, %v1030
        %v5293 = vadd.f32 %v5229, %v1029
        %v5294 = vadd.f32 %v5230, %v1030
        %v5295 = vadd.f32 %v5231, %v1029
        %v5296 = vadd.f32 %v5232, %v1030
        %v5297 = vadd.f32 %v5233, %v1029
        %v5298 = vadd.f32 %v5234, %v1030
        %v5299 = vadd.f32 %v5235, %v1029
        %v5300 = vadd.f32 %v5236, %v1030
        %v5301 = vadd.f32 %v5237, %v1029
        %v5302 = vadd.f32 %v5238, %v1030
        %v5303 = vadd.f32 %v5239, %v1029
        %v5304 = vadd.f32 %v5240, %v1030
        %v5305 = vadd.f32 %v5241, %v1029
        %v5306 = vadd.f32 %v5242, %v1030
        %v5307 = vadd.f32 %v5243, %v1029
        %v5308 = vadd.f32 %v5244, %v1030
        %v5309 = vadd.f32 %v5245, %v1029
        %v5310 = vadd.f32 %v5246, %v1030
        %v5311 = vadd.f32 %v5247, %v1029
        %v5312 = vadd.f32 %v5248, %v1030
        %v5313 = vadd.f32 %v5249, %v1029
        %v5314 = vadd.f32 %v5250, %v1030
        %v5315 = vadd.f32 %v5251, %v1029
        %v5316 = vadd.f32 %v5252, %v1030
        %v5317 = vadd.f32 %v5253, %v1029
        %v5318 = vadd.f32 %v5254, %v1030
        %v5319 = vadd.f32 %v5255, %v1029
        %v5320 = vadd.f32 %v5256, %v1030
        %v5321 = vadd.f32 %v5257, %v1029
        %v5322 = vadd.f32 %v5258, %v1030
        %v5323 = vadd.f32 %v5259, %v1029
        %v5324 = vadd.f32 %v5260, %v1030
        %v5325 = vadd.f32 %v5261, %v1029
        %v5326 = vadd.f32 %v5262, %v1030
        %v5327 = vadd.f32 %v5263, %v1029
        %v5328 = vadd.f32 %v5264, %v1030
        %v5329 = vadd.f32 %v5265, %v1029
        %v5330 = vadd.f32 %v5266, %v1030
        %v5331 = vadd.f32 %v5267, %v1029
        %v5332 = vadd.f32 %v5268, %v1030
        %v5333 = vadd.f32 %v5269, %v1029
        %v5334 = vadd.f32 %v5270, %v1030
        %v5335 = vadd.f32 %v5271, %v1029
        %v5336 = vadd.f32 %v5272, %v1030
        %v5337 = vadd.f32 %v5273, %v1029
        %v5338 = vadd.f32 %v5274, %v1030
        %v5339 = vadd.f32 %v5275, %v1029
        %v5340 = vadd.f32 %v5276, %v1030
        %v5341 = vadd.f32 %v5277, %v1029
        %v5342 = vadd.f32 %v5278, %v1030
        %v5343 = vadd.f32 %v5279, %v1029
        %v5344 = vadd.f32 %v5280, %v1030
        %v5345 = vsel %vm2274, %v5281, -inf
        %5346 = vmax.xlane.f32.xlu0 %v5345
        %v5347 = vpop.xlane.xlu0 %5346
        %v5348 = vsel %vm2274, %v5282, -inf
        %5349 = vmax.xlane.f32.xlu0 %v5348
        %v5350 = vpop.xlane.xlu0 %5349
        %v5351 = vsel %vm2274, %v5283, -inf
        %5352 = vmax.xlane.f32.xlu0 %v5351
        %v5353 = vpop.xlane.xlu0 %5352
        %v5354 = vsel %vm2274, %v5284, -inf
        %5355 = vmax.xlane.f32.xlu0 %v5354
        %v5356 = vpop.xlane.xlu0 %5355
        %v5357 = vsel %vm2274, %v5285, -inf
        %5358 = vmax.xlane.f32.xlu0 %v5357
        %v5359 = vpop.xlane.xlu0 %5358
        %v5360 = vsel %vm2274, %v5286, -inf
        %5361 = vmax.xlane.f32.xlu0 %v5360
        %v5362 = vpop.xlane.xlu0 %5361
        %v5363 = vsel %vm2274, %v5287, -inf
        %5364 = vmax.xlane.f32.xlu0 %v5363
        %v5365 = vpop.xlane.xlu0 %5364
        %v5366 = vsel %vm2274, %v5288, -inf
        %5367 = vmax.xlane.f32.xlu0 %v5366
        %v5368 = vpop.xlane.xlu0 %5367
        %v5369 = vsel %vm2274, %v5289, -inf
        %5370 = vmax.xlane.f32.xlu0 %v5369
        %v5371 = vpop.xlane.xlu0 %5370
        %v5372 = vsel %vm2274, %v5290, -inf
        %5373 = vmax.xlane.f32.xlu0 %v5372
        %v5374 = vpop.xlane.xlu0 %5373
        %v5375 = vsel %vm2274, %v5291, -inf
        %5376 = vmax.xlane.f32.xlu0 %v5375
        %v5377 = vpop.xlane.xlu0 %5376
        %v5378 = vsel %vm2274, %v5292, -inf
        %5379 = vmax.xlane.f32.xlu0 %v5378
        %v5380 = vpop.xlane.xlu0 %5379
        %v5381 = vsel %vm2274, %v5293, -inf
        %5382 = vmax.xlane.f32.xlu0 %v5381
        %v5383 = vpop.xlane.xlu0 %5382
        %v5384 = vsel %vm2274, %v5294, -inf
        %5385 = vmax.xlane.f32.xlu0 %v5384
        %v5386 = vpop.xlane.xlu0 %5385
        %v5387 = vsel %vm2274, %v5295, -inf
        %5388 = vmax.xlane.f32.xlu0 %v5387
        %v5389 = vpop.xlane.xlu0 %5388
        %v5390 = vsel %vm2274, %v5296, -inf
        %5391 = vmax.xlane.f32.xlu0 %v5390
        %v5392 = vpop.xlane.xlu0 %5391
        %v5393 = vsel %vm2274, %v5297, -inf
        %5394 = vmax.xlane.f32.xlu0 %v5393
        %v5395 = vpop.xlane.xlu0 %5394
        %v5396 = vsel %vm2274, %v5298, -inf
        %5397 = vmax.xlane.f32.xlu0 %v5396
        %v5398 = vpop.xlane.xlu0 %5397
        %v5399 = vsel %vm2274, %v5299, -inf
        %5400 = vmax.xlane.f32.xlu0 %v5399
        %v5401 = vpop.xlane.xlu0 %5400
        %v5402 = vsel %vm2274, %v5300, -inf
        %5403 = vmax.xlane.f32.xlu0 %v5402
        %v5404 = vpop.xlane.xlu0 %5403
        %v5405 = vsel %vm2274, %v5301, -inf
        %5406 = vmax.xlane.f32.xlu0 %v5405
        %v5407 = vpop.xlane.xlu0 %5406
        %v5408 = vsel %vm2274, %v5302, -inf
        %5409 = vmax.xlane.f32.xlu0 %v5408
        %v5410 = vpop.xlane.xlu0 %5409
        %v5411 = vsel %vm2274, %v5303, -inf
        %5412 = vmax.xlane.f32.xlu0 %v5411
        %v5413 = vpop.xlane.xlu0 %5412
        %v5414 = vsel %vm2274, %v5304, -inf
        %5415 = vmax.xlane.f32.xlu0 %v5414
        %v5416 = vpop.xlane.xlu0 %5415
        %v5417 = vsel %vm2274, %v5305, -inf
        %5418 = vmax.xlane.f32.xlu0 %v5417
        %v5419 = vpop.xlane.xlu0 %5418
        %v5420 = vsel %vm2274, %v5306, -inf
        %5421 = vmax.xlane.f32.xlu0 %v5420
        %v5422 = vpop.xlane.xlu0 %5421
        %v5423 = vsel %vm2274, %v5307, -inf
        %5424 = vmax.xlane.f32.xlu0 %v5423
        %v5425 = vpop.xlane.xlu0 %5424
        %v5426 = vsel %vm2274, %v5308, -inf
        %5427 = vmax.xlane.f32.xlu0 %v5426
        %v5428 = vpop.xlane.xlu0 %5427
        %v5429 = vsel %vm2274, %v5309, -inf
        %5430 = vmax.xlane.f32.xlu0 %v5429
        %v5431 = vpop.xlane.xlu0 %5430
        %v5432 = vsel %vm2274, %v5310, -inf
        %5433 = vmax.xlane.f32.xlu0 %v5432
        %v5434 = vpop.xlane.xlu0 %5433
        %v5435 = vsel %vm2274, %v5311, -inf
        %5436 = vmax.xlane.f32.xlu0 %v5435
        %v5437 = vpop.xlane.xlu0 %5436
        %v5438 = vsel %vm2274, %v5312, -inf
        %5439 = vmax.xlane.f32.xlu0 %v5438
        %v5440 = vpop.xlane.xlu0 %5439
        %v5441 = vsel %vm2274, %v5313, -inf
        %5442 = vmax.xlane.f32.xlu0 %v5441
        %v5443 = vpop.xlane.xlu0 %5442
        %v5444 = vsel %vm2274, %v5314, -inf
        %5445 = vmax.xlane.f32.xlu0 %v5444
        %v5446 = vpop.xlane.xlu0 %5445
        %v5447 = vsel %vm2274, %v5315, -inf
        %5448 = vmax.xlane.f32.xlu0 %v5447
        %v5449 = vpop.xlane.xlu0 %5448
        %v5450 = vsel %vm2274, %v5316, -inf
        %5451 = vmax.xlane.f32.xlu0 %v5450
        %v5452 = vpop.xlane.xlu0 %5451
        %v5453 = vsel %vm2274, %v5317, -inf
        %5454 = vmax.xlane.f32.xlu0 %v5453
        %v5455 = vpop.xlane.xlu0 %5454
        %v5456 = vsel %vm2274, %v5318, -inf
        %5457 = vmax.xlane.f32.xlu0 %v5456
        %v5458 = vpop.xlane.xlu0 %5457
        %v5459 = vsel %vm2274, %v5319, -inf
        %5460 = vmax.xlane.f32.xlu0 %v5459
        %v5461 = vpop.xlane.xlu0 %5460
        %v5462 = vsel %vm2274, %v5320, -inf
        %5463 = vmax.xlane.f32.xlu0 %v5462
        %v5464 = vpop.xlane.xlu0 %5463
        %v5465 = vsel %vm2274, %v5321, -inf
        %5466 = vmax.xlane.f32.xlu0 %v5465
        %v5467 = vpop.xlane.xlu0 %5466
        %v5468 = vsel %vm2274, %v5322, -inf
        %5469 = vmax.xlane.f32.xlu0 %v5468
        %v5470 = vpop.xlane.xlu0 %5469
        %v5471 = vsel %vm2274, %v5323, -inf
        %5472 = vmax.xlane.f32.xlu0 %v5471
        %v5473 = vpop.xlane.xlu0 %5472
        %v5474 = vsel %vm2274, %v5324, -inf
        %5475 = vmax.xlane.f32.xlu0 %v5474
        %v5476 = vpop.xlane.xlu0 %5475
        %v5477 = vsel %vm2274, %v5325, -inf
        %5478 = vmax.xlane.f32.xlu0 %v5477
        %v5479 = vpop.xlane.xlu0 %5478
        %v5480 = vsel %vm2274, %v5326, -inf
        %5481 = vmax.xlane.f32.xlu0 %v5480
        %v5482 = vpop.xlane.xlu0 %5481
        %v5483 = vsel %vm2274, %v5327, -inf
        %5484 = vmax.xlane.f32.xlu0 %v5483
        %v5485 = vpop.xlane.xlu0 %5484
        %v5486 = vsel %vm2274, %v5328, -inf
        %5487 = vmax.xlane.f32.xlu0 %v5486
        %v5488 = vpop.xlane.xlu0 %5487
        %v5489 = vsel %vm2274, %v5329, -inf
        %5490 = vmax.xlane.f32.xlu0 %v5489
        %v5491 = vpop.xlane.xlu0 %5490
        %v5492 = vsel %vm2274, %v5330, -inf
        %5493 = vmax.xlane.f32.xlu0 %v5492
        %v5494 = vpop.xlane.xlu0 %5493
        %v5495 = vsel %vm2274, %v5331, -inf
        %5496 = vmax.xlane.f32.xlu0 %v5495
        %v5497 = vpop.xlane.xlu0 %5496
        %v5498 = vsel %vm2274, %v5332, -inf
        %5499 = vmax.xlane.f32.xlu0 %v5498
        %v5500 = vpop.xlane.xlu0 %5499
        %v5501 = vsel %vm2274, %v5333, -inf
        %5502 = vmax.xlane.f32.xlu0 %v5501
        %v5503 = vpop.xlane.xlu0 %5502
        %v5504 = vsel %vm2274, %v5334, -inf
        %5505 = vmax.xlane.f32.xlu0 %v5504
        %v5506 = vpop.xlane.xlu0 %5505
        %v5507 = vsel %vm2274, %v5335, -inf
        %5508 = vmax.xlane.f32.xlu0 %v5507
        %v5509 = vpop.xlane.xlu0 %5508
        %v5510 = vsel %vm2274, %v5336, -inf
        %5511 = vmax.xlane.f32.xlu0 %v5510
        %v5512 = vpop.xlane.xlu0 %5511
        %v5513 = vsel %vm2274, %v5337, -inf
        %5514 = vmax.xlane.f32.xlu0 %v5513
        %v5515 = vpop.xlane.xlu0 %5514
        %v5516 = vsel %vm2274, %v5338, -inf
        %5517 = vmax.xlane.f32.xlu0 %v5516
        %v5518 = vpop.xlane.xlu0 %5517
        %v5519 = vsel %vm2274, %v5339, -inf
        %5520 = vmax.xlane.f32.xlu0 %v5519
        %v5521 = vpop.xlane.xlu0 %5520
        %v5522 = vsel %vm2274, %v5340, -inf
        %5523 = vmax.xlane.f32.xlu0 %v5522
        %v5524 = vpop.xlane.xlu0 %5523
        %v5525 = vsel %vm2274, %v5341, -inf
        %5526 = vmax.xlane.f32.xlu0 %v5525
        %v5527 = vpop.xlane.xlu0 %5526
        %v5528 = vsel %vm2274, %v5342, -inf
        %5529 = vmax.xlane.f32.xlu0 %v5528
        %v5530 = vpop.xlane.xlu0 %5529
        %v5531 = vsel %vm2274, %v5343, -inf
        %5532 = vmax.xlane.f32.xlu0 %v5531
        %v5533 = vpop.xlane.xlu0 %5532
        %v5534 = vsel %vm2274, %v5344, -inf
        %5535 = vmax.xlane.f32.xlu0 %v5534
        %v5536 = vpop.xlane.xlu0 %5535
        %v5537 = vsub.f32 %v5281, %v5347
        %v5538 = vsub.f32 %v5282, %v5350
        %v5539 = vsub.f32 %v5283, %v5353
        %v5540 = vsub.f32 %v5284, %v5356
        %v5541 = vsub.f32 %v5285, %v5359
        %v5542 = vsub.f32 %v5286, %v5362
        %v5543 = vsub.f32 %v5287, %v5365
        %v5544 = vsub.f32 %v5288, %v5368
        %v5545 = vsub.f32 %v5289, %v5371
        %v5546 = vsub.f32 %v5290, %v5374
        %v5547 = vsub.f32 %v5291, %v5377
        %v5548 = vsub.f32 %v5292, %v5380
        %v5549 = vsub.f32 %v5293, %v5383
        %v5550 = vsub.f32 %v5294, %v5386
        %v5551 = vsub.f32 %v5295, %v5389
        %v5552 = vsub.f32 %v5296, %v5392
        %v5553 = vsub.f32 %v5297, %v5395
        %v5554 = vsub.f32 %v5298, %v5398
        %v5555 = vsub.f32 %v5299, %v5401
        %v5556 = vsub.f32 %v5300, %v5404
        %v5557 = vsub.f32 %v5301, %v5407
        %v5558 = vsub.f32 %v5302, %v5410
        %v5559 = vsub.f32 %v5303, %v5413
        %v5560 = vsub.f32 %v5304, %v5416
        %v5561 = vsub.f32 %v5305, %v5419
        %v5562 = vsub.f32 %v5306, %v5422
        %v5563 = vsub.f32 %v5307, %v5425
        %v5564 = vsub.f32 %v5308, %v5428
        %v5565 = vsub.f32 %v5309, %v5431
        %v5566 = vsub.f32 %v5310, %v5434
        %v5567 = vsub.f32 %v5311, %v5437
        %v5568 = vsub.f32 %v5312, %v5440
        %v5569 = vsub.f32 %v5313, %v5443
        %v5570 = vsub.f32 %v5314, %v5446
        %v5571 = vsub.f32 %v5315, %v5449
        %v5572 = vsub.f32 %v5316, %v5452
        %v5573 = vsub.f32 %v5317, %v5455
        %v5574 = vsub.f32 %v5318, %v5458
        %v5575 = vsub.f32 %v5319, %v5461
        %v5576 = vsub.f32 %v5320, %v5464
        %v5577 = vsub.f32 %v5321, %v5467
        %v5578 = vsub.f32 %v5322, %v5470
        %v5579 = vsub.f32 %v5323, %v5473
        %v5580 = vsub.f32 %v5324, %v5476
        %v5581 = vsub.f32 %v5325, %v5479
        %v5582 = vsub.f32 %v5326, %v5482
        %v5583 = vsub.f32 %v5327, %v5485
        %v5584 = vsub.f32 %v5328, %v5488
        %v5585 = vsub.f32 %v5329, %v5491
        %v5586 = vsub.f32 %v5330, %v5494
        %v5587 = vsub.f32 %v5331, %v5497
        %v5588 = vsub.f32 %v5332, %v5500
        %v5589 = vsub.f32 %v5333, %v5503
        %v5590 = vsub.f32 %v5334, %v5506
        %v5591 = vsub.f32 %v5335, %v5509
        %v5592 = vsub.f32 %v5336, %v5512
        %v5593 = vsub.f32 %v5337, %v5515
        %v5594 = vsub.f32 %v5338, %v5518
        %v5595 = vsub.f32 %v5339, %v5521
        %v5596 = vsub.f32 %v5340, %v5524
        %v5597 = vsub.f32 %v5341, %v5527
        %v5598 = vsub.f32 %v5342, %v5530
        %v5599 = vsub.f32 %v5343, %v5533
        %v5600 = vsub.f32 %v5344, %v5536
        %v5601 = vmul.f32 %v5537, 1.442695
        %v5602 = vpow.pop %v5601
        %v5603 = vmul.f32 %v5538, 1.442695
        %v5604 = vpow.pop %v5603
        %v5605 = vmul.f32 %v5539, 1.442695
        %v5606 = vpow.pop %v5605
        %v5607 = vmul.f32 %v5540, 1.442695
        %v5608 = vpow.pop %v5607
        %v5609 = vmul.f32 %v5541, 1.442695
        %v5610 = vpow.pop %v5609
        %v5611 = vmul.f32 %v5542, 1.442695
        %v5612 = vpow.pop %v5611
        %v5613 = vmul.f32 %v5543, 1.442695
        %v5614 = vpow.pop %v5613
        %v5615 = vmul.f32 %v5544, 1.442695
        %v5616 = vpow.pop %v5615
        %v5617 = vmul.f32 %v5545, 1.442695
        %v5618 = vpow.pop %v5617
        %v5619 = vmul.f32 %v5546, 1.442695
        %v5620 = vpow.pop %v5619
        %v5621 = vmul.f32 %v5547, 1.442695
        %v5622 = vpow.pop %v5621
        %v5623 = vmul.f32 %v5548, 1.442695
        %v5624 = vpow.pop %v5623
        %v5625 = vmul.f32 %v5549, 1.442695
        %v5626 = vpow.pop %v5625
        %v5627 = vmul.f32 %v5550, 1.442695
        %v5628 = vpow.pop %v5627
        %v5629 = vmul.f32 %v5551, 1.442695
        %v5630 = vpow.pop %v5629
        %v5631 = vmul.f32 %v5552, 1.442695
        %v5632 = vpow.pop %v5631
        %v5633 = vmul.f32 %v5553, 1.442695
        %v5634 = vpow.pop %v5633
        %v5635 = vmul.f32 %v5554, 1.442695
        %v5636 = vpow.pop %v5635
        %v5637 = vmul.f32 %v5555, 1.442695
        %v5638 = vpow.pop %v5637
        %v5639 = vmul.f32 %v5556, 1.442695
        %v5640 = vpow.pop %v5639
        %v5641 = vmul.f32 %v5557, 1.442695
        %v5642 = vpow.pop %v5641
        %v5643 = vmul.f32 %v5558, 1.442695
        %v5644 = vpow.pop %v5643
        %v5645 = vmul.f32 %v5559, 1.442695
        %v5646 = vpow.pop %v5645
        %v5647 = vmul.f32 %v5560, 1.442695
        %v5648 = vpow.pop %v5647
        %v5649 = vmul.f32 %v5561, 1.442695
        %v5650 = vpow.pop %v5649
        %v5651 = vmul.f32 %v5562, 1.442695
        %v5652 = vpow.pop %v5651
        %v5653 = vmul.f32 %v5563, 1.442695
        %v5654 = vpow.pop %v5653
        %v5655 = vmul.f32 %v5564, 1.442695
        %v5656 = vpow.pop %v5655
        %v5657 = vmul.f32 %v5565, 1.442695
        %v5658 = vpow.pop %v5657
        %v5659 = vmul.f32 %v5566, 1.442695
        %v5660 = vpow.pop %v5659
        %v5661 = vmul.f32 %v5567, 1.442695
        %v5662 = vpow.pop %v5661
        %v5663 = vmul.f32 %v5568, 1.442695
        %v5664 = vpow.pop %v5663
        %v5665 = vmul.f32 %v5569, 1.442695
        %v5666 = vpow.pop %v5665
        %v5667 = vmul.f32 %v5570, 1.442695
        %v5668 = vpow.pop %v5667
        %v5669 = vmul.f32 %v5571, 1.442695
        %v5670 = vpow.pop %v5669
        %v5671 = vmul.f32 %v5572, 1.442695
        %v5672 = vpow.pop %v5671
        %v5673 = vmul.f32 %v5573, 1.442695
        %v5674 = vpow.pop %v5673
        %v5675 = vmul.f32 %v5574, 1.442695
        %v5676 = vpow.pop %v5675
        %v5677 = vmul.f32 %v5575, 1.442695
        %v5678 = vpow.pop %v5677
        %v5679 = vmul.f32 %v5576, 1.442695
        %v5680 = vpow.pop %v5679
        %v5681 = vmul.f32 %v5577, 1.442695
        %v5682 = vpow.pop %v5681
        %v5683 = vmul.f32 %v5578, 1.442695
        %v5684 = vpow.pop %v5683
        %v5685 = vmul.f32 %v5579, 1.442695
        %v5686 = vpow.pop %v5685
        %v5687 = vmul.f32 %v5580, 1.442695
        %v5688 = vpow.pop %v5687
        %v5689 = vmul.f32 %v5581, 1.442695
        %v5690 = vpow.pop %v5689
        %v5691 = vmul.f32 %v5582, 1.442695
        %v5692 = vpow.pop %v5691
        %v5693 = vmul.f32 %v5583, 1.442695
        %v5694 = vpow.pop %v5693
        %v5695 = vmul.f32 %v5584, 1.442695
        %v5696 = vpow.pop %v5695
        %v5697 = vmul.f32 %v5585, 1.442695
        %v5698 = vpow.pop %v5697
        %v5699 = vmul.f32 %v5586, 1.442695
        %v5700 = vpow.pop %v5699
        %v5701 = vmul.f32 %v5587, 1.442695
        %v5702 = vpow.pop %v5701
        %v5703 = vmul.f32 %v5588, 1.442695
        %v5704 = vpow.pop %v5703
        %v5705 = vmul.f32 %v5589, 1.442695
        %v5706 = vpow.pop %v5705
        %v5707 = vmul.f32 %v5590, 1.442695
        %v5708 = vpow.pop %v5707
        %v5709 = vmul.f32 %v5591, 1.442695
        %v5710 = vpow.pop %v5709
        %v5711 = vmul.f32 %v5592, 1.442695
        %v5712 = vpow.pop %v5711
        %v5713 = vmul.f32 %v5593, 1.442695
        %v5714 = vpow.pop %v5713
        %v5715 = vmul.f32 %v5594, 1.442695
        %v5716 = vpow.pop %v5715
        %v5717 = vmul.f32 %v5595, 1.442695
        %v5718 = vpow.pop %v5717
        %v5719 = vmul.f32 %v5596, 1.442695
        %v5720 = vpow.pop %v5719
        %v5721 = vmul.f32 %v5597, 1.442695
        %v5722 = vpow.pop %v5721
        %v5723 = vmul.f32 %v5598, 1.442695
        %v5724 = vpow.pop %v5723
        %v5725 = vmul.f32 %v5599, 1.442695
        %v5726 = vpow.pop %v5725
        %v5727 = vmul.f32 %v5600, 1.442695
        %v5728 = vpow.pop %v5727
        %v5729 = vsel %vm2274, %v5602, 0.0
        %5730 = vadd.xlane.f32.xlu0 %v5729
        %v5731 = vpop.xlane.xlu0 %5730
        %v5732 = vsel %vm2274, %v5604, 0.0
        %5733 = vadd.xlane.f32.xlu0 %v5732
        %v5734 = vpop.xlane.xlu0 %5733
        %v5735 = vsel %vm2274, %v5606, 0.0
        %5736 = vadd.xlane.f32.xlu0 %v5735
        %v5737 = vpop.xlane.xlu0 %5736
        %v5738 = vsel %vm2274, %v5608, 0.0
        %5739 = vadd.xlane.f32.xlu0 %v5738
        %v5740 = vpop.xlane.xlu0 %5739
        %v5741 = vsel %vm2274, %v5610, 0.0
        %5742 = vadd.xlane.f32.xlu0 %v5741
        %v5743 = vpop.xlane.xlu0 %5742
        %v5744 = vsel %vm2274, %v5612, 0.0
        %5745 = vadd.xlane.f32.xlu0 %v5744
        %v5746 = vpop.xlane.xlu0 %5745
        %v5747 = vsel %vm2274, %v5614, 0.0
        %5748 = vadd.xlane.f32.xlu0 %v5747
        %v5749 = vpop.xlane.xlu0 %5748
        %v5750 = vsel %vm2274, %v5616, 0.0
        %5751 = vadd.xlane.f32.xlu0 %v5750
        %v5752 = vpop.xlane.xlu0 %5751
        %v5753 = vsel %vm2274, %v5618, 0.0
        %5754 = vadd.xlane.f32.xlu0 %v5753
        %v5755 = vpop.xlane.xlu0 %5754
        %v5756 = vsel %vm2274, %v5620, 0.0
        %5757 = vadd.xlane.f32.xlu0 %v5756
        %v5758 = vpop.xlane.xlu0 %5757
        %v5759 = vsel %vm2274, %v5622, 0.0
        %5760 = vadd.xlane.f32.xlu0 %v5759
        %v5761 = vpop.xlane.xlu0 %5760
        %v5762 = vsel %vm2274, %v5624, 0.0
        %5763 = vadd.xlane.f32.xlu0 %v5762
        %v5764 = vpop.xlane.xlu0 %5763
        %v5765 = vsel %vm2274, %v5626, 0.0
        %5766 = vadd.xlane.f32.xlu0 %v5765
        %v5767 = vpop.xlane.xlu0 %5766
        %v5768 = vsel %vm2274, %v5628, 0.0
        %5769 = vadd.xlane.f32.xlu0 %v5768
        %v5770 = vpop.xlane.xlu0 %5769
        %v5771 = vsel %vm2274, %v5630, 0.0
        %5772 = vadd.xlane.f32.xlu0 %v5771
        %v5773 = vpop.xlane.xlu0 %5772
        %v5774 = vsel %vm2274, %v5632, 0.0
        %5775 = vadd.xlane.f32.xlu0 %v5774
        %v5776 = vpop.xlane.xlu0 %5775
        %v5777 = vsel %vm2274, %v5634, 0.0
        %5778 = vadd.xlane.f32.xlu0 %v5777
        %v5779 = vpop.xlane.xlu0 %5778
        %v5780 = vsel %vm2274, %v5636, 0.0
        %5781 = vadd.xlane.f32.xlu0 %v5780
        %v5782 = vpop.xlane.xlu0 %5781
        %v5783 = vsel %vm2274, %v5638, 0.0
        %5784 = vadd.xlane.f32.xlu0 %v5783
        %v5785 = vpop.xlane.xlu0 %5784
        %v5786 = vsel %vm2274, %v5640, 0.0
        %5787 = vadd.xlane.f32.xlu0 %v5786
        %v5788 = vpop.xlane.xlu0 %5787
        %v5789 = vsel %vm2274, %v5642, 0.0
        %5790 = vadd.xlane.f32.xlu0 %v5789
        %v5791 = vpop.xlane.xlu0 %5790
        %v5792 = vsel %vm2274, %v5644, 0.0
        %5793 = vadd.xlane.f32.xlu0 %v5792
        %v5794 = vpop.xlane.xlu0 %5793
        %v5795 = vsel %vm2274, %v5646, 0.0
        %5796 = vadd.xlane.f32.xlu0 %v5795
        %v5797 = vpop.xlane.xlu0 %5796
        %v5798 = vsel %vm2274, %v5648, 0.0
        %5799 = vadd.xlane.f32.xlu0 %v5798
        %v5800 = vpop.xlane.xlu0 %5799
        %v5801 = vsel %vm2274, %v5650, 0.0
        %5802 = vadd.xlane.f32.xlu0 %v5801
        %v5803 = vpop.xlane.xlu0 %5802
        %v5804 = vsel %vm2274, %v5652, 0.0
        %5805 = vadd.xlane.f32.xlu0 %v5804
        %v5806 = vpop.xlane.xlu0 %5805
        %v5807 = vsel %vm2274, %v5654, 0.0
        %5808 = vadd.xlane.f32.xlu0 %v5807
        %v5809 = vpop.xlane.xlu0 %5808
        %v5810 = vsel %vm2274, %v5656, 0.0
        %5811 = vadd.xlane.f32.xlu0 %v5810
        %v5812 = vpop.xlane.xlu0 %5811
        %v5813 = vsel %vm2274, %v5658, 0.0
        %5814 = vadd.xlane.f32.xlu0 %v5813
        %v5815 = vpop.xlane.xlu0 %5814
        %v5816 = vsel %vm2274, %v5660, 0.0
        %5817 = vadd.xlane.f32.xlu0 %v5816
        %v5818 = vpop.xlane.xlu0 %5817
        %v5819 = vsel %vm2274, %v5662, 0.0
        %5820 = vadd.xlane.f32.xlu0 %v5819
        %v5821 = vpop.xlane.xlu0 %5820
        %v5822 = vsel %vm2274, %v5664, 0.0
        %5823 = vadd.xlane.f32.xlu0 %v5822
        %v5824 = vpop.xlane.xlu0 %5823
        %v5825 = vsel %vm2274, %v5666, 0.0
        %5826 = vadd.xlane.f32.xlu0 %v5825
        %v5827 = vpop.xlane.xlu0 %5826
        %v5828 = vsel %vm2274, %v5668, 0.0
        %5829 = vadd.xlane.f32.xlu0 %v5828
        %v5830 = vpop.xlane.xlu0 %5829
        %v5831 = vsel %vm2274, %v5670, 0.0
        %5832 = vadd.xlane.f32.xlu0 %v5831
        %v5833 = vpop.xlane.xlu0 %5832
        %v5834 = vsel %vm2274, %v5672, 0.0
        %5835 = vadd.xlane.f32.xlu0 %v5834
        %v5836 = vpop.xlane.xlu0 %5835
        %v5837 = vsel %vm2274, %v5674, 0.0
        %5838 = vadd.xlane.f32.xlu0 %v5837
        %v5839 = vpop.xlane.xlu0 %5838
        %v5840 = vsel %vm2274, %v5676, 0.0
        %5841 = vadd.xlane.f32.xlu0 %v5840
        %v5842 = vpop.xlane.xlu0 %5841
        %v5843 = vsel %vm2274, %v5678, 0.0
        %5844 = vadd.xlane.f32.xlu0 %v5843
        %v5845 = vpop.xlane.xlu0 %5844
        %v5846 = vsel %vm2274, %v5680, 0.0
        %5847 = vadd.xlane.f32.xlu0 %v5846
        %v5848 = vpop.xlane.xlu0 %5847
        %v5849 = vsel %vm2274, %v5682, 0.0
        %5850 = vadd.xlane.f32.xlu0 %v5849
        %v5851 = vpop.xlane.xlu0 %5850
        %v5852 = vsel %vm2274, %v5684, 0.0
        %5853 = vadd.xlane.f32.xlu0 %v5852
        %v5854 = vpop.xlane.xlu0 %5853
        %v5855 = vsel %vm2274, %v5686, 0.0
        %5856 = vadd.xlane.f32.xlu0 %v5855
        %v5857 = vpop.xlane.xlu0 %5856
        %v5858 = vsel %vm2274, %v5688, 0.0
        %5859 = vadd.xlane.f32.xlu0 %v5858
        %v5860 = vpop.xlane.xlu0 %5859
        %v5861 = vsel %vm2274, %v5690, 0.0
        %5862 = vadd.xlane.f32.xlu0 %v5861
        %v5863 = vpop.xlane.xlu0 %5862
        %v5864 = vsel %vm2274, %v5692, 0.0
        %5865 = vadd.xlane.f32.xlu0 %v5864
        %v5866 = vpop.xlane.xlu0 %5865
        %v5867 = vsel %vm2274, %v5694, 0.0
        %5868 = vadd.xlane.f32.xlu0 %v5867
        %v5869 = vpop.xlane.xlu0 %5868
        %v5870 = vsel %vm2274, %v5696, 0.0
        %5871 = vadd.xlane.f32.xlu0 %v5870
        %v5872 = vpop.xlane.xlu0 %5871
        %v5873 = vsel %vm2274, %v5698, 0.0
        %5874 = vadd.xlane.f32.xlu0 %v5873
        %v5875 = vpop.xlane.xlu0 %5874
        %v5876 = vsel %vm2274, %v5700, 0.0
        %5877 = vadd.xlane.f32.xlu0 %v5876
        %v5878 = vpop.xlane.xlu0 %5877
        %v5879 = vsel %vm2274, %v5702, 0.0
        %5880 = vadd.xlane.f32.xlu0 %v5879
        %v5881 = vpop.xlane.xlu0 %5880
        %v5882 = vsel %vm2274, %v5704, 0.0
        %5883 = vadd.xlane.f32.xlu0 %v5882
        %v5884 = vpop.xlane.xlu0 %5883
        %v5885 = vsel %vm2274, %v5706, 0.0
        %5886 = vadd.xlane.f32.xlu0 %v5885
        %v5887 = vpop.xlane.xlu0 %5886
        %v5888 = vsel %vm2274, %v5708, 0.0
        %5889 = vadd.xlane.f32.xlu0 %v5888
        %v5890 = vpop.xlane.xlu0 %5889
        %v5891 = vsel %vm2274, %v5710, 0.0
        %5892 = vadd.xlane.f32.xlu0 %v5891
        %v5893 = vpop.xlane.xlu0 %5892
        %v5894 = vsel %vm2274, %v5712, 0.0
        %5895 = vadd.xlane.f32.xlu0 %v5894
        %v5896 = vpop.xlane.xlu0 %5895
        %v5897 = vsel %vm2274, %v5714, 0.0
        %5898 = vadd.xlane.f32.xlu0 %v5897
        %v5899 = vpop.xlane.xlu0 %5898
        %v5900 = vsel %vm2274, %v5716, 0.0
        %5901 = vadd.xlane.f32.xlu0 %v5900
        %v5902 = vpop.xlane.xlu0 %5901
        %v5903 = vsel %vm2274, %v5718, 0.0
        %5904 = vadd.xlane.f32.xlu0 %v5903
        %v5905 = vpop.xlane.xlu0 %5904
        %v5906 = vsel %vm2274, %v5720, 0.0
        %5907 = vadd.xlane.f32.xlu0 %v5906
        %v5908 = vpop.xlane.xlu0 %5907
        %v5909 = vsel %vm2274, %v5722, 0.0
        %5910 = vadd.xlane.f32.xlu0 %v5909
        %v5911 = vpop.xlane.xlu0 %5910
        %v5912 = vsel %vm2274, %v5724, 0.0
        %5913 = vadd.xlane.f32.xlu0 %v5912
        %v5914 = vpop.xlane.xlu0 %5913
        %v5915 = vsel %vm2274, %v5726, 0.0
        %5916 = vadd.xlane.f32.xlu0 %v5915
        %v5917 = vpop.xlane.xlu0 %5916
        %v5918 = vsel %vm2274, %v5728, 0.0
        %5919 = vadd.xlane.f32.xlu0 %v5918
        %v5920 = vpop.xlane.xlu0 %5919
        %v5921 = vrcp.pop %v5731
        %v5922 = vrcp.pop %v5734
        %v5923 = vrcp.pop %v5737
        %v5924 = vrcp.pop %v5740
        %v5925 = vrcp.pop %v5743
        %v5926 = vrcp.pop %v5746
        %v5927 = vrcp.pop %v5749
        %v5928 = vrcp.pop %v5752
        %v5929 = vrcp.pop %v5755
        %v5930 = vrcp.pop %v5758
        %v5931 = vrcp.pop %v5761
        %v5932 = vrcp.pop %v5764
        %v5933 = vrcp.pop %v5767
        %v5934 = vrcp.pop %v5770
        %v5935 = vrcp.pop %v5773
        %v5936 = vrcp.pop %v5776
        %v5937 = vrcp.pop %v5779
        %v5938 = vrcp.pop %v5782
        %v5939 = vrcp.pop %v5785
        %v5940 = vrcp.pop %v5788
        %v5941 = vrcp.pop %v5791
        %v5942 = vrcp.pop %v5794
        %v5943 = vrcp.pop %v5797
        %v5944 = vrcp.pop %v5800
        %v5945 = vrcp.pop %v5803
        %v5946 = vrcp.pop %v5806
        %v5947 = vrcp.pop %v5809
        %v5948 = vrcp.pop %v5812
        %v5949 = vrcp.pop %v5815
        %v5950 = vrcp.pop %v5818
        %v5951 = vrcp.pop %v5821
        %v5952 = vrcp.pop %v5824
        %v5953 = vrcp.pop %v5827
        %v5954 = vrcp.pop %v5830
        %v5955 = vrcp.pop %v5833
        %v5956 = vrcp.pop %v5836
        %v5957 = vrcp.pop %v5839
        %v5958 = vrcp.pop %v5842
        %v5959 = vrcp.pop %v5845
        %v5960 = vrcp.pop %v5848
        %v5961 = vrcp.pop %v5851
        %v5962 = vrcp.pop %v5854
        %v5963 = vrcp.pop %v5857
        %v5964 = vrcp.pop %v5860
        %v5965 = vrcp.pop %v5863
        %v5966 = vrcp.pop %v5866
        %v5967 = vrcp.pop %v5869
        %v5968 = vrcp.pop %v5872
        %v5969 = vrcp.pop %v5875
        %v5970 = vrcp.pop %v5878
        %v5971 = vrcp.pop %v5881
        %v5972 = vrcp.pop %v5884
        %v5973 = vrcp.pop %v5887
        %v5974 = vrcp.pop %v5890
        %v5975 = vrcp.pop %v5893
        %v5976 = vrcp.pop %v5896
        %v5977 = vrcp.pop %v5899
        %v5978 = vrcp.pop %v5902
        %v5979 = vrcp.pop %v5905
        %v5980 = vrcp.pop %v5908
        %v5981 = vrcp.pop %v5911
        %v5982 = vrcp.pop %v5914
        %v5983 = vrcp.pop %v5917
        %v5984 = vrcp.pop %v5920
        %v5985 = vmul.f32 %v5602, %v5921
        %v5986 = vmul.f32 %v5604, %v5922
        %v5987 = vmul.f32 %v5606, %v5923
        %v5988 = vmul.f32 %v5608, %v5924
        %v5989 = vmul.f32 %v5610, %v5925
        %v5990 = vmul.f32 %v5612, %v5926
        %v5991 = vmul.f32 %v5614, %v5927
        %v5992 = vmul.f32 %v5616, %v5928
        %v5993 = vmul.f32 %v5618, %v5929
        %v5994 = vmul.f32 %v5620, %v5930
        %v5995 = vmul.f32 %v5622, %v5931
        %v5996 = vmul.f32 %v5624, %v5932
        %v5997 = vmul.f32 %v5626, %v5933
        %v5998 = vmul.f32 %v5628, %v5934
        %v5999 = vmul.f32 %v5630, %v5935
        %v6000 = vmul.f32 %v5632, %v5936
        %v6001 = vmul.f32 %v5634, %v5937
        %v6002 = vmul.f32 %v5636, %v5938
        %v6003 = vmul.f32 %v5638, %v5939
        %v6004 = vmul.f32 %v5640, %v5940
        %v6005 = vmul.f32 %v5642, %v5941
        %v6006 = vmul.f32 %v5644, %v5942
        %v6007 = vmul.f32 %v5646, %v5943
        %v6008 = vmul.f32 %v5648, %v5944
        %v6009 = vmul.f32 %v5650, %v5945
        %v6010 = vmul.f32 %v5652, %v5946
        %v6011 = vmul.f32 %v5654, %v5947
        %v6012 = vmul.f32 %v5656, %v5948
        %v6013 = vmul.f32 %v5658, %v5949
        %v6014 = vmul.f32 %v5660, %v5950
        %v6015 = vmul.f32 %v5662, %v5951
        %v6016 = vmul.f32 %v5664, %v5952
        %v6017 = vmul.f32 %v5666, %v5953
        %v6018 = vmul.f32 %v5668, %v5954
        %v6019 = vmul.f32 %v5670, %v5955
        %v6020 = vmul.f32 %v5672, %v5956
        %v6021 = vmul.f32 %v5674, %v5957
        %v6022 = vmul.f32 %v5676, %v5958
        %v6023 = vmul.f32 %v5678, %v5959
        %v6024 = vmul.f32 %v5680, %v5960
        %v6025 = vmul.f32 %v5682, %v5961
        %v6026 = vmul.f32 %v5684, %v5962
        %v6027 = vmul.f32 %v5686, %v5963
        %v6028 = vmul.f32 %v5688, %v5964
        %v6029 = vmul.f32 %v5690, %v5965
        %v6030 = vmul.f32 %v5692, %v5966
        %v6031 = vmul.f32 %v5694, %v5967
        %v6032 = vmul.f32 %v5696, %v5968
        %v6033 = vmul.f32 %v5698, %v5969
        %v6034 = vmul.f32 %v5700, %v5970
        %v6035 = vmul.f32 %v5702, %v5971
        %v6036 = vmul.f32 %v5704, %v5972
        %v6037 = vmul.f32 %v5706, %v5973
        %v6038 = vmul.f32 %v5708, %v5974
        %v6039 = vmul.f32 %v5710, %v5975
        %v6040 = vmul.f32 %v5712, %v5976
        %v6041 = vmul.f32 %v5714, %v5977
        %v6042 = vmul.f32 %v5716, %v5978
        %v6043 = vmul.f32 %v5718, %v5979
        %v6044 = vmul.f32 %v5720, %v5980
        %v6045 = vmul.f32 %v5722, %v5981
        %v6046 = vmul.f32 %v5724, %v5982
        %v6047 = vmul.f32 %v5726, %v5983
        %v6048 = vmul.f32 %v5728, %v5984
        %v6049 = vpack.c.bf16 %v5985, %v5985
        %v6050 = vpack.c.bf16 %v5986, %v5986
        %v6051 = vpack.c.bf16 %v5987, %v5987
        %v6052 = vpack.c.bf16 %v5988, %v5988
        %v6053 = vpack.c.bf16 %v5989, %v5989
        %v6054 = vpack.c.bf16 %v5990, %v5990
        %v6055 = vpack.c.bf16 %v5991, %v5991
        %v6056 = vpack.c.bf16 %v5992, %v5992
        %v6057 = vpack.c.bf16 %v5993, %v5993
        %v6058 = vpack.c.bf16 %v5994, %v5994
        %v6059 = vpack.c.bf16 %v5995, %v5995
        %v6060 = vpack.c.bf16 %v5996, %v5996
        %v6061 = vpack.c.bf16 %v5997, %v5997
        %v6062 = vpack.c.bf16 %v5998, %v5998
        %v6063 = vpack.c.bf16 %v5999, %v5999
        %v6064 = vpack.c.bf16 %v6000, %v6000
        %v6065 = vpack.c.bf16 %v6001, %v6001
        %v6066 = vpack.c.bf16 %v6002, %v6002
        %v6067 = vpack.c.bf16 %v6003, %v6003
        %v6068 = vpack.c.bf16 %v6004, %v6004
        %v6069 = vpack.c.bf16 %v6005, %v6005
        %v6070 = vpack.c.bf16 %v6006, %v6006
        %v6071 = vpack.c.bf16 %v6007, %v6007
        %v6072 = vpack.c.bf16 %v6008, %v6008
        %v6073 = vpack.c.bf16 %v6009, %v6009
        %v6074 = vpack.c.bf16 %v6010, %v6010
        %v6075 = vpack.c.bf16 %v6011, %v6011
        %v6076 = vpack.c.bf16 %v6012, %v6012
        %v6077 = vpack.c.bf16 %v6013, %v6013
        %v6078 = vpack.c.bf16 %v6014, %v6014
        %v6079 = vpack.c.bf16 %v6015, %v6015
        %v6080 = vpack.c.bf16 %v6016, %v6016
        %v6081 = vpack.c.bf16 %v6017, %v6017
        %v6082 = vpack.c.bf16 %v6018, %v6018
        %v6083 = vpack.c.bf16 %v6019, %v6019
        %v6084 = vpack.c.bf16 %v6020, %v6020
        %v6085 = vpack.c.bf16 %v6021, %v6021
        %v6086 = vpack.c.bf16 %v6022, %v6022
        %v6087 = vpack.c.bf16 %v6023, %v6023
        %v6088 = vpack.c.bf16 %v6024, %v6024
        %v6089 = vpack.c.bf16 %v6025, %v6025
        %v6090 = vpack.c.bf16 %v6026, %v6026
        %v6091 = vpack.c.bf16 %v6027, %v6027
        %v6092 = vpack.c.bf16 %v6028, %v6028
        %v6093 = vpack.c.bf16 %v6029, %v6029
        %v6094 = vpack.c.bf16 %v6030, %v6030
        %v6095 = vpack.c.bf16 %v6031, %v6031
        %v6096 = vpack.c.bf16 %v6032, %v6032
        %v6097 = vpack.c.bf16 %v6033, %v6033
        %v6098 = vpack.c.bf16 %v6034, %v6034
        %v6099 = vpack.c.bf16 %v6035, %v6035
        %v6100 = vpack.c.bf16 %v6036, %v6036
        %v6101 = vpack.c.bf16 %v6037, %v6037
        %v6102 = vpack.c.bf16 %v6038, %v6038
        %v6103 = vpack.c.bf16 %v6039, %v6039
        %v6104 = vpack.c.bf16 %v6040, %v6040
        %v6105 = vpack.c.bf16 %v6041, %v6041
        %v6106 = vpack.c.bf16 %v6042, %v6042
        %v6107 = vpack.c.bf16 %v6043, %v6043
        %v6108 = vpack.c.bf16 %v6044, %v6044
        %v6109 = vpack.c.bf16 %v6045, %v6045
        %v6110 = vpack.c.bf16 %v6046, %v6046
        %v6111 = vpack.c.bf16 %v6047, %v6047
        %v6112 = vpack.c.bf16 %v6048, %v6048
        %v6121 = vunpack.c.l.b16 %v6049
        %v6122 = vunpack.c.l.b16 %v6050
        %v6123 = vunpack.c.l.b16 %v6051
        %v6124 = vunpack.c.l.b16 %v6052
        %v6125 = vunpack.c.l.b16 %v6053
        %v6126 = vunpack.c.l.b16 %v6054
        %v6127 = vunpack.c.l.b16 %v6055
        %v6128 = vunpack.c.l.b16 %v6056
        %v6129 = vpack.c.b16 %v6122, %v6121
        %v6130 = vpack.c.b16 %v6124, %v6123
        %v6131 = vpack.c.b16 %v6126, %v6125
        %v6132 = vpack.c.b16 %v6128, %v6127
        %v6135 = vsel %vm2274, %v6129, 0
        %v6138 = vsel %vm2274, %v6130, 0
        %v6141 = vsel %vm2274, %v6131, 0
        %v6144 = vsel %vm2274, %v6132, 0
        %6146 = vmatpush.bf16.msra.mxu0 0
        %6147 = vmatpush.bf16.msra.mxu0 0
        %6148 = vmatpush.bf16.msra.mxu0 0
        %6149 = vmatpush.bf16.msra.mxu0 0
        %6150 = vmatpush.bf16.msra.mxu0 0
        %6151 = vmatpush.bf16.msra.mxu0 0
        %6152 = vmatpush.bf16.msra.mxu0 0
        %6153 = vmatpush.bf16.msra.mxu0 %v4239
        %6154 = vmatmul.bf16.gmra.mxu0 %v6135
        %v6155 = vpop.f32.mrf.mxu0
        %v6156 = vadd.f32 0.0, %v6155
        %v6157 = vpop.f32.mrf.mxu0
        %v6158 = vadd.f32 0.0, %v6157
        %6159 = vmatmul.bf16.gmra.mxu0 %v6138
        %v6160 = vpop.f32.mrf.mxu0
        %v6161 = vadd.f32 0.0, %v6160
        %v6162 = vpop.f32.mrf.mxu0
        %v6163 = vadd.f32 0.0, %v6162
        %6164 = vmatmul.bf16.gmra.mxu0 %v6141
        %v6165 = vpop.f32.mrf.mxu0
        %v6166 = vadd.f32 0.0, %v6165
        %v6167 = vpop.f32.mrf.mxu0
        %v6168 = vadd.f32 0.0, %v6167
        %6169 = vmatmul.bf16.gmra.mxu0 %v6144
        %v6170 = vpop.f32.mrf.mxu0
        %v6171 = vadd.f32 0.0, %v6170
        %v6172 = vpop.f32.mrf.mxu0
        %v6173 = vadd.f32 0.0, %v6172
        %6174 = vdwg.mxu0
        %v6183 = vunpack.c.l.b16 %v6057
        %v6184 = vunpack.c.l.b16 %v6058
        %v6185 = vunpack.c.l.b16 %v6059
        %v6186 = vunpack.c.l.b16 %v6060
        %v6187 = vunpack.c.l.b16 %v6061
        %v6188 = vunpack.c.l.b16 %v6062
        %v6189 = vunpack.c.l.b16 %v6063
        %v6190 = vunpack.c.l.b16 %v6064
        %v6191 = vpack.c.b16 %v6184, %v6183
        %v6192 = vpack.c.b16 %v6186, %v6185
        %v6193 = vpack.c.b16 %v6188, %v6187
        %v6194 = vpack.c.b16 %v6190, %v6189
        %v6197 = vsel %vm2274, %v6191, 0
        %v6200 = vsel %vm2274, %v6192, 0
        %v6203 = vsel %vm2274, %v6193, 0
        %v6206 = vsel %vm2274, %v6194, 0
        %6208 = vmatpush.bf16.msra.mxu0 0
        %6209 = vmatpush.bf16.msra.mxu0 0
        %6210 = vmatpush.bf16.msra.mxu0 0
        %6211 = vmatpush.bf16.msra.mxu0 0
        %6212 = vmatpush.bf16.msra.mxu0 0
        %6213 = vmatpush.bf16.msra.mxu0 0
        %6214 = vmatpush.bf16.msra.mxu0 0
        %6215 = vmatpush.bf16.msra.mxu0 %v4263
        %6216 = vmatmul.bf16.gmra.mxu0 %v6197
        %v6217 = vpop.f32.mrf.mxu0
        %v6218 = vadd.f32 0.0, %v6217
        %v6219 = vpop.f32.mrf.mxu0
        %v6220 = vadd.f32 0.0, %v6219
        %6221 = vmatmul.bf16.gmra.mxu0 %v6200
        %v6222 = vpop.f32.mrf.mxu0
        %v6223 = vadd.f32 0.0, %v6222
        %v6224 = vpop.f32.mrf.mxu0
        %v6225 = vadd.f32 0.0, %v6224
        %6226 = vmatmul.bf16.gmra.mxu0 %v6203
        %v6227 = vpop.f32.mrf.mxu0
        %v6228 = vadd.f32 0.0, %v6227
        %v6229 = vpop.f32.mrf.mxu0
        %v6230 = vadd.f32 0.0, %v6229
        %6231 = vmatmul.bf16.gmra.mxu0 %v6206
        %v6232 = vpop.f32.mrf.mxu0
        %v6233 = vadd.f32 0.0, %v6232
        %v6234 = vpop.f32.mrf.mxu0
        %v6235 = vadd.f32 0.0, %v6234
        %6236 = vdwg.mxu0
        %v6245 = vunpack.c.l.b16 %v6065
        %v6246 = vunpack.c.l.b16 %v6066
        %v6247 = vunpack.c.l.b16 %v6067
        %v6248 = vunpack.c.l.b16 %v6068
        %v6249 = vunpack.c.l.b16 %v6069
        %v6250 = vunpack.c.l.b16 %v6070
        %v6251 = vunpack.c.l.b16 %v6071
        %v6252 = vunpack.c.l.b16 %v6072
        %v6253 = vpack.c.b16 %v6246, %v6245
        %v6254 = vpack.c.b16 %v6248, %v6247
        %v6255 = vpack.c.b16 %v6250, %v6249
        %v6256 = vpack.c.b16 %v6252, %v6251
        %v6259 = vsel %vm2274, %v6253, 0
        %v6262 = vsel %vm2274, %v6254, 0
        %v6265 = vsel %vm2274, %v6255, 0
        %v6268 = vsel %vm2274, %v6256, 0
        %6270 = vmatpush.bf16.msra.mxu0 0
        %6271 = vmatpush.bf16.msra.mxu0 0
        %6272 = vmatpush.bf16.msra.mxu0 0
        %6273 = vmatpush.bf16.msra.mxu0 0
        %6274 = vmatpush.bf16.msra.mxu0 0
        %6275 = vmatpush.bf16.msra.mxu0 0
        %6276 = vmatpush.bf16.msra.mxu0 0
        %6277 = vmatpush.bf16.msra.mxu0 %v4284
        %6278 = vmatmul.bf16.gmra.mxu0 %v6259
        %v6279 = vpop.f32.mrf.mxu0
        %v6280 = vadd.f32 0.0, %v6279
        %v6281 = vpop.f32.mrf.mxu0
        %v6282 = vadd.f32 0.0, %v6281
        %6283 = vmatmul.bf16.gmra.mxu0 %v6262
        %v6284 = vpop.f32.mrf.mxu0
        %v6285 = vadd.f32 0.0, %v6284
        %v6286 = vpop.f32.mrf.mxu0
        %v6287 = vadd.f32 0.0, %v6286
        %6288 = vmatmul.bf16.gmra.mxu0 %v6265
        %v6289 = vpop.f32.mrf.mxu0
        %v6290 = vadd.f32 0.0, %v6289
        %v6291 = vpop.f32.mrf.mxu0
        %v6292 = vadd.f32 0.0, %v6291
        %6293 = vmatmul.bf16.gmra.mxu0 %v6268
        %v6294 = vpop.f32.mrf.mxu0
        %v6295 = vadd.f32 0.0, %v6294
        %v6296 = vpop.f32.mrf.mxu0
        %v6297 = vadd.f32 0.0, %v6296
        %6298 = vdwg.mxu0
        %v6307 = vunpack.c.l.b16 %v6073
        %v6308 = vunpack.c.l.b16 %v6074
        %v6309 = vunpack.c.l.b16 %v6075
        %v6310 = vunpack.c.l.b16 %v6076
        %v6311 = vunpack.c.l.b16 %v6077
        %v6312 = vunpack.c.l.b16 %v6078
        %v6313 = vunpack.c.l.b16 %v6079
        %v6314 = vunpack.c.l.b16 %v6080
        %v6315 = vpack.c.b16 %v6308, %v6307
        %v6316 = vpack.c.b16 %v6310, %v6309
        %v6317 = vpack.c.b16 %v6312, %v6311
        %v6318 = vpack.c.b16 %v6314, %v6313
        %v6321 = vsel %vm2274, %v6315, 0
        %v6324 = vsel %vm2274, %v6316, 0
        %v6327 = vsel %vm2274, %v6317, 0
        %v6330 = vsel %vm2274, %v6318, 0
        %6332 = vmatpush.bf16.msra.mxu0 0
        %6333 = vmatpush.bf16.msra.mxu0 0
        %6334 = vmatpush.bf16.msra.mxu0 0
        %6335 = vmatpush.bf16.msra.mxu0 0
        %6336 = vmatpush.bf16.msra.mxu0 0
        %6337 = vmatpush.bf16.msra.mxu0 0
        %6338 = vmatpush.bf16.msra.mxu0 0
        %6339 = vmatpush.bf16.msra.mxu0 %v4305
        %6340 = vmatmul.bf16.gmra.mxu0 %v6321
        %v6341 = vpop.f32.mrf.mxu0
        %v6342 = vadd.f32 0.0, %v6341
        %v6343 = vpop.f32.mrf.mxu0
        %v6344 = vadd.f32 0.0, %v6343
        %6345 = vmatmul.bf16.gmra.mxu0 %v6324
        %v6346 = vpop.f32.mrf.mxu0
        %v6347 = vadd.f32 0.0, %v6346
        %v6348 = vpop.f32.mrf.mxu0
        %v6349 = vadd.f32 0.0, %v6348
        %6350 = vmatmul.bf16.gmra.mxu0 %v6327
        %v6351 = vpop.f32.mrf.mxu0
        %v6352 = vadd.f32 0.0, %v6351
        %v6353 = vpop.f32.mrf.mxu0
        %v6354 = vadd.f32 0.0, %v6353
        %6355 = vmatmul.bf16.gmra.mxu0 %v6330
        %v6356 = vpop.f32.mrf.mxu0
        %v6357 = vadd.f32 0.0, %v6356
        %v6358 = vpop.f32.mrf.mxu0
        %v6359 = vadd.f32 0.0, %v6358
        %6360 = vdwg.mxu0
        %v6369 = vunpack.c.l.b16 %v6081
        %v6370 = vunpack.c.l.b16 %v6082
        %v6371 = vunpack.c.l.b16 %v6083
        %v6372 = vunpack.c.l.b16 %v6084
        %v6373 = vunpack.c.l.b16 %v6085
        %v6374 = vunpack.c.l.b16 %v6086
        %v6375 = vunpack.c.l.b16 %v6087
        %v6376 = vunpack.c.l.b16 %v6088
        %v6377 = vpack.c.b16 %v6370, %v6369
        %v6378 = vpack.c.b16 %v6372, %v6371
        %v6379 = vpack.c.b16 %v6374, %v6373
        %v6380 = vpack.c.b16 %v6376, %v6375
        %v6383 = vsel %vm2274, %v6377, 0
        %v6386 = vsel %vm2274, %v6378, 0
        %v6389 = vsel %vm2274, %v6379, 0
        %v6392 = vsel %vm2274, %v6380, 0
        %6394 = vmatpush.bf16.msra.mxu0 0
        %6395 = vmatpush.bf16.msra.mxu0 0
        %6396 = vmatpush.bf16.msra.mxu0 0
        %6397 = vmatpush.bf16.msra.mxu0 0
        %6398 = vmatpush.bf16.msra.mxu0 0
        %6399 = vmatpush.bf16.msra.mxu0 0
        %6400 = vmatpush.bf16.msra.mxu0 0
        %6401 = vmatpush.bf16.msra.mxu0 %v4326
        %6402 = vmatmul.bf16.gmra.mxu0 %v6383
        %v6403 = vpop.f32.mrf.mxu0
        %v6404 = vadd.f32 0.0, %v6403
        %v6405 = vpop.f32.mrf.mxu0
        %v6406 = vadd.f32 0.0, %v6405
        %6407 = vmatmul.bf16.gmra.mxu0 %v6386
        %v6408 = vpop.f32.mrf.mxu0
        %v6409 = vadd.f32 0.0, %v6408
        %v6410 = vpop.f32.mrf.mxu0
        %v6411 = vadd.f32 0.0, %v6410
        %6412 = vmatmul.bf16.gmra.mxu0 %v6389
        %v6413 = vpop.f32.mrf.mxu0
        %v6414 = vadd.f32 0.0, %v6413
        %v6415 = vpop.f32.mrf.mxu0
        %v6416 = vadd.f32 0.0, %v6415
        %6417 = vmatmul.bf16.gmra.mxu0 %v6392
        %v6418 = vpop.f32.mrf.mxu0
        %v6419 = vadd.f32 0.0, %v6418
        %v6420 = vpop.f32.mrf.mxu0
        %v6421 = vadd.f32 0.0, %v6420
        %6422 = vdwg.mxu0
        %v6431 = vunpack.c.l.b16 %v6089
        %v6432 = vunpack.c.l.b16 %v6090
        %v6433 = vunpack.c.l.b16 %v6091
        %v6434 = vunpack.c.l.b16 %v6092
        %v6435 = vunpack.c.l.b16 %v6093
        %v6436 = vunpack.c.l.b16 %v6094
        %v6437 = vunpack.c.l.b16 %v6095
        %v6438 = vunpack.c.l.b16 %v6096
        %v6439 = vpack.c.b16 %v6432, %v6431
        %v6440 = vpack.c.b16 %v6434, %v6433
        %v6441 = vpack.c.b16 %v6436, %v6435
        %v6442 = vpack.c.b16 %v6438, %v6437
        %v6445 = vsel %vm2274, %v6439, 0
        %v6448 = vsel %vm2274, %v6440, 0
        %v6451 = vsel %vm2274, %v6441, 0
        %v6454 = vsel %vm2274, %v6442, 0
        %6456 = vmatpush.bf16.msra.mxu0 0
        %6457 = vmatpush.bf16.msra.mxu0 0
        %6458 = vmatpush.bf16.msra.mxu0 0
        %6459 = vmatpush.bf16.msra.mxu0 0
        %6460 = vmatpush.bf16.msra.mxu0 0
        %6461 = vmatpush.bf16.msra.mxu0 0
        %6462 = vmatpush.bf16.msra.mxu0 0
        %6463 = vmatpush.bf16.msra.mxu0 %v4347
        %6464 = vmatmul.bf16.gmra.mxu0 %v6445
        %v6465 = vpop.f32.mrf.mxu0
        %v6466 = vadd.f32 0.0, %v6465
        %v6467 = vpop.f32.mrf.mxu0
        %v6468 = vadd.f32 0.0, %v6467
        %6469 = vmatmul.bf16.gmra.mxu0 %v6448
        %v6470 = vpop.f32.mrf.mxu0
        %v6471 = vadd.f32 0.0, %v6470
        %v6472 = vpop.f32.mrf.mxu0
        %v6473 = vadd.f32 0.0, %v6472
        %6474 = vmatmul.bf16.gmra.mxu0 %v6451
        %v6475 = vpop.f32.mrf.mxu0
        %v6476 = vadd.f32 0.0, %v6475
        %v6477 = vpop.f32.mrf.mxu0
        %v6478 = vadd.f32 0.0, %v6477
        %6479 = vmatmul.bf16.gmra.mxu0 %v6454
        %v6480 = vpop.f32.mrf.mxu0
        %v6481 = vadd.f32 0.0, %v6480
        %v6482 = vpop.f32.mrf.mxu0
        %v6483 = vadd.f32 0.0, %v6482
        %6484 = vdwg.mxu0
        %v6493 = vunpack.c.l.b16 %v6097
        %v6494 = vunpack.c.l.b16 %v6098
        %v6495 = vunpack.c.l.b16 %v6099
        %v6496 = vunpack.c.l.b16 %v6100
        %v6497 = vunpack.c.l.b16 %v6101
        %v6498 = vunpack.c.l.b16 %v6102
        %v6499 = vunpack.c.l.b16 %v6103
        %v6500 = vunpack.c.l.b16 %v6104
        %v6501 = vpack.c.b16 %v6494, %v6493
        %v6502 = vpack.c.b16 %v6496, %v6495
        %v6503 = vpack.c.b16 %v6498, %v6497
        %v6504 = vpack.c.b16 %v6500, %v6499
        %v6507 = vsel %vm2274, %v6501, 0
        %v6510 = vsel %vm2274, %v6502, 0
        %v6513 = vsel %vm2274, %v6503, 0
        %v6516 = vsel %vm2274, %v6504, 0
        %6518 = vmatpush.bf16.msra.mxu0 0
        %6519 = vmatpush.bf16.msra.mxu0 0
        %6520 = vmatpush.bf16.msra.mxu0 0
        %6521 = vmatpush.bf16.msra.mxu0 0
        %6522 = vmatpush.bf16.msra.mxu0 0
        %6523 = vmatpush.bf16.msra.mxu0 0
        %6524 = vmatpush.bf16.msra.mxu0 0
        %6525 = vmatpush.bf16.msra.mxu0 %v4368
        %6526 = vmatmul.bf16.gmra.mxu0 %v6507
        %v6527 = vpop.f32.mrf.mxu0
        %v6528 = vadd.f32 0.0, %v6527
        %v6529 = vpop.f32.mrf.mxu0
        %v6530 = vadd.f32 0.0, %v6529
        %6531 = vmatmul.bf16.gmra.mxu0 %v6510
        %v6532 = vpop.f32.mrf.mxu0
        %v6533 = vadd.f32 0.0, %v6532
        %v6534 = vpop.f32.mrf.mxu0
        %v6535 = vadd.f32 0.0, %v6534
        %6536 = vmatmul.bf16.gmra.mxu0 %v6513
        %v6537 = vpop.f32.mrf.mxu0
        %v6538 = vadd.f32 0.0, %v6537
        %v6539 = vpop.f32.mrf.mxu0
        %v6540 = vadd.f32 0.0, %v6539
        %6541 = vmatmul.bf16.gmra.mxu0 %v6516
        %v6542 = vpop.f32.mrf.mxu0
        %v6543 = vadd.f32 0.0, %v6542
        %v6544 = vpop.f32.mrf.mxu0
        %v6545 = vadd.f32 0.0, %v6544
        %6546 = vdwg.mxu0
        %v6555 = vunpack.c.l.b16 %v6105
        %v6556 = vunpack.c.l.b16 %v6106
        %v6557 = vunpack.c.l.b16 %v6107
        %v6558 = vunpack.c.l.b16 %v6108
        %v6559 = vunpack.c.l.b16 %v6109
        %v6560 = vunpack.c.l.b16 %v6110
        %v6561 = vunpack.c.l.b16 %v6111
        %v6562 = vunpack.c.l.b16 %v6112
        %v6563 = vpack.c.b16 %v6556, %v6555
        %v6564 = vpack.c.b16 %v6558, %v6557
        %v6565 = vpack.c.b16 %v6560, %v6559
        %v6566 = vpack.c.b16 %v6562, %v6561
        %v6569 = vsel %vm2274, %v6563, 0
        %v6572 = vsel %vm2274, %v6564, 0
        %v6575 = vsel %vm2274, %v6565, 0
        %v6578 = vsel %vm2274, %v6566, 0
        %6580 = vmatpush.bf16.msra.mxu0 0
        %6581 = vmatpush.bf16.msra.mxu0 0
        %6582 = vmatpush.bf16.msra.mxu0 0
        %6583 = vmatpush.bf16.msra.mxu0 0
        %6584 = vmatpush.bf16.msra.mxu0 0
        %6585 = vmatpush.bf16.msra.mxu0 0
        %6586 = vmatpush.bf16.msra.mxu0 0
        %6587 = vmatpush.bf16.msra.mxu0 %v4389
        %6588 = vmatmul.bf16.gmra.mxu0 %v6569
        %v6589 = vpop.f32.mrf.mxu0
        %v6590 = vadd.f32 0.0, %v6589
        %v6591 = vpop.f32.mrf.mxu0
        %v6592 = vadd.f32 0.0, %v6591
        %6593 = vmatmul.bf16.gmra.mxu0 %v6572
        %v6594 = vpop.f32.mrf.mxu0
        %v6595 = vadd.f32 0.0, %v6594
        %v6596 = vpop.f32.mrf.mxu0
        %v6597 = vadd.f32 0.0, %v6596
        %6598 = vmatmul.bf16.gmra.mxu0 %v6575
        %v6599 = vpop.f32.mrf.mxu0
        %v6600 = vadd.f32 0.0, %v6599
        %v6601 = vpop.f32.mrf.mxu0
        %v6602 = vadd.f32 0.0, %v6601
        %6603 = vmatmul.bf16.gmra.mxu0 %v6578
        %v6604 = vpop.f32.mrf.mxu0
        %v6605 = vadd.f32 0.0, %v6604
        %v6606 = vpop.f32.mrf.mxu0
        %v6607 = vadd.f32 0.0, %v6606
        %6608 = vdwg.mxu0
        %v6609 = vmul.f32 %v6156, %v3539
        %v6610 = vmul.f32 %v6158, %v3539
        %v6611 = vmul.f32 %v6161, %v3540
        %v6612 = vmul.f32 %v6163, %v3540
        %v6613 = vmul.f32 %v6166, %v3541
        %v6614 = vmul.f32 %v6168, %v3541
        %v6615 = vmul.f32 %v6171, %v3542
        %v6616 = vmul.f32 %v6173, %v3542
        %v6617 = vmul.f32 %v6218, %v3539
        %v6618 = vmul.f32 %v6220, %v3539
        %v6619 = vmul.f32 %v6223, %v3540
        %v6620 = vmul.f32 %v6225, %v3540
        %v6621 = vmul.f32 %v6228, %v3541
        %v6622 = vmul.f32 %v6230, %v3541
        %v6623 = vmul.f32 %v6233, %v3542
        %v6624 = vmul.f32 %v6235, %v3542
        %v6625 = vmul.f32 %v6280, %v3539
        %v6626 = vmul.f32 %v6282, %v3539
        %v6627 = vmul.f32 %v6285, %v3540
        %v6628 = vmul.f32 %v6287, %v3540
        %v6629 = vmul.f32 %v6290, %v3541
        %v6630 = vmul.f32 %v6292, %v3541
        %v6631 = vmul.f32 %v6295, %v3542
        %v6632 = vmul.f32 %v6297, %v3542
        %v6633 = vmul.f32 %v6342, %v3539
        %v6634 = vmul.f32 %v6344, %v3539
        %v6635 = vmul.f32 %v6347, %v3540
        %v6636 = vmul.f32 %v6349, %v3540
        %v6637 = vmul.f32 %v6352, %v3541
        %v6638 = vmul.f32 %v6354, %v3541
        %v6639 = vmul.f32 %v6357, %v3542
        %v6640 = vmul.f32 %v6359, %v3542
        %v6641 = vmul.f32 %v6404, %v3539
        %v6642 = vmul.f32 %v6406, %v3539
        %v6643 = vmul.f32 %v6409, %v3540
        %v6644 = vmul.f32 %v6411, %v3540
        %v6645 = vmul.f32 %v6414, %v3541
        %v6646 = vmul.f32 %v6416, %v3541
        %v6647 = vmul.f32 %v6419, %v3542
        %v6648 = vmul.f32 %v6421, %v3542
        %v6649 = vmul.f32 %v6466, %v3539
        %v6650 = vmul.f32 %v6468, %v3539
        %v6651 = vmul.f32 %v6471, %v3540
        %v6652 = vmul.f32 %v6473, %v3540
        %v6653 = vmul.f32 %v6476, %v3541
        %v6654 = vmul.f32 %v6478, %v3541
        %v6655 = vmul.f32 %v6481, %v3542
        %v6656 = vmul.f32 %v6483, %v3542
        %v6657 = vmul.f32 %v6528, %v3539
        %v6658 = vmul.f32 %v6530, %v3539
        %v6659 = vmul.f32 %v6533, %v3540
        %v6660 = vmul.f32 %v6535, %v3540
        %v6661 = vmul.f32 %v6538, %v3541
        %v6662 = vmul.f32 %v6540, %v3541
        %v6663 = vmul.f32 %v6543, %v3542
        %v6664 = vmul.f32 %v6545, %v3542
        %v6665 = vmul.f32 %v6590, %v3539
        %v6666 = vmul.f32 %v6592, %v3539
        %v6667 = vmul.f32 %v6595, %v3540
        %v6668 = vmul.f32 %v6597, %v3540
        %v6669 = vmul.f32 %v6600, %v3541
        %v6670 = vmul.f32 %v6602, %v3541
        %v6671 = vmul.f32 %v6605, %v3542
        %v6672 = vmul.f32 %v6607, %v3542
        %v6673 = vsel %vm1168, %v6609, 0.0
        %v6674 = vsel %vm1168, %v6611, 0.0
        %v6675 = vadd.f32 %v6673, %v6674
        %v6676 = vsel %vm1168, %v6613, 0.0
        %v6677 = vadd.f32 %v6675, %v6676
        %v6678 = vsel %vm1168, %v6615, 0.0
        %v6679 = vadd.f32 %v6677, %v6678
        %v6680 = vsel %vm1168, %v6610, 0.0
        %v6681 = vsel %vm1168, %v6612, 0.0
        %v6682 = vadd.f32 %v6680, %v6681
        %v6683 = vsel %vm1168, %v6614, 0.0
        %v6684 = vadd.f32 %v6682, %v6683
        %v6685 = vsel %vm1168, %v6616, 0.0
        %v6686 = vadd.f32 %v6684, %v6685
        %v6687 = vsel %vm1168, %v6617, 0.0
        %v6688 = vsel %vm1168, %v6619, 0.0
        %v6689 = vadd.f32 %v6687, %v6688
        %v6690 = vsel %vm1168, %v6621, 0.0
        %v6691 = vadd.f32 %v6689, %v6690
        %v6692 = vsel %vm1168, %v6623, 0.0
        %v6693 = vadd.f32 %v6691, %v6692
        %v6694 = vsel %vm1168, %v6618, 0.0
        %v6695 = vsel %vm1168, %v6620, 0.0
        %v6696 = vadd.f32 %v6694, %v6695
        %v6697 = vsel %vm1168, %v6622, 0.0
        %v6698 = vadd.f32 %v6696, %v6697
        %v6699 = vsel %vm1168, %v6624, 0.0
        %v6700 = vadd.f32 %v6698, %v6699
        %v6701 = vsel %vm1168, %v6625, 0.0
        %v6702 = vsel %vm1168, %v6627, 0.0
        %v6703 = vadd.f32 %v6701, %v6702
        %v6704 = vsel %vm1168, %v6629, 0.0
        %v6705 = vadd.f32 %v6703, %v6704
        %v6706 = vsel %vm1168, %v6631, 0.0
        %v6707 = vadd.f32 %v6705, %v6706
        %v6708 = vsel %vm1168, %v6626, 0.0
        %v6709 = vsel %vm1168, %v6628, 0.0
        %v6710 = vadd.f32 %v6708, %v6709
        %v6711 = vsel %vm1168, %v6630, 0.0
        %v6712 = vadd.f32 %v6710, %v6711
        %v6713 = vsel %vm1168, %v6632, 0.0
        %v6714 = vadd.f32 %v6712, %v6713
        %v6715 = vsel %vm1168, %v6633, 0.0
        %v6716 = vsel %vm1168, %v6635, 0.0
        %v6717 = vadd.f32 %v6715, %v6716
        %v6718 = vsel %vm1168, %v6637, 0.0
        %v6719 = vadd.f32 %v6717, %v6718
        %v6720 = vsel %vm1168, %v6639, 0.0
        %v6721 = vadd.f32 %v6719, %v6720
        %v6722 = vsel %vm1168, %v6634, 0.0
        %v6723 = vsel %vm1168, %v6636, 0.0
        %v6724 = vadd.f32 %v6722, %v6723
        %v6725 = vsel %vm1168, %v6638, 0.0
        %v6726 = vadd.f32 %v6724, %v6725
        %v6727 = vsel %vm1168, %v6640, 0.0
        %v6728 = vadd.f32 %v6726, %v6727
        %v6729 = vsel %vm1168, %v6641, 0.0
        %v6730 = vsel %vm1168, %v6643, 0.0
        %v6731 = vadd.f32 %v6729, %v6730
        %v6732 = vsel %vm1168, %v6645, 0.0
        %v6733 = vadd.f32 %v6731, %v6732
        %v6734 = vsel %vm1168, %v6647, 0.0
        %v6735 = vadd.f32 %v6733, %v6734
        %v6736 = vsel %vm1168, %v6642, 0.0
        %v6737 = vsel %vm1168, %v6644, 0.0
        %v6738 = vadd.f32 %v6736, %v6737
        %v6739 = vsel %vm1168, %v6646, 0.0
        %v6740 = vadd.f32 %v6738, %v6739
        %v6741 = vsel %vm1168, %v6648, 0.0
        %v6742 = vadd.f32 %v6740, %v6741
        %v6743 = vsel %vm1168, %v6649, 0.0
        %v6744 = vsel %vm1168, %v6651, 0.0
        %v6745 = vadd.f32 %v6743, %v6744
        %v6746 = vsel %vm1168, %v6653, 0.0
        %v6747 = vadd.f32 %v6745, %v6746
        %v6748 = vsel %vm1168, %v6655, 0.0
        %v6749 = vadd.f32 %v6747, %v6748
        %v6750 = vsel %vm1168, %v6650, 0.0
        %v6751 = vsel %vm1168, %v6652, 0.0
        %v6752 = vadd.f32 %v6750, %v6751
        %v6753 = vsel %vm1168, %v6654, 0.0
        %v6754 = vadd.f32 %v6752, %v6753
        %v6755 = vsel %vm1168, %v6656, 0.0
        %v6756 = vadd.f32 %v6754, %v6755
        %v6757 = vsel %vm1168, %v6657, 0.0
        %v6758 = vsel %vm1168, %v6659, 0.0
        %v6759 = vadd.f32 %v6757, %v6758
        %v6760 = vsel %vm1168, %v6661, 0.0
        %v6761 = vadd.f32 %v6759, %v6760
        %v6762 = vsel %vm1168, %v6663, 0.0
        %v6763 = vadd.f32 %v6761, %v6762
        %v6764 = vsel %vm1168, %v6658, 0.0
        %v6765 = vsel %vm1168, %v6660, 0.0
        %v6766 = vadd.f32 %v6764, %v6765
        %v6767 = vsel %vm1168, %v6662, 0.0
        %v6768 = vadd.f32 %v6766, %v6767
        %v6769 = vsel %vm1168, %v6664, 0.0
        %v6770 = vadd.f32 %v6768, %v6769
        %v6771 = vsel %vm1168, %v6665, 0.0
        %v6772 = vsel %vm1168, %v6667, 0.0
        %v6773 = vadd.f32 %v6771, %v6772
        %v6774 = vsel %vm1168, %v6669, 0.0
        %v6775 = vadd.f32 %v6773, %v6774
        %v6776 = vsel %vm1168, %v6671, 0.0
        %v6777 = vadd.f32 %v6775, %v6776
        %v6778 = vsel %vm1168, %v6666, 0.0
        %v6779 = vsel %vm1168, %v6668, 0.0
        %v6780 = vadd.f32 %v6778, %v6779
        %v6781 = vsel %vm1168, %v6670, 0.0
        %v6782 = vadd.f32 %v6780, %v6781
        %v6783 = vsel %vm1168, %v6672, 0.0
        %v6784 = vadd.f32 %v6782, %v6783
        %v6785 = vld [vmem:[#allocation19] sm:$0x1]
        %v6787 = vperm.slane %v6785, 0
        %v6789 = vadd.f32 %v6679, %v6787
        %v6790 = vadd.f32 %v6686, %v6787
        %v6791 = vadd.f32 %v6693, %v6787
        %v6792 = vadd.f32 %v6700, %v6787
        %v6793 = vadd.f32 %v6707, %v6787
        %v6794 = vadd.f32 %v6714, %v6787
        %v6795 = vadd.f32 %v6721, %v6787
        %v6796 = vadd.f32 %v6728, %v6787
        %v6797 = vadd.f32 %v6735, %v6787
        %v6798 = vadd.f32 %v6742, %v6787
        %v6799 = vadd.f32 %v6749, %v6787
        %v6800 = vadd.f32 %v6756, %v6787
        %v6801 = vadd.f32 %v6763, %v6787
        %v6802 = vadd.f32 %v6770, %v6787
        %v6803 = vadd.f32 %v6777, %v6787
        %v6804 = vadd.f32 %v6784, %v6787
        %v6805 = vsel %vm1168, %v6789, 0.0
        %v6806 = vsel %vm1168, %v6790, 0.0
        %v6807 = vadd.f32 %v6805, %v6806
        %v6808 = vrot.slane %v6807, 4
        %v6809 = vadd.f32 %v6807, %v6808
        %v6810 = vrot.slane %v6809, 2
        %v6811 = vadd.f32 %v6809, %v6810
        %v6812 = vrot.slane %v6811, 1
        %v6813 = vadd.f32 %v6811, %v6812
        %v6814 = vsel %vm1168, %v6791, 0.0
        %v6815 = vsel %vm1168, %v6792, 0.0
        %v6816 = vadd.f32 %v6814, %v6815
        %v6817 = vrot.slane %v6816, 4
        %v6818 = vadd.f32 %v6816, %v6817
        %v6819 = vrot.slane %v6818, 2
        %v6820 = vadd.f32 %v6818, %v6819
        %v6821 = vrot.slane %v6820, 1
        %v6822 = vadd.f32 %v6820, %v6821
        %v6823 = vsel %vm1168, %v6793, 0.0
        %v6824 = vsel %vm1168, %v6794, 0.0
        %v6825 = vadd.f32 %v6823, %v6824
        %v6826 = vrot.slane %v6825, 4
        %v6827 = vadd.f32 %v6825, %v6826
        %v6828 = vrot.slane %v6827, 2
        %v6829 = vadd.f32 %v6827, %v6828
        %v6830 = vrot.slane %v6829, 1
        %v6831 = vadd.f32 %v6829, %v6830
        %v6832 = vsel %vm1168, %v6795, 0.0
        %v6833 = vsel %vm1168, %v6796, 0.0
        %v6834 = vadd.f32 %v6832, %v6833
        %v6835 = vrot.slane %v6834, 4
        %v6836 = vadd.f32 %v6834, %v6835
        %v6837 = vrot.slane %v6836, 2
        %v6838 = vadd.f32 %v6836, %v6837
        %v6839 = vrot.slane %v6838, 1
        %v6840 = vadd.f32 %v6838, %v6839
        %v6841 = vsel %vm1168, %v6797, 0.0
        %v6842 = vsel %vm1168, %v6798, 0.0
        %v6843 = vadd.f32 %v6841, %v6842
        %v6844 = vrot.slane %v6843, 4
        %v6845 = vadd.f32 %v6843, %v6844
        %v6846 = vrot.slane %v6845, 2
        %v6847 = vadd.f32 %v6845, %v6846
        %v6848 = vrot.slane %v6847, 1
        %v6849 = vadd.f32 %v6847, %v6848
        %v6850 = vsel %vm1168, %v6799, 0.0
        %v6851 = vsel %vm1168, %v6800, 0.0
        %v6852 = vadd.f32 %v6850, %v6851
        %v6853 = vrot.slane %v6852, 4
        %v6854 = vadd.f32 %v6852, %v6853
        %v6855 = vrot.slane %v6854, 2
        %v6856 = vadd.f32 %v6854, %v6855
        %v6857 = vrot.slane %v6856, 1
        %v6858 = vadd.f32 %v6856, %v6857
        %v6859 = vsel %vm1168, %v6801, 0.0
        %v6860 = vsel %vm1168, %v6802, 0.0
        %v6861 = vadd.f32 %v6859, %v6860
        %v6862 = vrot.slane %v6861, 4
        %v6863 = vadd.f32 %v6861, %v6862
        %v6864 = vrot.slane %v6863, 2
        %v6865 = vadd.f32 %v6863, %v6864
        %v6866 = vrot.slane %v6865, 1
        %v6867 = vadd.f32 %v6865, %v6866
        %v6868 = vsel %vm1168, %v6803, 0.0
        %v6869 = vsel %vm1168, %v6804, 0.0
        %v6870 = vadd.f32 %v6868, %v6869
        %v6871 = vrot.slane %v6870, 4
        %v6872 = vadd.f32 %v6870, %v6871
        %v6873 = vrot.slane %v6872, 2
        %v6874 = vadd.f32 %v6872, %v6873
        %v6875 = vrot.slane %v6874, 1
        %v6876 = vadd.f32 %v6874, %v6875
        %v6877 = vmul.f32 %v6813, 0.0625
        %v6878 = vmul.f32 %v6822, 0.0625
        %v6879 = vmul.f32 %v6831, 0.0625
        %v6880 = vmul.f32 %v6840, 0.0625
        %v6881 = vmul.f32 %v6849, 0.0625
        %v6882 = vmul.f32 %v6858, 0.0625
        %v6883 = vmul.f32 %v6867, 0.0625
        %v6884 = vmul.f32 %v6876, 0.0625
        %v6885 = vld [vmem:[#allocation23] sm:$0x1]
        %v6886 = vmul.f32 %v6885, %v6877
        %v6887 = vmul.f32 %v6885, %v6878
        %v6888 = vmul.f32 %v6885, %v6879
        %v6889 = vmul.f32 %v6885, %v6880
        %v6890 = vmul.f32 %v6885, %v6881
        %v6891 = vmul.f32 %v6885, %v6882
        %v6892 = vmul.f32 %v6885, %v6883
        %v6893 = vmul.f32 %v6885, %v6884
        %v6902 = vperm.slane %v6886, 0
        %v6903 = vperm.slane %v6887, 0
        %v6904 = vperm.slane %v6888, 0
        %v6905 = vperm.slane %v6889, 0
        %v6906 = vperm.slane %v6890, 0
        %v6907 = vperm.slane %v6891, 0
        %v6908 = vperm.slane %v6892, 0
        %v6909 = vperm.slane %v6893, 0
        %v6918 = vsub.f32 %v6789, %v6902
        %v6919 = vsub.f32 %v6790, %v6902
        %v6920 = vsub.f32 %v6791, %v6903
        %v6921 = vsub.f32 %v6792, %v6903
        %v6922 = vsub.f32 %v6793, %v6904
        %v6923 = vsub.f32 %v6794, %v6904
        %v6924 = vsub.f32 %v6795, %v6905
        %v6925 = vsub.f32 %v6796, %v6905
        %v6926 = vsub.f32 %v6797, %v6906
        %v6927 = vsub.f32 %v6798, %v6906
        %v6928 = vsub.f32 %v6799, %v6907
        %v6929 = vsub.f32 %v6800, %v6907
        %v6930 = vsub.f32 %v6801, %v6908
        %v6931 = vsub.f32 %v6802, %v6908
        %v6932 = vsub.f32 %v6803, %v6909
        %v6933 = vsub.f32 %v6804, %v6909
        %v6934 = vmul.f32 %v6918, %v6918
        %v6935 = vmul.f32 %v6919, %v6919
        %v6936 = vmul.f32 %v6920, %v6920
        %v6937 = vmul.f32 %v6921, %v6921
        %v6938 = vmul.f32 %v6922, %v6922
        %v6939 = vmul.f32 %v6923, %v6923
        %v6940 = vmul.f32 %v6924, %v6924
        %v6941 = vmul.f32 %v6925, %v6925
        %v6942 = vmul.f32 %v6926, %v6926
        %v6943 = vmul.f32 %v6927, %v6927
        %v6944 = vmul.f32 %v6928, %v6928
        %v6945 = vmul.f32 %v6929, %v6929
        %v6946 = vmul.f32 %v6930, %v6930
        %v6947 = vmul.f32 %v6931, %v6931
        %v6948 = vmul.f32 %v6932, %v6932
        %v6949 = vmul.f32 %v6933, %v6933
        %v6950 = vsel %vm1168, %v6934, 0.0
        %v6951 = vsel %vm1168, %v6935, 0.0
        %v6952 = vadd.f32 %v6950, %v6951
        %v6953 = vrot.slane %v6952, 4
        %v6954 = vadd.f32 %v6952, %v6953
        %v6955 = vrot.slane %v6954, 2
        %v6956 = vadd.f32 %v6954, %v6955
        %v6957 = vrot.slane %v6956, 1
        %v6958 = vadd.f32 %v6956, %v6957
        %v6959 = vsel %vm1168, %v6936, 0.0
        %v6960 = vsel %vm1168, %v6937, 0.0
        %v6961 = vadd.f32 %v6959, %v6960
        %v6962 = vrot.slane %v6961, 4
        %v6963 = vadd.f32 %v6961, %v6962
        %v6964 = vrot.slane %v6963, 2
        %v6965 = vadd.f32 %v6963, %v6964
        %v6966 = vrot.slane %v6965, 1
        %v6967 = vadd.f32 %v6965, %v6966
        %v6968 = vsel %vm1168, %v6938, 0.0
        %v6969 = vsel %vm1168, %v6939, 0.0
        %v6970 = vadd.f32 %v6968, %v6969
        %v6971 = vrot.slane %v6970, 4
        %v6972 = vadd.f32 %v6970, %v6971
        %v6973 = vrot.slane %v6972, 2
        %v6974 = vadd.f32 %v6972, %v6973
        %v6975 = vrot.slane %v6974, 1
        %v6976 = vadd.f32 %v6974, %v6975
        %v6977 = vsel %vm1168, %v6940, 0.0
        %v6978 = vsel %vm1168, %v6941, 0.0
        %v6979 = vadd.f32 %v6977, %v6978
        %v6980 = vrot.slane %v6979, 4
        %v6981 = vadd.f32 %v6979, %v6980
        %v6982 = vrot.slane %v6981, 2
        %v6983 = vadd.f32 %v6981, %v6982
        %v6984 = vrot.slane %v6983, 1
        %v6985 = vadd.f32 %v6983, %v6984
        %v6986 = vsel %vm1168, %v6942, 0.0
        %v6987 = vsel %vm1168, %v6943, 0.0
        %v6988 = vadd.f32 %v6986, %v6987
        %v6989 = vrot.slane %v6988, 4
        %v6990 = vadd.f32 %v6988, %v6989
        %v6991 = vrot.slane %v6990, 2
        %v6992 = vadd.f32 %v6990, %v6991
        %v6993 = vrot.slane %v6992, 1
        %v6994 = vadd.f32 %v6992, %v6993
        %v6995 = vsel %vm1168, %v6944, 0.0
        %v6996 = vsel %vm1168, %v6945, 0.0
        %v6997 = vadd.f32 %v6995, %v6996
        %v6998 = vrot.slane %v6997, 4
        %v6999 = vadd.f32 %v6997, %v6998
        %v7000 = vrot.slane %v6999, 2
        %v7001 = vadd.f32 %v6999, %v7000
        %v7002 = vrot.slane %v7001, 1
        %v7003 = vadd.f32 %v7001, %v7002
        %v7004 = vsel %vm1168, %v6946, 0.0
        %v7005 = vsel %vm1168, %v6947, 0.0
        %v7006 = vadd.f32 %v7004, %v7005
        %v7007 = vrot.slane %v7006, 4
        %v7008 = vadd.f32 %v7006, %v7007
        %v7009 = vrot.slane %v7008, 2
        %v7010 = vadd.f32 %v7008, %v7009
        %v7011 = vrot.slane %v7010, 1
        %v7012 = vadd.f32 %v7010, %v7011
        %v7013 = vsel %vm1168, %v6948, 0.0
        %v7014 = vsel %vm1168, %v6949, 0.0
        %v7015 = vadd.f32 %v7013, %v7014
        %v7016 = vrot.slane %v7015, 4
        %v7017 = vadd.f32 %v7015, %v7016
        %v7018 = vrot.slane %v7017, 2
        %v7019 = vadd.f32 %v7017, %v7018
        %v7020 = vrot.slane %v7019, 1
        %v7021 = vadd.f32 %v7019, %v7020
        %v7022 = vmul.f32 %v6958, 0.0625
        %v7023 = vmul.f32 %v6967, 0.0625
        %v7024 = vmul.f32 %v6976, 0.0625
        %v7025 = vmul.f32 %v6985, 0.0625
        %v7026 = vmul.f32 %v6994, 0.0625
        %v7027 = vmul.f32 %v7003, 0.0625
        %v7028 = vmul.f32 %v7012, 0.0625
        %v7029 = vmul.f32 %v7021, 0.0625
        %v7030 = vld [vmem:[#allocation20] sm:$0x1]
        %v7032 = vperm.slane %v7030, 0
        %v7034 = vmul.f32 %v7032, %v6918
        %v7035 = vmul.f32 %v7032, %v6919
        %v7036 = vmul.f32 %v7032, %v6920
        %v7037 = vmul.f32 %v7032, %v6921
        %v7038 = vmul.f32 %v7032, %v6922
        %v7039 = vmul.f32 %v7032, %v6923
        %v7040 = vmul.f32 %v7032, %v6924
        %v7041 = vmul.f32 %v7032, %v6925
        %v7042 = vmul.f32 %v7032, %v6926
        %v7043 = vmul.f32 %v7032, %v6927
        %v7044 = vmul.f32 %v7032, %v6928
        %v7045 = vmul.f32 %v7032, %v6929
        %v7046 = vmul.f32 %v7032, %v6930
        %v7047 = vmul.f32 %v7032, %v6931
        %v7048 = vmul.f32 %v7032, %v6932
        %v7049 = vmul.f32 %v7032, %v6933
        %v7050 = vadd.f32 %v7022, 1e-05
        %v7051 = vadd.f32 %v7023, 1e-05
        %v7052 = vadd.f32 %v7024, 1e-05
        %v7053 = vadd.f32 %v7025, 1e-05
        %v7054 = vadd.f32 %v7026, 1e-05
        %v7055 = vadd.f32 %v7027, 1e-05
        %v7056 = vadd.f32 %v7028, 1e-05
        %v7057 = vadd.f32 %v7029, 1e-05
        %v7058 = vrsqrt.pop %v7050
        %v7059 = vmul.f32 %v7058, %v7050
        %v7060 = vmul.f32 %v7059, %v7058
        %v7061 = vmul.f32 0.5, %v7060
        %v7062 = vsub.f32 1.5, %v7061
        %v7063 = vmul.f32 %v7058, %v7062
        %vm7064 = vweird.f32 %v7050
        %vm7065 = vweird.f32 %v7058
        %vm7066 = vmor %vm7064, %vm7065
        %v7067 = vsel %vm7066, %v7058, %v7063
        %v7068 = vrsqrt.pop %v7051
        %v7069 = vmul.f32 %v7068, %v7051
        %v7070 = vmul.f32 %v7069, %v7068
        %v7071 = vmul.f32 0.5, %v7070
        %v7072 = vsub.f32 1.5, %v7071
        %v7073 = vmul.f32 %v7068, %v7072
        %vm7074 = vweird.f32 %v7051
        %vm7075 = vweird.f32 %v7068
        %vm7076 = vmor %vm7074, %vm7075
        %v7077 = vsel %vm7076, %v7068, %v7073
        %v7078 = vrsqrt.pop %v7052
        %v7079 = vmul.f32 %v7078, %v7052
        %v7080 = vmul.f32 %v7079, %v7078
        %v7081 = vmul.f32 0.5, %v7080
        %v7082 = vsub.f32 1.5, %v7081
        %v7083 = vmul.f32 %v7078, %v7082
        %vm7084 = vweird.f32 %v7052
        %vm7085 = vweird.f32 %v7078
        %vm7086 = vmor %vm7084, %vm7085
        %v7087 = vsel %vm7086, %v7078, %v7083
        %v7088 = vrsqrt.pop %v7053
        %v7089 = vmul.f32 %v7088, %v7053
        %v7090 = vmul.f32 %v7089, %v7088
        %v7091 = vmul.f32 0.5, %v7090
        %v7092 = vsub.f32 1.5, %v7091
        %v7093 = vmul.f32 %v7088, %v7092
        %vm7094 = vweird.f32 %v7053
        %vm7095 = vweird.f32 %v7088
        %vm7096 = vmor %vm7094, %vm7095
        %v7097 = vsel %vm7096, %v7088, %v7093
        %v7098 = vrsqrt.pop %v7054
        %v7099 = vmul.f32 %v7098, %v7054
        %v7100 = vmul.f32 %v7099, %v7098
        %v7101 = vmul.f32 0.5, %v7100
        %v7102 = vsub.f32 1.5, %v7101
        %v7103 = vmul.f32 %v7098, %v7102
        %vm7104 = vweird.f32 %v7054
        %vm7105 = vweird.f32 %v7098
        %vm7106 = vmor %vm7104, %vm7105
        %v7107 = vsel %vm7106, %v7098, %v7103
        %v7108 = vrsqrt.pop %v7055
        %v7109 = vmul.f32 %v7108, %v7055
        %v7110 = vmul.f32 %v7109, %v7108
        %v7111 = vmul.f32 0.5, %v7110
        %v7112 = vsub.f32 1.5, %v7111
        %v7113 = vmul.f32 %v7108, %v7112
        %vm7114 = vweird.f32 %v7055
        %vm7115 = vweird.f32 %v7108
        %vm7116 = vmor %vm7114, %vm7115
        %v7117 = vsel %vm7116, %v7108, %v7113
        %v7118 = vrsqrt.pop %v7056
        %v7119 = vmul.f32 %v7118, %v7056
        %v7120 = vmul.f32 %v7119, %v7118
        %v7121 = vmul.f32 0.5, %v7120
        %v7122 = vsub.f32 1.5, %v7121
        %v7123 = vmul.f32 %v7118, %v7122
        %vm7124 = vweird.f32 %v7056
        %vm7125 = vweird.f32 %v7118
        %vm7126 = vmor %vm7124, %vm7125
        %v7127 = vsel %vm7126, %v7118, %v7123
        %v7128 = vrsqrt.pop %v7057
        %v7129 = vmul.f32 %v7128, %v7057
        %v7130 = vmul.f32 %v7129, %v7128
        %v7131 = vmul.f32 0.5, %v7130
        %v7132 = vsub.f32 1.5, %v7131
        %v7133 = vmul.f32 %v7128, %v7132
        %vm7134 = vweird.f32 %v7057
        %vm7135 = vweird.f32 %v7128
        %vm7136 = vmor %vm7134, %vm7135
        %v7137 = vsel %vm7136, %v7128, %v7133
        %v7138 = vmul.f32 %v7034, %v7067
        %v7139 = vmul.f32 %v7035, %v7067
        %v7140 = vmul.f32 %v7036, %v7077
        %v7141 = vmul.f32 %v7037, %v7077
        %v7142 = vmul.f32 %v7038, %v7087
        %v7143 = vmul.f32 %v7039, %v7087
        %v7144 = vmul.f32 %v7040, %v7097
        %v7145 = vmul.f32 %v7041, %v7097
        %v7146 = vmul.f32 %v7042, %v7107
        %v7147 = vmul.f32 %v7043, %v7107
        %v7148 = vmul.f32 %v7044, %v7117
        %v7149 = vmul.f32 %v7045, %v7117
        %v7150 = vmul.f32 %v7046, %v7127
        %v7151 = vmul.f32 %v7047, %v7127
        %v7152 = vmul.f32 %v7048, %v7137
        %v7153 = vmul.f32 %v7049, %v7137
        %v7154 = vld [vmem:[#allocation22] sm:$0x1]
        %v7156 = vperm.slane %v7154, 0
        %v7158 = vadd.f32 %v7138, %v7156
        %v7159 = vadd.f32 %v7139, %v7156
        %v7160 = vadd.f32 %v7140, %v7156
        %v7161 = vadd.f32 %v7141, %v7156
        %v7162 = vadd.f32 %v7142, %v7156
        %v7163 = vadd.f32 %v7143, %v7156
        %v7164 = vadd.f32 %v7144, %v7156
        %v7165 = vadd.f32 %v7145, %v7156
        %v7166 = vadd.f32 %v7146, %v7156
        %v7167 = vadd.f32 %v7147, %v7156
        %v7168 = vadd.f32 %v7148, %v7156
        %v7169 = vadd.f32 %v7149, %v7156
        %v7170 = vadd.f32 %v7150, %v7156
        %v7171 = vadd.f32 %v7151, %v7156
        %v7172 = vadd.f32 %v7152, %v7156
        %v7173 = vadd.f32 %v7153, %v7156
        %v7174 = vadd.f32 %v7158, %v4112
        %v7175 = vadd.f32 %v7159, %v4113
        %v7176 = vadd.f32 %v7160, %v4114
        %v7177 = vadd.f32 %v7161, %v4115
        %v7178 = vadd.f32 %v7162, %v4116
        %v7179 = vadd.f32 %v7163, %v4117
        %v7180 = vadd.f32 %v7164, %v4118
        %v7181 = vadd.f32 %v7165, %v4119
        %v7182 = vadd.f32 %v7166, %v4120
        %v7183 = vadd.f32 %v7167, %v4121
        %v7184 = vadd.f32 %v7168, %v4122
        %v7185 = vadd.f32 %v7169, %v4123
        %v7186 = vadd.f32 %v7170, %v4124
        %v7187 = vadd.f32 %v7171, %v4125
        %v7188 = vadd.f32 %v7172, %v4126
        %v7189 = vadd.f32 %v7173, %v4127
        %v7190 = vmax.f32 %v7174, 0.0
        %v7191 = vmax.f32 %v7175, 0.0
        %v7192 = vmax.f32 %v7176, 0.0
        %v7193 = vmax.f32 %v7177, 0.0
        %v7194 = vmax.f32 %v7178, 0.0
        %v7195 = vmax.f32 %v7179, 0.0
        %v7196 = vmax.f32 %v7180, 0.0
        %v7197 = vmax.f32 %v7181, 0.0
        %v7198 = vmax.f32 %v7182, 0.0
        %v7199 = vmax.f32 %v7183, 0.0
        %v7200 = vmax.f32 %v7184, 0.0
        %v7201 = vmax.f32 %v7185, 0.0
        %v7202 = vmax.f32 %v7186, 0.0
        %v7203 = vmax.f32 %v7187, 0.0
        %v7204 = vmax.f32 %v7188, 0.0
        %v7205 = vmax.f32 %v7189, 0.0
        %v7206 = vpack.c.bf16 %v7191, %v7190
        %v7207 = vpack.c.bf16 %v7193, %v7192
        %v7208 = vpack.c.bf16 %v7195, %v7194
        %v7209 = vpack.c.bf16 %v7197, %v7196
        %v7210 = vpack.c.bf16 %v7199, %v7198
        %v7211 = vpack.c.bf16 %v7201, %v7200
        %v7212 = vpack.c.bf16 %v7203, %v7202
        %v7213 = vpack.c.bf16 %v7205, %v7204
        %v7214 = vld [vmem:[#allocation25] sm:$0xff]
        %v7215 = vld [vmem:[#allocation25 + $0x8] sm:$0xff]
        %v7216 = vld [vmem:[#allocation25 + $0x10] sm:$0xff]
        %v7217 = vld [vmem:[#allocation25 + $0x18] sm:$0xff]
        %v7218 = vpack.c.bf16 %v7215, %v7214
        %v7219 = vpack.c.bf16 %v7217, %v7216
        %v7221 = vsel %vm1168, %v7206, 0
        %v7224 = vsel %vm1168, %v7207, 0
        %v7227 = vsel %vm1168, %v7208, 0
        %v7230 = vsel %vm1168, %v7209, 0
        %v7233 = vsel %vm1168, %v7210, 0
        %v7236 = vsel %vm1168, %v7211, 0
        %v7239 = vsel %vm1168, %v7212, 0
        %v7242 = vsel %vm1168, %v7213, 0
        %7244 = vmatpush.bf16.msra.mxu0 0
        %7245 = vmatpush.bf16.msra.mxu0 0
        %7246 = vmatpush.bf16.msra.mxu0 0
        %7247 = vmatpush.bf16.msra.mxu0 0
        %7248 = vmatpush.bf16.msra.mxu0 0
        %7249 = vmatpush.bf16.msra.mxu0 0
        %7250 = vmatpush.bf16.msra.mxu0 %v7219
        %7251 = vmatpush.bf16.msra.mxu0 %v7218
        %7252 = vmatmul.bf16.gmra.mxu0 %v7221
        %v7253 = vpop.f32.mrf.mxu0
        %v7254 = vadd.f32 0.0, %v7253
        %v7255 = vpop.f32.mrf.mxu0
        %v7256 = vadd.f32 0.0, %v7255
        %7257 = vmatmul.bf16.gmra.mxu0 %v7224
        %v7258 = vpop.f32.mrf.mxu0
        %v7259 = vadd.f32 0.0, %v7258
        %v7260 = vpop.f32.mrf.mxu0
        %v7261 = vadd.f32 0.0, %v7260
        %7262 = vmatmul.bf16.gmra.mxu0 %v7227
        %v7263 = vpop.f32.mrf.mxu0
        %v7264 = vadd.f32 0.0, %v7263
        %v7265 = vpop.f32.mrf.mxu0
        %v7266 = vadd.f32 0.0, %v7265
        %7267 = vmatmul.bf16.gmra.mxu0 %v7230
        %v7268 = vpop.f32.mrf.mxu0
        %v7269 = vadd.f32 0.0, %v7268
        %v7270 = vpop.f32.mrf.mxu0
        %v7271 = vadd.f32 0.0, %v7270
        %7272 = vmatmul.bf16.gmra.mxu0 %v7233
        %v7273 = vpop.f32.mrf.mxu0
        %v7274 = vadd.f32 0.0, %v7273
        %v7275 = vpop.f32.mrf.mxu0
        %v7276 = vadd.f32 0.0, %v7275
        %7277 = vmatmul.bf16.gmra.mxu0 %v7236
        %v7278 = vpop.f32.mrf.mxu0
        %v7279 = vadd.f32 0.0, %v7278
        %v7280 = vpop.f32.mrf.mxu0
        %v7281 = vadd.f32 0.0, %v7280
        %7282 = vmatmul.bf16.gmra.mxu0 %v7239
        %v7283 = vpop.f32.mrf.mxu0
        %v7284 = vadd.f32 0.0, %v7283
        %v7285 = vpop.f32.mrf.mxu0
        %v7286 = vadd.f32 0.0, %v7285
        %7287 = vmatmul.bf16.gmra.mxu0 %v7242
        %v7288 = vpop.f32.mrf.mxu0
        %v7289 = vadd.f32 0.0, %v7288
        %v7290 = vpop.f32.mrf.mxu0
        %v7291 = vadd.f32 0.0, %v7290
        %7292 = vdwg.mxu0
        %v7293 = vpack.c.bf16 %v7254, %v7254
        %v7294 = vpack.c.bf16 %v7256, %v7256
        %v7295 = vpack.c.bf16 %v7259, %v7259
        %v7296 = vpack.c.bf16 %v7261, %v7261
        %v7297 = vpack.c.bf16 %v7264, %v7264
        %v7298 = vpack.c.bf16 %v7266, %v7266
        %v7299 = vpack.c.bf16 %v7269, %v7269
        %v7300 = vpack.c.bf16 %v7271, %v7271
        %v7301 = vpack.c.bf16 %v7274, %v7274
        %v7302 = vpack.c.bf16 %v7276, %v7276
        %v7303 = vpack.c.bf16 %v7279, %v7279
        %v7304 = vpack.c.bf16 %v7281, %v7281
        %v7305 = vpack.c.bf16 %v7284, %v7284
        %v7306 = vpack.c.bf16 %v7286, %v7286
        %v7307 = vpack.c.bf16 %v7289, %v7289
        %v7308 = vpack.c.bf16 %v7291, %v7291
        %v7309 = vld [vmem:[%s18] sm:$0xf]
        %v7310 = vpack.c.bf16 %v7309, %v7309
        %v7311 = vld [vmem:[%s19] sm:$0xf]
        %v7312 = vpack.c.bf16 %v7311, %v7311
        %v7315 = vunpack.c.l.b16 %v7293
        %v7316 = vunpack.c.l.b16 %v7294
        %v7317 = vpack.c.b16 %v7316, %v7315
        %v7319 = vsel %vm1168, %v7310, 0
        %v7322 = vsel %vm1168, %v7317, 0
        %7324 = vmatpush.bf16.xpose.msra.mxu0 0
        %7325 = vmatpush.bf16.xpose.msra.mxu0 0
        %7326 = vmatpush.bf16.xpose.msra.mxu0 0
        %7327 = vmatpush.bf16.xpose.msra.mxu0 0
        %7328 = vmatpush.bf16.xpose.msra.mxu0 0
        %7329 = vmatpush.bf16.xpose.msra.mxu0 0
        %7330 = vmatpush.bf16.xpose.msra.mxu0 0
        %7331 = vmatpush.bf16.xpose.msra.mxu0 %v7322
        %7332 = vmatmul.bf16.gmra.mxu0 %v7319
        %v7333 = vpop.f32.mrf.mxu0
        %v7334 = vadd.f32 0.0, %v7333
        %v7335 = vpop.f32.mrf.mxu0
        %7336 = vdwg.mxu0
        %v7339 = vunpack.c.l.b16 %v7295
        %v7340 = vunpack.c.l.b16 %v7296
        %v7341 = vpack.c.b16 %v7340, %v7339
        %v7343 = vsel %vm1168, %v7341, 0
        %7345 = vmatpush.bf16.xpose.msra.mxu0 0
        %7346 = vmatpush.bf16.xpose.msra.mxu0 0
        %7347 = vmatpush.bf16.xpose.msra.mxu0 0
        %7348 = vmatpush.bf16.xpose.msra.mxu0 0
        %7349 = vmatpush.bf16.xpose.msra.mxu0 0
        %7350 = vmatpush.bf16.xpose.msra.mxu0 0
        %7351 = vmatpush.bf16.xpose.msra.mxu0 0
        %7352 = vmatpush.bf16.xpose.msra.mxu0 %v7343
        %7353 = vmatmul.bf16.gmra.mxu0 %v7319
        %v7354 = vpop.f32.mrf.mxu0
        %v7355 = vadd.f32 0.0, %v7354
        %v7356 = vpop.f32.mrf.mxu0
        %7357 = vdwg.mxu0
        %v7360 = vunpack.c.l.b16 %v7297
        %v7361 = vunpack.c.l.b16 %v7298
        %v7362 = vpack.c.b16 %v7361, %v7360
        %v7364 = vsel %vm1168, %v7362, 0
        %7366 = vmatpush.bf16.xpose.msra.mxu0 0
        %7367 = vmatpush.bf16.xpose.msra.mxu0 0
        %7368 = vmatpush.bf16.xpose.msra.mxu0 0
        %7369 = vmatpush.bf16.xpose.msra.mxu0 0
        %7370 = vmatpush.bf16.xpose.msra.mxu0 0
        %7371 = vmatpush.bf16.xpose.msra.mxu0 0
        %7372 = vmatpush.bf16.xpose.msra.mxu0 0
        %7373 = vmatpush.bf16.xpose.msra.mxu0 %v7364
        %7374 = vmatmul.bf16.gmra.mxu0 %v7319
        %v7375 = vpop.f32.mrf.mxu0
        %v7376 = vadd.f32 0.0, %v7375
        %v7377 = vpop.f32.mrf.mxu0
        %7378 = vdwg.mxu0
        %v7381 = vunpack.c.l.b16 %v7299
        %v7382 = vunpack.c.l.b16 %v7300
        %v7383 = vpack.c.b16 %v7382, %v7381
        %v7385 = vsel %vm1168, %v7383, 0
        %7387 = vmatpush.bf16.xpose.msra.mxu0 0
        %7388 = vmatpush.bf16.xpose.msra.mxu0 0
        %7389 = vmatpush.bf16.xpose.msra.mxu0 0
        %7390 = vmatpush.bf16.xpose.msra.mxu0 0
        %7391 = vmatpush.bf16.xpose.msra.mxu0 0
        %7392 = vmatpush.bf16.xpose.msra.mxu0 0
        %7393 = vmatpush.bf16.xpose.msra.mxu0 0
        %7394 = vmatpush.bf16.xpose.msra.mxu0 %v7385
        %7395 = vmatmul.bf16.gmra.mxu0 %v7319
        %v7396 = vpop.f32.mrf.mxu0
        %v7397 = vadd.f32 0.0, %v7396
        %v7398 = vpop.f32.mrf.mxu0
        %7399 = vdwg.mxu0
        %v7402 = vunpack.c.l.b16 %v7301
        %v7403 = vunpack.c.l.b16 %v7302
        %v7404 = vpack.c.b16 %v7403, %v7402
        %v7406 = vsel %vm1168, %v7404, 0
        %7408 = vmatpush.bf16.xpose.msra.mxu0 0
        %7409 = vmatpush.bf16.xpose.msra.mxu0 0
        %7410 = vmatpush.bf16.xpose.msra.mxu0 0
        %7411 = vmatpush.bf16.xpose.msra.mxu0 0
        %7412 = vmatpush.bf16.xpose.msra.mxu0 0
        %7413 = vmatpush.bf16.xpose.msra.mxu0 0
        %7414 = vmatpush.bf16.xpose.msra.mxu0 0
        %7415 = vmatpush.bf16.xpose.msra.mxu0 %v7406
        %7416 = vmatmul.bf16.gmra.mxu0 %v7319
        %v7417 = vpop.f32.mrf.mxu0
        %v7418 = vadd.f32 0.0, %v7417
        %v7419 = vpop.f32.mrf.mxu0
        %7420 = vdwg.mxu0
        %v7423 = vunpack.c.l.b16 %v7303
        %v7424 = vunpack.c.l.b16 %v7304
        %v7425 = vpack.c.b16 %v7424, %v7423
        %v7427 = vsel %vm1168, %v7425, 0
        %7429 = vmatpush.bf16.xpose.msra.mxu0 0
        %7430 = vmatpush.bf16.xpose.msra.mxu0 0
        %7431 = vmatpush.bf16.xpose.msra.mxu0 0
        %7432 = vmatpush.bf16.xpose.msra.mxu0 0
        %7433 = vmatpush.bf16.xpose.msra.mxu0 0
        %7434 = vmatpush.bf16.xpose.msra.mxu0 0
        %7435 = vmatpush.bf16.xpose.msra.mxu0 0
        %7436 = vmatpush.bf16.xpose.msra.mxu0 %v7427
        %7437 = vmatmul.bf16.gmra.mxu0 %v7319
        %v7438 = vpop.f32.mrf.mxu0
        %v7439 = vadd.f32 0.0, %v7438
        %v7440 = vpop.f32.mrf.mxu0
        %7441 = vdwg.mxu0
        %v7444 = vunpack.c.l.b16 %v7305
        %v7445 = vunpack.c.l.b16 %v7306
        %v7446 = vpack.c.b16 %v7445, %v7444
        %v7448 = vsel %vm1168, %v7446, 0
        %7450 = vmatpush.bf16.xpose.msra.mxu0 0
        %7451 = vmatpush.bf16.xpose.msra.mxu0 0
        %7452 = vmatpush.bf16.xpose.msra.mxu0 0
        %7453 = vmatpush.bf16.xpose.msra.mxu0 0
        %7454 = vmatpush.bf16.xpose.msra.mxu0 0
        %7455 = vmatpush.bf16.xpose.msra.mxu0 0
        %7456 = vmatpush.bf16.xpose.msra.mxu0 0
        %7457 = vmatpush.bf16.xpose.msra.mxu0 %v7448
        %7458 = vmatmul.bf16.gmra.mxu0 %v7319
        %v7459 = vpop.f32.mrf.mxu0
        %v7460 = vadd.f32 0.0, %v7459
        %v7461 = vpop.f32.mrf.mxu0
        %7462 = vdwg.mxu0
        %v7465 = vunpack.c.l.b16 %v7307
        %v7466 = vunpack.c.l.b16 %v7308
        %v7467 = vpack.c.b16 %v7466, %v7465
        %v7469 = vsel %vm1168, %v7467, 0
        %7471 = vmatpush.bf16.xpose.msra.mxu0 0
        %7472 = vmatpush.bf16.xpose.msra.mxu0 0
        %7473 = vmatpush.bf16.xpose.msra.mxu0 0
        %7474 = vmatpush.bf16.xpose.msra.mxu0 0
        %7475 = vmatpush.bf16.xpose.msra.mxu0 0
        %7476 = vmatpush.bf16.xpose.msra.mxu0 0
        %7477 = vmatpush.bf16.xpose.msra.mxu0 0
        %7478 = vmatpush.bf16.xpose.msra.mxu0 %v7469
        %7479 = vmatmul.bf16.gmra.mxu0 %v7319
        %v7480 = vpop.f32.mrf.mxu0
        %v7481 = vadd.f32 0.0, %v7480
        %v7482 = vpop.f32.mrf.mxu0
        %7483 = vdwg.mxu0
        %v7485 = vsel %vm1168, %v7312, 0
        %7487 = vmatpush.bf16.xpose.msra.mxu0 0
        %7488 = vmatpush.bf16.xpose.msra.mxu0 0
        %7489 = vmatpush.bf16.xpose.msra.mxu0 0
        %7490 = vmatpush.bf16.xpose.msra.mxu0 0
        %7491 = vmatpush.bf16.xpose.msra.mxu0 0
        %7492 = vmatpush.bf16.xpose.msra.mxu0 0
        %7493 = vmatpush.bf16.xpose.msra.mxu0 0
        %7494 = vmatpush.bf16.xpose.msra.mxu0 %v7322
        %7495 = vmatmul.bf16.gmra.mxu0 %v7485
        %v7496 = vpop.f32.mrf.mxu0
        %v7497 = vadd.f32 0.0, %v7496
        %v7498 = vpop.f32.mrf.mxu0
        %7499 = vdwg.mxu0
        %7500 = vmatpush.bf16.xpose.msra.mxu0 0
        %7501 = vmatpush.bf16.xpose.msra.mxu0 0
        %7502 = vmatpush.bf16.xpose.msra.mxu0 0
        %7503 = vmatpush.bf16.xpose.msra.mxu0 0
        %7504 = vmatpush.bf16.xpose.msra.mxu0 0
        %7505 = vmatpush.bf16.xpose.msra.mxu0 0
        %7506 = vmatpush.bf16.xpose.msra.mxu0 0
        %7507 = vmatpush.bf16.xpose.msra.mxu0 %v7343
        %7508 = vmatmul.bf16.gmra.mxu0 %v7485
        %v7509 = vpop.f32.mrf.mxu0
        %v7510 = vadd.f32 0.0, %v7509
        %v7511 = vpop.f32.mrf.mxu0
        %7512 = vdwg.mxu0
        %7513 = vmatpush.bf16.xpose.msra.mxu0 0
        %7514 = vmatpush.bf16.xpose.msra.mxu0 0
        %7515 = vmatpush.bf16.xpose.msra.mxu0 0
        %7516 = vmatpush.bf16.xpose.msra.mxu0 0
        %7517 = vmatpush.bf16.xpose.msra.mxu0 0
        %7518 = vmatpush.bf16.xpose.msra.mxu0 0
        %7519 = vmatpush.bf16.xpose.msra.mxu0 0
        %7520 = vmatpush.bf16.xpose.msra.mxu0 %v7364
        %7521 = vmatmul.bf16.gmra.mxu0 %v7485
        %v7522 = vpop.f32.mrf.mxu0
        %v7523 = vadd.f32 0.0, %v7522
        %v7524 = vpop.f32.mrf.mxu0
        %7525 = vdwg.mxu0
        %7526 = vmatpush.bf16.xpose.msra.mxu0 0
        %7527 = vmatpush.bf16.xpose.msra.mxu0 0
        %7528 = vmatpush.bf16.xpose.msra.mxu0 0
        %7529 = vmatpush.bf16.xpose.msra.mxu0 0
        %7530 = vmatpush.bf16.xpose.msra.mxu0 0
        %7531 = vmatpush.bf16.xpose.msra.mxu0 0
        %7532 = vmatpush.bf16.xpose.msra.mxu0 0
        %7533 = vmatpush.bf16.xpose.msra.mxu0 %v7385
        %7534 = vmatmul.bf16.gmra.mxu0 %v7485
        %v7535 = vpop.f32.mrf.mxu0
        %v7536 = vadd.f32 0.0, %v7535
        %v7537 = vpop.f32.mrf.mxu0
        %7538 = vdwg.mxu0
        %7539 = vmatpush.bf16.xpose.msra.mxu0 0
        %7540 = vmatpush.bf16.xpose.msra.mxu0 0
        %7541 = vmatpush.bf16.xpose.msra.mxu0 0
        %7542 = vmatpush.bf16.xpose.msra.mxu0 0
        %7543 = vmatpush.bf16.xpose.msra.mxu0 0
        %7544 = vmatpush.bf16.xpose.msra.mxu0 0
        %7545 = vmatpush.bf16.xpose.msra.mxu0 0
        %7546 = vmatpush.bf16.xpose.msra.mxu0 %v7406
        %7547 = vmatmul.bf16.gmra.mxu0 %v7485
        %v7548 = vpop.f32.mrf.mxu0
        %v7549 = vadd.f32 0.0, %v7548
        %v7550 = vpop.f32.mrf.mxu0
        %7551 = vdwg.mxu0
        %7552 = vmatpush.bf16.xpose.msra.mxu0 0
        %7553 = vmatpush.bf16.xpose.msra.mxu0 0
        %7554 = vmatpush.bf16.xpose.msra.mxu0 0
        %7555 = vmatpush.bf16.xpose.msra.mxu0 0
        %7556 = vmatpush.bf16.xpose.msra.mxu0 0
        %7557 = vmatpush.bf16.xpose.msra.mxu0 0
        %7558 = vmatpush.bf16.xpose.msra.mxu0 0
        %7559 = vmatpush.bf16.xpose.msra.mxu0 %v7427
        %7560 = vmatmul.bf16.gmra.mxu0 %v7485
        %v7561 = vpop.f32.mrf.mxu0
        %v7562 = vadd.f32 0.0, %v7561
        %v7563 = vpop.f32.mrf.mxu0
        %7564 = vdwg.mxu0
        %7565 = vmatpush.bf16.xpose.msra.mxu0 0
        %7566 = vmatpush.bf16.xpose.msra.mxu0 0
        %7567 = vmatpush.bf16.xpose.msra.mxu0 0
        %7568 = vmatpush.bf16.xpose.msra.mxu0 0
        %7569 = vmatpush.bf16.xpose.msra.mxu0 0
        %7570 = vmatpush.bf16.xpose.msra.mxu0 0
        %7571 = vmatpush.bf16.xpose.msra.mxu0 0
        %7572 = vmatpush.bf16.xpose.msra.mxu0 %v7448
        %7573 = vmatmul.bf16.gmra.mxu0 %v7485
        %v7574 = vpop.f32.mrf.mxu0
        %v7575 = vadd.f32 0.0, %v7574
        %v7576 = vpop.f32.mrf.mxu0
        %7577 = vdwg.mxu0
        %7578 = vmatpush.bf16.xpose.msra.mxu0 0
        %7579 = vmatpush.bf16.xpose.msra.mxu0 0
        %7580 = vmatpush.bf16.xpose.msra.mxu0 0
        %7581 = vmatpush.bf16.xpose.msra.mxu0 0
        %7582 = vmatpush.bf16.xpose.msra.mxu0 0
        %7583 = vmatpush.bf16.xpose.msra.mxu0 0
        %7584 = vmatpush.bf16.xpose.msra.mxu0 0
        %7585 = vmatpush.bf16.xpose.msra.mxu0 %v7469
        %7586 = vmatmul.bf16.gmra.mxu0 %v7485
        %v7587 = vpop.f32.mrf.mxu0
        %v7588 = vadd.f32 0.0, %v7587
        %v7589 = vpop.f32.mrf.mxu0
        %7590 = vdwg.mxu0
        %v7591 = vperm.slane %v7334, 0
        %v7592 = vlaneseq
        %v7593 = vshrl.u32 %v7592, 7
        %7595 = vset.pattern.permute.xlu0 %v7593
        %7596 = vperm.xlu0 %7595, %v7591
        %v7597 = vpop.permute.xlu0 %7596
        %v7598 = vlaneseq
        %v7599 = vshrl.u32 %v7598, 7
        %v7600 = vadd.s32 %v7599, 8
        %7601 = vset.pattern.permute.xlu0 %v7600
        %7602 = vperm.xlu0 %7601, %v7591
        %v7603 = vpop.permute.xlu0 %7602
        %v7604 = vperm.slane %v7334, 1
        %v7605 = vlaneseq
        %v7606 = vshrl.u32 %v7605, 7
        %7608 = vset.pattern.permute.xlu0 %v7606
        %7609 = vperm.xlu0 %7608, %v7604
        %v7610 = vpop.permute.xlu0 %7609
        %v7611 = vlaneseq
        %v7612 = vshrl.u32 %v7611, 7
        %v7613 = vadd.s32 %v7612, 8
        %7614 = vset.pattern.permute.xlu0 %v7613
        %7615 = vperm.xlu0 %7614, %v7604
        %v7616 = vpop.permute.xlu0 %7615
        %v7617 = vperm.slane %v7334, 2
        %v7618 = vlaneseq
        %v7619 = vshrl.u32 %v7618, 7
        %7621 = vset.pattern.permute.xlu0 %v7619
        %7622 = vperm.xlu0 %7621, %v7617
        %v7623 = vpop.permute.xlu0 %7622
        %v7624 = vlaneseq
        %v7625 = vshrl.u32 %v7624, 7
        %v7626 = vadd.s32 %v7625, 8
        %7627 = vset.pattern.permute.xlu0 %v7626
        %7628 = vperm.xlu0 %7627, %v7617
        %v7629 = vpop.permute.xlu0 %7628
        %v7630 = vperm.slane %v7334, 3
        %v7631 = vlaneseq
        %v7632 = vshrl.u32 %v7631, 7
        %7634 = vset.pattern.permute.xlu0 %v7632
        %7635 = vperm.xlu0 %7634, %v7630
        %v7636 = vpop.permute.xlu0 %7635
        %v7637 = vlaneseq
        %v7638 = vshrl.u32 %v7637, 7
        %v7639 = vadd.s32 %v7638, 8
        %7640 = vset.pattern.permute.xlu0 %v7639
        %7641 = vperm.xlu0 %7640, %v7630
        %v7642 = vpop.permute.xlu0 %7641
        %v7643 = vperm.slane %v7355, 0
        %v7644 = vlaneseq
        %v7645 = vshrl.u32 %v7644, 7
        %7647 = vset.pattern.permute.xlu0 %v7645
        %7648 = vperm.xlu0 %7647, %v7643
        %v7649 = vpop.permute.xlu0 %7648
        %v7650 = vlaneseq
        %v7651 = vshrl.u32 %v7650, 7
        %v7652 = vadd.s32 %v7651, 8
        %7653 = vset.pattern.permute.xlu0 %v7652
        %7654 = vperm.xlu0 %7653, %v7643
        %v7655 = vpop.permute.xlu0 %7654
        %v7656 = vperm.slane %v7355, 1
        %v7657 = vlaneseq
        %v7658 = vshrl.u32 %v7657, 7
        %7660 = vset.pattern.permute.xlu0 %v7658
        %7661 = vperm.xlu0 %7660, %v7656
        %v7662 = vpop.permute.xlu0 %7661
        %v7663 = vlaneseq
        %v7664 = vshrl.u32 %v7663, 7
        %v7665 = vadd.s32 %v7664, 8
        %7666 = vset.pattern.permute.xlu0 %v7665
        %7667 = vperm.xlu0 %7666, %v7656
        %v7668 = vpop.permute.xlu0 %7667
        %v7669 = vperm.slane %v7355, 2
        %v7670 = vlaneseq
        %v7671 = vshrl.u32 %v7670, 7
        %7673 = vset.pattern.permute.xlu0 %v7671
        %7674 = vperm.xlu0 %7673, %v7669
        %v7675 = vpop.permute.xlu0 %7674
        %v7676 = vlaneseq
        %v7677 = vshrl.u32 %v7676, 7
        %v7678 = vadd.s32 %v7677, 8
        %7679 = vset.pattern.permute.xlu0 %v7678
        %7680 = vperm.xlu0 %7679, %v7669
        %v7681 = vpop.permute.xlu0 %7680
        %v7682 = vperm.slane %v7355, 3
        %v7683 = vlaneseq
        %v7684 = vshrl.u32 %v7683, 7
        %7686 = vset.pattern.permute.xlu0 %v7684
        %7687 = vperm.xlu0 %7686, %v7682
        %v7688 = vpop.permute.xlu0 %7687
        %v7689 = vlaneseq
        %v7690 = vshrl.u32 %v7689, 7
        %v7691 = vadd.s32 %v7690, 8
        %7692 = vset.pattern.permute.xlu0 %v7691
        %7693 = vperm.xlu0 %7692, %v7682
        %v7694 = vpop.permute.xlu0 %7693
        %v7695 = vperm.slane %v7376, 0
        %v7696 = vlaneseq
        %v7697 = vshrl.u32 %v7696, 7
        %7699 = vset.pattern.permute.xlu0 %v7697
        %7700 = vperm.xlu0 %7699, %v7695
        %v7701 = vpop.permute.xlu0 %7700
        %v7702 = vlaneseq
        %v7703 = vshrl.u32 %v7702, 7
        %v7704 = vadd.s32 %v7703, 8
        %7705 = vset.pattern.permute.xlu0 %v7704
        %7706 = vperm.xlu0 %7705, %v7695
        %v7707 = vpop.permute.xlu0 %7706
        %v7708 = vperm.slane %v7376, 1
        %v7709 = vlaneseq
        %v7710 = vshrl.u32 %v7709, 7
        %7712 = vset.pattern.permute.xlu0 %v7710
        %7713 = vperm.xlu0 %7712, %v7708
        %v7714 = vpop.permute.xlu0 %7713
        %v7715 = vlaneseq
        %v7716 = vshrl.u32 %v7715, 7
        %v7717 = vadd.s32 %v7716, 8
        %7718 = vset.pattern.permute.xlu0 %v7717
        %7719 = vperm.xlu0 %7718, %v7708
        %v7720 = vpop.permute.xlu0 %7719
        %v7721 = vperm.slane %v7376, 2
        %v7722 = vlaneseq
        %v7723 = vshrl.u32 %v7722, 7
        %7725 = vset.pattern.permute.xlu0 %v7723
        %7726 = vperm.xlu0 %7725, %v7721
        %v7727 = vpop.permute.xlu0 %7726
        %v7728 = vlaneseq
        %v7729 = vshrl.u32 %v7728, 7
        %v7730 = vadd.s32 %v7729, 8
        %7731 = vset.pattern.permute.xlu0 %v7730
        %7732 = vperm.xlu0 %7731, %v7721
        %v7733 = vpop.permute.xlu0 %7732
        %v7734 = vperm.slane %v7376, 3
        %v7735 = vlaneseq
        %v7736 = vshrl.u32 %v7735, 7
        %7738 = vset.pattern.permute.xlu0 %v7736
        %7739 = vperm.xlu0 %7738, %v7734
        %v7740 = vpop.permute.xlu0 %7739
        %v7741 = vlaneseq
        %v7742 = vshrl.u32 %v7741, 7
        %v7743 = vadd.s32 %v7742, 8
        %7744 = vset.pattern.permute.xlu0 %v7743
        %7745 = vperm.xlu0 %7744, %v7734
        %v7746 = vpop.permute.xlu0 %7745
        %v7747 = vperm.slane %v7397, 0
        %v7748 = vlaneseq
        %v7749 = vshrl.u32 %v7748, 7
        %7751 = vset.pattern.permute.xlu0 %v7749
        %7752 = vperm.xlu0 %7751, %v7747
        %v7753 = vpop.permute.xlu0 %7752
        %v7754 = vlaneseq
        %v7755 = vshrl.u32 %v7754, 7
        %v7756 = vadd.s32 %v7755, 8
        %7757 = vset.pattern.permute.xlu0 %v7756
        %7758 = vperm.xlu0 %7757, %v7747
        %v7759 = vpop.permute.xlu0 %7758
        %v7760 = vperm.slane %v7397, 1
        %v7761 = vlaneseq
        %v7762 = vshrl.u32 %v7761, 7
        %7764 = vset.pattern.permute.xlu0 %v7762
        %7765 = vperm.xlu0 %7764, %v7760
        %v7766 = vpop.permute.xlu0 %7765
        %v7767 = vlaneseq
        %v7768 = vshrl.u32 %v7767, 7
        %v7769 = vadd.s32 %v7768, 8
        %7770 = vset.pattern.permute.xlu0 %v7769
        %7771 = vperm.xlu0 %7770, %v7760
        %v7772 = vpop.permute.xlu0 %7771
        %v7773 = vperm.slane %v7397, 2
        %v7774 = vlaneseq
        %v7775 = vshrl.u32 %v7774, 7
        %7777 = vset.pattern.permute.xlu0 %v7775
        %7778 = vperm.xlu0 %7777, %v7773
        %v7779 = vpop.permute.xlu0 %7778
        %v7780 = vlaneseq
        %v7781 = vshrl.u32 %v7780, 7
        %v7782 = vadd.s32 %v7781, 8
        %7783 = vset.pattern.permute.xlu0 %v7782
        %7784 = vperm.xlu0 %7783, %v7773
        %v7785 = vpop.permute.xlu0 %7784
        %v7786 = vperm.slane %v7397, 3
        %v7787 = vlaneseq
        %v7788 = vshrl.u32 %v7787, 7
        %7790 = vset.pattern.permute.xlu0 %v7788
        %7791 = vperm.xlu0 %7790, %v7786
        %v7792 = vpop.permute.xlu0 %7791
        %v7793 = vlaneseq
        %v7794 = vshrl.u32 %v7793, 7
        %v7795 = vadd.s32 %v7794, 8
        %7796 = vset.pattern.permute.xlu0 %v7795
        %7797 = vperm.xlu0 %7796, %v7786
        %v7798 = vpop.permute.xlu0 %7797
        %v7799 = vperm.slane %v7418, 0
        %v7800 = vlaneseq
        %v7801 = vshrl.u32 %v7800, 7
        %7803 = vset.pattern.permute.xlu0 %v7801
        %7804 = vperm.xlu0 %7803, %v7799
        %v7805 = vpop.permute.xlu0 %7804
        %v7806 = vlaneseq
        %v7807 = vshrl.u32 %v7806, 7
        %v7808 = vadd.s32 %v7807, 8
        %7809 = vset.pattern.permute.xlu0 %v7808
        %7810 = vperm.xlu0 %7809, %v7799
        %v7811 = vpop.permute.xlu0 %7810
        %v7812 = vperm.slane %v7418, 1
        %v7813 = vlaneseq
        %v7814 = vshrl.u32 %v7813, 7
        %7816 = vset.pattern.permute.xlu0 %v7814
        %7817 = vperm.xlu0 %7816, %v7812
        %v7818 = vpop.permute.xlu0 %7817
        %v7819 = vlaneseq
        %v7820 = vshrl.u32 %v7819, 7
        %v7821 = vadd.s32 %v7820, 8
        %7822 = vset.pattern.permute.xlu0 %v7821
        %7823 = vperm.xlu0 %7822, %v7812
        %v7824 = vpop.permute.xlu0 %7823
        %v7825 = vperm.slane %v7418, 2
        %v7826 = vlaneseq
        %v7827 = vshrl.u32 %v7826, 7
        %7829 = vset.pattern.permute.xlu0 %v7827
        %7830 = vperm.xlu0 %7829, %v7825
        %v7831 = vpop.permute.xlu0 %7830
        %v7832 = vlaneseq
        %v7833 = vshrl.u32 %v7832, 7
        %v7834 = vadd.s32 %v7833, 8
        %7835 = vset.pattern.permute.xlu0 %v7834
        %7836 = vperm.xlu0 %7835, %v7825
        %v7837 = vpop.permute.xlu0 %7836
        %v7838 = vperm.slane %v7418, 3
        %v7839 = vlaneseq
        %v7840 = vshrl.u32 %v7839, 7
        %7842 = vset.pattern.permute.xlu0 %v7840
        %7843 = vperm.xlu0 %7842, %v7838
        %v7844 = vpop.permute.xlu0 %7843
        %v7845 = vlaneseq
        %v7846 = vshrl.u32 %v7845, 7
        %v7847 = vadd.s32 %v7846, 8
        %7848 = vset.pattern.permute.xlu0 %v7847
        %7849 = vperm.xlu0 %7848, %v7838
        %v7850 = vpop.permute.xlu0 %7849
        %v7851 = vperm.slane %v7439, 0
        %v7852 = vlaneseq
        %v7853 = vshrl.u32 %v7852, 7
        %7855 = vset.pattern.permute.xlu0 %v7853
        %7856 = vperm.xlu0 %7855, %v7851
        %v7857 = vpop.permute.xlu0 %7856
        %v7858 = vlaneseq
        %v7859 = vshrl.u32 %v7858, 7
        %v7860 = vadd.s32 %v7859, 8
        %7861 = vset.pattern.permute.xlu0 %v7860
        %7862 = vperm.xlu0 %7861, %v7851
        %v7863 = vpop.permute.xlu0 %7862
        %v7864 = vperm.slane %v7439, 1
        %v7865 = vlaneseq
        %v7866 = vshrl.u32 %v7865, 7
        %7868 = vset.pattern.permute.xlu0 %v7866
        %7869 = vperm.xlu0 %7868, %v7864
        %v7870 = vpop.permute.xlu0 %7869
        %v7871 = vlaneseq
        %v7872 = vshrl.u32 %v7871, 7
        %v7873 = vadd.s32 %v7872, 8
        %7874 = vset.pattern.permute.xlu0 %v7873
        %7875 = vperm.xlu0 %7874, %v7864
        %v7876 = vpop.permute.xlu0 %7875
        %v7877 = vperm.slane %v7439, 2
        %v7878 = vlaneseq
        %v7879 = vshrl.u32 %v7878, 7
        %7881 = vset.pattern.permute.xlu0 %v7879
        %7882 = vperm.xlu0 %7881, %v7877
        %v7883 = vpop.permute.xlu0 %7882
        %v7884 = vlaneseq
        %v7885 = vshrl.u32 %v7884, 7
        %v7886 = vadd.s32 %v7885, 8
        %7887 = vset.pattern.permute.xlu0 %v7886
        %7888 = vperm.xlu0 %7887, %v7877
        %v7889 = vpop.permute.xlu0 %7888
        %v7890 = vperm.slane %v7439, 3
        %v7891 = vlaneseq
        %v7892 = vshrl.u32 %v7891, 7
        %7894 = vset.pattern.permute.xlu0 %v7892
        %7895 = vperm.xlu0 %7894, %v7890
        %v7896 = vpop.permute.xlu0 %7895
        %v7897 = vlaneseq
        %v7898 = vshrl.u32 %v7897, 7
        %v7899 = vadd.s32 %v7898, 8
        %7900 = vset.pattern.permute.xlu0 %v7899
        %7901 = vperm.xlu0 %7900, %v7890
        %v7902 = vpop.permute.xlu0 %7901
        %v7903 = vperm.slane %v7460, 0
        %v7904 = vlaneseq
        %v7905 = vshrl.u32 %v7904, 7
        %7907 = vset.pattern.permute.xlu0 %v7905
        %7908 = vperm.xlu0 %7907, %v7903
        %v7909 = vpop.permute.xlu0 %7908
        %v7910 = vlaneseq
        %v7911 = vshrl.u32 %v7910, 7
        %v7912 = vadd.s32 %v7911, 8
        %7913 = vset.pattern.permute.xlu0 %v7912
        %7914 = vperm.xlu0 %7913, %v7903
        %v7915 = vpop.permute.xlu0 %7914
        %v7916 = vperm.slane %v7460, 1
        %v7917 = vlaneseq
        %v7918 = vshrl.u32 %v7917, 7
        %7920 = vset.pattern.permute.xlu0 %v7918
        %7921 = vperm.xlu0 %7920, %v7916
        %v7922 = vpop.permute.xlu0 %7921
        %v7923 = vlaneseq
        %v7924 = vshrl.u32 %v7923, 7
        %v7925 = vadd.s32 %v7924, 8
        %7926 = vset.pattern.permute.xlu0 %v7925
        %7927 = vperm.xlu0 %7926, %v7916
        %v7928 = vpop.permute.xlu0 %7927
        %v7929 = vperm.slane %v7460, 2
        %v7930 = vlaneseq
        %v7931 = vshrl.u32 %v7930, 7
        %7933 = vset.pattern.permute.xlu0 %v7931
        %7934 = vperm.xlu0 %7933, %v7929
        %v7935 = vpop.permute.xlu0 %7934
        %v7936 = vlaneseq
        %v7937 = vshrl.u32 %v7936, 7
        %v7938 = vadd.s32 %v7937, 8
        %7939 = vset.pattern.permute.xlu0 %v7938
        %7940 = vperm.xlu0 %7939, %v7929
        %v7941 = vpop.permute.xlu0 %7940
        %v7942 = vperm.slane %v7460, 3
        %v7943 = vlaneseq
        %v7944 = vshrl.u32 %v7943, 7
        %7946 = vset.pattern.permute.xlu0 %v7944
        %7947 = vperm.xlu0 %7946, %v7942
        %v7948 = vpop.permute.xlu0 %7947
        %v7949 = vlaneseq
        %v7950 = vshrl.u32 %v7949, 7
        %v7951 = vadd.s32 %v7950, 8
        %7952 = vset.pattern.permute.xlu0 %v7951
        %7953 = vperm.xlu0 %7952, %v7942
        %v7954 = vpop.permute.xlu0 %7953
        %v7955 = vperm.slane %v7481, 0
        %v7956 = vlaneseq
        %v7957 = vshrl.u32 %v7956, 7
        %7959 = vset.pattern.permute.xlu0 %v7957
        %7960 = vperm.xlu0 %7959, %v7955
        %v7961 = vpop.permute.xlu0 %7960
        %v7962 = vlaneseq
        %v7963 = vshrl.u32 %v7962, 7
        %v7964 = vadd.s32 %v7963, 8
        %7965 = vset.pattern.permute.xlu0 %v7964
        %7966 = vperm.xlu0 %7965, %v7955
        %v7967 = vpop.permute.xlu0 %7966
        %v7968 = vperm.slane %v7481, 1
        %v7969 = vlaneseq
        %v7970 = vshrl.u32 %v7969, 7
        %7972 = vset.pattern.permute.xlu0 %v7970
        %7973 = vperm.xlu0 %7972, %v7968
        %v7974 = vpop.permute.xlu0 %7973
        %v7975 = vlaneseq
        %v7976 = vshrl.u32 %v7975, 7
        %v7977 = vadd.s32 %v7976, 8
        %7978 = vset.pattern.permute.xlu0 %v7977
        %7979 = vperm.xlu0 %7978, %v7968
        %v7980 = vpop.permute.xlu0 %7979
        %v7981 = vperm.slane %v7481, 2
        %v7982 = vlaneseq
        %v7983 = vshrl.u32 %v7982, 7
        %7985 = vset.pattern.permute.xlu0 %v7983
        %7986 = vperm.xlu0 %7985, %v7981
        %v7987 = vpop.permute.xlu0 %7986
        %v7988 = vlaneseq
        %v7989 = vshrl.u32 %v7988, 7
        %v7990 = vadd.s32 %v7989, 8
        %7991 = vset.pattern.permute.xlu0 %v7990
        %7992 = vperm.xlu0 %7991, %v7981
        %v7993 = vpop.permute.xlu0 %7992
        %v7994 = vperm.slane %v7481, 3
        %v7995 = vlaneseq
        %v7996 = vshrl.u32 %v7995, 7
        %7998 = vset.pattern.permute.xlu0 %v7996
        %7999 = vperm.xlu0 %7998, %v7994
        %v8000 = vpop.permute.xlu0 %7999
        %v8001 = vlaneseq
        %v8002 = vshrl.u32 %v8001, 7
        %v8003 = vadd.s32 %v8002, 8
        %8004 = vset.pattern.permute.xlu0 %v8003
        %8005 = vperm.xlu0 %8004, %v7994
        %v8006 = vpop.permute.xlu0 %8005
        %v8015 = vrot.slane %v7497, 1
        %v8016 = vrot.slane %v7497, 2
        %v8017 = vrot.slane %v7497, 3
        %v8018 = vrot.slane %v7510, 1
        %v8019 = vrot.slane %v7510, 2
        %v8020 = vrot.slane %v7510, 3
        %v8021 = vrot.slane %v7523, 1
        %v8022 = vrot.slane %v7523, 2
        %v8023 = vrot.slane %v7523, 3
        %v8024 = vrot.slane %v7536, 1
        %v8025 = vrot.slane %v7536, 2
        %v8026 = vrot.slane %v7536, 3
        %v8027 = vrot.slane %v7549, 1
        %v8028 = vrot.slane %v7549, 2
        %v8029 = vrot.slane %v7549, 3
        %v8030 = vrot.slane %v7562, 1
        %v8031 = vrot.slane %v7562, 2
        %v8032 = vrot.slane %v7562, 3
        %v8033 = vrot.slane %v7575, 1
        %v8034 = vrot.slane %v7575, 2
        %v8035 = vrot.slane %v7575, 3
        %v8036 = vrot.slane %v7588, 1
        %v8037 = vrot.slane %v7588, 2
        %v8038 = vrot.slane %v7588, 3
        %v8039 = vperm.slane %v7497, 0
        %v8040 = vperm.slane %v8015, 0
        %v8041 = vperm.slane %v8016, 0
        %v8042 = vperm.slane %v8017, 0
        %v8043 = vperm.slane %v7510, 0
        %v8044 = vperm.slane %v8018, 0
        %v8045 = vperm.slane %v8019, 0
        %v8046 = vperm.slane %v8020, 0
        %v8047 = vperm.slane %v7523, 0
        %v8048 = vperm.slane %v8021, 0
        %v8049 = vperm.slane %v8022, 0
        %v8050 = vperm.slane %v8023, 0
        %v8051 = vperm.slane %v7536, 0
        %v8052 = vperm.slane %v8024, 0
        %v8053 = vperm.slane %v8025, 0
        %v8054 = vperm.slane %v8026, 0
        %v8055 = vperm.slane %v7549, 0
        %v8056 = vperm.slane %v8027, 0
        %v8057 = vperm.slane %v8028, 0
        %v8058 = vperm.slane %v8029, 0
        %v8059 = vperm.slane %v7562, 0
        %v8060 = vperm.slane %v8030, 0
        %v8061 = vperm.slane %v8031, 0
        %v8062 = vperm.slane %v8032, 0
        %v8063 = vperm.slane %v7575, 0
        %v8064 = vperm.slane %v8033, 0
        %v8065 = vperm.slane %v8034, 0
        %v8066 = vperm.slane %v8035, 0
        %v8067 = vperm.slane %v7588, 0
        %v8068 = vperm.slane %v8036, 0
        %v8069 = vperm.slane %v8037, 0
        %v8070 = vperm.slane %v8038, 0
        %v8103 = vadd.f32 %v7597, %v8039
        %v8104 = vadd.f32 %v7603, %v8039
        %v8105 = vadd.f32 %v7610, %v8040
        %v8106 = vadd.f32 %v7616, %v8040
        %v8107 = vadd.f32 %v7623, %v8041
        %v8108 = vadd.f32 %v7629, %v8041
        %v8109 = vadd.f32 %v7636, %v8042
        %v8110 = vadd.f32 %v7642, %v8042
        %v8111 = vadd.f32 %v7649, %v8043
        %v8112 = vadd.f32 %v7655, %v8043
        %v8113 = vadd.f32 %v7662, %v8044
        %v8114 = vadd.f32 %v7668, %v8044
        %v8115 = vadd.f32 %v7675, %v8045
        %v8116 = vadd.f32 %v7681, %v8045
        %v8117 = vadd.f32 %v7688, %v8046
        %v8118 = vadd.f32 %v7694, %v8046
        %v8119 = vadd.f32 %v7701, %v8047
        %v8120 = vadd.f32 %v7707, %v8047
        %v8121 = vadd.f32 %v7714, %v8048
        %v8122 = vadd.f32 %v7720, %v8048
        %v8123 = vadd.f32 %v7727, %v8049
        %v8124 = vadd.f32 %v7733, %v8049
        %v8125 = vadd.f32 %v7740, %v8050
        %v8126 = vadd.f32 %v7746, %v8050
        %v8127 = vadd.f32 %v7753, %v8051
        %v8128 = vadd.f32 %v7759, %v8051
        %v8129 = vadd.f32 %v7766, %v8052
        %v8130 = vadd.f32 %v7772, %v8052
        %v8131 = vadd.f32 %v7779, %v8053
        %v8132 = vadd.f32 %v7785, %v8053
        %v8133 = vadd.f32 %v7792, %v8054
        %v8134 = vadd.f32 %v7798, %v8054
        %v8135 = vadd.f32 %v7805, %v8055
        %v8136 = vadd.f32 %v7811, %v8055
        %v8137 = vadd.f32 %v7818, %v8056
        %v8138 = vadd.f32 %v7824, %v8056
        %v8139 = vadd.f32 %v7831, %v8057
        %v8140 = vadd.f32 %v7837, %v8057
        %v8141 = vadd.f32 %v7844, %v8058
        %v8142 = vadd.f32 %v7850, %v8058
        %v8143 = vadd.f32 %v7857, %v8059
        %v8144 = vadd.f32 %v7863, %v8059
        %v8145 = vadd.f32 %v7870, %v8060
        %v8146 = vadd.f32 %v7876, %v8060
        %v8147 = vadd.f32 %v7883, %v8061
        %v8148 = vadd.f32 %v7889, %v8061
        %v8149 = vadd.f32 %v7896, %v8062
        %v8150 = vadd.f32 %v7902, %v8062
        %v8151 = vadd.f32 %v7909, %v8063
        %v8152 = vadd.f32 %v7915, %v8063
        %v8153 = vadd.f32 %v7922, %v8064
        %v8154 = vadd.f32 %v7928, %v8064
        %v8155 = vadd.f32 %v7935, %v8065
        %v8156 = vadd.f32 %v7941, %v8065
        %v8157 = vadd.f32 %v7948, %v8066
        %v8158 = vadd.f32 %v7954, %v8066
        %v8159 = vadd.f32 %v7961, %v8067
        %v8160 = vadd.f32 %v7967, %v8067
        %v8161 = vadd.f32 %v7974, %v8068
        %v8162 = vadd.f32 %v7980, %v8068
        %v8163 = vadd.f32 %v7987, %v8069
        %v8164 = vadd.f32 %v7993, %v8069
        %v8165 = vadd.f32 %v8000, %v8070
        %v8166 = vadd.f32 %v8006, %v8070
        %vm8167 = vcmp.gt.f32.partialorder %v8103, 0.0
        %vm8168 = vcmp.gt.f32.partialorder %v8104, 0.0
        %vm8169 = vcmp.gt.f32.partialorder %v8105, 0.0
        %vm8170 = vcmp.gt.f32.partialorder %v8106, 0.0
        %vm8171 = vcmp.gt.f32.partialorder %v8107, 0.0
        %vm8172 = vcmp.gt.f32.partialorder %v8108, 0.0
        %vm8173 = vcmp.gt.f32.partialorder %v8109, 0.0
        %vm8174 = vcmp.gt.f32.partialorder %v8110, 0.0
        %vm8175 = vcmp.gt.f32.partialorder %v8111, 0.0
        %vm8176 = vcmp.gt.f32.partialorder %v8112, 0.0
        %vm8177 = vcmp.gt.f32.partialorder %v8113, 0.0
        %vm8178 = vcmp.gt.f32.partialorder %v8114, 0.0
        %vm8179 = vcmp.gt.f32.partialorder %v8115, 0.0
        %vm8180 = vcmp.gt.f32.partialorder %v8116, 0.0
        %vm8181 = vcmp.gt.f32.partialorder %v8117, 0.0
        %vm8182 = vcmp.gt.f32.partialorder %v8118, 0.0
        %vm8183 = vcmp.gt.f32.partialorder %v8119, 0.0
        %vm8184 = vcmp.gt.f32.partialorder %v8120, 0.0
        %vm8185 = vcmp.gt.f32.partialorder %v8121, 0.0
        %vm8186 = vcmp.gt.f32.partialorder %v8122, 0.0
        %vm8187 = vcmp.gt.f32.partialorder %v8123, 0.0
        %vm8188 = vcmp.gt.f32.partialorder %v8124, 0.0
        %vm8189 = vcmp.gt.f32.partialorder %v8125, 0.0
        %vm8190 = vcmp.gt.f32.partialorder %v8126, 0.0
        %vm8191 = vcmp.gt.f32.partialorder %v8127, 0.0
        %vm8192 = vcmp.gt.f32.partialorder %v8128, 0.0
        %vm8193 = vcmp.gt.f32.partialorder %v8129, 0.0
        %vm8194 = vcmp.gt.f32.partialorder %v8130, 0.0
        %vm8195 = vcmp.gt.f32.partialorder %v8131, 0.0
        %vm8196 = vcmp.gt.f32.partialorder %v8132, 0.0
        %vm8197 = vcmp.gt.f32.partialorder %v8133, 0.0
        %vm8198 = vcmp.gt.f32.partialorder %v8134, 0.0
        %vm8199 = vcmp.gt.f32.partialorder %v8135, 0.0
        %vm8200 = vcmp.gt.f32.partialorder %v8136, 0.0
        %vm8201 = vcmp.gt.f32.partialorder %v8137, 0.0
        %vm8202 = vcmp.gt.f32.partialorder %v8138, 0.0
        %vm8203 = vcmp.gt.f32.partialorder %v8139, 0.0
        %vm8204 = vcmp.gt.f32.partialorder %v8140, 0.0
        %vm8205 = vcmp.gt.f32.partialorder %v8141, 0.0
        %vm8206 = vcmp.gt.f32.partialorder %v8142, 0.0
        %vm8207 = vcmp.gt.f32.partialorder %v8143, 0.0
        %vm8208 = vcmp.gt.f32.partialorder %v8144, 0.0
        %vm8209 = vcmp.gt.f32.partialorder %v8145, 0.0
        %vm8210 = vcmp.gt.f32.partialorder %v8146, 0.0
        %vm8211 = vcmp.gt.f32.partialorder %v8147, 0.0
        %vm8212 = vcmp.gt.f32.partialorder %v8148, 0.0
        %vm8213 = vcmp.gt.f32.partialorder %v8149, 0.0
        %vm8214 = vcmp.gt.f32.partialorder %v8150, 0.0
        %vm8215 = vcmp.gt.f32.partialorder %v8151, 0.0
        %vm8216 = vcmp.gt.f32.partialorder %v8152, 0.0
        %vm8217 = vcmp.gt.f32.partialorder %v8153, 0.0
        %vm8218 = vcmp.gt.f32.partialorder %v8154, 0.0
        %vm8219 = vcmp.gt.f32.partialorder %v8155, 0.0
        %vm8220 = vcmp.gt.f32.partialorder %v8156, 0.0
        %vm8221 = vcmp.gt.f32.partialorder %v8157, 0.0
        %vm8222 = vcmp.gt.f32.partialorder %v8158, 0.0
        %vm8223 = vcmp.gt.f32.partialorder %v8159, 0.0
        %vm8224 = vcmp.gt.f32.partialorder %v8160, 0.0
        %vm8225 = vcmp.gt.f32.partialorder %v8161, 0.0
        %vm8226 = vcmp.gt.f32.partialorder %v8162, 0.0
        %vm8227 = vcmp.gt.f32.partialorder %v8163, 0.0
        %vm8228 = vcmp.gt.f32.partialorder %v8164, 0.0
        %vm8229 = vcmp.gt.f32.partialorder %v8165, 0.0
        %vm8230 = vcmp.gt.f32.partialorder %v8166, 0.0
        %v8231 = vmul.f32 %v8103, 0.2
        %v8232 = vmul.f32 %v8104, 0.2
        %v8233 = vmul.f32 %v8105, 0.2
        %v8234 = vmul.f32 %v8106, 0.2
        %v8235 = vmul.f32 %v8107, 0.2
        %v8236 = vmul.f32 %v8108, 0.2
        %v8237 = vmul.f32 %v8109, 0.2
        %v8238 = vmul.f32 %v8110, 0.2
        %v8239 = vmul.f32 %v8111, 0.2
        %v8240 = vmul.f32 %v8112, 0.2
        %v8241 = vmul.f32 %v8113, 0.2
        %v8242 = vmul.f32 %v8114, 0.2
        %v8243 = vmul.f32 %v8115, 0.2
        %v8244 = vmul.f32 %v8116, 0.2
        %v8245 = vmul.f32 %v8117, 0.2
        %v8246 = vmul.f32 %v8118, 0.2
        %v8247 = vmul.f32 %v8119, 0.2
        %v8248 = vmul.f32 %v8120, 0.2
        %v8249 = vmul.f32 %v8121, 0.2
        %v8250 = vmul.f32 %v8122, 0.2
        %v8251 = vmul.f32 %v8123, 0.2
        %v8252 = vmul.f32 %v8124, 0.2
        %v8253 = vmul.f32 %v8125, 0.2
        %v8254 = vmul.f32 %v8126, 0.2
        %v8255 = vmul.f32 %v8127, 0.2
        %v8256 = vmul.f32 %v8128, 0.2
        %v8257 = vmul.f32 %v8129, 0.2
        %v8258 = vmul.f32 %v8130, 0.2
        %v8259 = vmul.f32 %v8131, 0.2
        %v8260 = vmul.f32 %v8132, 0.2
        %v8261 = vmul.f32 %v8133, 0.2
        %v8262 = vmul.f32 %v8134, 0.2
        %v8263 = vmul.f32 %v8135, 0.2
        %v8264 = vmul.f32 %v8136, 0.2
        %v8265 = vmul.f32 %v8137, 0.2
        %v8266 = vmul.f32 %v8138, 0.2
        %v8267 = vmul.f32 %v8139, 0.2
        %v8268 = vmul.f32 %v8140, 0.2
        %v8269 = vmul.f32 %v8141, 0.2
        %v8270 = vmul.f32 %v8142, 0.2
        %v8271 = vmul.f32 %v8143, 0.2
        %v8272 = vmul.f32 %v8144, 0.2
        %v8273 = vmul.f32 %v8145, 0.2
        %v8274 = vmul.f32 %v8146, 0.2
        %v8275 = vmul.f32 %v8147, 0.2
        %v8276 = vmul.f32 %v8148, 0.2
        %v8277 = vmul.f32 %v8149, 0.2
        %v8278 = vmul.f32 %v8150, 0.2
        %v8279 = vmul.f32 %v8151, 0.2
        %v8280 = vmul.f32 %v8152, 0.2
        %v8281 = vmul.f32 %v8153, 0.2
        %v8282 = vmul.f32 %v8154, 0.2
        %v8283 = vmul.f32 %v8155, 0.2
        %v8284 = vmul.f32 %v8156, 0.2
        %v8285 = vmul.f32 %v8157, 0.2
        %v8286 = vmul.f32 %v8158, 0.2
        %v8287 = vmul.f32 %v8159, 0.2
        %v8288 = vmul.f32 %v8160, 0.2
        %v8289 = vmul.f32 %v8161, 0.2
        %v8290 = vmul.f32 %v8162, 0.2
        %v8291 = vmul.f32 %v8163, 0.2
        %v8292 = vmul.f32 %v8164, 0.2
        %v8293 = vmul.f32 %v8165, 0.2
        %v8294 = vmul.f32 %v8166, 0.2
        %v8295 = vsel %vm8167, %v8103, %v8231
        %v8296 = vsel %vm8168, %v8104, %v8232
        %v8297 = vsel %vm8169, %v8105, %v8233
        %v8298 = vsel %vm8170, %v8106, %v8234
        %v8299 = vsel %vm8171, %v8107, %v8235
        %v8300 = vsel %vm8172, %v8108, %v8236
        %v8301 = vsel %vm8173, %v8109, %v8237
        %v8302 = vsel %vm8174, %v8110, %v8238
        %v8303 = vsel %vm8175, %v8111, %v8239
        %v8304 = vsel %vm8176, %v8112, %v8240
        %v8305 = vsel %vm8177, %v8113, %v8241
        %v8306 = vsel %vm8178, %v8114, %v8242
        %v8307 = vsel %vm8179, %v8115, %v8243
        %v8308 = vsel %vm8180, %v8116, %v8244
        %v8309 = vsel %vm8181, %v8117, %v8245
        %v8310 = vsel %vm8182, %v8118, %v8246
        %v8311 = vsel %vm8183, %v8119, %v8247
        %v8312 = vsel %vm8184, %v8120, %v8248
        %v8313 = vsel %vm8185, %v8121, %v8249
        %v8314 = vsel %vm8186, %v8122, %v8250
        %v8315 = vsel %vm8187, %v8123, %v8251
        %v8316 = vsel %vm8188, %v8124, %v8252
        %v8317 = vsel %vm8189, %v8125, %v8253
        %v8318 = vsel %vm8190, %v8126, %v8254
        %v8319 = vsel %vm8191, %v8127, %v8255
        %v8320 = vsel %vm8192, %v8128, %v8256
        %v8321 = vsel %vm8193, %v8129, %v8257
        %v8322 = vsel %vm8194, %v8130, %v8258
        %v8323 = vsel %vm8195, %v8131, %v8259
        %v8324 = vsel %vm8196, %v8132, %v8260
        %v8325 = vsel %vm8197, %v8133, %v8261
        %v8326 = vsel %vm8198, %v8134, %v8262
        %v8327 = vsel %vm8199, %v8135, %v8263
        %v8328 = vsel %vm8200, %v8136, %v8264
        %v8329 = vsel %vm8201, %v8137, %v8265
        %v8330 = vsel %vm8202, %v8138, %v8266
        %v8331 = vsel %vm8203, %v8139, %v8267
        %v8332 = vsel %vm8204, %v8140, %v8268
        %v8333 = vsel %vm8205, %v8141, %v8269
        %v8334 = vsel %vm8206, %v8142, %v8270
        %v8335 = vsel %vm8207, %v8143, %v8271
        %v8336 = vsel %vm8208, %v8144, %v8272
        %v8337 = vsel %vm8209, %v8145, %v8273
        %v8338 = vsel %vm8210, %v8146, %v8274
        %v8339 = vsel %vm8211, %v8147, %v8275
        %v8340 = vsel %vm8212, %v8148, %v8276
        %v8341 = vsel %vm8213, %v8149, %v8277
        %v8342 = vsel %vm8214, %v8150, %v8278
        %v8343 = vsel %vm8215, %v8151, %v8279
        %v8344 = vsel %vm8216, %v8152, %v8280
        %v8345 = vsel %vm8217, %v8153, %v8281
        %v8346 = vsel %vm8218, %v8154, %v8282
        %v8347 = vsel %vm8219, %v8155, %v8283
        %v8348 = vsel %vm8220, %v8156, %v8284
        %v8349 = vsel %vm8221, %v8157, %v8285
        %v8350 = vsel %vm8222, %v8158, %v8286
        %v8351 = vsel %vm8223, %v8159, %v8287
        %v8352 = vsel %vm8224, %v8160, %v8288
        %v8353 = vsel %vm8225, %v8161, %v8289
        %v8354 = vsel %vm8226, %v8162, %v8290
        %v8355 = vsel %vm8227, %v8163, %v8291
        %v8356 = vsel %vm8228, %v8164, %v8292
        %v8357 = vsel %vm8229, %v8165, %v8293
        %v8358 = vsel %vm8230, %v8166, %v8294
        %v8359 = vadd.f32 %v8295, %v1029
        %v8360 = vadd.f32 %v8296, %v1030
        %v8361 = vadd.f32 %v8297, %v1029
        %v8362 = vadd.f32 %v8298, %v1030
        %v8363 = vadd.f32 %v8299, %v1029
        %v8364 = vadd.f32 %v8300, %v1030
        %v8365 = vadd.f32 %v8301, %v1029
        %v8366 = vadd.f32 %v8302, %v1030
        %v8367 = vadd.f32 %v8303, %v1029
        %v8368 = vadd.f32 %v8304, %v1030
        %v8369 = vadd.f32 %v8305, %v1029
        %v8370 = vadd.f32 %v8306, %v1030
        %v8371 = vadd.f32 %v8307, %v1029
        %v8372 = vadd.f32 %v8308, %v1030
        %v8373 = vadd.f32 %v8309, %v1029
        %v8374 = vadd.f32 %v8310, %v1030
        %v8375 = vadd.f32 %v8311, %v1029
        %v8376 = vadd.f32 %v8312, %v1030
        %v8377 = vadd.f32 %v8313, %v1029
        %v8378 = vadd.f32 %v8314, %v1030
        %v8379 = vadd.f32 %v8315, %v1029
        %v8380 = vadd.f32 %v8316, %v1030
        %v8381 = vadd.f32 %v8317, %v1029
        %v8382 = vadd.f32 %v8318, %v1030
        %v8383 = vadd.f32 %v8319, %v1029
        %v8384 = vadd.f32 %v8320, %v1030
        %v8385 = vadd.f32 %v8321, %v1029
        %v8386 = vadd.f32 %v8322, %v1030
        %v8387 = vadd.f32 %v8323, %v1029
        %v8388 = vadd.f32 %v8324, %v1030
        %v8389 = vadd.f32 %v8325, %v1029
        %v8390 = vadd.f32 %v8326, %v1030
        %v8391 = vadd.f32 %v8327, %v1029
        %v8392 = vadd.f32 %v8328, %v1030
        %v8393 = vadd.f32 %v8329, %v1029
        %v8394 = vadd.f32 %v8330, %v1030
        %v8395 = vadd.f32 %v8331, %v1029
        %v8396 = vadd.f32 %v8332, %v1030
        %v8397 = vadd.f32 %v8333, %v1029
        %v8398 = vadd.f32 %v8334, %v1030
        %v8399 = vadd.f32 %v8335, %v1029
        %v8400 = vadd.f32 %v8336, %v1030
        %v8401 = vadd.f32 %v8337, %v1029
        %v8402 = vadd.f32 %v8338, %v1030
        %v8403 = vadd.f32 %v8339, %v1029
        %v8404 = vadd.f32 %v8340, %v1030
        %v8405 = vadd.f32 %v8341, %v1029
        %v8406 = vadd.f32 %v8342, %v1030
        %v8407 = vadd.f32 %v8343, %v1029
        %v8408 = vadd.f32 %v8344, %v1030
        %v8409 = vadd.f32 %v8345, %v1029
        %v8410 = vadd.f32 %v8346, %v1030
        %v8411 = vadd.f32 %v8347, %v1029
        %v8412 = vadd.f32 %v8348, %v1030
        %v8413 = vadd.f32 %v8349, %v1029
        %v8414 = vadd.f32 %v8350, %v1030
        %v8415 = vadd.f32 %v8351, %v1029
        %v8416 = vadd.f32 %v8352, %v1030
        %v8417 = vadd.f32 %v8353, %v1029
        %v8418 = vadd.f32 %v8354, %v1030
        %v8419 = vadd.f32 %v8355, %v1029
        %v8420 = vadd.f32 %v8356, %v1030
        %v8421 = vadd.f32 %v8357, %v1029
        %v8422 = vadd.f32 %v8358, %v1030
        %v8423 = vsel %vm2274, %v8359, -inf
        %8424 = vmax.xlane.f32.xlu0 %v8423
        %v8425 = vpop.xlane.xlu0 %8424
        %v8426 = vsel %vm2274, %v8360, -inf
        %8427 = vmax.xlane.f32.xlu0 %v8426
        %v8428 = vpop.xlane.xlu0 %8427
        %v8429 = vsel %vm2274, %v8361, -inf
        %8430 = vmax.xlane.f32.xlu0 %v8429
        %v8431 = vpop.xlane.xlu0 %8430
        %v8432 = vsel %vm2274, %v8362, -inf
        %8433 = vmax.xlane.f32.xlu0 %v8432
        %v8434 = vpop.xlane.xlu0 %8433
        %v8435 = vsel %vm2274, %v8363, -inf
        %8436 = vmax.xlane.f32.xlu0 %v8435
        %v8437 = vpop.xlane.xlu0 %8436
        %v8438 = vsel %vm2274, %v8364, -inf
        %8439 = vmax.xlane.f32.xlu0 %v8438
        %v8440 = vpop.xlane.xlu0 %8439
        %v8441 = vsel %vm2274, %v8365, -inf
        %8442 = vmax.xlane.f32.xlu0 %v8441
        %v8443 = vpop.xlane.xlu0 %8442
        %v8444 = vsel %vm2274, %v8366, -inf
        %8445 = vmax.xlane.f32.xlu0 %v8444
        %v8446 = vpop.xlane.xlu0 %8445
        %v8447 = vsel %vm2274, %v8367, -inf
        %8448 = vmax.xlane.f32.xlu0 %v8447
        %v8449 = vpop.xlane.xlu0 %8448
        %v8450 = vsel %vm2274, %v8368, -inf
        %8451 = vmax.xlane.f32.xlu0 %v8450
        %v8452 = vpop.xlane.xlu0 %8451
        %v8453 = vsel %vm2274, %v8369, -inf
        %8454 = vmax.xlane.f32.xlu0 %v8453
        %v8455 = vpop.xlane.xlu0 %8454
        %v8456 = vsel %vm2274, %v8370, -inf
        %8457 = vmax.xlane.f32.xlu0 %v8456
        %v8458 = vpop.xlane.xlu0 %8457
        %v8459 = vsel %vm2274, %v8371, -inf
        %8460 = vmax.xlane.f32.xlu0 %v8459
        %v8461 = vpop.xlane.xlu0 %8460
        %v8462 = vsel %vm2274, %v8372, -inf
        %8463 = vmax.xlane.f32.xlu0 %v8462
        %v8464 = vpop.xlane.xlu0 %8463
        %v8465 = vsel %vm2274, %v8373, -inf
        %8466 = vmax.xlane.f32.xlu0 %v8465
        %v8467 = vpop.xlane.xlu0 %8466
        %v8468 = vsel %vm2274, %v8374, -inf
        %8469 = vmax.xlane.f32.xlu0 %v8468
        %v8470 = vpop.xlane.xlu0 %8469
        %v8471 = vsel %vm2274, %v8375, -inf
        %8472 = vmax.xlane.f32.xlu0 %v8471
        %v8473 = vpop.xlane.xlu0 %8472
        %v8474 = vsel %vm2274, %v8376, -inf
        %8475 = vmax.xlane.f32.xlu0 %v8474
        %v8476 = vpop.xlane.xlu0 %8475
        %v8477 = vsel %vm2274, %v8377, -inf
        %8478 = vmax.xlane.f32.xlu0 %v8477
        %v8479 = vpop.xlane.xlu0 %8478
        %v8480 = vsel %vm2274, %v8378, -inf
        %8481 = vmax.xlane.f32.xlu0 %v8480
        %v8482 = vpop.xlane.xlu0 %8481
        %v8483 = vsel %vm2274, %v8379, -inf
        %8484 = vmax.xlane.f32.xlu0 %v8483
        %v8485 = vpop.xlane.xlu0 %8484
        %v8486 = vsel %vm2274, %v8380, -inf
        %8487 = vmax.xlane.f32.xlu0 %v8486
        %v8488 = vpop.xlane.xlu0 %8487
        %v8489 = vsel %vm2274, %v8381, -inf
        %8490 = vmax.xlane.f32.xlu0 %v8489
        %v8491 = vpop.xlane.xlu0 %8490
        %v8492 = vsel %vm2274, %v8382, -inf
        %8493 = vmax.xlane.f32.xlu0 %v8492
        %v8494 = vpop.xlane.xlu0 %8493
        %v8495 = vsel %vm2274, %v8383, -inf
        %8496 = vmax.xlane.f32.xlu0 %v8495
        %v8497 = vpop.xlane.xlu0 %8496
        %v8498 = vsel %vm2274, %v8384, -inf
        %8499 = vmax.xlane.f32.xlu0 %v8498
        %v8500 = vpop.xlane.xlu0 %8499
        %v8501 = vsel %vm2274, %v8385, -inf
        %8502 = vmax.xlane.f32.xlu0 %v8501
        %v8503 = vpop.xlane.xlu0 %8502
        %v8504 = vsel %vm2274, %v8386, -inf
        %8505 = vmax.xlane.f32.xlu0 %v8504
        %v8506 = vpop.xlane.xlu0 %8505
        %v8507 = vsel %vm2274, %v8387, -inf
        %8508 = vmax.xlane.f32.xlu0 %v8507
        %v8509 = vpop.xlane.xlu0 %8508
        %v8510 = vsel %vm2274, %v8388, -inf
        %8511 = vmax.xlane.f32.xlu0 %v8510
        %v8512 = vpop.xlane.xlu0 %8511
        %v8513 = vsel %vm2274, %v8389, -inf
        %8514 = vmax.xlane.f32.xlu0 %v8513
        %v8515 = vpop.xlane.xlu0 %8514
        %v8516 = vsel %vm2274, %v8390, -inf
        %8517 = vmax.xlane.f32.xlu0 %v8516
        %v8518 = vpop.xlane.xlu0 %8517
        %v8519 = vsel %vm2274, %v8391, -inf
        %8520 = vmax.xlane.f32.xlu0 %v8519
        %v8521 = vpop.xlane.xlu0 %8520
        %v8522 = vsel %vm2274, %v8392, -inf
        %8523 = vmax.xlane.f32.xlu0 %v8522
        %v8524 = vpop.xlane.xlu0 %8523
        %v8525 = vsel %vm2274, %v8393, -inf
        %8526 = vmax.xlane.f32.xlu0 %v8525
        %v8527 = vpop.xlane.xlu0 %8526
        %v8528 = vsel %vm2274, %v8394, -inf
        %8529 = vmax.xlane.f32.xlu0 %v8528
        %v8530 = vpop.xlane.xlu0 %8529
        %v8531 = vsel %vm2274, %v8395, -inf
        %8532 = vmax.xlane.f32.xlu0 %v8531
        %v8533 = vpop.xlane.xlu0 %8532
        %v8534 = vsel %vm2274, %v8396, -inf
        %8535 = vmax.xlane.f32.xlu0 %v8534
        %v8536 = vpop.xlane.xlu0 %8535
        %v8537 = vsel %vm2274, %v8397, -inf
        %8538 = vmax.xlane.f32.xlu0 %v8537
        %v8539 = vpop.xlane.xlu0 %8538
        %v8540 = vsel %vm2274, %v8398, -inf
        %8541 = vmax.xlane.f32.xlu0 %v8540
        %v8542 = vpop.xlane.xlu0 %8541
        %v8543 = vsel %vm2274, %v8399, -inf
        %8544 = vmax.xlane.f32.xlu0 %v8543
        %v8545 = vpop.xlane.xlu0 %8544
        %v8546 = vsel %vm2274, %v8400, -inf
        %8547 = vmax.xlane.f32.xlu0 %v8546
        %v8548 = vpop.xlane.xlu0 %8547
        %v8549 = vsel %vm2274, %v8401, -inf
        %8550 = vmax.xlane.f32.xlu0 %v8549
        %v8551 = vpop.xlane.xlu0 %8550
        %v8552 = vsel %vm2274, %v8402, -inf
        %8553 = vmax.xlane.f32.xlu0 %v8552
        %v8554 = vpop.xlane.xlu0 %8553
        %v8555 = vsel %vm2274, %v8403, -inf
        %8556 = vmax.xlane.f32.xlu0 %v8555
        %v8557 = vpop.xlane.xlu0 %8556
        %v8558 = vsel %vm2274, %v8404, -inf
        %8559 = vmax.xlane.f32.xlu0 %v8558
        %v8560 = vpop.xlane.xlu0 %8559
        %v8561 = vsel %vm2274, %v8405, -inf
        %8562 = vmax.xlane.f32.xlu0 %v8561
        %v8563 = vpop.xlane.xlu0 %8562
        %v8564 = vsel %vm2274, %v8406, -inf
        %8565 = vmax.xlane.f32.xlu0 %v8564
        %v8566 = vpop.xlane.xlu0 %8565
        %v8567 = vsel %vm2274, %v8407, -inf
        %8568 = vmax.xlane.f32.xlu0 %v8567
        %v8569 = vpop.xlane.xlu0 %8568
        %v8570 = vsel %vm2274, %v8408, -inf
        %8571 = vmax.xlane.f32.xlu0 %v8570
        %v8572 = vpop.xlane.xlu0 %8571
        %v8573 = vsel %vm2274, %v8409, -inf
        %8574 = vmax.xlane.f32.xlu0 %v8573
        %v8575 = vpop.xlane.xlu0 %8574
        %v8576 = vsel %vm2274, %v8410, -inf
        %8577 = vmax.xlane.f32.xlu0 %v8576
        %v8578 = vpop.xlane.xlu0 %8577
        %v8579 = vsel %vm2274, %v8411, -inf
        %8580 = vmax.xlane.f32.xlu0 %v8579
        %v8581 = vpop.xlane.xlu0 %8580
        %v8582 = vsel %vm2274, %v8412, -inf
        %8583 = vmax.xlane.f32.xlu0 %v8582
        %v8584 = vpop.xlane.xlu0 %8583
        %v8585 = vsel %vm2274, %v8413, -inf
        %8586 = vmax.xlane.f32.xlu0 %v8585
        %v8587 = vpop.xlane.xlu0 %8586
        %v8588 = vsel %vm2274, %v8414, -inf
        %8589 = vmax.xlane.f32.xlu0 %v8588
        %v8590 = vpop.xlane.xlu0 %8589
        %v8591 = vsel %vm2274, %v8415, -inf
        %8592 = vmax.xlane.f32.xlu0 %v8591
        %v8593 = vpop.xlane.xlu0 %8592
        %v8594 = vsel %vm2274, %v8416, -inf
        %8595 = vmax.xlane.f32.xlu0 %v8594
        %v8596 = vpop.xlane.xlu0 %8595
        %v8597 = vsel %vm2274, %v8417, -inf
        %8598 = vmax.xlane.f32.xlu0 %v8597
        %v8599 = vpop.xlane.xlu0 %8598
        %v8600 = vsel %vm2274, %v8418, -inf
        %8601 = vmax.xlane.f32.xlu0 %v8600
        %v8602 = vpop.xlane.xlu0 %8601
        %v8603 = vsel %vm2274, %v8419, -inf
        %8604 = vmax.xlane.f32.xlu0 %v8603
        %v8605 = vpop.xlane.xlu0 %8604
        %v8606 = vsel %vm2274, %v8420, -inf
        %8607 = vmax.xlane.f32.xlu0 %v8606
        %v8608 = vpop.xlane.xlu0 %8607
        %v8609 = vsel %vm2274, %v8421, -inf
        %8610 = vmax.xlane.f32.xlu0 %v8609
        %v8611 = vpop.xlane.xlu0 %8610
        %v8612 = vsel %vm2274, %v8422, -inf
        %8613 = vmax.xlane.f32.xlu0 %v8612
        %v8614 = vpop.xlane.xlu0 %8613
        %v8615 = vsub.f32 %v8359, %v8425
        %v8616 = vsub.f32 %v8360, %v8428
        %v8617 = vsub.f32 %v8361, %v8431
        %v8618 = vsub.f32 %v8362, %v8434
        %v8619 = vsub.f32 %v8363, %v8437
        %v8620 = vsub.f32 %v8364, %v8440
        %v8621 = vsub.f32 %v8365, %v8443
        %v8622 = vsub.f32 %v8366, %v8446
        %v8623 = vsub.f32 %v8367, %v8449
        %v8624 = vsub.f32 %v8368, %v8452
        %v8625 = vsub.f32 %v8369, %v8455
        %v8626 = vsub.f32 %v8370, %v8458
        %v8627 = vsub.f32 %v8371, %v8461
        %v8628 = vsub.f32 %v8372, %v8464
        %v8629 = vsub.f32 %v8373, %v8467
        %v8630 = vsub.f32 %v8374, %v8470
        %v8631 = vsub.f32 %v8375, %v8473
        %v8632 = vsub.f32 %v8376, %v8476
        %v8633 = vsub.f32 %v8377, %v8479
        %v8634 = vsub.f32 %v8378, %v8482
        %v8635 = vsub.f32 %v8379, %v8485
        %v8636 = vsub.f32 %v8380, %v8488
        %v8637 = vsub.f32 %v8381, %v8491
        %v8638 = vsub.f32 %v8382, %v8494
        %v8639 = vsub.f32 %v8383, %v8497
        %v8640 = vsub.f32 %v8384, %v8500
        %v8641 = vsub.f32 %v8385, %v8503
        %v8642 = vsub.f32 %v8386, %v8506
        %v8643 = vsub.f32 %v8387, %v8509
        %v8644 = vsub.f32 %v8388, %v8512
        %v8645 = vsub.f32 %v8389, %v8515
        %v8646 = vsub.f32 %v8390, %v8518
        %v8647 = vsub.f32 %v8391, %v8521
        %v8648 = vsub.f32 %v8392, %v8524
        %v8649 = vsub.f32 %v8393, %v8527
        %v8650 = vsub.f32 %v8394, %v8530
        %v8651 = vsub.f32 %v8395, %v8533
        %v8652 = vsub.f32 %v8396, %v8536
        %v8653 = vsub.f32 %v8397, %v8539
        %v8654 = vsub.f32 %v8398, %v8542
        %v8655 = vsub.f32 %v8399, %v8545
        %v8656 = vsub.f32 %v8400, %v8548
        %v8657 = vsub.f32 %v8401, %v8551
        %v8658 = vsub.f32 %v8402, %v8554
        %v8659 = vsub.f32 %v8403, %v8557
        %v8660 = vsub.f32 %v8404, %v8560
        %v8661 = vsub.f32 %v8405, %v8563
        %v8662 = vsub.f32 %v8406, %v8566
        %v8663 = vsub.f32 %v8407, %v8569
        %v8664 = vsub.f32 %v8408, %v8572
        %v8665 = vsub.f32 %v8409, %v8575
        %v8666 = vsub.f32 %v8410, %v8578
        %v8667 = vsub.f32 %v8411, %v8581
        %v8668 = vsub.f32 %v8412, %v8584
        %v8669 = vsub.f32 %v8413, %v8587
        %v8670 = vsub.f32 %v8414, %v8590
        %v8671 = vsub.f32 %v8415, %v8593
        %v8672 = vsub.f32 %v8416, %v8596
        %v8673 = vsub.f32 %v8417, %v8599
        %v8674 = vsub.f32 %v8418, %v8602
        %v8675 = vsub.f32 %v8419, %v8605
        %v8676 = vsub.f32 %v8420, %v8608
        %v8677 = vsub.f32 %v8421, %v8611
        %v8678 = vsub.f32 %v8422, %v8614
        %v8679 = vmul.f32 %v8615, 1.442695
        %v8680 = vpow.pop %v8679
        %v8681 = vmul.f32 %v8616, 1.442695
        %v8682 = vpow.pop %v8681
        %v8683 = vmul.f32 %v8617, 1.442695
        %v8684 = vpow.pop %v8683
        %v8685 = vmul.f32 %v8618, 1.442695
        %v8686 = vpow.pop %v8685
        %v8687 = vmul.f32 %v8619, 1.442695
        %v8688 = vpow.pop %v8687
        %v8689 = vmul.f32 %v8620, 1.442695
        %v8690 = vpow.pop %v8689
        %v8691 = vmul.f32 %v8621, 1.442695
        %v8692 = vpow.pop %v8691
        %v8693 = vmul.f32 %v8622, 1.442695
        %v8694 = vpow.pop %v8693
        %v8695 = vmul.f32 %v8623, 1.442695
        %v8696 = vpow.pop %v8695
        %v8697 = vmul.f32 %v8624, 1.442695
        %v8698 = vpow.pop %v8697
        %v8699 = vmul.f32 %v8625, 1.442695
        %v8700 = vpow.pop %v8699
        %v8701 = vmul.f32 %v8626, 1.442695
        %v8702 = vpow.pop %v8701
        %v8703 = vmul.f32 %v8627, 1.442695
        %v8704 = vpow.pop %v8703
        %v8705 = vmul.f32 %v8628, 1.442695
        %v8706 = vpow.pop %v8705
        %v8707 = vmul.f32 %v8629, 1.442695
        %v8708 = vpow.pop %v8707
        %v8709 = vmul.f32 %v8630, 1.442695
        %v8710 = vpow.pop %v8709
        %v8711 = vmul.f32 %v8631, 1.442695
        %v8712 = vpow.pop %v8711
        %v8713 = vmul.f32 %v8632, 1.442695
        %v8714 = vpow.pop %v8713
        %v8715 = vmul.f32 %v8633, 1.442695
        %v8716 = vpow.pop %v8715
        %v8717 = vmul.f32 %v8634, 1.442695
        %v8718 = vpow.pop %v8717
        %v8719 = vmul.f32 %v8635, 1.442695
        %v8720 = vpow.pop %v8719
        %v8721 = vmul.f32 %v8636, 1.442695
        %v8722 = vpow.pop %v8721
        %v8723 = vmul.f32 %v8637, 1.442695
        %v8724 = vpow.pop %v8723
        %v8725 = vmul.f32 %v8638, 1.442695
        %v8726 = vpow.pop %v8725
        %v8727 = vmul.f32 %v8639, 1.442695
        %v8728 = vpow.pop %v8727
        %v8729 = vmul.f32 %v8640, 1.442695
        %v8730 = vpow.pop %v8729
        %v8731 = vmul.f32 %v8641, 1.442695
        %v8732 = vpow.pop %v8731
        %v8733 = vmul.f32 %v8642, 1.442695
        %v8734 = vpow.pop %v8733
        %v8735 = vmul.f32 %v8643, 1.442695
        %v8736 = vpow.pop %v8735
        %v8737 = vmul.f32 %v8644, 1.442695
        %v8738 = vpow.pop %v8737
        %v8739 = vmul.f32 %v8645, 1.442695
        %v8740 = vpow.pop %v8739
        %v8741 = vmul.f32 %v8646, 1.442695
        %v8742 = vpow.pop %v8741
        %v8743 = vmul.f32 %v8647, 1.442695
        %v8744 = vpow.pop %v8743
        %v8745 = vmul.f32 %v8648, 1.442695
        %v8746 = vpow.pop %v8745
        %v8747 = vmul.f32 %v8649, 1.442695
        %v8748 = vpow.pop %v8747
        %v8749 = vmul.f32 %v8650, 1.442695
        %v8750 = vpow.pop %v8749
        %v8751 = vmul.f32 %v8651, 1.442695
        %v8752 = vpow.pop %v8751
        %v8753 = vmul.f32 %v8652, 1.442695
        %v8754 = vpow.pop %v8753
        %v8755 = vmul.f32 %v8653, 1.442695
        %v8756 = vpow.pop %v8755
        %v8757 = vmul.f32 %v8654, 1.442695
        %v8758 = vpow.pop %v8757
        %v8759 = vmul.f32 %v8655, 1.442695
        %v8760 = vpow.pop %v8759
        %v8761 = vmul.f32 %v8656, 1.442695
        %v8762 = vpow.pop %v8761
        %v8763 = vmul.f32 %v8657, 1.442695
        %v8764 = vpow.pop %v8763
        %v8765 = vmul.f32 %v8658, 1.442695
        %v8766 = vpow.pop %v8765
        %v8767 = vmul.f32 %v8659, 1.442695
        %v8768 = vpow.pop %v8767
        %v8769 = vmul.f32 %v8660, 1.442695
        %v8770 = vpow.pop %v8769
        %v8771 = vmul.f32 %v8661, 1.442695
        %v8772 = vpow.pop %v8771
        %v8773 = vmul.f32 %v8662, 1.442695
        %v8774 = vpow.pop %v8773
        %v8775 = vmul.f32 %v8663, 1.442695
        %v8776 = vpow.pop %v8775
        %v8777 = vmul.f32 %v8664, 1.442695
        %v8778 = vpow.pop %v8777
        %v8779 = vmul.f32 %v8665, 1.442695
        %v8780 = vpow.pop %v8779
        %v8781 = vmul.f32 %v8666, 1.442695
        %v8782 = vpow.pop %v8781
        %v8783 = vmul.f32 %v8667, 1.442695
        %v8784 = vpow.pop %v8783
        %v8785 = vmul.f32 %v8668, 1.442695
        %v8786 = vpow.pop %v8785
        %v8787 = vmul.f32 %v8669, 1.442695
        %v8788 = vpow.pop %v8787
        %v8789 = vmul.f32 %v8670, 1.442695
        %v8790 = vpow.pop %v8789
        %v8791 = vmul.f32 %v8671, 1.442695
        %v8792 = vpow.pop %v8791
        %v8793 = vmul.f32 %v8672, 1.442695
        %v8794 = vpow.pop %v8793
        %v8795 = vmul.f32 %v8673, 1.442695
        %v8796 = vpow.pop %v8795
        %v8797 = vmul.f32 %v8674, 1.442695
        %v8798 = vpow.pop %v8797
        %v8799 = vmul.f32 %v8675, 1.442695
        %v8800 = vpow.pop %v8799
        %v8801 = vmul.f32 %v8676, 1.442695
        %v8802 = vpow.pop %v8801
        %v8803 = vmul.f32 %v8677, 1.442695
        %v8804 = vpow.pop %v8803
        %v8805 = vmul.f32 %v8678, 1.442695
        %v8806 = vpow.pop %v8805
        %v8807 = vsel %vm2274, %v8680, 0.0
        %8808 = vadd.xlane.f32.xlu0 %v8807
        %v8809 = vpop.xlane.xlu0 %8808
        %v8810 = vsel %vm2274, %v8682, 0.0
        %8811 = vadd.xlane.f32.xlu0 %v8810
        %v8812 = vpop.xlane.xlu0 %8811
        %v8813 = vsel %vm2274, %v8684, 0.0
        %8814 = vadd.xlane.f32.xlu0 %v8813
        %v8815 = vpop.xlane.xlu0 %8814
        %v8816 = vsel %vm2274, %v8686, 0.0
        %8817 = vadd.xlane.f32.xlu0 %v8816
        %v8818 = vpop.xlane.xlu0 %8817
        %v8819 = vsel %vm2274, %v8688, 0.0
        %8820 = vadd.xlane.f32.xlu0 %v8819
        %v8821 = vpop.xlane.xlu0 %8820
        %v8822 = vsel %vm2274, %v8690, 0.0
        %8823 = vadd.xlane.f32.xlu0 %v8822
        %v8824 = vpop.xlane.xlu0 %8823
        %v8825 = vsel %vm2274, %v8692, 0.0
        %8826 = vadd.xlane.f32.xlu0 %v8825
        %v8827 = vpop.xlane.xlu0 %8826
        %v8828 = vsel %vm2274, %v8694, 0.0
        %8829 = vadd.xlane.f32.xlu0 %v8828
        %v8830 = vpop.xlane.xlu0 %8829
        %v8831 = vsel %vm2274, %v8696, 0.0
        %8832 = vadd.xlane.f32.xlu0 %v8831
        %v8833 = vpop.xlane.xlu0 %8832
        %v8834 = vsel %vm2274, %v8698, 0.0
        %8835 = vadd.xlane.f32.xlu0 %v8834
        %v8836 = vpop.xlane.xlu0 %8835
        %v8837 = vsel %vm2274, %v8700, 0.0
        %8838 = vadd.xlane.f32.xlu0 %v8837
        %v8839 = vpop.xlane.xlu0 %8838
        %v8840 = vsel %vm2274, %v8702, 0.0
        %8841 = vadd.xlane.f32.xlu0 %v8840
        %v8842 = vpop.xlane.xlu0 %8841
        %v8843 = vsel %vm2274, %v8704, 0.0
        %8844 = vadd.xlane.f32.xlu0 %v8843
        %v8845 = vpop.xlane.xlu0 %8844
        %v8846 = vsel %vm2274, %v8706, 0.0
        %8847 = vadd.xlane.f32.xlu0 %v8846
        %v8848 = vpop.xlane.xlu0 %8847
        %v8849 = vsel %vm2274, %v8708, 0.0
        %8850 = vadd.xlane.f32.xlu0 %v8849
        %v8851 = vpop.xlane.xlu0 %8850
        %v8852 = vsel %vm2274, %v8710, 0.0
        %8853 = vadd.xlane.f32.xlu0 %v8852
        %v8854 = vpop.xlane.xlu0 %8853
        %v8855 = vsel %vm2274, %v8712, 0.0
        %8856 = vadd.xlane.f32.xlu0 %v8855
        %v8857 = vpop.xlane.xlu0 %8856
        %v8858 = vsel %vm2274, %v8714, 0.0
        %8859 = vadd.xlane.f32.xlu0 %v8858
        %v8860 = vpop.xlane.xlu0 %8859
        %v8861 = vsel %vm2274, %v8716, 0.0
        %8862 = vadd.xlane.f32.xlu0 %v8861
        %v8863 = vpop.xlane.xlu0 %8862
        %v8864 = vsel %vm2274, %v8718, 0.0
        %8865 = vadd.xlane.f32.xlu0 %v8864
        %v8866 = vpop.xlane.xlu0 %8865
        %v8867 = vsel %vm2274, %v8720, 0.0
        %8868 = vadd.xlane.f32.xlu0 %v8867
        %v8869 = vpop.xlane.xlu0 %8868
        %v8870 = vsel %vm2274, %v8722, 0.0
        %8871 = vadd.xlane.f32.xlu0 %v8870
        %v8872 = vpop.xlane.xlu0 %8871
        %v8873 = vsel %vm2274, %v8724, 0.0
        %8874 = vadd.xlane.f32.xlu0 %v8873
        %v8875 = vpop.xlane.xlu0 %8874
        %v8876 = vsel %vm2274, %v8726, 0.0
        %8877 = vadd.xlane.f32.xlu0 %v8876
        %v8878 = vpop.xlane.xlu0 %8877
        %v8879 = vsel %vm2274, %v8728, 0.0
        %8880 = vadd.xlane.f32.xlu0 %v8879
        %v8881 = vpop.xlane.xlu0 %8880
        %v8882 = vsel %vm2274, %v8730, 0.0
        %8883 = vadd.xlane.f32.xlu0 %v8882
        %v8884 = vpop.xlane.xlu0 %8883
        %v8885 = vsel %vm2274, %v8732, 0.0
        %8886 = vadd.xlane.f32.xlu0 %v8885
        %v8887 = vpop.xlane.xlu0 %8886
        %v8888 = vsel %vm2274, %v8734, 0.0
        %8889 = vadd.xlane.f32.xlu0 %v8888
        %v8890 = vpop.xlane.xlu0 %8889
        %v8891 = vsel %vm2274, %v8736, 0.0
        %8892 = vadd.xlane.f32.xlu0 %v8891
        %v8893 = vpop.xlane.xlu0 %8892
        %v8894 = vsel %vm2274, %v8738, 0.0
        %8895 = vadd.xlane.f32.xlu0 %v8894
        %v8896 = vpop.xlane.xlu0 %8895
        %v8897 = vsel %vm2274, %v8740, 0.0
        %8898 = vadd.xlane.f32.xlu0 %v8897
        %v8899 = vpop.xlane.xlu0 %8898
        %v8900 = vsel %vm2274, %v8742, 0.0
        %8901 = vadd.xlane.f32.xlu0 %v8900
        %v8902 = vpop.xlane.xlu0 %8901
        %v8903 = vsel %vm2274, %v8744, 0.0
        %8904 = vadd.xlane.f32.xlu0 %v8903
        %v8905 = vpop.xlane.xlu0 %8904
        %v8906 = vsel %vm2274, %v8746, 0.0
        %8907 = vadd.xlane.f32.xlu0 %v8906
        %v8908 = vpop.xlane.xlu0 %8907
        %v8909 = vsel %vm2274, %v8748, 0.0
        %8910 = vadd.xlane.f32.xlu0 %v8909
        %v8911 = vpop.xlane.xlu0 %8910
        %v8912 = vsel %vm2274, %v8750, 0.0
        %8913 = vadd.xlane.f32.xlu0 %v8912
        %v8914 = vpop.xlane.xlu0 %8913
        %v8915 = vsel %vm2274, %v8752, 0.0
        %8916 = vadd.xlane.f32.xlu0 %v8915
        %v8917 = vpop.xlane.xlu0 %8916
        %v8918 = vsel %vm2274, %v8754, 0.0
        %8919 = vadd.xlane.f32.xlu0 %v8918
        %v8920 = vpop.xlane.xlu0 %8919
        %v8921 = vsel %vm2274, %v8756, 0.0
        %8922 = vadd.xlane.f32.xlu0 %v8921
        %v8923 = vpop.xlane.xlu0 %8922
        %v8924 = vsel %vm2274, %v8758, 0.0
        %8925 = vadd.xlane.f32.xlu0 %v8924
        %v8926 = vpop.xlane.xlu0 %8925
        %v8927 = vsel %vm2274, %v8760, 0.0
        %8928 = vadd.xlane.f32.xlu0 %v8927
        %v8929 = vpop.xlane.xlu0 %8928
        %v8930 = vsel %vm2274, %v8762, 0.0
        %8931 = vadd.xlane.f32.xlu0 %v8930
        %v8932 = vpop.xlane.xlu0 %8931
        %v8933 = vsel %vm2274, %v8764, 0.0
        %8934 = vadd.xlane.f32.xlu0 %v8933
        %v8935 = vpop.xlane.xlu0 %8934
        %v8936 = vsel %vm2274, %v8766, 0.0
        %8937 = vadd.xlane.f32.xlu0 %v8936
        %v8938 = vpop.xlane.xlu0 %8937
        %v8939 = vsel %vm2274, %v8768, 0.0
        %8940 = vadd.xlane.f32.xlu0 %v8939
        %v8941 = vpop.xlane.xlu0 %8940
        %v8942 = vsel %vm2274, %v8770, 0.0
        %8943 = vadd.xlane.f32.xlu0 %v8942
        %v8944 = vpop.xlane.xlu0 %8943
        %v8945 = vsel %vm2274, %v8772, 0.0
        %8946 = vadd.xlane.f32.xlu0 %v8945
        %v8947 = vpop.xlane.xlu0 %8946
        %v8948 = vsel %vm2274, %v8774, 0.0
        %8949 = vadd.xlane.f32.xlu0 %v8948
        %v8950 = vpop.xlane.xlu0 %8949
        %v8951 = vsel %vm2274, %v8776, 0.0
        %8952 = vadd.xlane.f32.xlu0 %v8951
        %v8953 = vpop.xlane.xlu0 %8952
        %v8954 = vsel %vm2274, %v8778, 0.0
        %8955 = vadd.xlane.f32.xlu0 %v8954
        %v8956 = vpop.xlane.xlu0 %8955
        %v8957 = vsel %vm2274, %v8780, 0.0
        %8958 = vadd.xlane.f32.xlu0 %v8957
        %v8959 = vpop.xlane.xlu0 %8958
        %v8960 = vsel %vm2274, %v8782, 0.0
        %8961 = vadd.xlane.f32.xlu0 %v8960
        %v8962 = vpop.xlane.xlu0 %8961
        %v8963 = vsel %vm2274, %v8784, 0.0
        %8964 = vadd.xlane.f32.xlu0 %v8963
        %v8965 = vpop.xlane.xlu0 %8964
        %v8966 = vsel %vm2274, %v8786, 0.0
        %8967 = vadd.xlane.f32.xlu0 %v8966
        %v8968 = vpop.xlane.xlu0 %8967
        %v8969 = vsel %vm2274, %v8788, 0.0
        %8970 = vadd.xlane.f32.xlu0 %v8969
        %v8971 = vpop.xlane.xlu0 %8970
        %v8972 = vsel %vm2274, %v8790, 0.0
        %8973 = vadd.xlane.f32.xlu0 %v8972
        %v8974 = vpop.xlane.xlu0 %8973
        %v8975 = vsel %vm2274, %v8792, 0.0
        %8976 = vadd.xlane.f32.xlu0 %v8975
        %v8977 = vpop.xlane.xlu0 %8976
        %v8978 = vsel %vm2274, %v8794, 0.0
        %8979 = vadd.xlane.f32.xlu0 %v8978
        %v8980 = vpop.xlane.xlu0 %8979
        %v8981 = vsel %vm2274, %v8796, 0.0
        %8982 = vadd.xlane.f32.xlu0 %v8981
        %v8983 = vpop.xlane.xlu0 %8982
        %v8984 = vsel %vm2274, %v8798, 0.0
        %8985 = vadd.xlane.f32.xlu0 %v8984
        %v8986 = vpop.xlane.xlu0 %8985
        %v8987 = vsel %vm2274, %v8800, 0.0
        %8988 = vadd.xlane.f32.xlu0 %v8987
        %v8989 = vpop.xlane.xlu0 %8988
        %v8990 = vsel %vm2274, %v8802, 0.0
        %8991 = vadd.xlane.f32.xlu0 %v8990
        %v8992 = vpop.xlane.xlu0 %8991
        %v8993 = vsel %vm2274, %v8804, 0.0
        %8994 = vadd.xlane.f32.xlu0 %v8993
        %v8995 = vpop.xlane.xlu0 %8994
        %v8996 = vsel %vm2274, %v8806, 0.0
        %8997 = vadd.xlane.f32.xlu0 %v8996
        %v8998 = vpop.xlane.xlu0 %8997
        %v8999 = vrcp.pop %v8809
        %v9000 = vrcp.pop %v8812
        %v9001 = vrcp.pop %v8815
        %v9002 = vrcp.pop %v8818
        %v9003 = vrcp.pop %v8821
        %v9004 = vrcp.pop %v8824
        %v9005 = vrcp.pop %v8827
        %v9006 = vrcp.pop %v8830
        %v9007 = vrcp.pop %v8833
        %v9008 = vrcp.pop %v8836
        %v9009 = vrcp.pop %v8839
        %v9010 = vrcp.pop %v8842
        %v9011 = vrcp.pop %v8845
        %v9012 = vrcp.pop %v8848
        %v9013 = vrcp.pop %v8851
        %v9014 = vrcp.pop %v8854
        %v9015 = vrcp.pop %v8857
        %v9016 = vrcp.pop %v8860
        %v9017 = vrcp.pop %v8863
        %v9018 = vrcp.pop %v8866
        %v9019 = vrcp.pop %v8869
        %v9020 = vrcp.pop %v8872
        %v9021 = vrcp.pop %v8875
        %v9022 = vrcp.pop %v8878
        %v9023 = vrcp.pop %v8881
        %v9024 = vrcp.pop %v8884
        %v9025 = vrcp.pop %v8887
        %v9026 = vrcp.pop %v8890
        %v9027 = vrcp.pop %v8893
        %v9028 = vrcp.pop %v8896
        %v9029 = vrcp.pop %v8899
        %v9030 = vrcp.pop %v8902
        %v9031 = vrcp.pop %v8905
        %v9032 = vrcp.pop %v8908
        %v9033 = vrcp.pop %v8911
        %v9034 = vrcp.pop %v8914
        %v9035 = vrcp.pop %v8917
        %v9036 = vrcp.pop %v8920
        %v9037 = vrcp.pop %v8923
        %v9038 = vrcp.pop %v8926
        %v9039 = vrcp.pop %v8929
        %v9040 = vrcp.pop %v8932
        %v9041 = vrcp.pop %v8935
        %v9042 = vrcp.pop %v8938
        %v9043 = vrcp.pop %v8941
        %v9044 = vrcp.pop %v8944
        %v9045 = vrcp.pop %v8947
        %v9046 = vrcp.pop %v8950
        %v9047 = vrcp.pop %v8953
        %v9048 = vrcp.pop %v8956
        %v9049 = vrcp.pop %v8959
        %v9050 = vrcp.pop %v8962
        %v9051 = vrcp.pop %v8965
        %v9052 = vrcp.pop %v8968
        %v9053 = vrcp.pop %v8971
        %v9054 = vrcp.pop %v8974
        %v9055 = vrcp.pop %v8977
        %v9056 = vrcp.pop %v8980
        %v9057 = vrcp.pop %v8983
        %v9058 = vrcp.pop %v8986
        %v9059 = vrcp.pop %v8989
        %v9060 = vrcp.pop %v8992
        %v9061 = vrcp.pop %v8995
        %v9062 = vrcp.pop %v8998
        %v9063 = vmul.f32 %v8680, %v8999
        %v9064 = vmul.f32 %v8682, %v9000
        %v9065 = vmul.f32 %v8684, %v9001
        %v9066 = vmul.f32 %v8686, %v9002
        %v9067 = vmul.f32 %v8688, %v9003
        %v9068 = vmul.f32 %v8690, %v9004
        %v9069 = vmul.f32 %v8692, %v9005
        %v9070 = vmul.f32 %v8694, %v9006
        %v9071 = vmul.f32 %v8696, %v9007
        %v9072 = vmul.f32 %v8698, %v9008
        %v9073 = vmul.f32 %v8700, %v9009
        %v9074 = vmul.f32 %v8702, %v9010
        %v9075 = vmul.f32 %v8704, %v9011
        %v9076 = vmul.f32 %v8706, %v9012
        %v9077 = vmul.f32 %v8708, %v9013
        %v9078 = vmul.f32 %v8710, %v9014
        %v9079 = vmul.f32 %v8712, %v9015
        %v9080 = vmul.f32 %v8714, %v9016
        %v9081 = vmul.f32 %v8716, %v9017
        %v9082 = vmul.f32 %v8718, %v9018
        %v9083 = vmul.f32 %v8720, %v9019
        %v9084 = vmul.f32 %v8722, %v9020
        %v9085 = vmul.f32 %v8724, %v9021
        %v9086 = vmul.f32 %v8726, %v9022
        %v9087 = vmul.f32 %v8728, %v9023
        %v9088 = vmul.f32 %v8730, %v9024
        %v9089 = vmul.f32 %v8732, %v9025
        %v9090 = vmul.f32 %v8734, %v9026
        %v9091 = vmul.f32 %v8736, %v9027
        %v9092 = vmul.f32 %v8738, %v9028
        %v9093 = vmul.f32 %v8740, %v9029
        %v9094 = vmul.f32 %v8742, %v9030
        %v9095 = vmul.f32 %v8744, %v9031
        %v9096 = vmul.f32 %v8746, %v9032
        %v9097 = vmul.f32 %v8748, %v9033
        %v9098 = vmul.f32 %v8750, %v9034
        %v9099 = vmul.f32 %v8752, %v9035
        %v9100 = vmul.f32 %v8754, %v9036
        %v9101 = vmul.f32 %v8756, %v9037
        %v9102 = vmul.f32 %v8758, %v9038
        %v9103 = vmul.f32 %v8760, %v9039
        %v9104 = vmul.f32 %v8762, %v9040
        %v9105 = vmul.f32 %v8764, %v9041
        %v9106 = vmul.f32 %v8766, %v9042
        %v9107 = vmul.f32 %v8768, %v9043
        %v9108 = vmul.f32 %v8770, %v9044
        %v9109 = vmul.f32 %v8772, %v9045
        %v9110 = vmul.f32 %v8774, %v9046
        %v9111 = vmul.f32 %v8776, %v9047
        %v9112 = vmul.f32 %v8778, %v9048
        %v9113 = vmul.f32 %v8780, %v9049
        %v9114 = vmul.f32 %v8782, %v9050
        %v9115 = vmul.f32 %v8784, %v9051
        %v9116 = vmul.f32 %v8786, %v9052
        %v9117 = vmul.f32 %v8788, %v9053
        %v9118 = vmul.f32 %v8790, %v9054
        %v9119 = vmul.f32 %v8792, %v9055
        %v9120 = vmul.f32 %v8794, %v9056
        %v9121 = vmul.f32 %v8796, %v9057
        %v9122 = vmul.f32 %v8798, %v9058
        %v9123 = vmul.f32 %v8800, %v9059
        %v9124 = vmul.f32 %v8802, %v9060
        %v9125 = vmul.f32 %v8804, %v9061
        %v9126 = vmul.f32 %v8806, %v9062
        %v9127 = vpack.c.bf16 %v9063, %v9063
        %v9128 = vpack.c.bf16 %v9064, %v9064
        %v9129 = vpack.c.bf16 %v9065, %v9065
        %v9130 = vpack.c.bf16 %v9066, %v9066
        %v9131 = vpack.c.bf16 %v9067, %v9067
        %v9132 = vpack.c.bf16 %v9068, %v9068
        %v9133 = vpack.c.bf16 %v9069, %v9069
        %v9134 = vpack.c.bf16 %v9070, %v9070
        %v9135 = vpack.c.bf16 %v9071, %v9071
        %v9136 = vpack.c.bf16 %v9072, %v9072
        %v9137 = vpack.c.bf16 %v9073, %v9073
        %v9138 = vpack.c.bf16 %v9074, %v9074
        %v9139 = vpack.c.bf16 %v9075, %v9075
        %v9140 = vpack.c.bf16 %v9076, %v9076
        %v9141 = vpack.c.bf16 %v9077, %v9077
        %v9142 = vpack.c.bf16 %v9078, %v9078
        %v9143 = vpack.c.bf16 %v9079, %v9079
        %v9144 = vpack.c.bf16 %v9080, %v9080
        %v9145 = vpack.c.bf16 %v9081, %v9081
        %v9146 = vpack.c.bf16 %v9082, %v9082
        %v9147 = vpack.c.bf16 %v9083, %v9083
        %v9148 = vpack.c.bf16 %v9084, %v9084
        %v9149 = vpack.c.bf16 %v9085, %v9085
        %v9150 = vpack.c.bf16 %v9086, %v9086
        %v9151 = vpack.c.bf16 %v9087, %v9087
        %v9152 = vpack.c.bf16 %v9088, %v9088
        %v9153 = vpack.c.bf16 %v9089, %v9089
        %v9154 = vpack.c.bf16 %v9090, %v9090
        %v9155 = vpack.c.bf16 %v9091, %v9091
        %v9156 = vpack.c.bf16 %v9092, %v9092
        %v9157 = vpack.c.bf16 %v9093, %v9093
        %v9158 = vpack.c.bf16 %v9094, %v9094
        %v9159 = vpack.c.bf16 %v9095, %v9095
        %v9160 = vpack.c.bf16 %v9096, %v9096
        %v9161 = vpack.c.bf16 %v9097, %v9097
        %v9162 = vpack.c.bf16 %v9098, %v9098
        %v9163 = vpack.c.bf16 %v9099, %v9099
        %v9164 = vpack.c.bf16 %v9100, %v9100
        %v9165 = vpack.c.bf16 %v9101, %v9101
        %v9166 = vpack.c.bf16 %v9102, %v9102
        %v9167 = vpack.c.bf16 %v9103, %v9103
        %v9168 = vpack.c.bf16 %v9104, %v9104
        %v9169 = vpack.c.bf16 %v9105, %v9105
        %v9170 = vpack.c.bf16 %v9106, %v9106
        %v9171 = vpack.c.bf16 %v9107, %v9107
        %v9172 = vpack.c.bf16 %v9108, %v9108
        %v9173 = vpack.c.bf16 %v9109, %v9109
        %v9174 = vpack.c.bf16 %v9110, %v9110
        %v9175 = vpack.c.bf16 %v9111, %v9111
        %v9176 = vpack.c.bf16 %v9112, %v9112
        %v9177 = vpack.c.bf16 %v9113, %v9113
        %v9178 = vpack.c.bf16 %v9114, %v9114
        %v9179 = vpack.c.bf16 %v9115, %v9115
        %v9180 = vpack.c.bf16 %v9116, %v9116
        %v9181 = vpack.c.bf16 %v9117, %v9117
        %v9182 = vpack.c.bf16 %v9118, %v9118
        %v9183 = vpack.c.bf16 %v9119, %v9119
        %v9184 = vpack.c.bf16 %v9120, %v9120
        %v9185 = vpack.c.bf16 %v9121, %v9121
        %v9186 = vpack.c.bf16 %v9122, %v9122
        %v9187 = vpack.c.bf16 %v9123, %v9123
        %v9188 = vpack.c.bf16 %v9124, %v9124
        %v9189 = vpack.c.bf16 %v9125, %v9125
        %v9190 = vpack.c.bf16 %v9126, %v9126
        %v9199 = vunpack.c.l.b16 %v9127
        %v9200 = vunpack.c.l.b16 %v9128
        %v9201 = vunpack.c.l.b16 %v9129
        %v9202 = vunpack.c.l.b16 %v9130
        %v9203 = vunpack.c.l.b16 %v9131
        %v9204 = vunpack.c.l.b16 %v9132
        %v9205 = vunpack.c.l.b16 %v9133
        %v9206 = vunpack.c.l.b16 %v9134
        %v9207 = vpack.c.b16 %v9200, %v9199
        %v9208 = vpack.c.b16 %v9202, %v9201
        %v9209 = vpack.c.b16 %v9204, %v9203
        %v9210 = vpack.c.b16 %v9206, %v9205
        %v9213 = vsel %vm2274, %v9207, 0
        %v9216 = vsel %vm2274, %v9208, 0
        %v9219 = vsel %vm2274, %v9209, 0
        %v9222 = vsel %vm2274, %v9210, 0
        %9224 = vmatpush.bf16.msra.mxu0 0
        %9225 = vmatpush.bf16.msra.mxu0 0
        %9226 = vmatpush.bf16.msra.mxu0 0
        %9227 = vmatpush.bf16.msra.mxu0 0
        %9228 = vmatpush.bf16.msra.mxu0 0
        %9229 = vmatpush.bf16.msra.mxu0 0
        %9230 = vmatpush.bf16.msra.mxu0 0
        %9231 = vmatpush.bf16.msra.mxu0 %v7317
        %9232 = vmatmul.bf16.gmra.mxu0 %v9213
        %v9233 = vpop.f32.mrf.mxu0
        %v9234 = vadd.f32 0.0, %v9233
        %v9235 = vpop.f32.mrf.mxu0
        %v9236 = vadd.f32 0.0, %v9235
        %9237 = vmatmul.bf16.gmra.mxu0 %v9216
        %v9238 = vpop.f32.mrf.mxu0
        %v9239 = vadd.f32 0.0, %v9238
        %v9240 = vpop.f32.mrf.mxu0
        %v9241 = vadd.f32 0.0, %v9240
        %9242 = vmatmul.bf16.gmra.mxu0 %v9219
        %v9243 = vpop.f32.mrf.mxu0
        %v9244 = vadd.f32 0.0, %v9243
        %v9245 = vpop.f32.mrf.mxu0
        %v9246 = vadd.f32 0.0, %v9245
        %9247 = vmatmul.bf16.gmra.mxu0 %v9222
        %v9248 = vpop.f32.mrf.mxu0
        %v9249 = vadd.f32 0.0, %v9248
        %v9250 = vpop.f32.mrf.mxu0
        %v9251 = vadd.f32 0.0, %v9250
        %9252 = vdwg.mxu0
        %v9261 = vunpack.c.l.b16 %v9135
        %v9262 = vunpack.c.l.b16 %v9136
        %v9263 = vunpack.c.l.b16 %v9137
        %v9264 = vunpack.c.l.b16 %v9138
        %v9265 = vunpack.c.l.b16 %v9139
        %v9266 = vunpack.c.l.b16 %v9140
        %v9267 = vunpack.c.l.b16 %v9141
        %v9268 = vunpack.c.l.b16 %v9142
        %v9269 = vpack.c.b16 %v9262, %v9261
        %v9270 = vpack.c.b16 %v9264, %v9263
        %v9271 = vpack.c.b16 %v9266, %v9265
        %v9272 = vpack.c.b16 %v9268, %v9267
        %v9275 = vsel %vm2274, %v9269, 0
        %v9278 = vsel %vm2274, %v9270, 0
        %v9281 = vsel %vm2274, %v9271, 0
        %v9284 = vsel %vm2274, %v9272, 0
        %9286 = vmatpush.bf16.msra.mxu0 0
        %9287 = vmatpush.bf16.msra.mxu0 0
        %9288 = vmatpush.bf16.msra.mxu0 0
        %9289 = vmatpush.bf16.msra.mxu0 0
        %9290 = vmatpush.bf16.msra.mxu0 0
        %9291 = vmatpush.bf16.msra.mxu0 0
        %9292 = vmatpush.bf16.msra.mxu0 0
        %9293 = vmatpush.bf16.msra.mxu0 %v7341
        %9294 = vmatmul.bf16.gmra.mxu0 %v9275
        %v9295 = vpop.f32.mrf.mxu0
        %v9296 = vadd.f32 0.0, %v9295
        %v9297 = vpop.f32.mrf.mxu0
        %v9298 = vadd.f32 0.0, %v9297
        %9299 = vmatmul.bf16.gmra.mxu0 %v9278
        %v9300 = vpop.f32.mrf.mxu0
        %v9301 = vadd.f32 0.0, %v9300
        %v9302 = vpop.f32.mrf.mxu0
        %v9303 = vadd.f32 0.0, %v9302
        %9304 = vmatmul.bf16.gmra.mxu0 %v9281
        %v9305 = vpop.f32.mrf.mxu0
        %v9306 = vadd.f32 0.0, %v9305
        %v9307 = vpop.f32.mrf.mxu0
        %v9308 = vadd.f32 0.0, %v9307
        %9309 = vmatmul.bf16.gmra.mxu0 %v9284
        %v9310 = vpop.f32.mrf.mxu0
        %v9311 = vadd.f32 0.0, %v9310
        %v9312 = vpop.f32.mrf.mxu0
        %v9313 = vadd.f32 0.0, %v9312
        %9314 = vdwg.mxu0
        %v9323 = vunpack.c.l.b16 %v9143
        %v9324 = vunpack.c.l.b16 %v9144
        %v9325 = vunpack.c.l.b16 %v9145
        %v9326 = vunpack.c.l.b16 %v9146
        %v9327 = vunpack.c.l.b16 %v9147
        %v9328 = vunpack.c.l.b16 %v9148
        %v9329 = vunpack.c.l.b16 %v9149
        %v9330 = vunpack.c.l.b16 %v9150
        %v9331 = vpack.c.b16 %v9324, %v9323
        %v9332 = vpack.c.b16 %v9326, %v9325
        %v9333 = vpack.c.b16 %v9328, %v9327
        %v9334 = vpack.c.b16 %v9330, %v9329
        %v9337 = vsel %vm2274, %v9331, 0
        %v9340 = vsel %vm2274, %v9332, 0
        %v9343 = vsel %vm2274, %v9333, 0
        %v9346 = vsel %vm2274, %v9334, 0
        %9348 = vmatpush.bf16.msra.mxu0 0
        %9349 = vmatpush.bf16.msra.mxu0 0
        %9350 = vmatpush.bf16.msra.mxu0 0
        %9351 = vmatpush.bf16.msra.mxu0 0
        %9352 = vmatpush.bf16.msra.mxu0 0
        %9353 = vmatpush.bf16.msra.mxu0 0
        %9354 = vmatpush.bf16.msra.mxu0 0
        %9355 = vmatpush.bf16.msra.mxu0 %v7362
        %9356 = vmatmul.bf16.gmra.mxu0 %v9337
        %v9357 = vpop.f32.mrf.mxu0
        %v9358 = vadd.f32 0.0, %v9357
        %v9359 = vpop.f32.mrf.mxu0
        %v9360 = vadd.f32 0.0, %v9359
        %9361 = vmatmul.bf16.gmra.mxu0 %v9340
        %v9362 = vpop.f32.mrf.mxu0
        %v9363 = vadd.f32 0.0, %v9362
        %v9364 = vpop.f32.mrf.mxu0
        %v9365 = vadd.f32 0.0, %v9364
        %9366 = vmatmul.bf16.gmra.mxu0 %v9343
        %v9367 = vpop.f32.mrf.mxu0
        %v9368 = vadd.f32 0.0, %v9367
        %v9369 = vpop.f32.mrf.mxu0
        %v9370 = vadd.f32 0.0, %v9369
        %9371 = vmatmul.bf16.gmra.mxu0 %v9346
        %v9372 = vpop.f32.mrf.mxu0
        %v9373 = vadd.f32 0.0, %v9372
        %v9374 = vpop.f32.mrf.mxu0
        %v9375 = vadd.f32 0.0, %v9374
        %9376 = vdwg.mxu0
        %v9385 = vunpack.c.l.b16 %v9151
        %v9386 = vunpack.c.l.b16 %v9152
        %v9387 = vunpack.c.l.b16 %v9153
        %v9388 = vunpack.c.l.b16 %v9154
        %v9389 = vunpack.c.l.b16 %v9155
        %v9390 = vunpack.c.l.b16 %v9156
        %v9391 = vunpack.c.l.b16 %v9157
        %v9392 = vunpack.c.l.b16 %v9158
        %v9393 = vpack.c.b16 %v9386, %v9385
        %v9394 = vpack.c.b16 %v9388, %v9387
        %v9395 = vpack.c.b16 %v9390, %v9389
        %v9396 = vpack.c.b16 %v9392, %v9391
        %v9399 = vsel %vm2274, %v9393, 0
        %v9402 = vsel %vm2274, %v9394, 0
        %v9405 = vsel %vm2274, %v9395, 0
        %v9408 = vsel %vm2274, %v9396, 0
        %9410 = vmatpush.bf16.msra.mxu0 0
        %9411 = vmatpush.bf16.msra.mxu0 0
        %9412 = vmatpush.bf16.msra.mxu0 0
        %9413 = vmatpush.bf16.msra.mxu0 0
        %9414 = vmatpush.bf16.msra.mxu0 0
        %9415 = vmatpush.bf16.msra.mxu0 0
        %9416 = vmatpush.bf16.msra.mxu0 0
        %9417 = vmatpush.bf16.msra.mxu0 %v7383
        %9418 = vmatmul.bf16.gmra.mxu0 %v9399
        %v9419 = vpop.f32.mrf.mxu0
        %v9420 = vadd.f32 0.0, %v9419
        %v9421 = vpop.f32.mrf.mxu0
        %v9422 = vadd.f32 0.0, %v9421
        %9423 = vmatmul.bf16.gmra.mxu0 %v9402
        %v9424 = vpop.f32.mrf.mxu0
        %v9425 = vadd.f32 0.0, %v9424
        %v9426 = vpop.f32.mrf.mxu0
        %v9427 = vadd.f32 0.0, %v9426
        %9428 = vmatmul.bf16.gmra.mxu0 %v9405
        %v9429 = vpop.f32.mrf.mxu0
        %v9430 = vadd.f32 0.0, %v9429
        %v9431 = vpop.f32.mrf.mxu0
        %v9432 = vadd.f32 0.0, %v9431
        %9433 = vmatmul.bf16.gmra.mxu0 %v9408
        %v9434 = vpop.f32.mrf.mxu0
        %v9435 = vadd.f32 0.0, %v9434
        %v9436 = vpop.f32.mrf.mxu0
        %v9437 = vadd.f32 0.0, %v9436
        %9438 = vdwg.mxu0
        %v9447 = vunpack.c.l.b16 %v9159
        %v9448 = vunpack.c.l.b16 %v9160
        %v9449 = vunpack.c.l.b16 %v9161
        %v9450 = vunpack.c.l.b16 %v9162
        %v9451 = vunpack.c.l.b16 %v9163
        %v9452 = vunpack.c.l.b16 %v9164
        %v9453 = vunpack.c.l.b16 %v9165
        %v9454 = vunpack.c.l.b16 %v9166
        %v9455 = vpack.c.b16 %v9448, %v9447
        %v9456 = vpack.c.b16 %v9450, %v9449
        %v9457 = vpack.c.b16 %v9452, %v9451
        %v9458 = vpack.c.b16 %v9454, %v9453
        %v9461 = vsel %vm2274, %v9455, 0
        %v9464 = vsel %vm2274, %v9456, 0
        %v9467 = vsel %vm2274, %v9457, 0
        %v9470 = vsel %vm2274, %v9458, 0
        %9472 = vmatpush.bf16.msra.mxu0 0
        %9473 = vmatpush.bf16.msra.mxu0 0
        %9474 = vmatpush.bf16.msra.mxu0 0
        %9475 = vmatpush.bf16.msra.mxu0 0
        %9476 = vmatpush.bf16.msra.mxu0 0
        %9477 = vmatpush.bf16.msra.mxu0 0
        %9478 = vmatpush.bf16.msra.mxu0 0
        %9479 = vmatpush.bf16.msra.mxu0 %v7404
        %9480 = vmatmul.bf16.gmra.mxu0 %v9461
        %v9481 = vpop.f32.mrf.mxu0
        %v9482 = vadd.f32 0.0, %v9481
        %v9483 = vpop.f32.mrf.mxu0
        %v9484 = vadd.f32 0.0, %v9483
        %9485 = vmatmul.bf16.gmra.mxu0 %v9464
        %v9486 = vpop.f32.mrf.mxu0
        %v9487 = vadd.f32 0.0, %v9486
        %v9488 = vpop.f32.mrf.mxu0
        %v9489 = vadd.f32 0.0, %v9488
        %9490 = vmatmul.bf16.gmra.mxu0 %v9467
        %v9491 = vpop.f32.mrf.mxu0
        %v9492 = vadd.f32 0.0, %v9491
        %v9493 = vpop.f32.mrf.mxu0
        %v9494 = vadd.f32 0.0, %v9493
        %9495 = vmatmul.bf16.gmra.mxu0 %v9470
        %v9496 = vpop.f32.mrf.mxu0
        %v9497 = vadd.f32 0.0, %v9496
        %v9498 = vpop.f32.mrf.mxu0
        %v9499 = vadd.f32 0.0, %v9498
        %9500 = vdwg.mxu0
        %v9509 = vunpack.c.l.b16 %v9167
        %v9510 = vunpack.c.l.b16 %v9168
        %v9511 = vunpack.c.l.b16 %v9169
        %v9512 = vunpack.c.l.b16 %v9170
        %v9513 = vunpack.c.l.b16 %v9171
        %v9514 = vunpack.c.l.b16 %v9172
        %v9515 = vunpack.c.l.b16 %v9173
        %v9516 = vunpack.c.l.b16 %v9174
        %v9517 = vpack.c.b16 %v9510, %v9509
        %v9518 = vpack.c.b16 %v9512, %v9511
        %v9519 = vpack.c.b16 %v9514, %v9513
        %v9520 = vpack.c.b16 %v9516, %v9515
        %v9523 = vsel %vm2274, %v9517, 0
        %v9526 = vsel %vm2274, %v9518, 0
        %v9529 = vsel %vm2274, %v9519, 0
        %v9532 = vsel %vm2274, %v9520, 0
        %9534 = vmatpush.bf16.msra.mxu0 0
        %9535 = vmatpush.bf16.msra.mxu0 0
        %9536 = vmatpush.bf16.msra.mxu0 0
        %9537 = vmatpush.bf16.msra.mxu0 0
        %9538 = vmatpush.bf16.msra.mxu0 0
        %9539 = vmatpush.bf16.msra.mxu0 0
        %9540 = vmatpush.bf16.msra.mxu0 0
        %9541 = vmatpush.bf16.msra.mxu0 %v7425
        %9542 = vmatmul.bf16.gmra.mxu0 %v9523
        %v9543 = vpop.f32.mrf.mxu0
        %v9544 = vadd.f32 0.0, %v9543
        %v9545 = vpop.f32.mrf.mxu0
        %v9546 = vadd.f32 0.0, %v9545
        %9547 = vmatmul.bf16.gmra.mxu0 %v9526
        %v9548 = vpop.f32.mrf.mxu0
        %v9549 = vadd.f32 0.0, %v9548
        %v9550 = vpop.f32.mrf.mxu0
        %v9551 = vadd.f32 0.0, %v9550
        %9552 = vmatmul.bf16.gmra.mxu0 %v9529
        %v9553 = vpop.f32.mrf.mxu0
        %v9554 = vadd.f32 0.0, %v9553
        %v9555 = vpop.f32.mrf.mxu0
        %v9556 = vadd.f32 0.0, %v9555
        %9557 = vmatmul.bf16.gmra.mxu0 %v9532
        %v9558 = vpop.f32.mrf.mxu0
        %v9559 = vadd.f32 0.0, %v9558
        %v9560 = vpop.f32.mrf.mxu0
        %v9561 = vadd.f32 0.0, %v9560
        %9562 = vdwg.mxu0
        %v9571 = vunpack.c.l.b16 %v9175
        %v9572 = vunpack.c.l.b16 %v9176
        %v9573 = vunpack.c.l.b16 %v9177
        %v9574 = vunpack.c.l.b16 %v9178
        %v9575 = vunpack.c.l.b16 %v9179
        %v9576 = vunpack.c.l.b16 %v9180
        %v9577 = vunpack.c.l.b16 %v9181
        %v9578 = vunpack.c.l.b16 %v9182
        %v9579 = vpack.c.b16 %v9572, %v9571
        %v9580 = vpack.c.b16 %v9574, %v9573
        %v9581 = vpack.c.b16 %v9576, %v9575
        %v9582 = vpack.c.b16 %v9578, %v9577
        %v9585 = vsel %vm2274, %v9579, 0
        %v9588 = vsel %vm2274, %v9580, 0
        %v9591 = vsel %vm2274, %v9581, 0
        %v9594 = vsel %vm2274, %v9582, 0
        %9596 = vmatpush.bf16.msra.mxu0 0
        %9597 = vmatpush.bf16.msra.mxu0 0
        %9598 = vmatpush.bf16.msra.mxu0 0
        %9599 = vmatpush.bf16.msra.mxu0 0
        %9600 = vmatpush.bf16.msra.mxu0 0
        %9601 = vmatpush.bf16.msra.mxu0 0
        %9602 = vmatpush.bf16.msra.mxu0 0
        %9603 = vmatpush.bf16.msra.mxu0 %v7446
        %9604 = vmatmul.bf16.gmra.mxu0 %v9585
        %v9605 = vpop.f32.mrf.mxu0
        %v9606 = vadd.f32 0.0, %v9605
        %v9607 = vpop.f32.mrf.mxu0
        %v9608 = vadd.f32 0.0, %v9607
        %9609 = vmatmul.bf16.gmra.mxu0 %v9588
        %v9610 = vpop.f32.mrf.mxu0
        %v9611 = vadd.f32 0.0, %v9610
        %v9612 = vpop.f32.mrf.mxu0
        %v9613 = vadd.f32 0.0, %v9612
        %9614 = vmatmul.bf16.gmra.mxu0 %v9591
        %v9615 = vpop.f32.mrf.mxu0
        %v9616 = vadd.f32 0.0, %v9615
        %v9617 = vpop.f32.mrf.mxu0
        %v9618 = vadd.f32 0.0, %v9617
        %9619 = vmatmul.bf16.gmra.mxu0 %v9594
        %v9620 = vpop.f32.mrf.mxu0
        %v9621 = vadd.f32 0.0, %v9620
        %v9622 = vpop.f32.mrf.mxu0
        %v9623 = vadd.f32 0.0, %v9622
        %9624 = vdwg.mxu0
        %v9633 = vunpack.c.l.b16 %v9183
        %v9634 = vunpack.c.l.b16 %v9184
        %v9635 = vunpack.c.l.b16 %v9185
        %v9636 = vunpack.c.l.b16 %v9186
        %v9637 = vunpack.c.l.b16 %v9187
        %v9638 = vunpack.c.l.b16 %v9188
        %v9639 = vunpack.c.l.b16 %v9189
        %v9640 = vunpack.c.l.b16 %v9190
        %v9641 = vpack.c.b16 %v9634, %v9633
        %v9642 = vpack.c.b16 %v9636, %v9635
        %v9643 = vpack.c.b16 %v9638, %v9637
        %v9644 = vpack.c.b16 %v9640, %v9639
        %v9647 = vsel %vm2274, %v9641, 0
        %v9650 = vsel %vm2274, %v9642, 0
        %v9653 = vsel %vm2274, %v9643, 0
        %v9656 = vsel %vm2274, %v9644, 0
        %9658 = vmatpush.bf16.msra.mxu0 0
        %9659 = vmatpush.bf16.msra.mxu0 0
        %9660 = vmatpush.bf16.msra.mxu0 0
        %9661 = vmatpush.bf16.msra.mxu0 0
        %9662 = vmatpush.bf16.msra.mxu0 0
        %9663 = vmatpush.bf16.msra.mxu0 0
        %9664 = vmatpush.bf16.msra.mxu0 0
        %9665 = vmatpush.bf16.msra.mxu0 %v7467
        %9666 = vmatmul.bf16.gmra.mxu0 %v9647
        %v9667 = vpop.f32.mrf.mxu0
        %v9668 = vadd.f32 0.0, %v9667
        %v9669 = vpop.f32.mrf.mxu0
        %v9670 = vadd.f32 0.0, %v9669
        %9671 = vmatmul.bf16.gmra.mxu0 %v9650
        %v9672 = vpop.f32.mrf.mxu0
        %v9673 = vadd.f32 0.0, %v9672
        %v9674 = vpop.f32.mrf.mxu0
        %v9675 = vadd.f32 0.0, %v9674
        %9676 = vmatmul.bf16.gmra.mxu0 %v9653
        %v9677 = vpop.f32.mrf.mxu0
        %v9678 = vadd.f32 0.0, %v9677
        %v9679 = vpop.f32.mrf.mxu0
        %v9680 = vadd.f32 0.0, %v9679
        %9681 = vmatmul.bf16.gmra.mxu0 %v9656
        %v9682 = vpop.f32.mrf.mxu0
        %v9683 = vadd.f32 0.0, %v9682
        %v9684 = vpop.f32.mrf.mxu0
        %v9685 = vadd.f32 0.0, %v9684
        %9686 = vdwg.mxu0
        %v9687 = vmul.f32 %v9234, %v3539
        %v9688 = vmul.f32 %v9236, %v3539
        %v9689 = vmul.f32 %v9239, %v3540
        %v9690 = vmul.f32 %v9241, %v3540
        %v9691 = vmul.f32 %v9244, %v3541
        %v9692 = vmul.f32 %v9246, %v3541
        %v9693 = vmul.f32 %v9249, %v3542
        %v9694 = vmul.f32 %v9251, %v3542
        %v9695 = vmul.f32 %v9296, %v3539
        %v9696 = vmul.f32 %v9298, %v3539
        %v9697 = vmul.f32 %v9301, %v3540
        %v9698 = vmul.f32 %v9303, %v3540
        %v9699 = vmul.f32 %v9306, %v3541
        %v9700 = vmul.f32 %v9308, %v3541
        %v9701 = vmul.f32 %v9311, %v3542
        %v9702 = vmul.f32 %v9313, %v3542
        %v9703 = vmul.f32 %v9358, %v3539
        %v9704 = vmul.f32 %v9360, %v3539
        %v9705 = vmul.f32 %v9363, %v3540
        %v9706 = vmul.f32 %v9365, %v3540
        %v9707 = vmul.f32 %v9368, %v3541
        %v9708 = vmul.f32 %v9370, %v3541
        %v9709 = vmul.f32 %v9373, %v3542
        %v9710 = vmul.f32 %v9375, %v3542
        %v9711 = vmul.f32 %v9420, %v3539
        %v9712 = vmul.f32 %v9422, %v3539
        %v9713 = vmul.f32 %v9425, %v3540
        %v9714 = vmul.f32 %v9427, %v3540
        %v9715 = vmul.f32 %v9430, %v3541
        %v9716 = vmul.f32 %v9432, %v3541
        %v9717 = vmul.f32 %v9435, %v3542
        %v9718 = vmul.f32 %v9437, %v3542
        %v9719 = vmul.f32 %v9482, %v3539
        %v9720 = vmul.f32 %v9484, %v3539
        %v9721 = vmul.f32 %v9487, %v3540
        %v9722 = vmul.f32 %v9489, %v3540
        %v9723 = vmul.f32 %v9492, %v3541
        %v9724 = vmul.f32 %v9494, %v3541
        %v9725 = vmul.f32 %v9497, %v3542
        %v9726 = vmul.f32 %v9499, %v3542
        %v9727 = vmul.f32 %v9544, %v3539
        %v9728 = vmul.f32 %v9546, %v3539
        %v9729 = vmul.f32 %v9549, %v3540
        %v9730 = vmul.f32 %v9551, %v3540
        %v9731 = vmul.f32 %v9554, %v3541
        %v9732 = vmul.f32 %v9556, %v3541
        %v9733 = vmul.f32 %v9559, %v3542
        %v9734 = vmul.f32 %v9561, %v3542
        %v9735 = vmul.f32 %v9606, %v3539
        %v9736 = vmul.f32 %v9608, %v3539
        %v9737 = vmul.f32 %v9611, %v3540
        %v9738 = vmul.f32 %v9613, %v3540
        %v9739 = vmul.f32 %v9616, %v3541
        %v9740 = vmul.f32 %v9618, %v3541
        %v9741 = vmul.f32 %v9621, %v3542
        %v9742 = vmul.f32 %v9623, %v3542
        %v9743 = vmul.f32 %v9668, %v3539
        %v9744 = vmul.f32 %v9670, %v3539
        %v9745 = vmul.f32 %v9673, %v3540
        %v9746 = vmul.f32 %v9675, %v3540
        %v9747 = vmul.f32 %v9678, %v3541
        %v9748 = vmul.f32 %v9680, %v3541
        %v9749 = vmul.f32 %v9683, %v3542
        %v9750 = vmul.f32 %v9685, %v3542
        %v9751 = vsel %vm1168, %v9687, 0.0
        %v9752 = vsel %vm1168, %v9689, 0.0
        %v9753 = vadd.f32 %v9751, %v9752
        %v9754 = vsel %vm1168, %v9691, 0.0
        %v9755 = vadd.f32 %v9753, %v9754
        %v9756 = vsel %vm1168, %v9693, 0.0
        %v9757 = vadd.f32 %v9755, %v9756
        %v9758 = vsel %vm1168, %v9688, 0.0
        %v9759 = vsel %vm1168, %v9690, 0.0
        %v9760 = vadd.f32 %v9758, %v9759
        %v9761 = vsel %vm1168, %v9692, 0.0
        %v9762 = vadd.f32 %v9760, %v9761
        %v9763 = vsel %vm1168, %v9694, 0.0
        %v9764 = vadd.f32 %v9762, %v9763
        %v9765 = vsel %vm1168, %v9695, 0.0
        %v9766 = vsel %vm1168, %v9697, 0.0
        %v9767 = vadd.f32 %v9765, %v9766
        %v9768 = vsel %vm1168, %v9699, 0.0
        %v9769 = vadd.f32 %v9767, %v9768
        %v9770 = vsel %vm1168, %v9701, 0.0
        %v9771 = vadd.f32 %v9769, %v9770
        %v9772 = vsel %vm1168, %v9696, 0.0
        %v9773 = vsel %vm1168, %v9698, 0.0
        %v9774 = vadd.f32 %v9772, %v9773
        %v9775 = vsel %vm1168, %v9700, 0.0
        %v9776 = vadd.f32 %v9774, %v9775
        %v9777 = vsel %vm1168, %v9702, 0.0
        %v9778 = vadd.f32 %v9776, %v9777
        %v9779 = vsel %vm1168, %v9703, 0.0
        %v9780 = vsel %vm1168, %v9705, 0.0
        %v9781 = vadd.f32 %v9779, %v9780
        %v9782 = vsel %vm1168, %v9707, 0.0
        %v9783 = vadd.f32 %v9781, %v9782
        %v9784 = vsel %vm1168, %v9709, 0.0
        %v9785 = vadd.f32 %v9783, %v9784
        %v9786 = vsel %vm1168, %v9704, 0.0
        %v9787 = vsel %vm1168, %v9706, 0.0
        %v9788 = vadd.f32 %v9786, %v9787
        %v9789 = vsel %vm1168, %v9708, 0.0
        %v9790 = vadd.f32 %v9788, %v9789
        %v9791 = vsel %vm1168, %v9710, 0.0
        %v9792 = vadd.f32 %v9790, %v9791
        %v9793 = vsel %vm1168, %v9711, 0.0
        %v9794 = vsel %vm1168, %v9713, 0.0
        %v9795 = vadd.f32 %v9793, %v9794
        %v9796 = vsel %vm1168, %v9715, 0.0
        %v9797 = vadd.f32 %v9795, %v9796
        %v9798 = vsel %vm1168, %v9717, 0.0
        %v9799 = vadd.f32 %v9797, %v9798
        %v9800 = vsel %vm1168, %v9712, 0.0
        %v9801 = vsel %vm1168, %v9714, 0.0
        %v9802 = vadd.f32 %v9800, %v9801
        %v9803 = vsel %vm1168, %v9716, 0.0
        %v9804 = vadd.f32 %v9802, %v9803
        %v9805 = vsel %vm1168, %v9718, 0.0
        %v9806 = vadd.f32 %v9804, %v9805
        %v9807 = vsel %vm1168, %v9719, 0.0
        %v9808 = vsel %vm1168, %v9721, 0.0
        %v9809 = vadd.f32 %v9807, %v9808
        %v9810 = vsel %vm1168, %v9723, 0.0
        %v9811 = vadd.f32 %v9809, %v9810
        %v9812 = vsel %vm1168, %v9725, 0.0
        %v9813 = vadd.f32 %v9811, %v9812
        %v9814 = vsel %vm1168, %v9720, 0.0
        %v9815 = vsel %vm1168, %v9722, 0.0
        %v9816 = vadd.f32 %v9814, %v9815
        %v9817 = vsel %vm1168, %v9724, 0.0
        %v9818 = vadd.f32 %v9816, %v9817
        %v9819 = vsel %vm1168, %v9726, 0.0
        %v9820 = vadd.f32 %v9818, %v9819
        %v9821 = vsel %vm1168, %v9727, 0.0
        %v9822 = vsel %vm1168, %v9729, 0.0
        %v9823 = vadd.f32 %v9821, %v9822
        %v9824 = vsel %vm1168, %v9731, 0.0
        %v9825 = vadd.f32 %v9823, %v9824
        %v9826 = vsel %vm1168, %v9733, 0.0
        %v9827 = vadd.f32 %v9825, %v9826
        %v9828 = vsel %vm1168, %v9728, 0.0
        %v9829 = vsel %vm1168, %v9730, 0.0
        %v9830 = vadd.f32 %v9828, %v9829
        %v9831 = vsel %vm1168, %v9732, 0.0
        %v9832 = vadd.f32 %v9830, %v9831
        %v9833 = vsel %vm1168, %v9734, 0.0
        %v9834 = vadd.f32 %v9832, %v9833
        %v9835 = vsel %vm1168, %v9735, 0.0
        %v9836 = vsel %vm1168, %v9737, 0.0
        %v9837 = vadd.f32 %v9835, %v9836
        %v9838 = vsel %vm1168, %v9739, 0.0
        %v9839 = vadd.f32 %v9837, %v9838
        %v9840 = vsel %vm1168, %v9741, 0.0
        %v9841 = vadd.f32 %v9839, %v9840
        %v9842 = vsel %vm1168, %v9736, 0.0
        %v9843 = vsel %vm1168, %v9738, 0.0
        %v9844 = vadd.f32 %v9842, %v9843
        %v9845 = vsel %vm1168, %v9740, 0.0
        %v9846 = vadd.f32 %v9844, %v9845
        %v9847 = vsel %vm1168, %v9742, 0.0
        %v9848 = vadd.f32 %v9846, %v9847
        %v9849 = vsel %vm1168, %v9743, 0.0
        %v9850 = vsel %vm1168, %v9745, 0.0
        %v9851 = vadd.f32 %v9849, %v9850
        %v9852 = vsel %vm1168, %v9747, 0.0
        %v9853 = vadd.f32 %v9851, %v9852
        %v9854 = vsel %vm1168, %v9749, 0.0
        %v9855 = vadd.f32 %v9853, %v9854
        %v9856 = vsel %vm1168, %v9744, 0.0
        %v9857 = vsel %vm1168, %v9746, 0.0
        %v9858 = vadd.f32 %v9856, %v9857
        %v9859 = vsel %vm1168, %v9748, 0.0
        %v9860 = vadd.f32 %v9858, %v9859
        %v9861 = vsel %vm1168, %v9750, 0.0
        %v9862 = vadd.f32 %v9860, %v9861
        %v9863 = vld [vmem:[%s20] sm:$0x1]
        %v9865 = vperm.slane %v9863, 0
        %v9867 = vadd.f32 %v9757, %v9865
        %v9868 = vadd.f32 %v9764, %v9865
        %v9869 = vadd.f32 %v9771, %v9865
        %v9870 = vadd.f32 %v9778, %v9865
        %v9871 = vadd.f32 %v9785, %v9865
        %v9872 = vadd.f32 %v9792, %v9865
        %v9873 = vadd.f32 %v9799, %v9865
        %v9874 = vadd.f32 %v9806, %v9865
        %v9875 = vadd.f32 %v9813, %v9865
        %v9876 = vadd.f32 %v9820, %v9865
        %v9877 = vadd.f32 %v9827, %v9865
        %v9878 = vadd.f32 %v9834, %v9865
        %v9879 = vadd.f32 %v9841, %v9865
        %v9880 = vadd.f32 %v9848, %v9865
        %v9881 = vadd.f32 %v9855, %v9865
        %v9882 = vadd.f32 %v9862, %v9865
        %v9883 = vsel %vm1168, %v9867, 0.0
        %v9884 = vsel %vm1168, %v9868, 0.0
        %v9885 = vadd.f32 %v9883, %v9884
        %v9886 = vrot.slane %v9885, 4
        %v9887 = vadd.f32 %v9885, %v9886
        %v9888 = vrot.slane %v9887, 2
        %v9889 = vadd.f32 %v9887, %v9888
        %v9890 = vrot.slane %v9889, 1
        %v9891 = vadd.f32 %v9889, %v9890
        %v9892 = vsel %vm1168, %v9869, 0.0
        %v9893 = vsel %vm1168, %v9870, 0.0
        %v9894 = vadd.f32 %v9892, %v9893
        %v9895 = vrot.slane %v9894, 4
        %v9896 = vadd.f32 %v9894, %v9895
        %v9897 = vrot.slane %v9896, 2
        %v9898 = vadd.f32 %v9896, %v9897
        %v9899 = vrot.slane %v9898, 1
        %v9900 = vadd.f32 %v9898, %v9899
        %v9901 = vsel %vm1168, %v9871, 0.0
        %v9902 = vsel %vm1168, %v9872, 0.0
        %v9903 = vadd.f32 %v9901, %v9902
        %v9904 = vrot.slane %v9903, 4
        %v9905 = vadd.f32 %v9903, %v9904
        %v9906 = vrot.slane %v9905, 2
        %v9907 = vadd.f32 %v9905, %v9906
        %v9908 = vrot.slane %v9907, 1
        %v9909 = vadd.f32 %v9907, %v9908
        %v9910 = vsel %vm1168, %v9873, 0.0
        %v9911 = vsel %vm1168, %v9874, 0.0
        %v9912 = vadd.f32 %v9910, %v9911
        %v9913 = vrot.slane %v9912, 4
        %v9914 = vadd.f32 %v9912, %v9913
        %v9915 = vrot.slane %v9914, 2
        %v9916 = vadd.f32 %v9914, %v9915
        %v9917 = vrot.slane %v9916, 1
        %v9918 = vadd.f32 %v9916, %v9917
        %v9919 = vsel %vm1168, %v9875, 0.0
        %v9920 = vsel %vm1168, %v9876, 0.0
        %v9921 = vadd.f32 %v9919, %v9920
        %v9922 = vrot.slane %v9921, 4
        %v9923 = vadd.f32 %v9921, %v9922
        %v9924 = vrot.slane %v9923, 2
        %v9925 = vadd.f32 %v9923, %v9924
        %v9926 = vrot.slane %v9925, 1
        %v9927 = vadd.f32 %v9925, %v9926
        %v9928 = vsel %vm1168, %v9877, 0.0
        %v9929 = vsel %vm1168, %v9878, 0.0
        %v9930 = vadd.f32 %v9928, %v9929
        %v9931 = vrot.slane %v9930, 4
        %v9932 = vadd.f32 %v9930, %v9931
        %v9933 = vrot.slane %v9932, 2
        %v9934 = vadd.f32 %v9932, %v9933
        %v9935 = vrot.slane %v9934, 1
        %v9936 = vadd.f32 %v9934, %v9935
        %v9937 = vsel %vm1168, %v9879, 0.0
        %v9938 = vsel %vm1168, %v9880, 0.0
        %v9939 = vadd.f32 %v9937, %v9938
        %v9940 = vrot.slane %v9939, 4
        %v9941 = vadd.f32 %v9939, %v9940
        %v9942 = vrot.slane %v9941, 2
        %v9943 = vadd.f32 %v9941, %v9942
        %v9944 = vrot.slane %v9943, 1
        %v9945 = vadd.f32 %v9943, %v9944
        %v9946 = vsel %vm1168, %v9881, 0.0
        %v9947 = vsel %vm1168, %v9882, 0.0
        %v9948 = vadd.f32 %v9946, %v9947
        %v9949 = vrot.slane %v9948, 4
        %v9950 = vadd.f32 %v9948, %v9949
        %v9951 = vrot.slane %v9950, 2
        %v9952 = vadd.f32 %v9950, %v9951
        %v9953 = vrot.slane %v9952, 1
        %v9954 = vadd.f32 %v9952, %v9953
        %v9955 = vmul.f32 %v9891, 0.0625
        %v9956 = vmul.f32 %v9900, 0.0625
        %v9957 = vmul.f32 %v9909, 0.0625
        %v9958 = vmul.f32 %v9918, 0.0625
        %v9959 = vmul.f32 %v9927, 0.0625
        %v9960 = vmul.f32 %v9936, 0.0625
        %v9961 = vmul.f32 %v9945, 0.0625
        %v9962 = vmul.f32 %v9954, 0.0625
        %v9963 = vld [vmem:[%s23] sm:$0x1]
        %v9964 = vmul.f32 %v9963, %v9955
        %v9965 = vmul.f32 %v9963, %v9956
        %v9966 = vmul.f32 %v9963, %v9957
        %v9967 = vmul.f32 %v9963, %v9958
        %v9968 = vmul.f32 %v9963, %v9959
        %v9969 = vmul.f32 %v9963, %v9960
        %v9970 = vmul.f32 %v9963, %v9961
        %v9971 = vmul.f32 %v9963, %v9962
        %v9980 = vperm.slane %v9964, 0
        %v9981 = vperm.slane %v9965, 0
        %v9982 = vperm.slane %v9966, 0
        %v9983 = vperm.slane %v9967, 0
        %v9984 = vperm.slane %v9968, 0
        %v9985 = vperm.slane %v9969, 0
        %v9986 = vperm.slane %v9970, 0
        %v9987 = vperm.slane %v9971, 0
        %v9996 = vsub.f32 %v9867, %v9980
        %v9997 = vsub.f32 %v9868, %v9980
        %v9998 = vsub.f32 %v9869, %v9981
        %v9999 = vsub.f32 %v9870, %v9981
        %v10000 = vsub.f32 %v9871, %v9982
        %v10001 = vsub.f32 %v9872, %v9982
        %v10002 = vsub.f32 %v9873, %v9983
        %v10003 = vsub.f32 %v9874, %v9983
        %v10004 = vsub.f32 %v9875, %v9984
        %v10005 = vsub.f32 %v9876, %v9984
        %v10006 = vsub.f32 %v9877, %v9985
        %v10007 = vsub.f32 %v9878, %v9985
        %v10008 = vsub.f32 %v9879, %v9986
        %v10009 = vsub.f32 %v9880, %v9986
        %v10010 = vsub.f32 %v9881, %v9987
        %v10011 = vsub.f32 %v9882, %v9987
        %v10012 = vmul.f32 %v9996, %v9996
        %v10013 = vmul.f32 %v9997, %v9997
        %v10014 = vmul.f32 %v9998, %v9998
        %v10015 = vmul.f32 %v9999, %v9999
        %v10016 = vmul.f32 %v10000, %v10000
        %v10017 = vmul.f32 %v10001, %v10001
        %v10018 = vmul.f32 %v10002, %v10002
        %v10019 = vmul.f32 %v10003, %v10003
        %v10020 = vmul.f32 %v10004, %v10004
        %v10021 = vmul.f32 %v10005, %v10005
        %v10022 = vmul.f32 %v10006, %v10006
        %v10023 = vmul.f32 %v10007, %v10007
        %v10024 = vmul.f32 %v10008, %v10008
        %v10025 = vmul.f32 %v10009, %v10009
        %v10026 = vmul.f32 %v10010, %v10010
        %v10027 = vmul.f32 %v10011, %v10011
        %v10028 = vsel %vm1168, %v10012, 0.0
        %v10029 = vsel %vm1168, %v10013, 0.0
        %v10030 = vadd.f32 %v10028, %v10029
        %v10031 = vrot.slane %v10030, 4
        %v10032 = vadd.f32 %v10030, %v10031
        %v10033 = vrot.slane %v10032, 2
        %v10034 = vadd.f32 %v10032, %v10033
        %v10035 = vrot.slane %v10034, 1
        %v10036 = vadd.f32 %v10034, %v10035
        %v10037 = vsel %vm1168, %v10014, 0.0
        %v10038 = vsel %vm1168, %v10015, 0.0
        %v10039 = vadd.f32 %v10037, %v10038
        %v10040 = vrot.slane %v10039, 4
        %v10041 = vadd.f32 %v10039, %v10040
        %v10042 = vrot.slane %v10041, 2
        %v10043 = vadd.f32 %v10041, %v10042
        %v10044 = vrot.slane %v10043, 1
        %v10045 = vadd.f32 %v10043, %v10044
        %v10046 = vsel %vm1168, %v10016, 0.0
        %v10047 = vsel %vm1168, %v10017, 0.0
        %v10048 = vadd.f32 %v10046, %v10047
        %v10049 = vrot.slane %v10048, 4
        %v10050 = vadd.f32 %v10048, %v10049
        %v10051 = vrot.slane %v10050, 2
        %v10052 = vadd.f32 %v10050, %v10051
        %v10053 = vrot.slane %v10052, 1
        %v10054 = vadd.f32 %v10052, %v10053
        %v10055 = vsel %vm1168, %v10018, 0.0
        %v10056 = vsel %vm1168, %v10019, 0.0
        %v10057 = vadd.f32 %v10055, %v10056
        %v10058 = vrot.slane %v10057, 4
        %v10059 = vadd.f32 %v10057, %v10058
        %v10060 = vrot.slane %v10059, 2
        %v10061 = vadd.f32 %v10059, %v10060
        %v10062 = vrot.slane %v10061, 1
        %v10063 = vadd.f32 %v10061, %v10062
        %v10064 = vsel %vm1168, %v10020, 0.0
        %v10065 = vsel %vm1168, %v10021, 0.0
        %v10066 = vadd.f32 %v10064, %v10065
        %v10067 = vrot.slane %v10066, 4
        %v10068 = vadd.f32 %v10066, %v10067
        %v10069 = vrot.slane %v10068, 2
        %v10070 = vadd.f32 %v10068, %v10069
        %v10071 = vrot.slane %v10070, 1
        %v10072 = vadd.f32 %v10070, %v10071
        %v10073 = vsel %vm1168, %v10022, 0.0
        %v10074 = vsel %vm1168, %v10023, 0.0
        %v10075 = vadd.f32 %v10073, %v10074
        %v10076 = vrot.slane %v10075, 4
        %v10077 = vadd.f32 %v10075, %v10076
        %v10078 = vrot.slane %v10077, 2
        %v10079 = vadd.f32 %v10077, %v10078
        %v10080 = vrot.slane %v10079, 1
        %v10081 = vadd.f32 %v10079, %v10080
        %v10082 = vsel %vm1168, %v10024, 0.0
        %v10083 = vsel %vm1168, %v10025, 0.0
        %v10084 = vadd.f32 %v10082, %v10083
        %v10085 = vrot.slane %v10084, 4
        %v10086 = vadd.f32 %v10084, %v10085
        %v10087 = vrot.slane %v10086, 2
        %v10088 = vadd.f32 %v10086, %v10087
        %v10089 = vrot.slane %v10088, 1
        %v10090 = vadd.f32 %v10088, %v10089
        %v10091 = vsel %vm1168, %v10026, 0.0
        %v10092 = vsel %vm1168, %v10027, 0.0
        %v10093 = vadd.f32 %v10091, %v10092
        %v10094 = vrot.slane %v10093, 4
        %v10095 = vadd.f32 %v10093, %v10094
        %v10096 = vrot.slane %v10095, 2
        %v10097 = vadd.f32 %v10095, %v10096
        %v10098 = vrot.slane %v10097, 1
        %v10099 = vadd.f32 %v10097, %v10098
        %v10100 = vmul.f32 %v10036, 0.0625
        %v10101 = vmul.f32 %v10045, 0.0625
        %v10102 = vmul.f32 %v10054, 0.0625
        %v10103 = vmul.f32 %v10063, 0.0625
        %v10104 = vmul.f32 %v10072, 0.0625
        %v10105 = vmul.f32 %v10081, 0.0625
        %v10106 = vmul.f32 %v10090, 0.0625
        %v10107 = vmul.f32 %v10099, 0.0625
        %v10108 = vld [vmem:[%s21] sm:$0x1]
        %v10110 = vperm.slane %v10108, 0
        %v10112 = vmul.f32 %v10110, %v9996
        %v10113 = vmul.f32 %v10110, %v9997
        %v10114 = vmul.f32 %v10110, %v9998
        %v10115 = vmul.f32 %v10110, %v9999
        %v10116 = vmul.f32 %v10110, %v10000
        %v10117 = vmul.f32 %v10110, %v10001
        %v10118 = vmul.f32 %v10110, %v10002
        %v10119 = vmul.f32 %v10110, %v10003
        %v10120 = vmul.f32 %v10110, %v10004
        %v10121 = vmul.f32 %v10110, %v10005
        %v10122 = vmul.f32 %v10110, %v10006
        %v10123 = vmul.f32 %v10110, %v10007
        %v10124 = vmul.f32 %v10110, %v10008
        %v10125 = vmul.f32 %v10110, %v10009
        %v10126 = vmul.f32 %v10110, %v10010
        %v10127 = vmul.f32 %v10110, %v10011
        %v10128 = vadd.f32 %v10100, 1e-05
        %v10129 = vadd.f32 %v10101, 1e-05
        %v10130 = vadd.f32 %v10102, 1e-05
        %v10131 = vadd.f32 %v10103, 1e-05
        %v10132 = vadd.f32 %v10104, 1e-05
        %v10133 = vadd.f32 %v10105, 1e-05
        %v10134 = vadd.f32 %v10106, 1e-05
        %v10135 = vadd.f32 %v10107, 1e-05
        %v10136 = vrsqrt.pop %v10128
        %v10137 = vmul.f32 %v10136, %v10128
        %v10138 = vmul.f32 %v10137, %v10136
        %v10139 = vmul.f32 0.5, %v10138
        %v10140 = vsub.f32 1.5, %v10139
        %v10141 = vmul.f32 %v10136, %v10140
        %vm10142 = vweird.f32 %v10128
        %vm10143 = vweird.f32 %v10136
        %vm10144 = vmor %vm10142, %vm10143
        %v10145 = vsel %vm10144, %v10136, %v10141
        %v10146 = vrsqrt.pop %v10129
        %v10147 = vmul.f32 %v10146, %v10129
        %v10148 = vmul.f32 %v10147, %v10146
        %v10149 = vmul.f32 0.5, %v10148
        %v10150 = vsub.f32 1.5, %v10149
        %v10151 = vmul.f32 %v10146, %v10150
        %vm10152 = vweird.f32 %v10129
        %vm10153 = vweird.f32 %v10146
        %vm10154 = vmor %vm10152, %vm10153
        %v10155 = vsel %vm10154, %v10146, %v10151
        %v10156 = vrsqrt.pop %v10130
        %v10157 = vmul.f32 %v10156, %v10130
        %v10158 = vmul.f32 %v10157, %v10156
        %v10159 = vmul.f32 0.5, %v10158
        %v10160 = vsub.f32 1.5, %v10159
        %v10161 = vmul.f32 %v10156, %v10160
        %vm10162 = vweird.f32 %v10130
        %vm10163 = vweird.f32 %v10156
        %vm10164 = vmor %vm10162, %vm10163
        %v10165 = vsel %vm10164, %v10156, %v10161
        %v10166 = vrsqrt.pop %v10131
        %v10167 = vmul.f32 %v10166, %v10131
        %v10168 = vmul.f32 %v10167, %v10166
        %v10169 = vmul.f32 0.5, %v10168
        %v10170 = vsub.f32 1.5, %v10169
        %v10171 = vmul.f32 %v10166, %v10170
        %vm10172 = vweird.f32 %v10131
        %vm10173 = vweird.f32 %v10166
        %vm10174 = vmor %vm10172, %vm10173
        %v10175 = vsel %vm10174, %v10166, %v10171
        %v10176 = vrsqrt.pop %v10132
        %v10177 = vmul.f32 %v10176, %v10132
        %v10178 = vmul.f32 %v10177, %v10176
        %v10179 = vmul.f32 0.5, %v10178
        %v10180 = vsub.f32 1.5, %v10179
        %v10181 = vmul.f32 %v10176, %v10180
        %vm10182 = vweird.f32 %v10132
        %vm10183 = vweird.f32 %v10176
        %vm10184 = vmor %vm10182, %vm10183
        %v10185 = vsel %vm10184, %v10176, %v10181
        %v10186 = vrsqrt.pop %v10133
        %v10187 = vmul.f32 %v10186, %v10133
        %v10188 = vmul.f32 %v10187, %v10186
        %v10189 = vmul.f32 0.5, %v10188
        %v10190 = vsub.f32 1.5, %v10189
        %v10191 = vmul.f32 %v10186, %v10190
        %vm10192 = vweird.f32 %v10133
        %vm10193 = vweird.f32 %v10186
        %vm10194 = vmor %vm10192, %vm10193
        %v10195 = vsel %vm10194, %v10186, %v10191
        %v10196 = vrsqrt.pop %v10134
        %v10197 = vmul.f32 %v10196, %v10134
        %v10198 = vmul.f32 %v10197, %v10196
        %v10199 = vmul.f32 0.5, %v10198
        %v10200 = vsub.f32 1.5, %v10199
        %v10201 = vmul.f32 %v10196, %v10200
        %vm10202 = vweird.f32 %v10134
        %vm10203 = vweird.f32 %v10196
        %vm10204 = vmor %vm10202, %vm10203
        %v10205 = vsel %vm10204, %v10196, %v10201
        %v10206 = vrsqrt.pop %v10135
        %v10207 = vmul.f32 %v10206, %v10135
        %v10208 = vmul.f32 %v10207, %v10206
        %v10209 = vmul.f32 0.5, %v10208
        %v10210 = vsub.f32 1.5, %v10209
        %v10211 = vmul.f32 %v10206, %v10210
        %vm10212 = vweird.f32 %v10135
        %vm10213 = vweird.f32 %v10206
        %vm10214 = vmor %vm10212, %vm10213
        %v10215 = vsel %vm10214, %v10206, %v10211
        %v10216 = vmul.f32 %v10112, %v10145
        %v10217 = vmul.f32 %v10113, %v10145
        %v10218 = vmul.f32 %v10114, %v10155
        %v10219 = vmul.f32 %v10115, %v10155
        %v10220 = vmul.f32 %v10116, %v10165
        %v10221 = vmul.f32 %v10117, %v10165
        %v10222 = vmul.f32 %v10118, %v10175
        %v10223 = vmul.f32 %v10119, %v10175
        %v10224 = vmul.f32 %v10120, %v10185
        %v10225 = vmul.f32 %v10121, %v10185
        %v10226 = vmul.f32 %v10122, %v10195
        %v10227 = vmul.f32 %v10123, %v10195
        %v10228 = vmul.f32 %v10124, %v10205
        %v10229 = vmul.f32 %v10125, %v10205
        %v10230 = vmul.f32 %v10126, %v10215
        %v10231 = vmul.f32 %v10127, %v10215
        %v10232 = vld [vmem:[%s22] sm:$0x1]
        %v10234 = vperm.slane %v10232, 0
        %v10236 = vadd.f32 %v10216, %v10234
        %v10237 = vadd.f32 %v10217, %v10234
        %v10238 = vadd.f32 %v10218, %v10234
        %v10239 = vadd.f32 %v10219, %v10234
        %v10240 = vadd.f32 %v10220, %v10234
        %v10241 = vadd.f32 %v10221, %v10234
        %v10242 = vadd.f32 %v10222, %v10234
        %v10243 = vadd.f32 %v10223, %v10234
        %v10244 = vadd.f32 %v10224, %v10234
        %v10245 = vadd.f32 %v10225, %v10234
        %v10246 = vadd.f32 %v10226, %v10234
        %v10247 = vadd.f32 %v10227, %v10234
        %v10248 = vadd.f32 %v10228, %v10234
        %v10249 = vadd.f32 %v10229, %v10234
        %v10250 = vadd.f32 %v10230, %v10234
        %v10251 = vadd.f32 %v10231, %v10234
        %v10252 = vadd.f32 %v10236, %v7190
        %v10253 = vadd.f32 %v10237, %v7191
        %v10254 = vadd.f32 %v10238, %v7192
        %v10255 = vadd.f32 %v10239, %v7193
        %v10256 = vadd.f32 %v10240, %v7194
        %v10257 = vadd.f32 %v10241, %v7195
        %v10258 = vadd.f32 %v10242, %v7196
        %v10259 = vadd.f32 %v10243, %v7197
        %v10260 = vadd.f32 %v10244, %v7198
        %v10261 = vadd.f32 %v10245, %v7199
        %v10262 = vadd.f32 %v10246, %v7200
        %v10263 = vadd.f32 %v10247, %v7201
        %v10264 = vadd.f32 %v10248, %v7202
        %v10265 = vadd.f32 %v10249, %v7203
        %v10266 = vadd.f32 %v10250, %v7204
        %v10267 = vadd.f32 %v10251, %v7205
        %v10268 = vmax.f32 %v10252, 0.0
        %v10269 = vmax.f32 %v10253, 0.0
        %v10270 = vmax.f32 %v10254, 0.0
        %v10271 = vmax.f32 %v10255, 0.0
        %v10272 = vmax.f32 %v10256, 0.0
        %v10273 = vmax.f32 %v10257, 0.0
        %v10274 = vmax.f32 %v10258, 0.0
        %v10275 = vmax.f32 %v10259, 0.0
        %v10276 = vmax.f32 %v10260, 0.0
        %v10277 = vmax.f32 %v10261, 0.0
        %v10278 = vmax.f32 %v10262, 0.0
        %v10279 = vmax.f32 %v10263, 0.0
        %v10280 = vmax.f32 %v10264, 0.0
        %v10281 = vmax.f32 %v10265, 0.0
        %v10282 = vmax.f32 %v10266, 0.0
        %v10283 = vmax.f32 %v10267, 0.0
        %v10284 = vsel %vm1168, %v10268, 0.0
        %v10285 = vsel %vm1168, %v10269, 0.0
        %v10286 = vadd.f32 %v10284, %v10285
        %v10287 = vrot.slane %v10286, 4
        %v10288 = vadd.f32 %v10286, %v10287
        %v10289 = vrot.slane %v10288, 2
        %v10290 = vadd.f32 %v10288, %v10289
        %v10291 = vrot.slane %v10290, 1
        %v10292 = vadd.f32 %v10290, %v10291
        %v10293 = vsel %vm1168, %v10270, 0.0
        %v10294 = vsel %vm1168, %v10271, 0.0
        %v10295 = vadd.f32 %v10293, %v10294
        %v10296 = vrot.slane %v10295, 4
        %v10297 = vadd.f32 %v10295, %v10296
        %v10298 = vrot.slane %v10297, 2
        %v10299 = vadd.f32 %v10297, %v10298
        %v10300 = vrot.slane %v10299, 1
        %v10301 = vadd.f32 %v10299, %v10300
        %v10302 = vsel %vm1168, %v10272, 0.0
        %v10303 = vsel %vm1168, %v10273, 0.0
        %v10304 = vadd.f32 %v10302, %v10303
        %v10305 = vrot.slane %v10304, 4
        %v10306 = vadd.f32 %v10304, %v10305
        %v10307 = vrot.slane %v10306, 2
        %v10308 = vadd.f32 %v10306, %v10307
        %v10309 = vrot.slane %v10308, 1
        %v10310 = vadd.f32 %v10308, %v10309
        %v10311 = vsel %vm1168, %v10274, 0.0
        %v10312 = vsel %vm1168, %v10275, 0.0
        %v10313 = vadd.f32 %v10311, %v10312
        %v10314 = vrot.slane %v10313, 4
        %v10315 = vadd.f32 %v10313, %v10314
        %v10316 = vrot.slane %v10315, 2
        %v10317 = vadd.f32 %v10315, %v10316
        %v10318 = vrot.slane %v10317, 1
        %v10319 = vadd.f32 %v10317, %v10318
        %v10320 = vsel %vm1168, %v10276, 0.0
        %v10321 = vsel %vm1168, %v10277, 0.0
        %v10322 = vadd.f32 %v10320, %v10321
        %v10323 = vrot.slane %v10322, 4
        %v10324 = vadd.f32 %v10322, %v10323
        %v10325 = vrot.slane %v10324, 2
        %v10326 = vadd.f32 %v10324, %v10325
        %v10327 = vrot.slane %v10326, 1
        %v10328 = vadd.f32 %v10326, %v10327
        %v10329 = vsel %vm1168, %v10278, 0.0
        %v10330 = vsel %vm1168, %v10279, 0.0
        %v10331 = vadd.f32 %v10329, %v10330
        %v10332 = vrot.slane %v10331, 4
        %v10333 = vadd.f32 %v10331, %v10332
        %v10334 = vrot.slane %v10333, 2
        %v10335 = vadd.f32 %v10333, %v10334
        %v10336 = vrot.slane %v10335, 1
        %v10337 = vadd.f32 %v10335, %v10336
        %v10338 = vsel %vm1168, %v10280, 0.0
        %v10339 = vsel %vm1168, %v10281, 0.0
        %v10340 = vadd.f32 %v10338, %v10339
        %v10341 = vrot.slane %v10340, 4
        %v10342 = vadd.f32 %v10340, %v10341
        %v10343 = vrot.slane %v10342, 2
        %v10344 = vadd.f32 %v10342, %v10343
        %v10345 = vrot.slane %v10344, 1
        %v10346 = vadd.f32 %v10344, %v10345
        %v10347 = vsel %vm1168, %v10282, 0.0
        %v10348 = vsel %vm1168, %v10283, 0.0
        %v10349 = vadd.f32 %v10347, %v10348
        %v10350 = vrot.slane %v10349, 4
        %v10351 = vadd.f32 %v10349, %v10350
        %v10352 = vrot.slane %v10351, 2
        %v10353 = vadd.f32 %v10351, %v10352
        %v10354 = vrot.slane %v10353, 1
        %v10355 = vadd.f32 %v10353, %v10354
        %v10356 = vmul.f32 %v10292, 0.0625
        %v10357 = vmul.f32 %v10301, 0.0625
        %v10358 = vmul.f32 %v10310, 0.0625
        %v10359 = vmul.f32 %v10319, 0.0625
        %v10360 = vmul.f32 %v10328, 0.0625
        %v10361 = vmul.f32 %v10337, 0.0625
        %v10362 = vmul.f32 %v10346, 0.0625
        %v10363 = vmul.f32 %v10355, 0.0625
        %v10364 = vld [vmem:[%s24] sm:$0x1]
        %v10365 = vmul.f32 %v10356, %v10364
        %v10366 = vmul.f32 %v10357, %v10364
        %v10367 = vmul.f32 %v10358, %v10364
        %v10368 = vmul.f32 %v10359, %v10364
        %v10369 = vmul.f32 %v10360, %v10364
        %v10370 = vmul.f32 %v10361, %v10364
        %v10371 = vmul.f32 %v10362, %v10364
        %v10372 = vmul.f32 %v10363, %v10364
        %vm10373 = vcmask 253952
        %v10374 = vsel %vm10373, %v10365, 0.0
        %10375 = vadd.xlane.f32.xlu0 %v10374
        %v10376 = vpop.xlane.xlu0 %10375
        %v10377 = vsel %vm10373, %v10366, 0.0
        %10378 = vadd.xlane.f32.xlu0 %v10377
        %v10379 = vpop.xlane.xlu0 %10378
        %v10380 = vsel %vm10373, %v10367, 0.0
        %10381 = vadd.xlane.f32.xlu0 %v10380
        %v10382 = vpop.xlane.xlu0 %10381
        %v10383 = vsel %vm10373, %v10368, 0.0
        %10384 = vadd.xlane.f32.xlu0 %v10383
        %v10385 = vpop.xlane.xlu0 %10384
        %v10386 = vsel %vm10373, %v10369, 0.0
        %10387 = vadd.xlane.f32.xlu0 %v10386
        %v10388 = vpop.xlane.xlu0 %10387
        %v10389 = vsel %vm10373, %v10370, 0.0
        %10390 = vadd.xlane.f32.xlu0 %v10389
        %v10391 = vpop.xlane.xlu0 %10390
        %v10392 = vsel %vm10373, %v10371, 0.0
        %10393 = vadd.xlane.f32.xlu0 %v10392
        %v10394 = vpop.xlane.xlu0 %10393
        %v10395 = vsel %vm10373, %v10372, 0.0
        %10396 = vadd.xlane.f32.xlu0 %v10395
        %v10397 = vpop.xlane.xlu0 %10396
        %v10398 = vld [vmem:[#allocation2] sm:$0x1]
        %v10399 = vadd.f32 %v10376, %v10398
        %v10400 = vadd.f32 %v10379, %v10398
        %v10401 = vadd.f32 %v10382, %v10398
        %v10402 = vadd.f32 %v10385, %v10398
        %v10403 = vadd.f32 %v10388, %v10398
        %v10404 = vadd.f32 %v10391, %v10398
        %v10405 = vadd.f32 %v10394, %v10398
        %v10406 = vadd.f32 %v10397, %v10398
        %vm10407 = vcmask 0
        %10408 = vst.msk [vmem:[%s1026] sm:$0x1] %vm10407, %v10399
        %10409 = vst.msk [vmem:[%s1026 + $0x1] sm:$0x1] %vm10407, %v10400
        %10410 = vst.msk [vmem:[%s1026 + $0x2] sm:$0x1] %vm10407, %v10401
        %10411 = vst.msk [vmem:[%s1026 + $0x3] sm:$0x1] %vm10407, %v10402
        %10412 = vst.msk [vmem:[%s1026 + $0x4] sm:$0x1] %vm10407, %v10403
        %10413 = vst.msk [vmem:[%s1026 + $0x5] sm:$0x1] %vm10407, %v10404
        %10414 = vst.msk [vmem:[%s1026 + $0x6] sm:$0x1] %vm10407, %v10405
        %10415 = vst.msk [vmem:[%s1026 + $0x7] sm:$0x1] %vm10407, %v10406
        %s10416 = smul.u32 8, %s49
        %p10417 = scmp.lt.s32.totalorder %s10416, 15
        %s10418 = scalar_select %p10417, %s10416, 15
        %s10419 = scalar_lea.vmem %s26, %s10418
        // Predicated region
        $region185: #{tpu_custom_call.1} parent=123 // pred_check
          %p10420 = pneg %p618
        $region186: #{tpu_custom_call.1} parent=123 // pred_check_branch
          %10422 = sbr.rel (%p10420) target = $region188
        $region187: #{tpu_custom_call.1} parent=123 // pred_region
          %s10423 = smul.u32 8, %s49
        $region188: #{tpu_custom_call.1} parent=123 // pred_fallthru
          _
      $region124: #{tpu_custom_call.1} parent=5 // pred_fallthru
        _
      %p10424 = scmp.le.s32.totalorder 2, %s44
      // Predicated region
      $region189: #{tpu_custom_call.1} parent=5 // pred_check
        %p10425 = pneg %p10424
      $region190: #{tpu_custom_call.1} parent=5 // pred_check_branch
        %10427 = sbr.rel (%p10425) target = $region192
      $region191: #{tpu_custom_call.1} parent=5 // pred_region
        %s10428 = ssub.s32 %s44, 2
        // Predicated region
        $region193: #{tpu_custom_call.1} parent=191 // pred_check
          %p10429 = pneg %p624
        $region194: #{tpu_custom_call.1} parent=191 // pred_check_branch
          %10431 = sbr.rel (%p10429) target = $region196
        $region195: #{tpu_custom_call.1} parent=191 // pred_region
          %s10432 = smul.u32 8, %s50
          %p10433 = scmp.lt.s32.totalorder %s10432, 15
          %s10434 = scalar_select %p10433, %s10432, 15
          %s10435 = scalar_lea.vmem %s26, %s10434
        $region196: #{tpu_custom_call.1} parent=191 // pred_fallthru
          _
      $region192: #{tpu_custom_call.1} parent=5 // pred_fallthru
        _
    $region6: #{tpu_custom_call.1} parent=1 // loop_footer
      %s48 = sadd.s32 1, %s44
    $region7: #{tpu_custom_call.1} parent=1 // loop_footer_branch
      %43 = sbr.rel target = $region3
    $region8: #{tpu_custom_call.1} parent=1 // loop_exit
      _
    %10436 = vsyncpa [#allocation4], 1
    %s10437 = scalar_lea.sflag [#allocation4], 1
    %10438 = vsyncpa %s10437, 1
    %10439 = vsyncpa [#allocation6], 1
    %10440 = vsyncpa [#allocation9], 1
    %10441 = vsyncpa [#allocation12], 1
    %10442 = vsyncpa [#allocation15], 1
    %10443 = vsyncpa [#allocation18], 1
    %10444 = vsyncpa [#allocation21], 1
    %10445 = vsyncpa [#allocation24], 1

</llo_original>
